<compile_context>
chip_gen: v5e
topology: v5e:2x2
jax: 0.10.0
libtpu: 0.0.40
codegen_flags: <defaults>
</compile_context>

<pallas_src>
import numpy as np
import jax
import jax.numpy as jnp
from jax.experimental import pallas as pl
from jax.experimental.pallas import tpu as pltpu

BN_EPS = 1e-5
NEG_INF = -1e30

# Input spatial size chosen so the conv stack flattens to exactly 16 features
# (as required by nn.Linear(16, 8)):  H=51, W=11  ->  final maps are (4, 2, 2).
N_BATCH, C_IN, H_IN, W_IN = 2, 1, 51, 11
OUTPUT_SIZE = 3
OUT_PAD = 128          # lane-dense padded output width (sliced to OUTPUT_SIZE outside)

# (Cout, Cin, kh, kw, sh, sw) for the four convs
CONV_CFG = [
    (4, 1, 3, 1, 2, 1),
    (4, 4, 3, 2, 2, 1),
    (4, 4, 4, 2, 2, 2),
    (4, 4, 3, 3, 2, 2),
]


def _conv_geometry():
    geoms = []
    h, w = H_IN, W_IN
    for (co, ci, kh, kw, sh, sw) in CONV_CFG:
        ho = (h - kh) // sh + 1
        wo = (w - kw) // sw + 1
        geoms.append((kh, sh, ho))
        h, w = ho, wo
    return geoms, h, w


GEOM, H_LAST, W_LAST = _conv_geometry()
C_LAST = CONV_CFG[-1][0]
assert C_LAST * H_LAST * W_LAST == 16, "flatten size must be 16"
assert H_LAST == 2
assert all(sh in (1, 2) for (_, sh, _) in GEOM)


def _row_stride(ciwi):
    # weight-matrix row blocks padded to a sublane-aligned stride
    return ((ciwi + 7) // 8) * 8


# ----------------------------- Pallas kernel ---------------------------------
def _conv_block(a3, wm_ref, b_ref, kh, sh, ho):
    """One Conv2d + bias + ReLU.  a3: (Hi, tm, Ci*Wi) -> (Ho, tm, Co*Wo)."""
    hi, tm, ciwi = a3.shape
    rs = _row_stride(ciwi)
    cowo = wm_ref.shape[1]
    acc = None
    for di in range(kh):
        if sh == 1:
            part = a3[di:di + ho]                                          # (ho, tm, ciwi)
        else:
            end = di + sh * ho
            if end <= hi:
                # rows di, di+1, ..., di+2*ho-1 ; keep the first of each pair
                part = a3[di:end].reshape(ho, sh * tm, ciwi)[:, 0:tm, :]
            else:
                # window shifted up by one row; keep the second of each pair
                assert end - hi == 1 and di >= 1 and sh == 2
                part = a3[di - 1:end - 1].reshape(ho, sh * tm, ciwi)[:, tm:sh * tm, :]
        lhs = part.reshape(ho * tm, ciwi)                                  # free merge
        w_di = wm_ref[di * rs:di * rs + ciwi, :]                           # (ciwi, cowo)
        c = jnp.dot(lhs, w_di, preferred_element_type=jnp.float32)
        acc = c if acc is None else acc + c
    out = jnp.maximum(acc + b_ref[...], 0.0)                               # bias + ReLU
    return out.reshape(ho, tm, cowo)


def apdf2lat_kernel(x_ref, w1, b1, w2, b2, w3, b3, w4, b4,
                    wf1a, wf1b, bf1, wf2, bf2, out_ref):
    # Input slab: (H_IN, tm, W_IN) == (Hi, tm, Ci*Wi) with Ci=1.
    a = x_ref[...]
    for (kh, sh, ho), (wm_ref, b_ref) in zip(
            GEOM, ((w1, b1), (w2, b2), (w3, b3), (w4, b4))):
        a = _conv_block(a, wm_ref, b_ref, kh, sh, ho)        # BN folded into weights
    # a: (2, tm, 8) — conv4 output rows i=0,1, lanes in (c, w) order.
    tm = a.shape[1]
    f0 = a[0:1].reshape(tm, C_LAST * W_LAST)
    f1 = a[1:2].reshape(tm, C_LAST * W_LAST)
    # Flatten + Dropout(identity) + Linear(16, 8): fc1 rows were permuted & split per
    # conv output row at setup time, so no in-kernel transpose/concat is needed.
    h = (jnp.dot(f0, wf1a[...], preferred_element_type=jnp.float32)
         + jnp.dot(f1, wf1b[...], preferred_element_type=jnp.float32) + bf1[...])
    h = jnp.maximum(h, 0.0)
    # Dropout(identity) + Linear(8, 3) padded to 128 lanes (pad logits = -1e30).
    logits = jnp.dot(h, wf2[...], preferred_element_type=jnp.float32) + bf2[...]
    logits = logits - jnp.max(logits, axis=1, keepdims=True)
    e = jnp.exp(logits)
    out_ref[...] = e * pl.reciprocal(jnp.sum(e, axis=1, keepdims=True), approx=True)


def apdf2lat_forward(x, kernel_args, block_batch=128):
    assert block_batch % 8 == 0
    n = x.shape[0]
    # (N, 1, H, W) -> (H, N, W): H-major, batch-in-sublanes layout used by the kernel.
    x3 = jnp.transpose(x.astype(jnp.float32).reshape(n, H_IN, W_IN), (1, 0, 2))
    n_pad = ((n + block_batch - 1) // block_batch) * block_batch
    if n_pad != n:
        x3 = jnp.pad(x3, ((0, 0), (0, n_pad - n), (0, 0)))
    grid = (n_pad // block_batch,)
    in_specs = [pl.BlockSpec((H_IN, block_batch, W_IN), lambda b: (0, b, 0))]
    # Weights/biases: full blocks + constant index_maps -> DMA'd once, stay resident.
    in_specs += [pl.BlockSpec(a.shape, lambda b: (0, 0)) for a in kernel_args]
    out = pl.pallas_call(
        apdf2lat_kernel,
        out_shape=jax.ShapeDtypeStruct((n_pad, OUT_PAD), jnp.float32),
        grid=grid,
        in_specs=in_specs,
        out_specs=pl.BlockSpec((block_batch, OUT_PAD), lambda b: (b, 0)),
        compiler_params=pltpu.CompilerParams(dimension_semantics=("parallel",)),
    )(x3, *kernel_args)
    return out[:n, :OUTPUT_SIZE]


# ------------------------- parameter / matrix setup ---------------------------
def build_conv_wm(w, b, cin, hi, wi, sh, sw, scale):
    """Banded per-kernel-row matrices: conv == sum_di (row-slab @ wm[di block])."""
    cout, _, kh, kw = w.shape
    ho = (hi - kh) // sh + 1
    wo = (wi - kw) // sw + 1
    ciwi = cin * wi
    rs = _row_stride(ciwi)
    wm = np.zeros((kh * rs, cout * wo), dtype=np.float32)
    for di in range(kh):
        for ci in range(cin):
            for p in range(wi):
                row = di * rs + ci * wi + p
                for co in range(cout):
                    for j in range(wo):
                        dj = p - sw * j
                        if 0 <= dj < kw:
                            wm[row, co * wo + j] = w[co, ci, di, dj] * scale
    brow = np.zeros((1, cout * wo), dtype=np.float32)
    for co in range(cout):
        brow[0, co * wo:(co + 1) * wo] = b[co]
    return wm, brow, ho, wo


def uniform(key, shape, bound):
    return jax.random.uniform(key, shape, jnp.float32, -bound, bound)


def init_params(key):
    """Deterministic PyTorch-style init (kaiming-uniform-ish bounds)."""
    keys = jax.random.split(key, 12)
    raw_convs = []
    for idx, (co, ci, kh, kw, _, _) in enumerate(CONV_CFG):
        bound = 1.0 / np.sqrt(ci * kh * kw)
        w = np.asarray(uniform(keys[2 * idx], (co, ci, kh, kw), bound))
        b = np.asarray(uniform(keys[2 * idx + 1], (co,), bound))
        raw_convs.append((w, b))
    wf1 = np.asarray(uniform(keys[8], (16, 8), 1.0 / np.sqrt(16)))
    bf1 = np.asarray(uniform(keys[9], (8,), 1.0 / np.sqrt(16)))
    wf2 = np.asarray(uniform(keys[10], (8, OUTPUT_SIZE), 1.0 / np.sqrt(8)))
    bf2 = np.asarray(uniform(keys[11], (OUTPUT_SIZE,), 1.0 / np.sqrt(8)))

    bn = np.float32(1.0 / np.sqrt(1.0 + BN_EPS))  # eval-mode BN folded into conv weights
    kernel_args = []
    h, w = H_IN, W_IN
    for (wc, bc), (co, ci, kh, kw, sh, sw) in zip(raw_convs, CONV_CFG):
        wm, brow, h, w = build_conv_wm(wc, bc, ci, h, w, sh, sw, bn)
        kernel_args += [jnp.asarray(wm), jnp.asarray(brow)]
    assert h == H_LAST and w == W_LAST

    # fc1: permute/split rows so the kernel consumes (c, w)-ordered per-row features
    # (no in-kernel transpose).  fc2: pad to 128 lanes with -inf bias on pad lanes.
    wf1a = np.zeros((C_LAST * W_LAST, 8), dtype=np.float32)
    wf1b = np.zeros((C_LAST * W_LAST, 8), dtype=np.float32)
    for c in range(C_LAST):
        for j in range(W_LAST):
            wf1a[c * W_LAST + j, :] = wf1[c * H_LAST * W_LAST + 0 * W_LAST + j, :]
            wf1b[c * W_LAST + j, :] = wf1[c * H_LAST * W_LAST + 1 * W_LAST + j, :]
    wf2p = np.zeros((8, OUT_PAD), dtype=np.float32)
    wf2p[:, :OUTPUT_SIZE] = wf2
    bf2p = np.full((1, OUT_PAD), NEG_INF, dtype=np.float32)
    bf2p[0, :OUTPUT_SIZE] = bf2
    kernel_args += [jnp.asarray(wf1a), jnp.asarray(wf1b), jnp.asarray(bf1[None, :]),
                    jnp.asarray(wf2p), jnp.asarray(bf2p)]
    return raw_convs, (wf1, bf1, wf2, bf2), kernel_args


# --------------------------- pure-JAX reference --------------------------------
def reference_forward(x, raw_convs, fc):
    bn = 1.0 / np.sqrt(1.0 + BN_EPS)
    h = x.astype(jnp.float32)
    for (w, b), (_, _, _, _, sh, sw) in zip(raw_convs, CONV_CFG):
        h = h * bn
        h = jax.lax.conv_general_dilated(
            h, jnp.asarray(w), (sh, sw), 'VALID',
            dimension_numbers=('NCHW', 'OIHW', 'NCHW')) + jnp.asarray(b)[None, :, None, None]
        h = jnp.maximum(h, 0.0)
    h = h.reshape(h.shape[0], -1)
    wf1, bf1, wf2, bf2 = fc
    h = jnp.maximum(h @ jnp.asarray(wf1) + jnp.asarray(bf1), 0.0)
    logits = h @ jnp.asarray(wf2) + jnp.asarray(bf2)
    return jax.nn.softmax(logits, axis=1)


# ------------------------------------ main -------------------------------------
if __name__ == "__main__":
    key = jax.random.PRNGKey(0)
    k_x, k_p = jax.random.split(key)
    x = jax.random.normal(k_x, (N_BATCH, C_IN, H_IN, W_IN), dtype=jnp.float32)

    raw_convs, fc, kernel_args = init_params(k_p)

    out = jax.block_until_ready(apdf2lat_forward(x, kernel_args))
    ref = jax.block_until_ready(reference_forward(x, raw_convs, fc))

    # tolerances slightly relaxed because of the approx reciprocal in the softmax
    np.testing.assert_allclose(np.asarray(out), np.asarray(ref), rtol=1e-2, atol=1e-5)
    np.testing.assert_allclose(np.asarray(out).sum(axis=1), np.ones(N_BATCH),
                               rtol=0, atol=5e-3)
    print("KERNEL_OK")
</pallas_src>

<mosaic_0001>
module attributes {stable_mosaic.version = 11 : i64} {
  func.func @apdf2lat_kernel(%arg0: i32, %arg1: memref<51x128x11xf32, #tpu.memory_space<vmem>>, %arg2: memref<48x44xf32, #tpu.memory_space<vmem>>, %arg3: memref<1x44xf32, #tpu.memory_space<vmem>>, %arg4: memref<144x40xf32, #tpu.memory_space<vmem>>, %arg5: memref<1x40xf32, #tpu.memory_space<vmem>>, %arg6: memref<160x20xf32, #tpu.memory_space<vmem>>, %arg7: memref<1x20xf32, #tpu.memory_space<vmem>>, %arg8: memref<72x8xf32, #tpu.memory_space<vmem>>, %arg9: memref<1x8xf32, #tpu.memory_space<vmem>>, %arg10: memref<8x8xf32, #tpu.memory_space<vmem>>, %arg11: memref<8x8xf32, #tpu.memory_space<vmem>>, %arg12: memref<1x8xf32, #tpu.memory_space<vmem>>, %arg13: memref<8x128xf32, #tpu.memory_space<vmem>>, %arg14: memref<1x128xf32, #tpu.memory_space<vmem>>, %arg15: memref<128x128xf32, #tpu.memory_space<vmem>>) attributes {dimension_semantics = [#tpu.dimension_semantics<parallel>], iteration_bounds = array<i64: 1>, scalar_prefetch = 0 : i64, scratch_operands = 0 : i64, tpu.core_type = #tpu.core_type<tc>, window_params = [{transform_indices = @transform_0, window_bounds = array<i64: 51, 128, 11>}, {pipeline_mode = #tpu.pipeline_mode<synchronous>, transform_indices = @transform_1, window_bounds = array<i64: 48, 44>}, {pipeline_mode = #tpu.pipeline_mode<synchronous>, transform_indices = @transform_2, window_bounds = array<i64: 1, 44>}, {pipeline_mode = #tpu.pipeline_mode<synchronous>, transform_indices = @transform_3, window_bounds = array<i64: 144, 40>}, {pipeline_mode = #tpu.pipeline_mode<synchronous>, transform_indices = @transform_4, window_bounds = array<i64: 1, 40>}, {pipeline_mode = #tpu.pipeline_mode<synchronous>, transform_indices = @transform_5, window_bounds = array<i64: 160, 20>}, {pipeline_mode = #tpu.pipeline_mode<synchronous>, transform_indices = @transform_6, window_bounds = array<i64: 1, 20>}, {pipeline_mode = #tpu.pipeline_mode<synchronous>, transform_indices = @transform_7, window_bounds = array<i64: 72, 8>}, {pipeline_mode = #tpu.pipeline_mode<synchronous>, transform_indices = @transform_8, window_bounds = array<i64: 1, 8>}, {pipeline_mode = #tpu.pipeline_mode<synchronous>, transform_indices = @transform_9, window_bounds = array<i64: 8, 8>}, {pipeline_mode = #tpu.pipeline_mode<synchronous>, transform_indices = @transform_10, window_bounds = array<i64: 8, 8>}, {pipeline_mode = #tpu.pipeline_mode<synchronous>, transform_indices = @transform_11, window_bounds = array<i64: 1, 8>}, {pipeline_mode = #tpu.pipeline_mode<synchronous>, transform_indices = @transform_12, window_bounds = array<i64: 8, 128>}, {pipeline_mode = #tpu.pipeline_mode<synchronous>, transform_indices = @transform_13, window_bounds = array<i64: 1, 128>}, {transform_indices = @transform_14, window_bounds = array<i64: 128, 128>}]} {
    %c0 = arith.constant 0 : index
    %c0_0 = arith.constant 0 : index
    %c0_1 = arith.constant 0 : index
    %0 = vector.load %arg1[%c0, %c0_0, %c0_1] : memref<51x128x11xf32, #tpu.memory_space<vmem>>, vector<51x128x11xf32>
    %1 = vector.extract_strided_slice %0 {offsets = [0, 0, 0], sizes = [50, 128, 11], strides = [1, 1, 1]} : vector<51x128x11xf32> to vector<50x128x11xf32>
    %2 = vector.shape_cast %1 : vector<50x128x11xf32> to vector<25x256x11xf32>
    %3 = vector.extract_strided_slice %2 {offsets = [0, 0, 0], sizes = [25, 128, 11], strides = [1, 1, 1]} : vector<25x256x11xf32> to vector<25x128x11xf32>
    %4 = vector.shape_cast %3 : vector<25x128x11xf32> to vector<3200x11xf32>
    %c0_2 = arith.constant 0 : index
    %c0_3 = arith.constant 0 : index
    %5 = vector.load %arg2[%c0_2, %c0_3] : memref<48x44xf32, #tpu.memory_space<vmem>>, vector<11x44xf32>
    %cst = arith.constant dense<0.000000e+00> : vector<3200x44xf32>
    %6 = tpu.matmul %4, %5, %cst {dimension_numbers = #tpu.dot_dimension_numbers<[1], [0], [0], [1], [0, 0, 1, 1], [], []>} : vector<3200x11xf32>, vector<11x44xf32>, vector<3200x44xf32> -> vector<3200x44xf32>
    %7 = vector.extract_strided_slice %0 {offsets = [1, 0, 0], sizes = [50, 128, 11], strides = [1, 1, 1]} : vector<51x128x11xf32> to vector<50x128x11xf32>
    %8 = vector.shape_cast %7 : vector<50x128x11xf32> to vector<25x256x11xf32>
    %9 = vector.extract_strided_slice %8 {offsets = [0, 0, 0], sizes = [25, 128, 11], strides = [1, 1, 1]} : vector<25x256x11xf32> to vector<25x128x11xf32>
    %10 = vector.shape_cast %9 : vector<25x128x11xf32> to vector<3200x11xf32>
    %c16 = arith.constant 16 : index
    %c0_4 = arith.constant 0 : index
    %11 = vector.load %arg2[%c16, %c0_4] : memref<48x44xf32, #tpu.memory_space<vmem>>, vector<11x44xf32>
    %cst_5 = arith.constant dense<0.000000e+00> : vector<3200x44xf32>
    %12 = tpu.matmul %10, %11, %cst_5 {dimension_numbers = #tpu.dot_dimension_numbers<[1], [0], [0], [1], [0, 0, 1, 1], [], []>} : vector<3200x11xf32>, vector<11x44xf32>, vector<3200x44xf32> -> vector<3200x44xf32>
    %13 = arith.addf %6, %12 : vector<3200x44xf32>
    %14 = vector.extract_strided_slice %0 {offsets = [1, 0, 0], sizes = [50, 128, 11], strides = [1, 1, 1]} : vector<51x128x11xf32> to vector<50x128x11xf32>
    %15 = vector.shape_cast %14 : vector<50x128x11xf32> to vector<25x256x11xf32>
    %16 = vector.extract_strided_slice %15 {offsets = [0, 128, 0], sizes = [25, 128, 11], strides = [1, 1, 1]} : vector<25x256x11xf32> to vector<25x128x11xf32>
    %17 = vector.shape_cast %16 : vector<25x128x11xf32> to vector<3200x11xf32>
    %c32 = arith.constant 32 : index
    %c0_6 = arith.constant 0 : index
    %18 = vector.load %arg2[%c32, %c0_6] : memref<48x44xf32, #tpu.memory_space<vmem>>, vector<11x44xf32>
    %cst_7 = arith.constant dense<0.000000e+00> : vector<3200x44xf32>
    %19 = tpu.matmul %17, %18, %cst_7 {dimension_numbers = #tpu.dot_dimension_numbers<[1], [0], [0], [1], [0, 0, 1, 1], [], []>} : vector<3200x11xf32>, vector<11x44xf32>, vector<3200x44xf32> -> vector<3200x44xf32>
    %20 = arith.addf %13, %19 : vector<3200x44xf32>
    %c0_8 = arith.constant 0 : index
    %c0_9 = arith.constant 0 : index
    %21 = vector.load %arg3[%c0_8, %c0_9] : memref<1x44xf32, #tpu.memory_space<vmem>>, vector<1x44xf32>
    %22 = vector.broadcast %21 : vector<1x44xf32> to vector<3200x44xf32>
    %23 = arith.addf %20, %22 : vector<3200x44xf32>
    %cst_10 = arith.constant 0.000000e+00 : f32
    %24 = vector.broadcast %cst_10 : f32 to vector<3200x44xf32>
    %25 = arith.maximumf %23, %24 : vector<3200x44xf32>
    %26 = vector.shape_cast %25 : vector<3200x44xf32> to vector<25x128x44xf32>
    %27 = vector.extract_strided_slice %26 {offsets = [0, 0, 0], sizes = [24, 128, 44], strides = [1, 1, 1]} : vector<25x128x44xf32> to vector<24x128x44xf32>
    %28 = vector.shape_cast %27 : vector<24x128x44xf32> to vector<12x256x44xf32>
    %29 = vector.extract_strided_slice %28 {offsets = [0, 0, 0], sizes = [12, 128, 44], strides = [1, 1, 1]} : vector<12x256x44xf32> to vector<12x128x44xf32>
    %30 = vector.shape_cast %29 : vector<12x128x44xf32> to vector<1536x44xf32>
    %c0_11 = arith.constant 0 : index
    %c0_12 = arith.constant 0 : index
    %31 = vector.load %arg4[%c0_11, %c0_12] : memref<144x40xf32, #tpu.memory_space<vmem>>, vector<44x40xf32>
    %cst_13 = arith.constant dense<0.000000e+00> : vector<1536x40xf32>
    %32 = tpu.matmul %30, %31, %cst_13 {dimension_numbers = #tpu.dot_dimension_numbers<[1], [0], [0], [1], [0, 0, 1, 1], [], []>} : vector<1536x44xf32>, vector<44x40xf32>, vector<1536x40xf32> -> vector<1536x40xf32>
    %33 = vector.extract_strided_slice %26 {offsets = [1, 0, 0], sizes = [24, 128, 44], strides = [1, 1, 1]} : vector<25x128x44xf32> to vector<24x128x44xf32>
    %34 = vector.shape_cast %33 : vector<24x128x44xf32> to vector<12x256x44xf32>
    %35 = vector.extract_strided_slice %34 {offsets = [0, 0, 0], sizes = [12, 128, 44], strides = [1, 1, 1]} : vector<12x256x44xf32> to vector<12x128x44xf32>
    %36 = vector.shape_cast %35 : vector<12x128x44xf32> to vector<1536x44xf32>
    %c48 = arith.constant 48 : index
    %c0_14 = arith.constant 0 : index
    %37 = vector.load %arg4[%c48, %c0_14] : memref<144x40xf32, #tpu.memory_space<vmem>>, vector<44x40xf32>
    %cst_15 = arith.constant dense<0.000000e+00> : vector<1536x40xf32>
    %38 = tpu.matmul %36, %37, %cst_15 {dimension_numbers = #tpu.dot_dimension_numbers<[1], [0], [0], [1], [0, 0, 1, 1], [], []>} : vector<1536x44xf32>, vector<44x40xf32>, vector<1536x40xf32> -> vector<1536x40xf32>
    %39 = arith.addf %32, %38 : vector<1536x40xf32>
    %40 = vector.extract_strided_slice %26 {offsets = [1, 0, 0], sizes = [24, 128, 44], strides = [1, 1, 1]} : vector<25x128x44xf32> to vector<24x128x44xf32>
    %41 = vector.shape_cast %40 : vector<24x128x44xf32> to vector<12x256x44xf32>
    %42 = vector.extract_strided_slice %41 {offsets = [0, 128, 0], sizes = [12, 128, 44], strides = [1, 1, 1]} : vector<12x256x44xf32> to vector<12x128x44xf32>
    %43 = vector.shape_cast %42 : vector<12x128x44xf32> to vector<1536x44xf32>
    %c96 = arith.constant 96 : index
    %c0_16 = arith.constant 0 : index
    %44 = vector.load %arg4[%c96, %c0_16] : memref<144x40xf32, #tpu.memory_space<vmem>>, vector<44x40xf32>
    %cst_17 = arith.constant dense<0.000000e+00> : vector<1536x40xf32>
    %45 = tpu.matmul %43, %44, %cst_17 {dimension_numbers = #tpu.dot_dimension_numbers<[1], [0], [0], [1], [0, 0, 1, 1], [], []>} : vector<1536x44xf32>, vector<44x40xf32>, vector<1536x40xf32> -> vector<1536x40xf32>
    %46 = arith.addf %39, %45 : vector<1536x40xf32>
    %c0_18 = arith.constant 0 : index
    %c0_19 = arith.constant 0 : index
    %47 = vector.load %arg5[%c0_18, %c0_19] : memref<1x40xf32, #tpu.memory_space<vmem>>, vector<1x40xf32>
    %48 = vector.broadcast %47 : vector<1x40xf32> to vector<1536x40xf32>
    %49 = arith.addf %46, %48 : vector<1536x40xf32>
    %cst_20 = arith.constant 0.000000e+00 : f32
    %50 = vector.broadcast %cst_20 : f32 to vector<1536x40xf32>
    %51 = arith.maximumf %49, %50 : vector<1536x40xf32>
    %52 = vector.shape_cast %51 : vector<1536x40xf32> to vector<12x128x40xf32>
    %53 = vector.extract_strided_slice %52 {offsets = [0, 0, 0], sizes = [10, 128, 40], strides = [1, 1, 1]} : vector<12x128x40xf32> to vector<10x128x40xf32>
    %54 = vector.shape_cast %53 : vector<10x128x40xf32> to vector<5x256x40xf32>
    %55 = vector.extract_strided_slice %54 {offsets = [0, 0, 0], sizes = [5, 128, 40], strides = [1, 1, 1]} : vector<5x256x40xf32> to vector<5x128x40xf32>
    %56 = vector.shape_cast %55 : vector<5x128x40xf32> to vector<640x40xf32>
    %c0_21 = arith.constant 0 : index
    %c0_22 = arith.constant 0 : index
    %57 = vector.load %arg6[%c0_21, %c0_22] : memref<160x20xf32, #tpu.memory_space<vmem>>, vector<40x20xf32>
    %cst_23 = arith.constant dense<0.000000e+00> : vector<640x20xf32>
    %58 = tpu.matmul %56, %57, %cst_23 {dimension_numbers = #tpu.dot_dimension_numbers<[1], [0], [0], [1], [0, 0, 1, 1], [], []>} : vector<640x40xf32>, vector<40x20xf32>, vector<640x20xf32> -> vector<640x20xf32>
    %59 = vector.extract_strided_slice %52 {offsets = [1, 0, 0], sizes = [10, 128, 40], strides = [1, 1, 1]} : vector<12x128x40xf32> to vector<10x128x40xf32>
    %60 = vector.shape_cast %59 : vector<10x128x40xf32> to vector<5x256x40xf32>
    %61 = vector.extract_strided_slice %60 {offsets = [0, 0, 0], sizes = [5, 128, 40], strides = [1, 1, 1]} : vector<5x256x40xf32> to vector<5x128x40xf32>
    %62 = vector.shape_cast %61 : vector<5x128x40xf32> to vector<640x40xf32>
    %c40 = arith.constant 40 : index
    %c0_24 = arith.constant 0 : index
    %63 = vector.load %arg6[%c40, %c0_24] : memref<160x20xf32, #tpu.memory_space<vmem>>, vector<40x20xf32>
    %cst_25 = arith.constant dense<0.000000e+00> : vector<640x20xf32>
    %64 = tpu.matmul %62, %63, %cst_25 {dimension_numbers = #tpu.dot_dimension_numbers<[1], [0], [0], [1], [0, 0, 1, 1], [], []>} : vector<640x40xf32>, vector<40x20xf32>, vector<640x20xf32> -> vector<640x20xf32>
    %65 = arith.addf %58, %64 : vector<640x20xf32>
    %66 = vector.extract_strided_slice %52 {offsets = [2, 0, 0], sizes = [10, 128, 40], strides = [1, 1, 1]} : vector<12x128x40xf32> to vector<10x128x40xf32>
    %67 = vector.shape_cast %66 : vector<10x128x40xf32> to vector<5x256x40xf32>
    %68 = vector.extract_strided_slice %67 {offsets = [0, 0, 0], sizes = [5, 128, 40], strides = [1, 1, 1]} : vector<5x256x40xf32> to vector<5x128x40xf32>
    %69 = vector.shape_cast %68 : vector<5x128x40xf32> to vector<640x40xf32>
    %c80 = arith.constant 80 : index
    %c0_26 = arith.constant 0 : index
    %70 = vector.load %arg6[%c80, %c0_26] : memref<160x20xf32, #tpu.memory_space<vmem>>, vector<40x20xf32>
    %cst_27 = arith.constant dense<0.000000e+00> : vector<640x20xf32>
    %71 = tpu.matmul %69, %70, %cst_27 {dimension_numbers = #tpu.dot_dimension_numbers<[1], [0], [0], [1], [0, 0, 1, 1], [], []>} : vector<640x40xf32>, vector<40x20xf32>, vector<640x20xf32> -> vector<640x20xf32>
    %72 = arith.addf %65, %71 : vector<640x20xf32>
    %73 = vector.extract_strided_slice %52 {offsets = [2, 0, 0], sizes = [10, 128, 40], strides = [1, 1, 1]} : vector<12x128x40xf32> to vector<10x128x40xf32>
    %74 = vector.shape_cast %73 : vector<10x128x40xf32> to vector<5x256x40xf32>
    %75 = vector.extract_strided_slice %74 {offsets = [0, 128, 0], sizes = [5, 128, 40], strides = [1, 1, 1]} : vector<5x256x40xf32> to vector<5x128x40xf32>
    %76 = vector.shape_cast %75 : vector<5x128x40xf32> to vector<640x40xf32>
    %c120 = arith.constant 120 : index
    %c0_28 = arith.constant 0 : index
    %77 = vector.load %arg6[%c120, %c0_28] : memref<160x20xf32, #tpu.memory_space<vmem>>, vector<40x20xf32>
    %cst_29 = arith.constant dense<0.000000e+00> : vector<640x20xf32>
    %78 = tpu.matmul %76, %77, %cst_29 {dimension_numbers = #tpu.dot_dimension_numbers<[1], [0], [0], [1], [0, 0, 1, 1], [], []>} : vector<640x40xf32>, vector<40x20xf32>, vector<640x20xf32> -> vector<640x20xf32>
    %79 = arith.addf %72, %78 : vector<640x20xf32>
    %c0_30 = arith.constant 0 : index
    %c0_31 = arith.constant 0 : index
    %80 = vector.load %arg7[%c0_30, %c0_31] : memref<1x20xf32, #tpu.memory_space<vmem>>, vector<1x20xf32>
    %81 = vector.broadcast %80 : vector<1x20xf32> to vector<640x20xf32>
    %82 = arith.addf %79, %81 : vector<640x20xf32>
    %cst_32 = arith.constant 0.000000e+00 : f32
    %83 = vector.broadcast %cst_32 : f32 to vector<640x20xf32>
    %84 = arith.maximumf %82, %83 : vector<640x20xf32>
    %85 = vector.shape_cast %84 : vector<640x20xf32> to vector<5x128x20xf32>
    %86 = vector.extract_strided_slice %85 {offsets = [0, 0, 0], sizes = [4, 128, 20], strides = [1, 1, 1]} : vector<5x128x20xf32> to vector<4x128x20xf32>
    %87 = vector.shape_cast %86 : vector<4x128x20xf32> to vector<2x256x20xf32>
    %88 = vector.extract_strided_slice %87 {offsets = [0, 0, 0], sizes = [2, 128, 20], strides = [1, 1, 1]} : vector<2x256x20xf32> to vector<2x128x20xf32>
    %89 = vector.shape_cast %88 : vector<2x128x20xf32> to vector<256x20xf32>
    %c0_33 = arith.constant 0 : index
    %c0_34 = arith.constant 0 : index
    %90 = vector.load %arg8[%c0_33, %c0_34] : memref<72x8xf32, #tpu.memory_space<vmem>>, vector<20x8xf32>
    %cst_35 = arith.constant dense<0.000000e+00> : vector<256x8xf32>
    %91 = tpu.matmul %89, %90, %cst_35 {dimension_numbers = #tpu.dot_dimension_numbers<[1], [0], [0], [1], [0, 0, 1, 1], [], []>} : vector<256x20xf32>, vector<20x8xf32>, vector<256x8xf32> -> vector<256x8xf32>
    %92 = vector.extract_strided_slice %85 {offsets = [1, 0, 0], sizes = [4, 128, 20], strides = [1, 1, 1]} : vector<5x128x20xf32> to vector<4x128x20xf32>
    %93 = vector.shape_cast %92 : vector<4x128x20xf32> to vector<2x256x20xf32>
    %94 = vector.extract_strided_slice %93 {offsets = [0, 0, 0], sizes = [2, 128, 20], strides = [1, 1, 1]} : vector<2x256x20xf32> to vector<2x128x20xf32>
    %95 = vector.shape_cast %94 : vector<2x128x20xf32> to vector<256x20xf32>
    %c24 = arith.constant 24 : index
    %c0_36 = arith.constant 0 : index
    %96 = vector.load %arg8[%c24, %c0_36] : memref<72x8xf32, #tpu.memory_space<vmem>>, vector<20x8xf32>
    %cst_37 = arith.constant dense<0.000000e+00> : vector<256x8xf32>
    %97 = tpu.matmul %95, %96, %cst_37 {dimension_numbers = #tpu.dot_dimension_numbers<[1], [0], [0], [1], [0, 0, 1, 1], [], []>} : vector<256x20xf32>, vector<20x8xf32>, vector<256x8xf32> -> vector<256x8xf32>
    %98 = arith.addf %91, %97 : vector<256x8xf32>
    %99 = vector.extract_strided_slice %85 {offsets = [1, 0, 0], sizes = [4, 128, 20], strides = [1, 1, 1]} : vector<5x128x20xf32> to vector<4x128x20xf32>
    %100 = vector.shape_cast %99 : vector<4x128x20xf32> to vector<2x256x20xf32>
    %101 = vector.extract_strided_slice %100 {offsets = [0, 128, 0], sizes = [2, 128, 20], strides = [1, 1, 1]} : vector<2x256x20xf32> to vector<2x128x20xf32>
    %102 = vector.shape_cast %101 : vector<2x128x20xf32> to vector<256x20xf32>
    %c48_38 = arith.constant 48 : index
    %c0_39 = arith.constant 0 : index
    %103 = vector.load %arg8[%c48_38, %c0_39] : memref<72x8xf32, #tpu.memory_space<vmem>>, vector<20x8xf32>
    %cst_40 = arith.constant dense<0.000000e+00> : vector<256x8xf32>
    %104 = tpu.matmul %102, %103, %cst_40 {dimension_numbers = #tpu.dot_dimension_numbers<[1], [0], [0], [1], [0, 0, 1, 1], [], []>} : vector<256x20xf32>, vector<20x8xf32>, vector<256x8xf32> -> vector<256x8xf32>
    %105 = arith.addf %98, %104 : vector<256x8xf32>
    %c0_41 = arith.constant 0 : index
    %c0_42 = arith.constant 0 : index
    %106 = vector.load %arg9[%c0_41, %c0_42] : memref<1x8xf32, #tpu.memory_space<vmem>>, vector<1x8xf32>
    %107 = vector.broadcast %106 : vector<1x8xf32> to vector<256x8xf32>
    %108 = arith.addf %105, %107 : vector<256x8xf32>
    %cst_43 = arith.constant 0.000000e+00 : f32
    %109 = vector.broadcast %cst_43 : f32 to vector<256x8xf32>
    %110 = arith.maximumf %108, %109 : vector<256x8xf32>
    %111 = vector.shape_cast %110 : vector<256x8xf32> to vector<2x128x8xf32>
    %112 = vector.extract_strided_slice %111 {offsets = [0, 0, 0], sizes = [1, 128, 8], strides = [1, 1, 1]} : vector<2x128x8xf32> to vector<1x128x8xf32>
    %113 = vector.shape_cast %112 : vector<1x128x8xf32> to vector<128x8xf32>
    %114 = vector.extract_strided_slice %111 {offsets = [1, 0, 0], sizes = [1, 128, 8], strides = [1, 1, 1]} : vector<2x128x8xf32> to vector<1x128x8xf32>
    %115 = vector.shape_cast %114 : vector<1x128x8xf32> to vector<128x8xf32>
    %c0_44 = arith.constant 0 : index
    %c0_45 = arith.constant 0 : index
    %116 = vector.load %arg10[%c0_44, %c0_45] : memref<8x8xf32, #tpu.memory_space<vmem>>, vector<8x8xf32>
    %cst_46 = arith.constant dense<0.000000e+00> : vector<128x8xf32>
    %117 = tpu.matmul %113, %116, %cst_46 {dimension_numbers = #tpu.dot_dimension_numbers<[1], [0], [0], [1], [0, 0, 1, 1], [], []>} : vector<128x8xf32>, vector<8x8xf32>, vector<128x8xf32> -> vector<128x8xf32>
    %c0_47 = arith.constant 0 : index
    %c0_48 = arith.constant 0 : index
    %118 = vector.load %arg11[%c0_47, %c0_48] : memref<8x8xf32, #tpu.memory_space<vmem>>, vector<8x8xf32>
    %cst_49 = arith.constant dense<0.000000e+00> : vector<128x8xf32>
    %119 = tpu.matmul %115, %118, %cst_49 {dimension_numbers = #tpu.dot_dimension_numbers<[1], [0], [0], [1], [0, 0, 1, 1], [], []>} : vector<128x8xf32>, vector<8x8xf32>, vector<128x8xf32> -> vector<128x8xf32>
    %120 = arith.addf %117, %119 : vector<128x8xf32>
    %c0_50 = arith.constant 0 : index
    %c0_51 = arith.constant 0 : index
    %121 = vector.load %arg12[%c0_50, %c0_51] : memref<1x8xf32, #tpu.memory_space<vmem>>, vector<1x8xf32>
    %122 = vector.broadcast %121 : vector<1x8xf32> to vector<128x8xf32>
    %123 = arith.addf %120, %122 : vector<128x8xf32>
    %cst_52 = arith.constant 0.000000e+00 : f32
    %124 = vector.broadcast %cst_52 : f32 to vector<128x8xf32>
    %125 = arith.maximumf %123, %124 : vector<128x8xf32>
    %c0_53 = arith.constant 0 : index
    %c0_54 = arith.constant 0 : index
    %126 = vector.load %arg13[%c0_53, %c0_54] : memref<8x128xf32, #tpu.memory_space<vmem>>, vector<8x128xf32>
    %cst_55 = arith.constant dense<0.000000e+00> : vector<128x128xf32>
    %127 = tpu.matmul %125, %126, %cst_55 {dimension_numbers = #tpu.dot_dimension_numbers<[1], [0], [0], [1], [0, 0, 1, 1], [], []>} : vector<128x8xf32>, vector<8x128xf32>, vector<128x128xf32> -> vector<128x128xf32>
    %c0_56 = arith.constant 0 : index
    %c0_57 = arith.constant 0 : index
    %128 = vector.load %arg14[%c0_56, %c0_57] : memref<1x128xf32, #tpu.memory_space<vmem>>, vector<1x128xf32>
    %129 = vector.broadcast %128 : vector<1x128xf32> to vector<128x128xf32>
    %130 = arith.addf %127, %129 : vector<128x128xf32>
    %cst_58 = arith.constant dense<0xFF800000> : vector<128xf32>
    %131 = vector.multi_reduction <maximumf>, %130, %cst_58 [1] : vector<128x128xf32> to vector<128xf32>
    %132 = vector.shape_cast %131 : vector<128xf32> to vector<128x1xf32>
    %133 = vector.broadcast %132 : vector<128x1xf32> to vector<128x128xf32>
    %134 = arith.subf %130, %133 : vector<128x128xf32>
    %135 = math.exp %134 : vector<128x128xf32>
    %cst_59 = arith.constant dense<0.000000e+00> : vector<128xf32>
    %136 = vector.multi_reduction <add>, %135, %cst_59 [1] : vector<128x128xf32> to vector<128xf32>
    %137 = vector.shape_cast %136 : vector<128xf32> to vector<128x1xf32>
    %138 = tpu.reciprocal %137 {approx = true} : vector<128x1xf32> -> vector<128x1xf32>
    %139 = vector.broadcast %138 : vector<128x1xf32> to vector<128x128xf32>
    %140 = arith.mulf %135, %139 : vector<128x128xf32>
    %c0_60 = arith.constant 0 : index
    %c0_61 = arith.constant 0 : index
    %141 = vector.load %arg15[%c0_60, %c0_61] : memref<128x128xf32, #tpu.memory_space<vmem>>, vector<128x128xf32>
    tpu.vector_store %arg15[%c0_60, %c0_61], %140 {strides = array<i32>} : memref<128x128xf32, #tpu.memory_space<vmem>>, vector<128x128xf32>,
    return
  }
  func.func @transform_0(%arg0: i32) -> (i32, i32, i32) {
    %c0_i32 = arith.constant 0 : i32
    %c0_i32_0 = arith.constant 0 : i32
    %c0_i32_1 = arith.constant 0 : i32
    return %c0_i32, %arg0, %c0_i32_0 : i32, i32, i32
  }
  func.func @transform_1(%arg0: i32) -> (i32, i32) {
    %c0_i32 = arith.constant 0 : i32
    %c0_i32_0 = arith.constant 0 : i32
    %c0_i32_1 = arith.constant 0 : i32
    return %c0_i32, %c0_i32_0 : i32, i32
  }
  func.func @transform_2(%arg0: i32) -> (i32, i32) {
    %c0_i32 = arith.constant 0 : i32
    %c0_i32_0 = arith.constant 0 : i32
    %c0_i32_1 = arith.constant 0 : i32
    return %c0_i32, %c0_i32_0 : i32, i32
  }
  func.func @transform_3(%arg0: i32) -> (i32, i32) {
    %c0_i32 = arith.constant 0 : i32
    %c0_i32_0 = arith.constant 0 : i32
    %c0_i32_1 = arith.constant 0 : i32
    return %c0_i32, %c0_i32_0 : i32, i32
  }
  func.func @transform_4(%arg0: i32) -> (i32, i32) {
    %c0_i32 = arith.constant 0 : i32
    %c0_i32_0 = arith.constant 0 : i32
    %c0_i32_1 = arith.constant 0 : i32
    return %c0_i32, %c0_i32_0 : i32, i32
  }
  func.func @transform_5(%arg0: i32) -> (i32, i32) {
    %c0_i32 = arith.constant 0 : i32
    %c0_i32_0 = arith.constant 0 : i32
    %c0_i32_1 = arith.constant 0 : i32
    return %c0_i32, %c0_i32_0 : i32, i32
  }
  func.func @transform_6(%arg0: i32) -> (i32, i32) {
    %c0_i32 = arith.constant 0 : i32
    %c0_i32_0 = arith.constant 0 : i32
    %c0_i32_1 = arith.constant 0 : i32
    return %c0_i32, %c0_i32_0 : i32, i32
  }
  func.func @transform_7(%arg0: i32) -> (i32, i32) {
    %c0_i32 = arith.constant 0 : i32
    %c0_i32_0 = arith.constant 0 : i32
    %c0_i32_1 = arith.constant 0 : i32
    return %c0_i32, %c0_i32_0 : i32, i32
  }
  func.func @transform_8(%arg0: i32) -> (i32, i32) {
    %c0_i32 = arith.constant 0 : i32
    %c0_i32_0 = arith.constant 0 : i32
    %c0_i32_1 = arith.constant 0 : i32
    return %c0_i32, %c0_i32_0 : i32, i32
  }
  func.func @transform_9(%arg0: i32) -> (i32, i32) {
    %c0_i32 = arith.constant 0 : i32
    %c0_i32_0 = arith.constant 0 : i32
    %c0_i32_1 = arith.constant 0 : i32
    return %c0_i32, %c0_i32_0 : i32, i32
  }
  func.func @transform_10(%arg0: i32) -> (i32, i32) {
    %c0_i32 = arith.constant 0 : i32
    %c0_i32_0 = arith.constant 0 : i32
    %c0_i32_1 = arith.constant 0 : i32
    return %c0_i32, %c0_i32_0 : i32, i32
  }
  func.func @transform_11(%arg0: i32) -> (i32, i32) {
    %c0_i32 = arith.constant 0 : i32
    %c0_i32_0 = arith.constant 0 : i32
    %c0_i32_1 = arith.constant 0 : i32
    return %c0_i32, %c0_i32_0 : i32, i32
  }
  func.func @transform_12(%arg0: i32) -> (i32, i32) {
    %c0_i32 = arith.constant 0 : i32
    %c0_i32_0 = arith.constant 0 : i32
    %c0_i32_1 = arith.constant 0 : i32
    return %c0_i32, %c0_i32_0 : i32, i32
  }
  func.func @transform_13(%arg0: i32) -> (i32, i32) {
    %c0_i32 = arith.constant 0 : i32
    %c0_i32_0 = arith.constant 0 : i32
    %c0_i32_1 = arith.constant 0 : i32
    return %c0_i32, %c0_i32_0 : i32, i32
  }
  func.func @transform_14(%arg0: i32) -> (i32, i32) {
    %c0_i32 = arith.constant 0 : i32
    %c0_i32_0 = arith.constant 0 : i32
    return %arg0, %c0_i32 : i32, i32
  }
}

</mosaic_0001>

<llo_original>
// kernel: tpu_custom_call.1
$region0: #{tpu_custom_call.1}
  #allocation0 [shape = 'u32[]', space=smem, size = 0x4, offset = 0x4, fixed_abs, tag = 'smem constant byte address 0x4 - core index']
  #allocation1 [shape = 'u32[72,128]{1,0:T(1,128)}', space=vmem, size = 0x9000, scoped, tag = 'internal scratch']
  %s0 = inlined_call_operand.vmem [shape: f32[51,128,11], index: 0, kind: input, shape index: {}]
  %s1 = inlined_call_operand.vmem [shape: f32[48,44], index: 1, kind: input, shape index: {}]
  %s2 = inlined_call_operand.vmem [shape: f32[1,44], index: 2, kind: input, shape index: {}]
  %s3 = inlined_call_operand.vmem [shape: f32[144,40], index: 3, kind: input, shape index: {}]
  %s4 = inlined_call_operand.vmem [shape: f32[1,40], index: 4, kind: input, shape index: {}]
  %s5 = inlined_call_operand.vmem [shape: f32[160,20], index: 5, kind: input, shape index: {}]
  %s6 = inlined_call_operand.vmem [shape: f32[1,20], index: 6, kind: input, shape index: {}]
  %s7 = inlined_call_operand.vmem [shape: f32[72,8], index: 7, kind: input, shape index: {}]
  %s8 = inlined_call_operand.vmem [shape: f32[1,8], index: 8, kind: input, shape index: {}]
  %s9 = inlined_call_operand.vmem [shape: f32[8,8], index: 9, kind: input, shape index: {}]
  %s10 = inlined_call_operand.vmem [shape: f32[8,8], index: 10, kind: input, shape index: {}]
  %s11 = inlined_call_operand.vmem [shape: f32[1,8], index: 11, kind: input, shape index: {}]
  %s12 = inlined_call_operand.vmem [shape: f32[8,128], index: 12, kind: input, shape index: {}]
  %s13 = inlined_call_operand.vmem [shape: f32[1,128], index: 13, kind: input, shape index: {}]
  %s14 = inlined_call_operand.hbm [shape: f32[128,128], index: 14, kind: output, shape index: {}]
  %s15 = sld [smem:[#allocation0]]
  $region66: #{tpu_custom_call.1} parent=0
    _
  %s17 = ssub.s32 1, %s15
  %s18 = scalar_select 0, %s17, %s15
  $region1: #{tpu_custom_call.1} parent=0
    #allocation2 [shape = 'u8[65536]{0}', space=vmem, size = 0x10000, scoped, tag = 'output window, operand 0, single buffered']
    #allocation3 [shape = 's32[1]{0}', space=sflag, size = 0x4, scoped, tag = 'scoped memory for tpu_custom_call.1']
    %19 = vsyncpa [#allocation3], 0
    // Predicated region
    $region2: #{tpu_custom_call.1} parent=1 // pred_check
      _
    $region3: #{tpu_custom_call.1} parent=1 // pred_check_branch
      %21 = sbr.rel (0) target = $region5
    $region4: #{tpu_custom_call.1} parent=1 // pred_region
      _
    $region5: #{tpu_custom_call.1} parent=1 // pred_fallthru
      _
    // Predicated region
    $region6: #{tpu_custom_call.1} parent=1 // pred_check
      _
    $region7: #{tpu_custom_call.1} parent=1 // pred_check_branch
      %23 = sbr.rel (0) target = $region9
    $region8: #{tpu_custom_call.1} parent=1 // pred_region
      _
    $region9: #{tpu_custom_call.1} parent=1 // pred_fallthru
      _
    // Predicated region
    $region10: #{tpu_custom_call.1} parent=1 // pred_check
      _
    $region11: #{tpu_custom_call.1} parent=1 // pred_check_branch
      %25 = sbr.rel (0) target = $region13
    $region12: #{tpu_custom_call.1} parent=1 // pred_region
      _
    $region13: #{tpu_custom_call.1} parent=1 // pred_fallthru
      _
    // Predicated region
    $region14: #{tpu_custom_call.1} parent=1 // pred_check
      _
    $region15: #{tpu_custom_call.1} parent=1 // pred_check_branch
      %27 = sbr.rel (0) target = $region17
    $region16: #{tpu_custom_call.1} parent=1 // pred_region
      _
    $region17: #{tpu_custom_call.1} parent=1 // pred_fallthru
      _
    // Predicated region
    $region18: #{tpu_custom_call.1} parent=1 // pred_check
      _
    $region19: #{tpu_custom_call.1} parent=1 // pred_check_branch
      %29 = sbr.rel (0) target = $region21
    $region20: #{tpu_custom_call.1} parent=1 // pred_region
      _
    $region21: #{tpu_custom_call.1} parent=1 // pred_fallthru
      _
    // Predicated region
    $region22: #{tpu_custom_call.1} parent=1 // pred_check
      _
    $region23: #{tpu_custom_call.1} parent=1 // pred_check_branch
      %31 = sbr.rel (0) target = $region25
    $region24: #{tpu_custom_call.1} parent=1 // pred_region
      _
    $region25: #{tpu_custom_call.1} parent=1 // pred_fallthru
      _
    // Predicated region
    $region26: #{tpu_custom_call.1} parent=1 // pred_check
      _
    $region27: #{tpu_custom_call.1} parent=1 // pred_check_branch
      %33 = sbr.rel (0) target = $region29
    $region28: #{tpu_custom_call.1} parent=1 // pred_region
      _
    $region29: #{tpu_custom_call.1} parent=1 // pred_fallthru
      _
    // Predicated region
    $region30: #{tpu_custom_call.1} parent=1 // pred_check
      _
    $region31: #{tpu_custom_call.1} parent=1 // pred_check_branch
      %35 = sbr.rel (0) target = $region33
    $region32: #{tpu_custom_call.1} parent=1 // pred_region
      _
    $region33: #{tpu_custom_call.1} parent=1 // pred_fallthru
      _
    // Predicated region
    $region34: #{tpu_custom_call.1} parent=1 // pred_check
      _
    $region35: #{tpu_custom_call.1} parent=1 // pred_check_branch
      %37 = sbr.rel (0) target = $region37
    $region36: #{tpu_custom_call.1} parent=1 // pred_region
      _
    $region37: #{tpu_custom_call.1} parent=1 // pred_fallthru
      _
    // Predicated region
    $region38: #{tpu_custom_call.1} parent=1 // pred_check
      _
    $region39: #{tpu_custom_call.1} parent=1 // pred_check_branch
      %39 = sbr.rel (0) target = $region41
    $region40: #{tpu_custom_call.1} parent=1 // pred_region
      _
    $region41: #{tpu_custom_call.1} parent=1 // pred_fallthru
      _
    // Predicated region
    $region42: #{tpu_custom_call.1} parent=1 // pred_check
      _
    $region43: #{tpu_custom_call.1} parent=1 // pred_check_branch
      %41 = sbr.rel (0) target = $region45
    $region44: #{tpu_custom_call.1} parent=1 // pred_region
      _
    $region45: #{tpu_custom_call.1} parent=1 // pred_fallthru
      _
    // Predicated region
    $region46: #{tpu_custom_call.1} parent=1 // pred_check
      _
    $region47: #{tpu_custom_call.1} parent=1 // pred_check_branch
      %43 = sbr.rel (0) target = $region49
    $region48: #{tpu_custom_call.1} parent=1 // pred_region
      _
    $region49: #{tpu_custom_call.1} parent=1 // pred_fallthru
      _
    // Predicated region
    $region50: #{tpu_custom_call.1} parent=1 // pred_check
      _
    $region51: #{tpu_custom_call.1} parent=1 // pred_check_branch
      %45 = sbr.rel (0) target = $region53
    $region52: #{tpu_custom_call.1} parent=1 // pred_region
      _
    $region53: #{tpu_custom_call.1} parent=1 // pred_fallthru
      _
    // Predicated region
    $region54: #{tpu_custom_call.1} parent=1 // pred_check
      _
    $region55: #{tpu_custom_call.1} parent=1 // pred_check_branch
      %47 = sbr.rel (0) target = $region57
    $region56: #{tpu_custom_call.1} parent=1 // pred_region
      _
    $region57: #{tpu_custom_call.1} parent=1 // pred_fallthru
      _
    %v48 = vld [vmem:[%s0] sm:$0xff]
    %v49 = vld [vmem:[%s0 + $0x8] sm:$0xff]
    %v50 = vld [vmem:[%s0 + $0x10] sm:$0xff]
    %v51 = vld [vmem:[%s0 + $0x18] sm:$0xff]
    %v52 = vld [vmem:[%s0 + $0x20] sm:$0xff]
    %v53 = vld [vmem:[%s0 + $0x28] sm:$0xff]
    %v54 = vld [vmem:[%s0 + $0x30] sm:$0xff]
    %v55 = vld [vmem:[%s0 + $0x38] sm:$0xff]
    %v56 = vld [vmem:[%s0 + $0x40] sm:$0xff]
    %v57 = vld [vmem:[%s0 + $0x48] sm:$0xff]
    %v58 = vld [vmem:[%s0 + $0x50] sm:$0xff]
    %v59 = vld [vmem:[%s0 + $0x58] sm:$0xff]
    %v60 = vld [vmem:[%s0 + $0x60] sm:$0xff]
    %v61 = vld [vmem:[%s0 + $0x68] sm:$0xff]
    %v62 = vld [vmem:[%s0 + $0x70] sm:$0xff]
    %v63 = vld [vmem:[%s0 + $0x78] sm:$0xff]
    %v64 = vld [vmem:[%s0 + $0x80] sm:$0xff]
    %v65 = vld [vmem:[%s0 + $0x88] sm:$0xff]
    %v66 = vld [vmem:[%s0 + $0x90] sm:$0xff]
    %v67 = vld [vmem:[%s0 + $0x98] sm:$0xff]
    %v68 = vld [vmem:[%s0 + $0xa0] sm:$0xff]
    %v69 = vld [vmem:[%s0 + $0xa8] sm:$0xff]
    %v70 = vld [vmem:[%s0 + $0xb0] sm:$0xff]
    %v71 = vld [vmem:[%s0 + $0xb8] sm:$0xff]
    %v72 = vld [vmem:[%s0 + $0xc0] sm:$0xff]
    %v73 = vld [vmem:[%s0 + $0xc8] sm:$0xff]
    %v74 = vld [vmem:[%s0 + $0xd0] sm:$0xff]
    %v75 = vld [vmem:[%s0 + $0xd8] sm:$0xff]
    %v76 = vld [vmem:[%s0 + $0xe0] sm:$0xff]
    %v77 = vld [vmem:[%s0 + $0xe8] sm:$0xff]
    %v78 = vld [vmem:[%s0 + $0xf0] sm:$0xff]
    %v79 = vld [vmem:[%s0 + $0xf8] sm:$0xff]
    %v80 = vld [vmem:[%s0 + $0x100] sm:$0xff]
    %v81 = vld [vmem:[%s0 + $0x108] sm:$0xff]
    %v82 = vld [vmem:[%s0 + $0x110] sm:$0xff]
    %v83 = vld [vmem:[%s0 + $0x118] sm:$0xff]
    %v84 = vld [vmem:[%s0 + $0x120] sm:$0xff]
    %v85 = vld [vmem:[%s0 + $0x128] sm:$0xff]
    %v86 = vld [vmem:[%s0 + $0x130] sm:$0xff]
    %v87 = vld [vmem:[%s0 + $0x138] sm:$0xff]
    %v88 = vld [vmem:[%s0 + $0x140] sm:$0xff]
    %v89 = vld [vmem:[%s0 + $0x148] sm:$0xff]
    %v90 = vld [vmem:[%s0 + $0x150] sm:$0xff]
    %v91 = vld [vmem:[%s0 + $0x158] sm:$0xff]
    %v92 = vld [vmem:[%s0 + $0x160] sm:$0xff]
    %v93 = vld [vmem:[%s0 + $0x168] sm:$0xff]
    %v94 = vld [vmem:[%s0 + $0x170] sm:$0xff]
    %v95 = vld [vmem:[%s0 + $0x178] sm:$0xff]
    %v96 = vld [vmem:[%s0 + $0x180] sm:$0xff]
    %v97 = vld [vmem:[%s0 + $0x188] sm:$0xff]
    %v98 = vld [vmem:[%s0 + $0x190] sm:$0xff]
    %v99 = vld [vmem:[%s0 + $0x198] sm:$0xff]
    %v100 = vld [vmem:[%s0 + $0x1a0] sm:$0xff]
    %v101 = vld [vmem:[%s0 + $0x1a8] sm:$0xff]
    %v102 = vld [vmem:[%s0 + $0x1b0] sm:$0xff]
    %v103 = vld [vmem:[%s0 + $0x1b8] sm:$0xff]
    %v104 = vld [vmem:[%s0 + $0x1c0] sm:$0xff]
    %v105 = vld [vmem:[%s0 + $0x1c8] sm:$0xff]
    %v106 = vld [vmem:[%s0 + $0x1d0] sm:$0xff]
    %v107 = vld [vmem:[%s0 + $0x1d8] sm:$0xff]
    %v108 = vld [vmem:[%s0 + $0x1e0] sm:$0xff]
    %v109 = vld [vmem:[%s0 + $0x1e8] sm:$0xff]
    %v110 = vld [vmem:[%s0 + $0x1f0] sm:$0xff]
    %v111 = vld [vmem:[%s0 + $0x1f8] sm:$0xff]
    %v112 = vld [vmem:[%s0 + $0x200] sm:$0xff]
    %v113 = vld [vmem:[%s0 + $0x208] sm:$0xff]
    %v114 = vld [vmem:[%s0 + $0x210] sm:$0xff]
    %v115 = vld [vmem:[%s0 + $0x218] sm:$0xff]
    %v116 = vld [vmem:[%s0 + $0x220] sm:$0xff]
    %v117 = vld [vmem:[%s0 + $0x228] sm:$0xff]
    %v118 = vld [vmem:[%s0 + $0x230] sm:$0xff]
    %v119 = vld [vmem:[%s0 + $0x238] sm:$0xff]
    %v120 = vld [vmem:[%s0 + $0x240] sm:$0xff]
    %v121 = vld [vmem:[%s0 + $0x248] sm:$0xff]
    %v122 = vld [vmem:[%s0 + $0x250] sm:$0xff]
    %v123 = vld [vmem:[%s0 + $0x258] sm:$0xff]
    %v124 = vld [vmem:[%s0 + $0x260] sm:$0xff]
    %v125 = vld [vmem:[%s0 + $0x268] sm:$0xff]
    %v126 = vld [vmem:[%s0 + $0x270] sm:$0xff]
    %v127 = vld [vmem:[%s0 + $0x278] sm:$0xff]
    %v128 = vld [vmem:[%s0 + $0x280] sm:$0xff]
    %v129 = vld [vmem:[%s0 + $0x288] sm:$0xff]
    %v130 = vld [vmem:[%s0 + $0x290] sm:$0xff]
    %v131 = vld [vmem:[%s0 + $0x298] sm:$0xff]
    %v132 = vld [vmem:[%s0 + $0x2a0] sm:$0xff]
    %v133 = vld [vmem:[%s0 + $0x2a8] sm:$0xff]
    %v134 = vld [vmem:[%s0 + $0x2b0] sm:$0xff]
    %v135 = vld [vmem:[%s0 + $0x2b8] sm:$0xff]
    %v136 = vld [vmem:[%s0 + $0x2c0] sm:$0xff]
    %v137 = vld [vmem:[%s0 + $0x2c8] sm:$0xff]
    %v138 = vld [vmem:[%s0 + $0x2d0] sm:$0xff]
    %v139 = vld [vmem:[%s0 + $0x2d8] sm:$0xff]
    %v140 = vld [vmem:[%s0 + $0x2e0] sm:$0xff]
    %v141 = vld [vmem:[%s0 + $0x2e8] sm:$0xff]
    %v142 = vld [vmem:[%s0 + $0x2f0] sm:$0xff]
    %v143 = vld [vmem:[%s0 + $0x2f8] sm:$0xff]
    %v144 = vld [vmem:[%s0 + $0x300] sm:$0xff]
    %v145 = vld [vmem:[%s0 + $0x308] sm:$0xff]
    %v146 = vld [vmem:[%s0 + $0x310] sm:$0xff]
    %v147 = vld [vmem:[%s0 + $0x318] sm:$0xff]
    %v148 = vld [vmem:[%s0 + $0x320] sm:$0xff]
    %v149 = vld [vmem:[%s0 + $0x328] sm:$0xff]
    %v150 = vld [vmem:[%s0 + $0x330] sm:$0xff]
    %v151 = vld [vmem:[%s0 + $0x338] sm:$0xff]
    %v152 = vld [vmem:[%s0 + $0x340] sm:$0xff]
    %v153 = vld [vmem:[%s0 + $0x348] sm:$0xff]
    %v154 = vld [vmem:[%s0 + $0x350] sm:$0xff]
    %v155 = vld [vmem:[%s0 + $0x358] sm:$0xff]
    %v156 = vld [vmem:[%s0 + $0x360] sm:$0xff]
    %v157 = vld [vmem:[%s0 + $0x368] sm:$0xff]
    %v158 = vld [vmem:[%s0 + $0x370] sm:$0xff]
    %v159 = vld [vmem:[%s0 + $0x378] sm:$0xff]
    %v160 = vld [vmem:[%s0 + $0x380] sm:$0xff]
    %v161 = vld [vmem:[%s0 + $0x388] sm:$0xff]
    %v162 = vld [vmem:[%s0 + $0x390] sm:$0xff]
    %v163 = vld [vmem:[%s0 + $0x398] sm:$0xff]
    %v164 = vld [vmem:[%s0 + $0x3a0] sm:$0xff]
    %v165 = vld [vmem:[%s0 + $0x3a8] sm:$0xff]
    %v166 = vld [vmem:[%s0 + $0x3b0] sm:$0xff]
    %v167 = vld [vmem:[%s0 + $0x3b8] sm:$0xff]
    %v168 = vld [vmem:[%s0 + $0x3c0] sm:$0xff]
    %v169 = vld [vmem:[%s0 + $0x3c8] sm:$0xff]
    %v170 = vld [vmem:[%s0 + $0x3d0] sm:$0xff]
    %v171 = vld [vmem:[%s0 + $0x3d8] sm:$0xff]
    %v172 = vld [vmem:[%s0 + $0x3e0] sm:$0xff]
    %v173 = vld [vmem:[%s0 + $0x3e8] sm:$0xff]
    %v174 = vld [vmem:[%s0 + $0x3f0] sm:$0xff]
    %v175 = vld [vmem:[%s0 + $0x3f8] sm:$0xff]
    %v176 = vld [vmem:[%s0 + $0x400] sm:$0xff]
    %v177 = vld [vmem:[%s0 + $0x408] sm:$0xff]
    %v178 = vld [vmem:[%s0 + $0x410] sm:$0xff]
    %v179 = vld [vmem:[%s0 + $0x418] sm:$0xff]
    %v180 = vld [vmem:[%s0 + $0x420] sm:$0xff]
    %v181 = vld [vmem:[%s0 + $0x428] sm:$0xff]
    %v182 = vld [vmem:[%s0 + $0x430] sm:$0xff]
    %v183 = vld [vmem:[%s0 + $0x438] sm:$0xff]
    %v184 = vld [vmem:[%s0 + $0x440] sm:$0xff]
    %v185 = vld [vmem:[%s0 + $0x448] sm:$0xff]
    %v186 = vld [vmem:[%s0 + $0x450] sm:$0xff]
    %v187 = vld [vmem:[%s0 + $0x458] sm:$0xff]
    %v188 = vld [vmem:[%s0 + $0x460] sm:$0xff]
    %v189 = vld [vmem:[%s0 + $0x468] sm:$0xff]
    %v190 = vld [vmem:[%s0 + $0x470] sm:$0xff]
    %v191 = vld [vmem:[%s0 + $0x478] sm:$0xff]
    %v192 = vld [vmem:[%s0 + $0x480] sm:$0xff]
    %v193 = vld [vmem:[%s0 + $0x488] sm:$0xff]
    %v194 = vld [vmem:[%s0 + $0x490] sm:$0xff]
    %v195 = vld [vmem:[%s0 + $0x498] sm:$0xff]
    %v196 = vld [vmem:[%s0 + $0x4a0] sm:$0xff]
    %v197 = vld [vmem:[%s0 + $0x4a8] sm:$0xff]
    %v198 = vld [vmem:[%s0 + $0x4b0] sm:$0xff]
    %v199 = vld [vmem:[%s0 + $0x4b8] sm:$0xff]
    %v200 = vld [vmem:[%s0 + $0x4c0] sm:$0xff]
    %v201 = vld [vmem:[%s0 + $0x4c8] sm:$0xff]
    %v202 = vld [vmem:[%s0 + $0x4d0] sm:$0xff]
    %v203 = vld [vmem:[%s0 + $0x4d8] sm:$0xff]
    %v204 = vld [vmem:[%s0 + $0x4e0] sm:$0xff]
    %v205 = vld [vmem:[%s0 + $0x4e8] sm:$0xff]
    %v206 = vld [vmem:[%s0 + $0x4f0] sm:$0xff]
    %v207 = vld [vmem:[%s0 + $0x4f8] sm:$0xff]
    %v208 = vld [vmem:[%s0 + $0x500] sm:$0xff]
    %v209 = vld [vmem:[%s0 + $0x508] sm:$0xff]
    %v210 = vld [vmem:[%s0 + $0x510] sm:$0xff]
    %v211 = vld [vmem:[%s0 + $0x518] sm:$0xff]
    %v212 = vld [vmem:[%s0 + $0x520] sm:$0xff]
    %v213 = vld [vmem:[%s0 + $0x528] sm:$0xff]
    %v214 = vld [vmem:[%s0 + $0x530] sm:$0xff]
    %v215 = vld [vmem:[%s0 + $0x538] sm:$0xff]
    %v216 = vld [vmem:[%s0 + $0x540] sm:$0xff]
    %v217 = vld [vmem:[%s0 + $0x548] sm:$0xff]
    %v218 = vld [vmem:[%s0 + $0x550] sm:$0xff]
    %v219 = vld [vmem:[%s0 + $0x558] sm:$0xff]
    %v220 = vld [vmem:[%s0 + $0x560] sm:$0xff]
    %v221 = vld [vmem:[%s0 + $0x568] sm:$0xff]
    %v222 = vld [vmem:[%s0 + $0x570] sm:$0xff]
    %v223 = vld [vmem:[%s0 + $0x578] sm:$0xff]
    %v224 = vld [vmem:[%s0 + $0x580] sm:$0xff]
    %v225 = vld [vmem:[%s0 + $0x588] sm:$0xff]
    %v226 = vld [vmem:[%s0 + $0x590] sm:$0xff]
    %v227 = vld [vmem:[%s0 + $0x598] sm:$0xff]
    %v228 = vld [vmem:[%s0 + $0x5a0] sm:$0xff]
    %v229 = vld [vmem:[%s0 + $0x5a8] sm:$0xff]
    %v230 = vld [vmem:[%s0 + $0x5b0] sm:$0xff]
    %v231 = vld [vmem:[%s0 + $0x5b8] sm:$0xff]
    %v232 = vld [vmem:[%s0 + $0x5c0] sm:$0xff]
    %v233 = vld [vmem:[%s0 + $0x5c8] sm:$0xff]
    %v234 = vld [vmem:[%s0 + $0x5d0] sm:$0xff]
    %v235 = vld [vmem:[%s0 + $0x5d8] sm:$0xff]
    %v236 = vld [vmem:[%s0 + $0x5e0] sm:$0xff]
    %v237 = vld [vmem:[%s0 + $0x5e8] sm:$0xff]
    %v238 = vld [vmem:[%s0 + $0x5f0] sm:$0xff]
    %v239 = vld [vmem:[%s0 + $0x5f8] sm:$0xff]
    %v240 = vld [vmem:[%s0 + $0x600] sm:$0xff]
    %v241 = vld [vmem:[%s0 + $0x608] sm:$0xff]
    %v242 = vld [vmem:[%s0 + $0x610] sm:$0xff]
    %v243 = vld [vmem:[%s0 + $0x618] sm:$0xff]
    %v244 = vld [vmem:[%s0 + $0x620] sm:$0xff]
    %v245 = vld [vmem:[%s0 + $0x628] sm:$0xff]
    %v246 = vld [vmem:[%s0 + $0x630] sm:$0xff]
    %v247 = vld [vmem:[%s0 + $0x638] sm:$0xff]
    %v248 = vld [vmem:[%s0 + $0x640] sm:$0xff]
    %v249 = vld [vmem:[%s0 + $0x648] sm:$0xff]
    %v250 = vld [vmem:[%s0 + $0x650] sm:$0xff]
    %v251 = vld [vmem:[%s0 + $0x658] sm:$0xff]
    %v252 = vld [vmem:[%s0 + $0x660] sm:$0xff]
    %v253 = vld [vmem:[%s0 + $0x668] sm:$0xff]
    %v254 = vld [vmem:[%s0 + $0x670] sm:$0xff]
    %v255 = vld [vmem:[%s0 + $0x678] sm:$0xff]
    %v256 = vld [vmem:[%s0 + $0x680] sm:$0xff]
    %v257 = vld [vmem:[%s0 + $0x688] sm:$0xff]
    %v258 = vld [vmem:[%s0 + $0x690] sm:$0xff]
    %v259 = vld [vmem:[%s0 + $0x698] sm:$0xff]
    %v260 = vld [vmem:[%s0 + $0x6a0] sm:$0xff]
    %v261 = vld [vmem:[%s0 + $0x6a8] sm:$0xff]
    %v262 = vld [vmem:[%s0 + $0x6b0] sm:$0xff]
    %v263 = vld [vmem:[%s0 + $0x6b8] sm:$0xff]
    %v264 = vld [vmem:[%s0 + $0x6c0] sm:$0xff]
    %v265 = vld [vmem:[%s0 + $0x6c8] sm:$0xff]
    %v266 = vld [vmem:[%s0 + $0x6d0] sm:$0xff]
    %v267 = vld [vmem:[%s0 + $0x6d8] sm:$0xff]
    %v268 = vld [vmem:[%s0 + $0x6e0] sm:$0xff]
    %v269 = vld [vmem:[%s0 + $0x6e8] sm:$0xff]
    %v270 = vld [vmem:[%s0 + $0x6f0] sm:$0xff]
    %v271 = vld [vmem:[%s0 + $0x6f8] sm:$0xff]
    %v272 = vld [vmem:[%s0 + $0x700] sm:$0xff]
    %v273 = vld [vmem:[%s0 + $0x708] sm:$0xff]
    %v274 = vld [vmem:[%s0 + $0x710] sm:$0xff]
    %v275 = vld [vmem:[%s0 + $0x718] sm:$0xff]
    %v276 = vld [vmem:[%s0 + $0x720] sm:$0xff]
    %v277 = vld [vmem:[%s0 + $0x728] sm:$0xff]
    %v278 = vld [vmem:[%s0 + $0x730] sm:$0xff]
    %v279 = vld [vmem:[%s0 + $0x738] sm:$0xff]
    %v280 = vld [vmem:[%s0 + $0x740] sm:$0xff]
    %v281 = vld [vmem:[%s0 + $0x748] sm:$0xff]
    %v282 = vld [vmem:[%s0 + $0x750] sm:$0xff]
    %v283 = vld [vmem:[%s0 + $0x758] sm:$0xff]
    %v284 = vld [vmem:[%s0 + $0x760] sm:$0xff]
    %v285 = vld [vmem:[%s0 + $0x768] sm:$0xff]
    %v286 = vld [vmem:[%s0 + $0x770] sm:$0xff]
    %v287 = vld [vmem:[%s0 + $0x778] sm:$0xff]
    %v288 = vld [vmem:[%s0 + $0x780] sm:$0xff]
    %v289 = vld [vmem:[%s0 + $0x788] sm:$0xff]
    %v290 = vld [vmem:[%s0 + $0x790] sm:$0xff]
    %v291 = vld [vmem:[%s0 + $0x798] sm:$0xff]
    %v292 = vld [vmem:[%s0 + $0x7a0] sm:$0xff]
    %v293 = vld [vmem:[%s0 + $0x7a8] sm:$0xff]
    %v294 = vld [vmem:[%s0 + $0x7b0] sm:$0xff]
    %v295 = vld [vmem:[%s0 + $0x7b8] sm:$0xff]
    %v296 = vld [vmem:[%s0 + $0x7c0] sm:$0xff]
    %v297 = vld [vmem:[%s0 + $0x7c8] sm:$0xff]
    %v298 = vld [vmem:[%s0 + $0x7d0] sm:$0xff]
    %v299 = vld [vmem:[%s0 + $0x7d8] sm:$0xff]
    %v300 = vld [vmem:[%s0 + $0x7e0] sm:$0xff]
    %v301 = vld [vmem:[%s0 + $0x7e8] sm:$0xff]
    %v302 = vld [vmem:[%s0 + $0x7f0] sm:$0xff]
    %v303 = vld [vmem:[%s0 + $0x7f8] sm:$0xff]
    %v304 = vld [vmem:[%s0 + $0x800] sm:$0xff]
    %v305 = vld [vmem:[%s0 + $0x808] sm:$0xff]
    %v306 = vld [vmem:[%s0 + $0x810] sm:$0xff]
    %v307 = vld [vmem:[%s0 + $0x818] sm:$0xff]
    %v308 = vld [vmem:[%s0 + $0x820] sm:$0xff]
    %v309 = vld [vmem:[%s0 + $0x828] sm:$0xff]
    %v310 = vld [vmem:[%s0 + $0x830] sm:$0xff]
    %v311 = vld [vmem:[%s0 + $0x838] sm:$0xff]
    %v312 = vld [vmem:[%s0 + $0x840] sm:$0xff]
    %v313 = vld [vmem:[%s0 + $0x848] sm:$0xff]
    %v314 = vld [vmem:[%s0 + $0x850] sm:$0xff]
    %v315 = vld [vmem:[%s0 + $0x858] sm:$0xff]
    %v316 = vld [vmem:[%s0 + $0x860] sm:$0xff]
    %v317 = vld [vmem:[%s0 + $0x868] sm:$0xff]
    %v318 = vld [vmem:[%s0 + $0x870] sm:$0xff]
    %v319 = vld [vmem:[%s0 + $0x878] sm:$0xff]
    %v320 = vld [vmem:[%s0 + $0x880] sm:$0xff]
    %v321 = vld [vmem:[%s0 + $0x888] sm:$0xff]
    %v322 = vld [vmem:[%s0 + $0x890] sm:$0xff]
    %v323 = vld [vmem:[%s0 + $0x898] sm:$0xff]
    %v324 = vld [vmem:[%s0 + $0x8a0] sm:$0xff]
    %v325 = vld [vmem:[%s0 + $0x8a8] sm:$0xff]
    %v326 = vld [vmem:[%s0 + $0x8b0] sm:$0xff]
    %v327 = vld [vmem:[%s0 + $0x8b8] sm:$0xff]
    %v328 = vld [vmem:[%s0 + $0x8c0] sm:$0xff]
    %v329 = vld [vmem:[%s0 + $0x8c8] sm:$0xff]
    %v330 = vld [vmem:[%s0 + $0x8d0] sm:$0xff]
    %v331 = vld [vmem:[%s0 + $0x8d8] sm:$0xff]
    %v332 = vld [vmem:[%s0 + $0x8e0] sm:$0xff]
    %v333 = vld [vmem:[%s0 + $0x8e8] sm:$0xff]
    %v334 = vld [vmem:[%s0 + $0x8f0] sm:$0xff]
    %v335 = vld [vmem:[%s0 + $0x8f8] sm:$0xff]
    %v336 = vld [vmem:[%s0 + $0x900] sm:$0xff]
    %v337 = vld [vmem:[%s0 + $0x908] sm:$0xff]
    %v338 = vld [vmem:[%s0 + $0x910] sm:$0xff]
    %v339 = vld [vmem:[%s0 + $0x918] sm:$0xff]
    %v340 = vld [vmem:[%s0 + $0x920] sm:$0xff]
    %v341 = vld [vmem:[%s0 + $0x928] sm:$0xff]
    %v342 = vld [vmem:[%s0 + $0x930] sm:$0xff]
    %v343 = vld [vmem:[%s0 + $0x938] sm:$0xff]
    %v344 = vld [vmem:[%s0 + $0x940] sm:$0xff]
    %v345 = vld [vmem:[%s0 + $0x948] sm:$0xff]
    %v346 = vld [vmem:[%s0 + $0x950] sm:$0xff]
    %v347 = vld [vmem:[%s0 + $0x958] sm:$0xff]
    %v348 = vld [vmem:[%s0 + $0x960] sm:$0xff]
    %v349 = vld [vmem:[%s0 + $0x968] sm:$0xff]
    %v350 = vld [vmem:[%s0 + $0x970] sm:$0xff]
    %v351 = vld [vmem:[%s0 + $0x978] sm:$0xff]
    %v352 = vld [vmem:[%s0 + $0x980] sm:$0xff]
    %v353 = vld [vmem:[%s0 + $0x988] sm:$0xff]
    %v354 = vld [vmem:[%s0 + $0x990] sm:$0xff]
    %v355 = vld [vmem:[%s0 + $0x998] sm:$0xff]
    %v356 = vld [vmem:[%s0 + $0x9a0] sm:$0xff]
    %v357 = vld [vmem:[%s0 + $0x9a8] sm:$0xff]
    %v358 = vld [vmem:[%s0 + $0x9b0] sm:$0xff]
    %v359 = vld [vmem:[%s0 + $0x9b8] sm:$0xff]
    %v360 = vld [vmem:[%s0 + $0x9c0] sm:$0xff]
    %v361 = vld [vmem:[%s0 + $0x9c8] sm:$0xff]
    %v362 = vld [vmem:[%s0 + $0x9d0] sm:$0xff]
    %v363 = vld [vmem:[%s0 + $0x9d8] sm:$0xff]
    %v364 = vld [vmem:[%s0 + $0x9e0] sm:$0xff]
    %v365 = vld [vmem:[%s0 + $0x9e8] sm:$0xff]
    %v366 = vld [vmem:[%s0 + $0x9f0] sm:$0xff]
    %v367 = vld [vmem:[%s0 + $0x9f8] sm:$0xff]
    %v368 = vld [vmem:[%s0 + $0xa00] sm:$0xff]
    %v369 = vld [vmem:[%s0 + $0xa08] sm:$0xff]
    %v370 = vld [vmem:[%s0 + $0xa10] sm:$0xff]
    %v371 = vld [vmem:[%s0 + $0xa18] sm:$0xff]
    %v372 = vld [vmem:[%s0 + $0xa20] sm:$0xff]
    %v373 = vld [vmem:[%s0 + $0xa28] sm:$0xff]
    %v374 = vld [vmem:[%s0 + $0xa30] sm:$0xff]
    %v375 = vld [vmem:[%s0 + $0xa38] sm:$0xff]
    %v376 = vld [vmem:[%s0 + $0xa40] sm:$0xff]
    %v377 = vld [vmem:[%s0 + $0xa48] sm:$0xff]
    %v378 = vld [vmem:[%s0 + $0xa50] sm:$0xff]
    %v379 = vld [vmem:[%s0 + $0xa58] sm:$0xff]
    %v380 = vld [vmem:[%s0 + $0xa60] sm:$0xff]
    %v381 = vld [vmem:[%s0 + $0xa68] sm:$0xff]
    %v382 = vld [vmem:[%s0 + $0xa70] sm:$0xff]
    %v383 = vld [vmem:[%s0 + $0xa78] sm:$0xff]
    %v384 = vld [vmem:[%s0 + $0xa80] sm:$0xff]
    %v385 = vld [vmem:[%s0 + $0xa88] sm:$0xff]
    %v386 = vld [vmem:[%s0 + $0xa90] sm:$0xff]
    %v387 = vld [vmem:[%s0 + $0xa98] sm:$0xff]
    %v388 = vld [vmem:[%s0 + $0xaa0] sm:$0xff]
    %v389 = vld [vmem:[%s0 + $0xaa8] sm:$0xff]
    %v390 = vld [vmem:[%s0 + $0xab0] sm:$0xff]
    %v391 = vld [vmem:[%s0 + $0xab8] sm:$0xff]
    %v392 = vld [vmem:[%s0 + $0xac0] sm:$0xff]
    %v393 = vld [vmem:[%s0 + $0xac8] sm:$0xff]
    %v394 = vld [vmem:[%s0 + $0xad0] sm:$0xff]
    %v395 = vld [vmem:[%s0 + $0xad8] sm:$0xff]
    %v396 = vld [vmem:[%s0 + $0xae0] sm:$0xff]
    %v397 = vld [vmem:[%s0 + $0xae8] sm:$0xff]
    %v398 = vld [vmem:[%s0 + $0xaf0] sm:$0xff]
    %v399 = vld [vmem:[%s0 + $0xaf8] sm:$0xff]
    %v400 = vld [vmem:[%s0 + $0xb00] sm:$0xff]
    %v401 = vld [vmem:[%s0 + $0xb08] sm:$0xff]
    %v402 = vld [vmem:[%s0 + $0xb10] sm:$0xff]
    %v403 = vld [vmem:[%s0 + $0xb18] sm:$0xff]
    %v404 = vld [vmem:[%s0 + $0xb20] sm:$0xff]
    %v405 = vld [vmem:[%s0 + $0xb28] sm:$0xff]
    %v406 = vld [vmem:[%s0 + $0xb30] sm:$0xff]
    %v407 = vld [vmem:[%s0 + $0xb38] sm:$0xff]
    %v408 = vld [vmem:[%s0 + $0xb40] sm:$0xff]
    %v409 = vld [vmem:[%s0 + $0xb48] sm:$0xff]
    %v410 = vld [vmem:[%s0 + $0xb50] sm:$0xff]
    %v411 = vld [vmem:[%s0 + $0xb58] sm:$0xff]
    %v412 = vld [vmem:[%s0 + $0xb60] sm:$0xff]
    %v413 = vld [vmem:[%s0 + $0xb68] sm:$0xff]
    %v414 = vld [vmem:[%s0 + $0xb70] sm:$0xff]
    %v415 = vld [vmem:[%s0 + $0xb78] sm:$0xff]
    %v416 = vld [vmem:[%s0 + $0xb80] sm:$0xff]
    %v417 = vld [vmem:[%s0 + $0xb88] sm:$0xff]
    %v418 = vld [vmem:[%s0 + $0xb90] sm:$0xff]
    %v419 = vld [vmem:[%s0 + $0xb98] sm:$0xff]
    %v420 = vld [vmem:[%s0 + $0xba0] sm:$0xff]
    %v421 = vld [vmem:[%s0 + $0xba8] sm:$0xff]
    %v422 = vld [vmem:[%s0 + $0xbb0] sm:$0xff]
    %v423 = vld [vmem:[%s0 + $0xbb8] sm:$0xff]
    %v424 = vld [vmem:[%s0 + $0xbc0] sm:$0xff]
    %v425 = vld [vmem:[%s0 + $0xbc8] sm:$0xff]
    %v426 = vld [vmem:[%s0 + $0xbd0] sm:$0xff]
    %v427 = vld [vmem:[%s0 + $0xbd8] sm:$0xff]
    %v428 = vld [vmem:[%s0 + $0xbe0] sm:$0xff]
    %v429 = vld [vmem:[%s0 + $0xbe8] sm:$0xff]
    %v430 = vld [vmem:[%s0 + $0xbf0] sm:$0xff]
    %v431 = vld [vmem:[%s0 + $0xbf8] sm:$0xff]
    %v432 = vld [vmem:[%s0 + $0xc00] sm:$0xff]
    %v433 = vld [vmem:[%s0 + $0xc08] sm:$0xff]
    %v434 = vld [vmem:[%s0 + $0xc10] sm:$0xff]
    %v435 = vld [vmem:[%s0 + $0xc18] sm:$0xff]
    %v436 = vld [vmem:[%s0 + $0xc20] sm:$0xff]
    %v437 = vld [vmem:[%s0 + $0xc28] sm:$0xff]
    %v438 = vld [vmem:[%s0 + $0xc30] sm:$0xff]
    %v439 = vld [vmem:[%s0 + $0xc38] sm:$0xff]
    %v440 = vld [vmem:[%s0 + $0xc40] sm:$0xff]
    %v441 = vld [vmem:[%s0 + $0xc48] sm:$0xff]
    %v442 = vld [vmem:[%s0 + $0xc50] sm:$0xff]
    %v443 = vld [vmem:[%s0 + $0xc58] sm:$0xff]
    %v444 = vld [vmem:[%s0 + $0xc60] sm:$0xff]
    %v445 = vld [vmem:[%s0 + $0xc68] sm:$0xff]
    %v446 = vld [vmem:[%s0 + $0xc70] sm:$0xff]
    %v447 = vld [vmem:[%s0 + $0xc78] sm:$0xff]
    %v448 = vld [vmem:[%s0 + $0xc80] sm:$0xff]
    %v449 = vld [vmem:[%s0 + $0xc88] sm:$0xff]
    %v450 = vld [vmem:[%s0 + $0xc90] sm:$0xff]
    %v451 = vld [vmem:[%s0 + $0xc98] sm:$0xff]
    %v452 = vld [vmem:[%s0 + $0xca0] sm:$0xff]
    %v453 = vld [vmem:[%s0 + $0xca8] sm:$0xff]
    %v454 = vld [vmem:[%s0 + $0xcb0] sm:$0xff]
    %v455 = vld [vmem:[%s0 + $0xcb8] sm:$0xff]
    %v456 = vld [vmem:[%s0 + $0xcc0] sm:$0xff]
    %v457 = vld [vmem:[%s0 + $0xcc8] sm:$0xff]
    %v458 = vld [vmem:[%s0 + $0xcd0] sm:$0xff]
    %v459 = vld [vmem:[%s0 + $0xcd8] sm:$0xff]
    %v460 = vld [vmem:[%s0 + $0xce0] sm:$0xff]
    %v461 = vld [vmem:[%s0 + $0xce8] sm:$0xff]
    %v462 = vld [vmem:[%s0 + $0xcf0] sm:$0xff]
    %v463 = vld [vmem:[%s0 + $0xcf8] sm:$0xff]
    %v464 = vld [vmem:[%s0 + $0xd00] sm:$0xff]
    %v465 = vld [vmem:[%s0 + $0xd08] sm:$0xff]
    %v466 = vld [vmem:[%s0 + $0xd10] sm:$0xff]
    %v467 = vld [vmem:[%s0 + $0xd18] sm:$0xff]
    %v468 = vld [vmem:[%s0 + $0xd20] sm:$0xff]
    %v469 = vld [vmem:[%s0 + $0xd28] sm:$0xff]
    %v470 = vld [vmem:[%s0 + $0xd30] sm:$0xff]
    %v471 = vld [vmem:[%s0 + $0xd38] sm:$0xff]
    %v472 = vld [vmem:[%s0 + $0xd40] sm:$0xff]
    %v473 = vld [vmem:[%s0 + $0xd48] sm:$0xff]
    %v474 = vld [vmem:[%s0 + $0xd50] sm:$0xff]
    %v475 = vld [vmem:[%s0 + $0xd58] sm:$0xff]
    %v476 = vld [vmem:[%s0 + $0xd60] sm:$0xff]
    %v477 = vld [vmem:[%s0 + $0xd68] sm:$0xff]
    %v478 = vld [vmem:[%s0 + $0xd70] sm:$0xff]
    %v479 = vld [vmem:[%s0 + $0xd78] sm:$0xff]
    %v480 = vld [vmem:[%s0 + $0xd80] sm:$0xff]
    %v481 = vld [vmem:[%s0 + $0xd88] sm:$0xff]
    %v482 = vld [vmem:[%s0 + $0xd90] sm:$0xff]
    %v483 = vld [vmem:[%s0 + $0xd98] sm:$0xff]
    %v484 = vld [vmem:[%s0 + $0xda0] sm:$0xff]
    %v485 = vld [vmem:[%s0 + $0xda8] sm:$0xff]
    %v486 = vld [vmem:[%s0 + $0xdb0] sm:$0xff]
    %v487 = vld [vmem:[%s0 + $0xdb8] sm:$0xff]
    %v488 = vld [vmem:[%s0 + $0xdc0] sm:$0xff]
    %v489 = vld [vmem:[%s0 + $0xdc8] sm:$0xff]
    %v490 = vld [vmem:[%s0 + $0xdd0] sm:$0xff]
    %v491 = vld [vmem:[%s0 + $0xdd8] sm:$0xff]
    %v492 = vld [vmem:[%s0 + $0xde0] sm:$0xff]
    %v493 = vld [vmem:[%s0 + $0xde8] sm:$0xff]
    %v494 = vld [vmem:[%s0 + $0xdf0] sm:$0xff]
    %v495 = vld [vmem:[%s0 + $0xdf8] sm:$0xff]
    %v496 = vld [vmem:[%s0 + $0xe00] sm:$0xff]
    %v497 = vld [vmem:[%s0 + $0xe08] sm:$0xff]
    %v498 = vld [vmem:[%s0 + $0xe10] sm:$0xff]
    %v499 = vld [vmem:[%s0 + $0xe18] sm:$0xff]
    %v500 = vld [vmem:[%s0 + $0xe20] sm:$0xff]
    %v501 = vld [vmem:[%s0 + $0xe28] sm:$0xff]
    %v502 = vld [vmem:[%s0 + $0xe30] sm:$0xff]
    %v503 = vld [vmem:[%s0 + $0xe38] sm:$0xff]
    %v504 = vld [vmem:[%s0 + $0xe40] sm:$0xff]
    %v505 = vld [vmem:[%s0 + $0xe48] sm:$0xff]
    %v506 = vld [vmem:[%s0 + $0xe50] sm:$0xff]
    %v507 = vld [vmem:[%s0 + $0xe58] sm:$0xff]
    %v508 = vld [vmem:[%s0 + $0xe60] sm:$0xff]
    %v509 = vld [vmem:[%s0 + $0xe68] sm:$0xff]
    %v510 = vld [vmem:[%s0 + $0xe70] sm:$0xff]
    %v511 = vld [vmem:[%s0 + $0xe78] sm:$0xff]
    %v512 = vld [vmem:[%s0 + $0xe80] sm:$0xff]
    %v513 = vld [vmem:[%s0 + $0xe88] sm:$0xff]
    %v514 = vld [vmem:[%s0 + $0xe90] sm:$0xff]
    %v515 = vld [vmem:[%s0 + $0xe98] sm:$0xff]
    %v516 = vld [vmem:[%s0 + $0xea0] sm:$0xff]
    %v517 = vld [vmem:[%s0 + $0xea8] sm:$0xff]
    %v518 = vld [vmem:[%s0 + $0xeb0] sm:$0xff]
    %v519 = vld [vmem:[%s0 + $0xeb8] sm:$0xff]
    %v520 = vld [vmem:[%s0 + $0xec0] sm:$0xff]
    %v521 = vld [vmem:[%s0 + $0xec8] sm:$0xff]
    %v522 = vld [vmem:[%s0 + $0xed0] sm:$0xff]
    %v523 = vld [vmem:[%s0 + $0xed8] sm:$0xff]
    %v524 = vld [vmem:[%s0 + $0xee0] sm:$0xff]
    %v525 = vld [vmem:[%s0 + $0xee8] sm:$0xff]
    %v526 = vld [vmem:[%s0 + $0xef0] sm:$0xff]
    %v527 = vld [vmem:[%s0 + $0xef8] sm:$0xff]
    %v528 = vld [vmem:[%s0 + $0xf00] sm:$0xff]
    %v529 = vld [vmem:[%s0 + $0xf08] sm:$0xff]
    %v530 = vld [vmem:[%s0 + $0xf10] sm:$0xff]
    %v531 = vld [vmem:[%s0 + $0xf18] sm:$0xff]
    %v532 = vld [vmem:[%s0 + $0xf20] sm:$0xff]
    %v533 = vld [vmem:[%s0 + $0xf28] sm:$0xff]
    %v534 = vld [vmem:[%s0 + $0xf30] sm:$0xff]
    %v535 = vld [vmem:[%s0 + $0xf38] sm:$0xff]
    %v536 = vld [vmem:[%s0 + $0xf40] sm:$0xff]
    %v537 = vld [vmem:[%s0 + $0xf48] sm:$0xff]
    %v538 = vld [vmem:[%s0 + $0xf50] sm:$0xff]
    %v539 = vld [vmem:[%s0 + $0xf58] sm:$0xff]
    %v540 = vld [vmem:[%s0 + $0xf60] sm:$0xff]
    %v541 = vld [vmem:[%s0 + $0xf68] sm:$0xff]
    %v542 = vld [vmem:[%s0 + $0xf70] sm:$0xff]
    %v543 = vld [vmem:[%s0 + $0xf78] sm:$0xff]
    %v544 = vld [vmem:[%s0 + $0xf80] sm:$0xff]
    %v545 = vld [vmem:[%s0 + $0xf88] sm:$0xff]
    %v546 = vld [vmem:[%s0 + $0xf90] sm:$0xff]
    %v547 = vld [vmem:[%s0 + $0xf98] sm:$0xff]
    %v548 = vld [vmem:[%s0 + $0xfa0] sm:$0xff]
    %v549 = vld [vmem:[%s0 + $0xfa8] sm:$0xff]
    %v550 = vld [vmem:[%s0 + $0xfb0] sm:$0xff]
    %v551 = vld [vmem:[%s0 + $0xfb8] sm:$0xff]
    %v552 = vld [vmem:[%s0 + $0xfc0] sm:$0xff]
    %v553 = vld [vmem:[%s0 + $0xfc8] sm:$0xff]
    %v554 = vld [vmem:[%s0 + $0xfd0] sm:$0xff]
    %v555 = vld [vmem:[%s0 + $0xfd8] sm:$0xff]
    %v556 = vld [vmem:[%s0 + $0xfe0] sm:$0xff]
    %v557 = vld [vmem:[%s0 + $0xfe8] sm:$0xff]
    %v558 = vld [vmem:[%s0 + $0xff0] sm:$0xff]
    %v559 = vld [vmem:[%s0 + $0xff8] sm:$0xff]
    %v560 = vld [vmem:[%s0 + $0x1000] sm:$0xff]
    %v561 = vld [vmem:[%s0 + $0x1008] sm:$0xff]
    %v562 = vld [vmem:[%s0 + $0x1010] sm:$0xff]
    %v563 = vld [vmem:[%s0 + $0x1018] sm:$0xff]
    %v564 = vld [vmem:[%s0 + $0x1020] sm:$0xff]
    %v565 = vld [vmem:[%s0 + $0x1028] sm:$0xff]
    %v566 = vld [vmem:[%s0 + $0x1030] sm:$0xff]
    %v567 = vld [vmem:[%s0 + $0x1038] sm:$0xff]
    %v568 = vld [vmem:[%s0 + $0x1040] sm:$0xff]
    %v569 = vld [vmem:[%s0 + $0x1048] sm:$0xff]
    %v570 = vld [vmem:[%s0 + $0x1050] sm:$0xff]
    %v571 = vld [vmem:[%s0 + $0x1058] sm:$0xff]
    %v572 = vld [vmem:[%s0 + $0x1060] sm:$0xff]
    %v573 = vld [vmem:[%s0 + $0x1068] sm:$0xff]
    %v574 = vld [vmem:[%s0 + $0x1070] sm:$0xff]
    %v575 = vld [vmem:[%s0 + $0x1078] sm:$0xff]
    %v576 = vld [vmem:[%s0 + $0x1080] sm:$0xff]
    %v577 = vld [vmem:[%s0 + $0x1088] sm:$0xff]
    %v578 = vld [vmem:[%s0 + $0x1090] sm:$0xff]
    %v579 = vld [vmem:[%s0 + $0x1098] sm:$0xff]
    %v580 = vld [vmem:[%s0 + $0x10a0] sm:$0xff]
    %v581 = vld [vmem:[%s0 + $0x10a8] sm:$0xff]
    %v582 = vld [vmem:[%s0 + $0x10b0] sm:$0xff]
    %v583 = vld [vmem:[%s0 + $0x10b8] sm:$0xff]
    %v584 = vld [vmem:[%s0 + $0x10c0] sm:$0xff]
    %v585 = vld [vmem:[%s0 + $0x10c8] sm:$0xff]
    %v586 = vld [vmem:[%s0 + $0x10d0] sm:$0xff]
    %v587 = vld [vmem:[%s0 + $0x10d8] sm:$0xff]
    %v588 = vld [vmem:[%s0 + $0x10e0] sm:$0xff]
    %v589 = vld [vmem:[%s0 + $0x10e8] sm:$0xff]
    %v590 = vld [vmem:[%s0 + $0x10f0] sm:$0xff]
    %v591 = vld [vmem:[%s0 + $0x10f8] sm:$0xff]
    %v592 = vld [vmem:[%s0 + $0x1100] sm:$0xff]
    %v593 = vld [vmem:[%s0 + $0x1108] sm:$0xff]
    %v594 = vld [vmem:[%s0 + $0x1110] sm:$0xff]
    %v595 = vld [vmem:[%s0 + $0x1118] sm:$0xff]
    %v596 = vld [vmem:[%s0 + $0x1120] sm:$0xff]
    %v597 = vld [vmem:[%s0 + $0x1128] sm:$0xff]
    %v598 = vld [vmem:[%s0 + $0x1130] sm:$0xff]
    %v599 = vld [vmem:[%s0 + $0x1138] sm:$0xff]
    %v600 = vld [vmem:[%s0 + $0x1140] sm:$0xff]
    %v601 = vld [vmem:[%s0 + $0x1148] sm:$0xff]
    %v602 = vld [vmem:[%s0 + $0x1150] sm:$0xff]
    %v603 = vld [vmem:[%s0 + $0x1158] sm:$0xff]
    %v604 = vld [vmem:[%s0 + $0x1160] sm:$0xff]
    %v605 = vld [vmem:[%s0 + $0x1168] sm:$0xff]
    %v606 = vld [vmem:[%s0 + $0x1170] sm:$0xff]
    %v607 = vld [vmem:[%s0 + $0x1178] sm:$0xff]
    %v608 = vld [vmem:[%s0 + $0x1180] sm:$0xff]
    %v609 = vld [vmem:[%s0 + $0x1188] sm:$0xff]
    %v610 = vld [vmem:[%s0 + $0x1190] sm:$0xff]
    %v611 = vld [vmem:[%s0 + $0x1198] sm:$0xff]
    %v612 = vld [vmem:[%s0 + $0x11a0] sm:$0xff]
    %v613 = vld [vmem:[%s0 + $0x11a8] sm:$0xff]
    %v614 = vld [vmem:[%s0 + $0x11b0] sm:$0xff]
    %v615 = vld [vmem:[%s0 + $0x11b8] sm:$0xff]
    %v616 = vld [vmem:[%s0 + $0x11c0] sm:$0xff]
    %v617 = vld [vmem:[%s0 + $0x11c8] sm:$0xff]
    %v618 = vld [vmem:[%s0 + $0x11d0] sm:$0xff]
    %v619 = vld [vmem:[%s0 + $0x11d8] sm:$0xff]
    %v620 = vld [vmem:[%s0 + $0x11e0] sm:$0xff]
    %v621 = vld [vmem:[%s0 + $0x11e8] sm:$0xff]
    %v622 = vld [vmem:[%s0 + $0x11f0] sm:$0xff]
    %v623 = vld [vmem:[%s0 + $0x11f8] sm:$0xff]
    %v624 = vld [vmem:[%s0 + $0x1200] sm:$0xff]
    %v625 = vld [vmem:[%s0 + $0x1208] sm:$0xff]
    %v626 = vld [vmem:[%s0 + $0x1210] sm:$0xff]
    %v627 = vld [vmem:[%s0 + $0x1218] sm:$0xff]
    %v628 = vld [vmem:[%s0 + $0x1220] sm:$0xff]
    %v629 = vld [vmem:[%s0 + $0x1228] sm:$0xff]
    %v630 = vld [vmem:[%s0 + $0x1230] sm:$0xff]
    %v631 = vld [vmem:[%s0 + $0x1238] sm:$0xff]
    %v632 = vld [vmem:[%s0 + $0x1240] sm:$0xff]
    %v633 = vld [vmem:[%s0 + $0x1248] sm:$0xff]
    %v634 = vld [vmem:[%s0 + $0x1250] sm:$0xff]
    %v635 = vld [vmem:[%s0 + $0x1258] sm:$0xff]
    %v636 = vld [vmem:[%s0 + $0x1260] sm:$0xff]
    %v637 = vld [vmem:[%s0 + $0x1268] sm:$0xff]
    %v638 = vld [vmem:[%s0 + $0x1270] sm:$0xff]
    %v639 = vld [vmem:[%s0 + $0x1278] sm:$0xff]
    %v640 = vld [vmem:[%s0 + $0x1280] sm:$0xff]
    %v641 = vld [vmem:[%s0 + $0x1288] sm:$0xff]
    %v642 = vld [vmem:[%s0 + $0x1290] sm:$0xff]
    %v643 = vld [vmem:[%s0 + $0x1298] sm:$0xff]
    %v644 = vld [vmem:[%s0 + $0x12a0] sm:$0xff]
    %v645 = vld [vmem:[%s0 + $0x12a8] sm:$0xff]
    %v646 = vld [vmem:[%s0 + $0x12b0] sm:$0xff]
    %v647 = vld [vmem:[%s0 + $0x12b8] sm:$0xff]
    %v648 = vld [vmem:[%s0 + $0x12c0] sm:$0xff]
    %v649 = vld [vmem:[%s0 + $0x12c8] sm:$0xff]
    %v650 = vld [vmem:[%s0 + $0x12d0] sm:$0xff]
    %v651 = vld [vmem:[%s0 + $0x12d8] sm:$0xff]
    %v652 = vld [vmem:[%s0 + $0x12e0] sm:$0xff]
    %v653 = vld [vmem:[%s0 + $0x12e8] sm:$0xff]
    %v654 = vld [vmem:[%s0 + $0x12f0] sm:$0xff]
    %v655 = vld [vmem:[%s0 + $0x12f8] sm:$0xff]
    %v656 = vld [vmem:[%s0 + $0x1300] sm:$0xff]
    %v657 = vld [vmem:[%s0 + $0x1308] sm:$0xff]
    %v658 = vld [vmem:[%s0 + $0x1310] sm:$0xff]
    %v659 = vld [vmem:[%s0 + $0x1318] sm:$0xff]
    %v660 = vld [vmem:[%s0 + $0x1320] sm:$0xff]
    %v661 = vld [vmem:[%s0 + $0x1328] sm:$0xff]
    %v662 = vld [vmem:[%s0 + $0x1330] sm:$0xff]
    %v663 = vld [vmem:[%s0 + $0x1338] sm:$0xff]
    %v664 = vld [vmem:[%s0 + $0x1340] sm:$0xff]
    %v665 = vld [vmem:[%s0 + $0x1348] sm:$0xff]
    %v666 = vld [vmem:[%s0 + $0x1350] sm:$0xff]
    %v667 = vld [vmem:[%s0 + $0x1358] sm:$0xff]
    %v668 = vld [vmem:[%s0 + $0x1360] sm:$0xff]
    %v669 = vld [vmem:[%s0 + $0x1368] sm:$0xff]
    %v670 = vld [vmem:[%s0 + $0x1370] sm:$0xff]
    %v671 = vld [vmem:[%s0 + $0x1378] sm:$0xff]
    %v672 = vld [vmem:[%s0 + $0x1380] sm:$0xff]
    %v673 = vld [vmem:[%s0 + $0x1388] sm:$0xff]
    %v674 = vld [vmem:[%s0 + $0x1390] sm:$0xff]
    %v675 = vld [vmem:[%s0 + $0x1398] sm:$0xff]
    %v676 = vld [vmem:[%s0 + $0x13a0] sm:$0xff]
    %v677 = vld [vmem:[%s0 + $0x13a8] sm:$0xff]
    %v678 = vld [vmem:[%s0 + $0x13b0] sm:$0xff]
    %v679 = vld [vmem:[%s0 + $0x13b8] sm:$0xff]
    %v680 = vld [vmem:[%s0 + $0x13c0] sm:$0xff]
    %v681 = vld [vmem:[%s0 + $0x13c8] sm:$0xff]
    %v682 = vld [vmem:[%s0 + $0x13d0] sm:$0xff]
    %v683 = vld [vmem:[%s0 + $0x13d8] sm:$0xff]
    %v684 = vld [vmem:[%s0 + $0x13e0] sm:$0xff]
    %v685 = vld [vmem:[%s0 + $0x13e8] sm:$0xff]
    %v686 = vld [vmem:[%s0 + $0x13f0] sm:$0xff]
    %v687 = vld [vmem:[%s0 + $0x13f8] sm:$0xff]
    %v688 = vld [vmem:[%s0 + $0x1400] sm:$0xff]
    %v689 = vld [vmem:[%s0 + $0x1408] sm:$0xff]
    %v690 = vld [vmem:[%s0 + $0x1410] sm:$0xff]
    %v691 = vld [vmem:[%s0 + $0x1418] sm:$0xff]
    %v692 = vld [vmem:[%s0 + $0x1420] sm:$0xff]
    %v693 = vld [vmem:[%s0 + $0x1428] sm:$0xff]
    %v694 = vld [vmem:[%s0 + $0x1430] sm:$0xff]
    %v695 = vld [vmem:[%s0 + $0x1438] sm:$0xff]
    %v696 = vld [vmem:[%s0 + $0x1440] sm:$0xff]
    %v697 = vld [vmem:[%s0 + $0x1448] sm:$0xff]
    %v698 = vld [vmem:[%s0 + $0x1450] sm:$0xff]
    %v699 = vld [vmem:[%s0 + $0x1458] sm:$0xff]
    %v700 = vld [vmem:[%s0 + $0x1460] sm:$0xff]
    %v701 = vld [vmem:[%s0 + $0x1468] sm:$0xff]
    %v702 = vld [vmem:[%s0 + $0x1470] sm:$0xff]
    %v703 = vld [vmem:[%s0 + $0x1478] sm:$0xff]
    %v704 = vld [vmem:[%s0 + $0x1480] sm:$0xff]
    %v705 = vld [vmem:[%s0 + $0x1488] sm:$0xff]
    %v706 = vld [vmem:[%s0 + $0x1490] sm:$0xff]
    %v707 = vld [vmem:[%s0 + $0x1498] sm:$0xff]
    %v708 = vld [vmem:[%s0 + $0x14a0] sm:$0xff]
    %v709 = vld [vmem:[%s0 + $0x14a8] sm:$0xff]
    %v710 = vld [vmem:[%s0 + $0x14b0] sm:$0xff]
    %v711 = vld [vmem:[%s0 + $0x14b8] sm:$0xff]
    %v712 = vld [vmem:[%s0 + $0x14c0] sm:$0xff]
    %v713 = vld [vmem:[%s0 + $0x14c8] sm:$0xff]
    %v714 = vld [vmem:[%s0 + $0x14d0] sm:$0xff]
    %v715 = vld [vmem:[%s0 + $0x14d8] sm:$0xff]
    %v716 = vld [vmem:[%s0 + $0x14e0] sm:$0xff]
    %v717 = vld [vmem:[%s0 + $0x14e8] sm:$0xff]
    %v718 = vld [vmem:[%s0 + $0x14f0] sm:$0xff]
    %v719 = vld [vmem:[%s0 + $0x14f8] sm:$0xff]
    %v720 = vld [vmem:[%s0 + $0x1500] sm:$0xff]
    %v721 = vld [vmem:[%s0 + $0x1508] sm:$0xff]
    %v722 = vld [vmem:[%s0 + $0x1510] sm:$0xff]
    %v723 = vld [vmem:[%s0 + $0x1518] sm:$0xff]
    %v724 = vld [vmem:[%s0 + $0x1520] sm:$0xff]
    %v725 = vld [vmem:[%s0 + $0x1528] sm:$0xff]
    %v726 = vld [vmem:[%s0 + $0x1530] sm:$0xff]
    %v727 = vld [vmem:[%s0 + $0x1538] sm:$0xff]
    %v728 = vld [vmem:[%s0 + $0x1540] sm:$0xff]
    %v729 = vld [vmem:[%s0 + $0x1548] sm:$0xff]
    %v730 = vld [vmem:[%s0 + $0x1550] sm:$0xff]
    %v731 = vld [vmem:[%s0 + $0x1558] sm:$0xff]
    %v732 = vld [vmem:[%s0 + $0x1560] sm:$0xff]
    %v733 = vld [vmem:[%s0 + $0x1568] sm:$0xff]
    %v734 = vld [vmem:[%s0 + $0x1570] sm:$0xff]
    %v735 = vld [vmem:[%s0 + $0x1578] sm:$0xff]
    %v736 = vld [vmem:[%s0 + $0x1580] sm:$0xff]
    %v737 = vld [vmem:[%s0 + $0x1588] sm:$0xff]
    %v738 = vld [vmem:[%s0 + $0x1590] sm:$0xff]
    %v739 = vld [vmem:[%s0 + $0x1598] sm:$0xff]
    %v740 = vld [vmem:[%s0 + $0x15a0] sm:$0xff]
    %v741 = vld [vmem:[%s0 + $0x15a8] sm:$0xff]
    %v742 = vld [vmem:[%s0 + $0x15b0] sm:$0xff]
    %v743 = vld [vmem:[%s0 + $0x15b8] sm:$0xff]
    %v744 = vld [vmem:[%s0 + $0x15c0] sm:$0xff]
    %v745 = vld [vmem:[%s0 + $0x15c8] sm:$0xff]
    %v746 = vld [vmem:[%s0 + $0x15d0] sm:$0xff]
    %v747 = vld [vmem:[%s0 + $0x15d8] sm:$0xff]
    %v748 = vld [vmem:[%s0 + $0x15e0] sm:$0xff]
    %v749 = vld [vmem:[%s0 + $0x15e8] sm:$0xff]
    %v750 = vld [vmem:[%s0 + $0x15f0] sm:$0xff]
    %v751 = vld [vmem:[%s0 + $0x15f8] sm:$0xff]
    %v752 = vld [vmem:[%s0 + $0x1600] sm:$0xff]
    %v753 = vld [vmem:[%s0 + $0x1608] sm:$0xff]
    %v754 = vld [vmem:[%s0 + $0x1610] sm:$0xff]
    %v755 = vld [vmem:[%s0 + $0x1618] sm:$0xff]
    %v756 = vld [vmem:[%s0 + $0x1620] sm:$0xff]
    %v757 = vld [vmem:[%s0 + $0x1628] sm:$0xff]
    %v758 = vld [vmem:[%s0 + $0x1630] sm:$0xff]
    %v759 = vld [vmem:[%s0 + $0x1638] sm:$0xff]
    %v760 = vld [vmem:[%s0 + $0x1640] sm:$0xff]
    %v761 = vld [vmem:[%s0 + $0x1648] sm:$0xff]
    %v762 = vld [vmem:[%s0 + $0x1650] sm:$0xff]
    %v763 = vld [vmem:[%s0 + $0x1658] sm:$0xff]
    %v764 = vld [vmem:[%s0 + $0x1660] sm:$0xff]
    %v765 = vld [vmem:[%s0 + $0x1668] sm:$0xff]
    %v766 = vld [vmem:[%s0 + $0x1670] sm:$0xff]
    %v767 = vld [vmem:[%s0 + $0x1678] sm:$0xff]
    %v768 = vld [vmem:[%s0 + $0x1680] sm:$0xff]
    %v769 = vld [vmem:[%s0 + $0x1688] sm:$0xff]
    %v770 = vld [vmem:[%s0 + $0x1690] sm:$0xff]
    %v771 = vld [vmem:[%s0 + $0x1698] sm:$0xff]
    %v772 = vld [vmem:[%s0 + $0x16a0] sm:$0xff]
    %v773 = vld [vmem:[%s0 + $0x16a8] sm:$0xff]
    %v774 = vld [vmem:[%s0 + $0x16b0] sm:$0xff]
    %v775 = vld [vmem:[%s0 + $0x16b8] sm:$0xff]
    %v776 = vld [vmem:[%s0 + $0x16c0] sm:$0xff]
    %v777 = vld [vmem:[%s0 + $0x16c8] sm:$0xff]
    %v778 = vld [vmem:[%s0 + $0x16d0] sm:$0xff]
    %v779 = vld [vmem:[%s0 + $0x16d8] sm:$0xff]
    %v780 = vld [vmem:[%s0 + $0x16e0] sm:$0xff]
    %v781 = vld [vmem:[%s0 + $0x16e8] sm:$0xff]
    %v782 = vld [vmem:[%s0 + $0x16f0] sm:$0xff]
    %v783 = vld [vmem:[%s0 + $0x16f8] sm:$0xff]
    %v784 = vld [vmem:[%s0 + $0x1700] sm:$0xff]
    %v785 = vld [vmem:[%s0 + $0x1708] sm:$0xff]
    %v786 = vld [vmem:[%s0 + $0x1710] sm:$0xff]
    %v787 = vld [vmem:[%s0 + $0x1718] sm:$0xff]
    %v788 = vld [vmem:[%s0 + $0x1720] sm:$0xff]
    %v789 = vld [vmem:[%s0 + $0x1728] sm:$0xff]
    %v790 = vld [vmem:[%s0 + $0x1730] sm:$0xff]
    %v791 = vld [vmem:[%s0 + $0x1738] sm:$0xff]
    %v792 = vld [vmem:[%s0 + $0x1740] sm:$0xff]
    %v793 = vld [vmem:[%s0 + $0x1748] sm:$0xff]
    %v794 = vld [vmem:[%s0 + $0x1750] sm:$0xff]
    %v795 = vld [vmem:[%s0 + $0x1758] sm:$0xff]
    %v796 = vld [vmem:[%s0 + $0x1760] sm:$0xff]
    %v797 = vld [vmem:[%s0 + $0x1768] sm:$0xff]
    %v798 = vld [vmem:[%s0 + $0x1770] sm:$0xff]
    %v799 = vld [vmem:[%s0 + $0x1778] sm:$0xff]
    %v800 = vld [vmem:[%s0 + $0x1780] sm:$0xff]
    %v801 = vld [vmem:[%s0 + $0x1788] sm:$0xff]
    %v802 = vld [vmem:[%s0 + $0x1790] sm:$0xff]
    %v803 = vld [vmem:[%s0 + $0x1798] sm:$0xff]
    %v804 = vld [vmem:[%s0 + $0x17a0] sm:$0xff]
    %v805 = vld [vmem:[%s0 + $0x17a8] sm:$0xff]
    %v806 = vld [vmem:[%s0 + $0x17b0] sm:$0xff]
    %v807 = vld [vmem:[%s0 + $0x17b8] sm:$0xff]
    %v808 = vld [vmem:[%s0 + $0x17c0] sm:$0xff]
    %v809 = vld [vmem:[%s0 + $0x17c8] sm:$0xff]
    %v810 = vld [vmem:[%s0 + $0x17d0] sm:$0xff]
    %v811 = vld [vmem:[%s0 + $0x17d8] sm:$0xff]
    %v812 = vld [vmem:[%s0 + $0x17e0] sm:$0xff]
    %v813 = vld [vmem:[%s0 + $0x17e8] sm:$0xff]
    %v814 = vld [vmem:[%s0 + $0x17f0] sm:$0xff]
    %v815 = vld [vmem:[%s0 + $0x17f8] sm:$0xff]
    %v816 = vld [vmem:[%s0 + $0x1800] sm:$0xff]
    %v817 = vld [vmem:[%s0 + $0x1808] sm:$0xff]
    %v818 = vld [vmem:[%s0 + $0x1810] sm:$0xff]
    %v819 = vld [vmem:[%s0 + $0x1818] sm:$0xff]
    %v820 = vld [vmem:[%s0 + $0x1820] sm:$0xff]
    %v821 = vld [vmem:[%s0 + $0x1828] sm:$0xff]
    %v822 = vld [vmem:[%s0 + $0x1830] sm:$0xff]
    %v823 = vld [vmem:[%s0 + $0x1838] sm:$0xff]
    %v824 = vld [vmem:[%s0 + $0x1840] sm:$0xff]
    %v825 = vld [vmem:[%s0 + $0x1848] sm:$0xff]
    %v826 = vld [vmem:[%s0 + $0x1850] sm:$0xff]
    %v827 = vld [vmem:[%s0 + $0x1858] sm:$0xff]
    %v828 = vld [vmem:[%s0 + $0x1860] sm:$0xff]
    %v829 = vld [vmem:[%s0 + $0x1868] sm:$0xff]
    %v830 = vld [vmem:[%s0 + $0x1870] sm:$0xff]
    %v831 = vld [vmem:[%s0 + $0x1878] sm:$0xff]
    %v832 = vld [vmem:[%s0 + $0x1880] sm:$0xff]
    %v833 = vld [vmem:[%s0 + $0x1888] sm:$0xff]
    %v834 = vld [vmem:[%s0 + $0x1890] sm:$0xff]
    %v835 = vld [vmem:[%s0 + $0x1898] sm:$0xff]
    %v836 = vld [vmem:[%s0 + $0x18a0] sm:$0xff]
    %v837 = vld [vmem:[%s0 + $0x18a8] sm:$0xff]
    %v838 = vld [vmem:[%s0 + $0x18b0] sm:$0xff]
    %v839 = vld [vmem:[%s0 + $0x18b8] sm:$0xff]
    %v840 = vld [vmem:[%s0 + $0x18c0] sm:$0xff]
    %v841 = vld [vmem:[%s0 + $0x18c8] sm:$0xff]
    %v842 = vld [vmem:[%s0 + $0x18d0] sm:$0xff]
    %v843 = vld [vmem:[%s0 + $0x18d8] sm:$0xff]
    %v844 = vld [vmem:[%s0 + $0x18e0] sm:$0xff]
    %v845 = vld [vmem:[%s0 + $0x18e8] sm:$0xff]
    %v846 = vld [vmem:[%s0 + $0x18f0] sm:$0xff]
    %v847 = vld [vmem:[%s0 + $0x18f8] sm:$0xff]
    %v848 = vld [vmem:[%s0 + $0x1900] sm:$0xff]
    %v849 = vld [vmem:[%s0 + $0x1908] sm:$0xff]
    %v850 = vld [vmem:[%s0 + $0x1910] sm:$0xff]
    %v851 = vld [vmem:[%s0 + $0x1918] sm:$0xff]
    %v852 = vld [vmem:[%s0 + $0x1920] sm:$0xff]
    %v853 = vld [vmem:[%s0 + $0x1928] sm:$0xff]
    %v854 = vld [vmem:[%s0 + $0x1930] sm:$0xff]
    %v855 = vld [vmem:[%s0 + $0x1938] sm:$0xff]
    %v856 = vld [vmem:[%s0 + $0x1940] sm:$0xff]
    %v857 = vld [vmem:[%s0 + $0x1948] sm:$0xff]
    %v858 = vld [vmem:[%s0 + $0x1950] sm:$0xff]
    %v859 = vld [vmem:[%s0 + $0x1958] sm:$0xff]
    %v860 = vld [vmem:[%s0 + $0x1960] sm:$0xff]
    %v861 = vld [vmem:[%s0 + $0x1968] sm:$0xff]
    %v862 = vld [vmem:[%s0 + $0x1970] sm:$0xff]
    %v863 = vld [vmem:[%s0 + $0x1978] sm:$0xff]
    %v864 = vld [vmem:[%s1] sm:$0xff]
    %v865 = vld [vmem:[%s1 + $0x8] sm:$0x7]
    %v866 = vld [vmem:[%s1 + $0x10] sm:$0xff]
    %v867 = vld [vmem:[%s1 + $0x18] sm:$0x7]
    %vm868 = vcmask 89088
    %v870 = vsel %vm868, %v64, 0
    %v873 = vsel %vm868, %v65, 0
    %v876 = vsel %vm868, %v66, 0
    %v879 = vsel %vm868, %v67, 0
    %v882 = vsel %vm868, %v68, 0
    %v885 = vsel %vm868, %v69, 0
    %v888 = vsel %vm868, %v70, 0
    %v891 = vsel %vm868, %v71, 0
    %v894 = vsel %vm868, %v72, 0
    %v897 = vsel %vm868, %v73, 0
    %v900 = vsel %vm868, %v74, 0
    %v903 = vsel %vm868, %v75, 0
    %v906 = vsel %vm868, %v76, 0
    %v909 = vsel %vm868, %v77, 0
    %v912 = vsel %vm868, %v78, 0
    %v915 = vsel %vm868, %v79, 0
    %v918 = vsel %vm868, %v96, 0
    %v921 = vsel %vm868, %v97, 0
    %v924 = vsel %vm868, %v98, 0
    %v927 = vsel %vm868, %v99, 0
    %v930 = vsel %vm868, %v100, 0
    %v933 = vsel %vm868, %v101, 0
    %v936 = vsel %vm868, %v102, 0
    %v939 = vsel %vm868, %v103, 0
    %v942 = vsel %vm868, %v104, 0
    %v945 = vsel %vm868, %v105, 0
    %v948 = vsel %vm868, %v106, 0
    %v951 = vsel %vm868, %v107, 0
    %v954 = vsel %vm868, %v108, 0
    %v957 = vsel %vm868, %v109, 0
    %v960 = vsel %vm868, %v110, 0
    %v963 = vsel %vm868, %v111, 0
    %v966 = vsel %vm868, %v128, 0
    %v969 = vsel %vm868, %v129, 0
    %v972 = vsel %vm868, %v130, 0
    %v975 = vsel %vm868, %v131, 0
    %v978 = vsel %vm868, %v132, 0
    %v981 = vsel %vm868, %v133, 0
    %v984 = vsel %vm868, %v134, 0
    %v987 = vsel %vm868, %v135, 0
    %v990 = vsel %vm868, %v136, 0
    %v993 = vsel %vm868, %v137, 0
    %v996 = vsel %vm868, %v138, 0
    %v999 = vsel %vm868, %v139, 0
    %v1002 = vsel %vm868, %v140, 0
    %v1005 = vsel %vm868, %v141, 0
    %v1008 = vsel %vm868, %v142, 0
    %v1011 = vsel %vm868, %v143, 0
    %v1014 = vsel %vm868, %v160, 0
    %v1017 = vsel %vm868, %v161, 0
    %v1020 = vsel %vm868, %v162, 0
    %v1023 = vsel %vm868, %v163, 0
    %v1026 = vsel %vm868, %v164, 0
    %v1029 = vsel %vm868, %v165, 0
    %v1032 = vsel %vm868, %v166, 0
    %v1035 = vsel %vm868, %v167, 0
    %v1038 = vsel %vm868, %v168, 0
    %v1041 = vsel %vm868, %v169, 0
    %v1044 = vsel %vm868, %v170, 0
    %v1047 = vsel %vm868, %v171, 0
    %v1050 = vsel %vm868, %v172, 0
    %v1053 = vsel %vm868, %v173, 0
    %v1056 = vsel %vm868, %v174, 0
    %v1059 = vsel %vm868, %v175, 0
    %v1062 = vsel %vm868, %v192, 0
    %v1065 = vsel %vm868, %v193, 0
    %v1068 = vsel %vm868, %v194, 0
    %v1071 = vsel %vm868, %v195, 0
    %v1074 = vsel %vm868, %v196, 0
    %v1077 = vsel %vm868, %v197, 0
    %v1080 = vsel %vm868, %v198, 0
    %v1083 = vsel %vm868, %v199, 0
    %v1086 = vsel %vm868, %v200, 0
    %v1089 = vsel %vm868, %v201, 0
    %v1092 = vsel %vm868, %v202, 0
    %v1095 = vsel %vm868, %v203, 0
    %v1098 = vsel %vm868, %v204, 0
    %v1101 = vsel %vm868, %v205, 0
    %v1104 = vsel %vm868, %v206, 0
    %v1107 = vsel %vm868, %v207, 0
    %v1110 = vsel %vm868, %v224, 0
    %v1113 = vsel %vm868, %v225, 0
    %v1116 = vsel %vm868, %v226, 0
    %v1119 = vsel %vm868, %v227, 0
    %v1122 = vsel %vm868, %v228, 0
    %v1125 = vsel %vm868, %v229, 0
    %v1128 = vsel %vm868, %v230, 0
    %v1131 = vsel %vm868, %v231, 0
    %v1134 = vsel %vm868, %v232, 0
    %v1137 = vsel %vm868, %v233, 0
    %v1140 = vsel %vm868, %v234, 0
    %v1143 = vsel %vm868, %v235, 0
    %v1146 = vsel %vm868, %v236, 0
    %v1149 = vsel %vm868, %v237, 0
    %v1152 = vsel %vm868, %v238, 0
    %v1155 = vsel %vm868, %v239, 0
    %v1158 = vsel %vm868, %v256, 0
    %v1161 = vsel %vm868, %v257, 0
    %v1164 = vsel %vm868, %v258, 0
    %v1167 = vsel %vm868, %v259, 0
    %v1170 = vsel %vm868, %v260, 0
    %v1173 = vsel %vm868, %v261, 0
    %v1176 = vsel %vm868, %v262, 0
    %v1179 = vsel %vm868, %v263, 0
    %v1182 = vsel %vm868, %v264, 0
    %v1185 = vsel %vm868, %v265, 0
    %v1188 = vsel %vm868, %v266, 0
    %v1191 = vsel %vm868, %v267, 0
    %v1194 = vsel %vm868, %v268, 0
    %v1197 = vsel %vm868, %v269, 0
    %v1200 = vsel %vm868, %v270, 0
    %v1203 = vsel %vm868, %v271, 0
    %v1206 = vsel %vm868, %v288, 0
    %v1209 = vsel %vm868, %v289, 0
    %v1212 = vsel %vm868, %v290, 0
    %v1215 = vsel %vm868, %v291, 0
    %v1218 = vsel %vm868, %v292, 0
    %v1221 = vsel %vm868, %v293, 0
    %v1224 = vsel %vm868, %v294, 0
    %v1227 = vsel %vm868, %v295, 0
    %v1230 = vsel %vm868, %v296, 0
    %v1233 = vsel %vm868, %v297, 0
    %v1236 = vsel %vm868, %v298, 0
    %v1239 = vsel %vm868, %v299, 0
    %v1242 = vsel %vm868, %v300, 0
    %v1245 = vsel %vm868, %v301, 0
    %v1248 = vsel %vm868, %v302, 0
    %v1251 = vsel %vm868, %v303, 0
    %v1254 = vsel %vm868, %v320, 0
    %v1257 = vsel %vm868, %v321, 0
    %v1260 = vsel %vm868, %v322, 0
    %v1263 = vsel %vm868, %v323, 0
    %v1266 = vsel %vm868, %v324, 0
    %v1269 = vsel %vm868, %v325, 0
    %v1272 = vsel %vm868, %v326, 0
    %v1275 = vsel %vm868, %v327, 0
    %v1278 = vsel %vm868, %v328, 0
    %v1281 = vsel %vm868, %v329, 0
    %v1284 = vsel %vm868, %v330, 0
    %v1287 = vsel %vm868, %v331, 0
    %v1290 = vsel %vm868, %v332, 0
    %v1293 = vsel %vm868, %v333, 0
    %v1296 = vsel %vm868, %v334, 0
    %v1299 = vsel %vm868, %v335, 0
    %v1302 = vsel %vm868, %v352, 0
    %v1305 = vsel %vm868, %v353, 0
    %v1308 = vsel %vm868, %v354, 0
    %v1311 = vsel %vm868, %v355, 0
    %v1314 = vsel %vm868, %v356, 0
    %v1317 = vsel %vm868, %v357, 0
    %v1320 = vsel %vm868, %v358, 0
    %v1323 = vsel %vm868, %v359, 0
    %v1326 = vsel %vm868, %v360, 0
    %v1329 = vsel %vm868, %v361, 0
    %v1332 = vsel %vm868, %v362, 0
    %v1335 = vsel %vm868, %v363, 0
    %v1338 = vsel %vm868, %v364, 0
    %v1341 = vsel %vm868, %v365, 0
    %v1344 = vsel %vm868, %v366, 0
    %v1347 = vsel %vm868, %v367, 0
    %v1350 = vsel %vm868, %v384, 0
    %v1353 = vsel %vm868, %v385, 0
    %v1356 = vsel %vm868, %v386, 0
    %v1359 = vsel %vm868, %v387, 0
    %v1362 = vsel %vm868, %v388, 0
    %v1365 = vsel %vm868, %v389, 0
    %v1368 = vsel %vm868, %v390, 0
    %v1371 = vsel %vm868, %v391, 0
    %v1374 = vsel %vm868, %v392, 0
    %v1377 = vsel %vm868, %v393, 0
    %v1380 = vsel %vm868, %v394, 0
    %v1383 = vsel %vm868, %v395, 0
    %v1386 = vsel %vm868, %v396, 0
    %v1389 = vsel %vm868, %v397, 0
    %v1392 = vsel %vm868, %v398, 0
    %v1395 = vsel %vm868, %v399, 0
    %v1398 = vsel %vm868, %v416, 0
    %v1401 = vsel %vm868, %v417, 0
    %v1404 = vsel %vm868, %v418, 0
    %v1407 = vsel %vm868, %v419, 0
    %v1410 = vsel %vm868, %v420, 0
    %v1413 = vsel %vm868, %v421, 0
    %v1416 = vsel %vm868, %v422, 0
    %v1419 = vsel %vm868, %v423, 0
    %v1422 = vsel %vm868, %v424, 0
    %v1425 = vsel %vm868, %v425, 0
    %v1428 = vsel %vm868, %v426, 0
    %v1431 = vsel %vm868, %v427, 0
    %v1434 = vsel %vm868, %v428, 0
    %v1437 = vsel %vm868, %v429, 0
    %v1440 = vsel %vm868, %v430, 0
    %v1443 = vsel %vm868, %v431, 0
    %v1446 = vsel %vm868, %v448, 0
    %v1449 = vsel %vm868, %v449, 0
    %v1452 = vsel %vm868, %v450, 0
    %v1455 = vsel %vm868, %v451, 0
    %v1458 = vsel %vm868, %v452, 0
    %v1461 = vsel %vm868, %v453, 0
    %v1464 = vsel %vm868, %v454, 0
    %v1467 = vsel %vm868, %v455, 0
    %v1470 = vsel %vm868, %v456, 0
    %v1473 = vsel %vm868, %v457, 0
    %v1476 = vsel %vm868, %v458, 0
    %v1479 = vsel %vm868, %v459, 0
    %v1482 = vsel %vm868, %v460, 0
    %v1485 = vsel %vm868, %v461, 0
    %v1488 = vsel %vm868, %v462, 0
    %v1491 = vsel %vm868, %v463, 0
    %v1494 = vsel %vm868, %v480, 0
    %v1497 = vsel %vm868, %v481, 0
    %v1500 = vsel %vm868, %v482, 0
    %v1503 = vsel %vm868, %v483, 0
    %v1506 = vsel %vm868, %v484, 0
    %v1509 = vsel %vm868, %v485, 0
    %v1512 = vsel %vm868, %v486, 0
    %v1515 = vsel %vm868, %v487, 0
    %v1518 = vsel %vm868, %v488, 0
    %v1521 = vsel %vm868, %v489, 0
    %v1524 = vsel %vm868, %v490, 0
    %v1527 = vsel %vm868, %v491, 0
    %v1530 = vsel %vm868, %v492, 0
    %v1533 = vsel %vm868, %v493, 0
    %v1536 = vsel %vm868, %v494, 0
    %v1539 = vsel %vm868, %v495, 0
    %v1542 = vsel %vm868, %v512, 0
    %v1545 = vsel %vm868, %v513, 0
    %v1548 = vsel %vm868, %v514, 0
    %v1551 = vsel %vm868, %v515, 0
    %v1554 = vsel %vm868, %v516, 0
    %v1557 = vsel %vm868, %v517, 0
    %v1560 = vsel %vm868, %v518, 0
    %v1563 = vsel %vm868, %v519, 0
    %v1566 = vsel %vm868, %v520, 0
    %v1569 = vsel %vm868, %v521, 0
    %v1572 = vsel %vm868, %v522, 0
    %v1575 = vsel %vm868, %v523, 0
    %v1578 = vsel %vm868, %v524, 0
    %v1581 = vsel %vm868, %v525, 0
    %v1584 = vsel %vm868, %v526, 0
    %v1587 = vsel %vm868, %v527, 0
    %v1590 = vsel %vm868, %v544, 0
    %v1593 = vsel %vm868, %v545, 0
    %v1596 = vsel %vm868, %v546, 0
    %v1599 = vsel %vm868, %v547, 0
    %v1602 = vsel %vm868, %v548, 0
    %v1605 = vsel %vm868, %v549, 0
    %v1608 = vsel %vm868, %v550, 0
    %v1611 = vsel %vm868, %v551, 0
    %v1614 = vsel %vm868, %v552, 0
    %v1617 = vsel %vm868, %v553, 0
    %v1620 = vsel %vm868, %v554, 0
    %v1623 = vsel %vm868, %v555, 0
    %v1626 = vsel %vm868, %v556, 0
    %v1629 = vsel %vm868, %v557, 0
    %v1632 = vsel %vm868, %v558, 0
    %v1635 = vsel %vm868, %v559, 0
    %v1638 = vsel %vm868, %v576, 0
    %v1641 = vsel %vm868, %v577, 0
    %v1644 = vsel %vm868, %v578, 0
    %v1647 = vsel %vm868, %v579, 0
    %v1650 = vsel %vm868, %v580, 0
    %v1653 = vsel %vm868, %v581, 0
    %v1656 = vsel %vm868, %v582, 0
    %v1659 = vsel %vm868, %v583, 0
    %v1662 = vsel %vm868, %v584, 0
    %v1665 = vsel %vm868, %v585, 0
    %v1668 = vsel %vm868, %v586, 0
    %v1671 = vsel %vm868, %v587, 0
    %v1674 = vsel %vm868, %v588, 0
    %v1677 = vsel %vm868, %v589, 0
    %v1680 = vsel %vm868, %v590, 0
    %v1683 = vsel %vm868, %v591, 0
    %v1686 = vsel %vm868, %v608, 0
    %v1689 = vsel %vm868, %v609, 0
    %v1692 = vsel %vm868, %v610, 0
    %v1695 = vsel %vm868, %v611, 0
    %v1698 = vsel %vm868, %v612, 0
    %v1701 = vsel %vm868, %v613, 0
    %v1704 = vsel %vm868, %v614, 0
    %v1707 = vsel %vm868, %v615, 0
    %v1710 = vsel %vm868, %v616, 0
    %v1713 = vsel %vm868, %v617, 0
    %v1716 = vsel %vm868, %v618, 0
    %v1719 = vsel %vm868, %v619, 0
    %v1722 = vsel %vm868, %v620, 0
    %v1725 = vsel %vm868, %v621, 0
    %v1728 = vsel %vm868, %v622, 0
    %v1731 = vsel %vm868, %v623, 0
    %v1734 = vsel %vm868, %v640, 0
    %v1737 = vsel %vm868, %v641, 0
    %v1740 = vsel %vm868, %v642, 0
    %v1743 = vsel %vm868, %v643, 0
    %v1746 = vsel %vm868, %v644, 0
    %v1749 = vsel %vm868, %v645, 0
    %v1752 = vsel %vm868, %v646, 0
    %v1755 = vsel %vm868, %v647, 0
    %v1758 = vsel %vm868, %v648, 0
    %v1761 = vsel %vm868, %v649, 0
    %v1764 = vsel %vm868, %v650, 0
    %v1767 = vsel %vm868, %v651, 0
    %v1770 = vsel %vm868, %v652, 0
    %v1773 = vsel %vm868, %v653, 0
    %v1776 = vsel %vm868, %v654, 0
    %v1779 = vsel %vm868, %v655, 0
    %v1782 = vsel %vm868, %v672, 0
    %v1785 = vsel %vm868, %v673, 0
    %v1788 = vsel %vm868, %v674, 0
    %v1791 = vsel %vm868, %v675, 0
    %v1794 = vsel %vm868, %v676, 0
    %v1797 = vsel %vm868, %v677, 0
    %v1800 = vsel %vm868, %v678, 0
    %v1803 = vsel %vm868, %v679, 0
    %v1806 = vsel %vm868, %v680, 0
    %v1809 = vsel %vm868, %v681, 0
    %v1812 = vsel %vm868, %v682, 0
    %v1815 = vsel %vm868, %v683, 0
    %v1818 = vsel %vm868, %v684, 0
    %v1821 = vsel %vm868, %v685, 0
    %v1824 = vsel %vm868, %v686, 0
    %v1827 = vsel %vm868, %v687, 0
    %v1830 = vsel %vm868, %v704, 0
    %v1833 = vsel %vm868, %v705, 0
    %v1836 = vsel %vm868, %v706, 0
    %v1839 = vsel %vm868, %v707, 0
    %v1842 = vsel %vm868, %v708, 0
    %v1845 = vsel %vm868, %v709, 0
    %v1848 = vsel %vm868, %v710, 0
    %v1851 = vsel %vm868, %v711, 0
    %v1854 = vsel %vm868, %v712, 0
    %v1857 = vsel %vm868, %v713, 0
    %v1860 = vsel %vm868, %v714, 0
    %v1863 = vsel %vm868, %v715, 0
    %v1866 = vsel %vm868, %v716, 0
    %v1869 = vsel %vm868, %v717, 0
    %v1872 = vsel %vm868, %v718, 0
    %v1875 = vsel %vm868, %v719, 0
    %v1878 = vsel %vm868, %v736, 0
    %v1881 = vsel %vm868, %v737, 0
    %v1884 = vsel %vm868, %v738, 0
    %v1887 = vsel %vm868, %v739, 0
    %v1890 = vsel %vm868, %v740, 0
    %v1893 = vsel %vm868, %v741, 0
    %v1896 = vsel %vm868, %v742, 0
    %v1899 = vsel %vm868, %v743, 0
    %v1902 = vsel %vm868, %v744, 0
    %v1905 = vsel %vm868, %v745, 0
    %v1908 = vsel %vm868, %v746, 0
    %v1911 = vsel %vm868, %v747, 0
    %v1914 = vsel %vm868, %v748, 0
    %v1917 = vsel %vm868, %v749, 0
    %v1920 = vsel %vm868, %v750, 0
    %v1923 = vsel %vm868, %v751, 0
    %v1926 = vsel %vm868, %v768, 0
    %v1929 = vsel %vm868, %v769, 0
    %v1932 = vsel %vm868, %v770, 0
    %v1935 = vsel %vm868, %v771, 0
    %v1938 = vsel %vm868, %v772, 0
    %v1941 = vsel %vm868, %v773, 0
    %v1944 = vsel %vm868, %v774, 0
    %v1947 = vsel %vm868, %v775, 0
    %v1950 = vsel %vm868, %v776, 0
    %v1953 = vsel %vm868, %v777, 0
    %v1956 = vsel %vm868, %v778, 0
    %v1959 = vsel %vm868, %v779, 0
    %v1962 = vsel %vm868, %v780, 0
    %v1965 = vsel %vm868, %v781, 0
    %v1968 = vsel %vm868, %v782, 0
    %v1971 = vsel %vm868, %v783, 0
    %v1974 = vsel %vm868, %v800, 0
    %v1977 = vsel %vm868, %v801, 0
    %v1980 = vsel %vm868, %v802, 0
    %v1983 = vsel %vm868, %v803, 0
    %v1986 = vsel %vm868, %v804, 0
    %v1989 = vsel %vm868, %v805, 0
    %v1992 = vsel %vm868, %v806, 0
    %v1995 = vsel %vm868, %v807, 0
    %v1998 = vsel %vm868, %v808, 0
    %v2001 = vsel %vm868, %v809, 0
    %v2004 = vsel %vm868, %v810, 0
    %v2007 = vsel %vm868, %v811, 0
    %v2010 = vsel %vm868, %v812, 0
    %v2013 = vsel %vm868, %v813, 0
    %v2016 = vsel %vm868, %v814, 0
    %v2019 = vsel %vm868, %v815, 0
    %v2022 = vsel %vm868, %v832, 0
    %v2025 = vsel %vm868, %v833, 0
    %v2028 = vsel %vm868, %v834, 0
    %v2031 = vsel %vm868, %v835, 0
    %v2034 = vsel %vm868, %v836, 0
    %v2037 = vsel %vm868, %v837, 0
    %v2040 = vsel %vm868, %v838, 0
    %v2043 = vsel %vm868, %v839, 0
    %v2046 = vsel %vm868, %v840, 0
    %v2049 = vsel %vm868, %v841, 0
    %v2052 = vsel %vm868, %v842, 0
    %v2055 = vsel %vm868, %v843, 0
    %v2058 = vsel %vm868, %v844, 0
    %v2061 = vsel %vm868, %v845, 0
    %v2064 = vsel %vm868, %v846, 0
    %v2067 = vsel %vm868, %v847, 0
    %vm2069 = vcmask 1042432
    %v2071 = vsel %vm2069, %v867, 0
    %2073 = vmatpush.msra.mxu0 0.0
    %2074 = vmatpush.msra.mxu0 0.0
    %2075 = vmatpush.msra.mxu0 0.0
    %2076 = vmatpush.msra.mxu0 0.0
    %2077 = vmatpush.msra.mxu0 0.0
    %2078 = vmatpush.msra.mxu0 0.0
    %2079 = vmatpush.msra.mxu0 0.0
    %2080 = vmatpush.msra.mxu0 0.0
    %2081 = vmatpush.msra.mxu0 0.0
    %2082 = vmatpush.msra.mxu0 0.0
    %2083 = vmatpush.msra.mxu0 0.0
    %2084 = vmatpush.msra.mxu0 0.0
    %2085 = vmatpush.msra.mxu0 0.0
    %2086 = vmatpush.msra.mxu0 0.0
    %2087 = vmatpush.msra.mxu0 %v2071
    %2088 = vmatpush.msra.mxu0 %v866
    %2089 = vmatmul.f32.gmra.mxu0 %v870
    %v2090 = vpop.f32.mrf.mxu0
    %v2091 = vadd.f32 0.0, %v2090
    %2092 = vmatmul.f32.gmra.mxu0 %v873
    %v2093 = vpop.f32.mrf.mxu0
    %v2094 = vadd.f32 0.0, %v2093
    %2095 = vmatmul.f32.gmra.mxu0 %v876
    %v2096 = vpop.f32.mrf.mxu0
    %v2097 = vadd.f32 0.0, %v2096
    %2098 = vmatmul.f32.gmra.mxu0 %v879
    %v2099 = vpop.f32.mrf.mxu0
    %v2100 = vadd.f32 0.0, %v2099
    %2101 = vmatmul.f32.gmra.mxu0 %v882
    %v2102 = vpop.f32.mrf.mxu0
    %v2103 = vadd.f32 0.0, %v2102
    %2104 = vmatmul.f32.gmra.mxu0 %v885
    %v2105 = vpop.f32.mrf.mxu0
    %v2106 = vadd.f32 0.0, %v2105
    %2107 = vmatmul.f32.gmra.mxu0 %v888
    %v2108 = vpop.f32.mrf.mxu0
    %v2109 = vadd.f32 0.0, %v2108
    %2110 = vmatmul.f32.gmra.mxu0 %v891
    %v2111 = vpop.f32.mrf.mxu0
    %v2112 = vadd.f32 0.0, %v2111
    %2113 = vmatmul.f32.gmra.mxu0 %v894
    %v2114 = vpop.f32.mrf.mxu0
    %v2115 = vadd.f32 0.0, %v2114
    %2116 = vmatmul.f32.gmra.mxu0 %v897
    %v2117 = vpop.f32.mrf.mxu0
    %v2118 = vadd.f32 0.0, %v2117
    %2119 = vmatmul.f32.gmra.mxu0 %v900
    %v2120 = vpop.f32.mrf.mxu0
    %v2121 = vadd.f32 0.0, %v2120
    %2122 = vmatmul.f32.gmra.mxu0 %v903
    %v2123 = vpop.f32.mrf.mxu0
    %v2124 = vadd.f32 0.0, %v2123
    %2125 = vmatmul.f32.gmra.mxu0 %v906
    %v2126 = vpop.f32.mrf.mxu0
    %v2127 = vadd.f32 0.0, %v2126
    %2128 = vmatmul.f32.gmra.mxu0 %v909
    %v2129 = vpop.f32.mrf.mxu0
    %v2130 = vadd.f32 0.0, %v2129
    %2131 = vmatmul.f32.gmra.mxu0 %v912
    %v2132 = vpop.f32.mrf.mxu0
    %v2133 = vadd.f32 0.0, %v2132
    %2134 = vmatmul.f32.gmra.mxu0 %v915
    %v2135 = vpop.f32.mrf.mxu0
    %v2136 = vadd.f32 0.0, %v2135
    %2137 = vmatmul.f32.gmra.mxu0 %v918
    %v2138 = vpop.f32.mrf.mxu0
    %v2139 = vadd.f32 0.0, %v2138
    %2140 = vmatmul.f32.gmra.mxu0 %v921
    %v2141 = vpop.f32.mrf.mxu0
    %v2142 = vadd.f32 0.0, %v2141
    %2143 = vmatmul.f32.gmra.mxu0 %v924
    %v2144 = vpop.f32.mrf.mxu0
    %v2145 = vadd.f32 0.0, %v2144
    %2146 = vmatmul.f32.gmra.mxu0 %v927
    %v2147 = vpop.f32.mrf.mxu0
    %v2148 = vadd.f32 0.0, %v2147
    %2149 = vmatmul.f32.gmra.mxu0 %v930
    %v2150 = vpop.f32.mrf.mxu0
    %v2151 = vadd.f32 0.0, %v2150
    %2152 = vmatmul.f32.gmra.mxu0 %v933
    %v2153 = vpop.f32.mrf.mxu0
    %v2154 = vadd.f32 0.0, %v2153
    %2155 = vmatmul.f32.gmra.mxu0 %v936
    %v2156 = vpop.f32.mrf.mxu0
    %v2157 = vadd.f32 0.0, %v2156
    %2158 = vmatmul.f32.gmra.mxu0 %v939
    %v2159 = vpop.f32.mrf.mxu0
    %v2160 = vadd.f32 0.0, %v2159
    %2161 = vmatmul.f32.gmra.mxu0 %v942
    %v2162 = vpop.f32.mrf.mxu0
    %v2163 = vadd.f32 0.0, %v2162
    %2164 = vmatmul.f32.gmra.mxu0 %v945
    %v2165 = vpop.f32.mrf.mxu0
    %v2166 = vadd.f32 0.0, %v2165
    %2167 = vmatmul.f32.gmra.mxu0 %v948
    %v2168 = vpop.f32.mrf.mxu0
    %v2169 = vadd.f32 0.0, %v2168
    %2170 = vmatmul.f32.gmra.mxu0 %v951
    %v2171 = vpop.f32.mrf.mxu0
    %v2172 = vadd.f32 0.0, %v2171
    %2173 = vmatmul.f32.gmra.mxu0 %v954
    %v2174 = vpop.f32.mrf.mxu0
    %v2175 = vadd.f32 0.0, %v2174
    %2176 = vmatmul.f32.gmra.mxu0 %v957
    %v2177 = vpop.f32.mrf.mxu0
    %v2178 = vadd.f32 0.0, %v2177
    %2179 = vmatmul.f32.gmra.mxu0 %v960
    %v2180 = vpop.f32.mrf.mxu0
    %v2181 = vadd.f32 0.0, %v2180
    %2182 = vmatmul.f32.gmra.mxu0 %v963
    %v2183 = vpop.f32.mrf.mxu0
    %v2184 = vadd.f32 0.0, %v2183
    %2185 = vmatmul.f32.gmra.mxu0 %v966
    %v2186 = vpop.f32.mrf.mxu0
    %v2187 = vadd.f32 0.0, %v2186
    %2188 = vmatmul.f32.gmra.mxu0 %v969
    %v2189 = vpop.f32.mrf.mxu0
    %v2190 = vadd.f32 0.0, %v2189
    %2191 = vmatmul.f32.gmra.mxu0 %v972
    %v2192 = vpop.f32.mrf.mxu0
    %v2193 = vadd.f32 0.0, %v2192
    %2194 = vmatmul.f32.gmra.mxu0 %v975
    %v2195 = vpop.f32.mrf.mxu0
    %v2196 = vadd.f32 0.0, %v2195
    %2197 = vmatmul.f32.gmra.mxu0 %v978
    %v2198 = vpop.f32.mrf.mxu0
    %v2199 = vadd.f32 0.0, %v2198
    %2200 = vmatmul.f32.gmra.mxu0 %v981
    %v2201 = vpop.f32.mrf.mxu0
    %v2202 = vadd.f32 0.0, %v2201
    %2203 = vmatmul.f32.gmra.mxu0 %v984
    %v2204 = vpop.f32.mrf.mxu0
    %v2205 = vadd.f32 0.0, %v2204
    %2206 = vmatmul.f32.gmra.mxu0 %v987
    %v2207 = vpop.f32.mrf.mxu0
    %v2208 = vadd.f32 0.0, %v2207
    %2209 = vmatmul.f32.gmra.mxu0 %v990
    %v2210 = vpop.f32.mrf.mxu0
    %v2211 = vadd.f32 0.0, %v2210
    %2212 = vmatmul.f32.gmra.mxu0 %v993
    %v2213 = vpop.f32.mrf.mxu0
    %v2214 = vadd.f32 0.0, %v2213
    %2215 = vmatmul.f32.gmra.mxu0 %v996
    %v2216 = vpop.f32.mrf.mxu0
    %v2217 = vadd.f32 0.0, %v2216
    %2218 = vmatmul.f32.gmra.mxu0 %v999
    %v2219 = vpop.f32.mrf.mxu0
    %v2220 = vadd.f32 0.0, %v2219
    %2221 = vmatmul.f32.gmra.mxu0 %v1002
    %v2222 = vpop.f32.mrf.mxu0
    %v2223 = vadd.f32 0.0, %v2222
    %2224 = vmatmul.f32.gmra.mxu0 %v1005
    %v2225 = vpop.f32.mrf.mxu0
    %v2226 = vadd.f32 0.0, %v2225
    %2227 = vmatmul.f32.gmra.mxu0 %v1008
    %v2228 = vpop.f32.mrf.mxu0
    %v2229 = vadd.f32 0.0, %v2228
    %2230 = vmatmul.f32.gmra.mxu0 %v1011
    %v2231 = vpop.f32.mrf.mxu0
    %v2232 = vadd.f32 0.0, %v2231
    %2233 = vmatmul.f32.gmra.mxu0 %v1014
    %v2234 = vpop.f32.mrf.mxu0
    %v2235 = vadd.f32 0.0, %v2234
    %2236 = vmatmul.f32.gmra.mxu0 %v1017
    %v2237 = vpop.f32.mrf.mxu0
    %v2238 = vadd.f32 0.0, %v2237
    %2239 = vmatmul.f32.gmra.mxu0 %v1020
    %v2240 = vpop.f32.mrf.mxu0
    %v2241 = vadd.f32 0.0, %v2240
    %2242 = vmatmul.f32.gmra.mxu0 %v1023
    %v2243 = vpop.f32.mrf.mxu0
    %v2244 = vadd.f32 0.0, %v2243
    %2245 = vmatmul.f32.gmra.mxu0 %v1026
    %v2246 = vpop.f32.mrf.mxu0
    %v2247 = vadd.f32 0.0, %v2246
    %2248 = vmatmul.f32.gmra.mxu0 %v1029
    %v2249 = vpop.f32.mrf.mxu0
    %v2250 = vadd.f32 0.0, %v2249
    %2251 = vmatmul.f32.gmra.mxu0 %v1032
    %v2252 = vpop.f32.mrf.mxu0
    %v2253 = vadd.f32 0.0, %v2252
    %2254 = vmatmul.f32.gmra.mxu0 %v1035
    %v2255 = vpop.f32.mrf.mxu0
    %v2256 = vadd.f32 0.0, %v2255
    %2257 = vmatmul.f32.gmra.mxu0 %v1038
    %v2258 = vpop.f32.mrf.mxu0
    %v2259 = vadd.f32 0.0, %v2258
    %2260 = vmatmul.f32.gmra.mxu0 %v1041
    %v2261 = vpop.f32.mrf.mxu0
    %v2262 = vadd.f32 0.0, %v2261
    %2263 = vmatmul.f32.gmra.mxu0 %v1044
    %v2264 = vpop.f32.mrf.mxu0
    %v2265 = vadd.f32 0.0, %v2264
    %2266 = vmatmul.f32.gmra.mxu0 %v1047
    %v2267 = vpop.f32.mrf.mxu0
    %v2268 = vadd.f32 0.0, %v2267
    %2269 = vmatmul.f32.gmra.mxu0 %v1050
    %v2270 = vpop.f32.mrf.mxu0
    %v2271 = vadd.f32 0.0, %v2270
    %2272 = vmatmul.f32.gmra.mxu0 %v1053
    %v2273 = vpop.f32.mrf.mxu0
    %v2274 = vadd.f32 0.0, %v2273
    %2275 = vmatmul.f32.gmra.mxu0 %v1056
    %v2276 = vpop.f32.mrf.mxu0
    %v2277 = vadd.f32 0.0, %v2276
    %2278 = vmatmul.f32.gmra.mxu0 %v1059
    %v2279 = vpop.f32.mrf.mxu0
    %v2280 = vadd.f32 0.0, %v2279
    %2281 = vmatmul.f32.gmra.mxu0 %v1062
    %v2282 = vpop.f32.mrf.mxu0
    %v2283 = vadd.f32 0.0, %v2282
    %2284 = vmatmul.f32.gmra.mxu0 %v1065
    %v2285 = vpop.f32.mrf.mxu0
    %v2286 = vadd.f32 0.0, %v2285
    %2287 = vmatmul.f32.gmra.mxu0 %v1068
    %v2288 = vpop.f32.mrf.mxu0
    %v2289 = vadd.f32 0.0, %v2288
    %2290 = vmatmul.f32.gmra.mxu0 %v1071
    %v2291 = vpop.f32.mrf.mxu0
    %v2292 = vadd.f32 0.0, %v2291
    %2293 = vmatmul.f32.gmra.mxu0 %v1074
    %v2294 = vpop.f32.mrf.mxu0
    %v2295 = vadd.f32 0.0, %v2294
    %2296 = vmatmul.f32.gmra.mxu0 %v1077
    %v2297 = vpop.f32.mrf.mxu0
    %v2298 = vadd.f32 0.0, %v2297
    %2299 = vmatmul.f32.gmra.mxu0 %v1080
    %v2300 = vpop.f32.mrf.mxu0
    %v2301 = vadd.f32 0.0, %v2300
    %2302 = vmatmul.f32.gmra.mxu0 %v1083
    %v2303 = vpop.f32.mrf.mxu0
    %v2304 = vadd.f32 0.0, %v2303
    %2305 = vmatmul.f32.gmra.mxu0 %v1086
    %v2306 = vpop.f32.mrf.mxu0
    %v2307 = vadd.f32 0.0, %v2306
    %2308 = vmatmul.f32.gmra.mxu0 %v1089
    %v2309 = vpop.f32.mrf.mxu0
    %v2310 = vadd.f32 0.0, %v2309
    %2311 = vmatmul.f32.gmra.mxu0 %v1092
    %v2312 = vpop.f32.mrf.mxu0
    %v2313 = vadd.f32 0.0, %v2312
    %2314 = vmatmul.f32.gmra.mxu0 %v1095
    %v2315 = vpop.f32.mrf.mxu0
    %v2316 = vadd.f32 0.0, %v2315
    %2317 = vmatmul.f32.gmra.mxu0 %v1098
    %v2318 = vpop.f32.mrf.mxu0
    %v2319 = vadd.f32 0.0, %v2318
    %2320 = vmatmul.f32.gmra.mxu0 %v1101
    %v2321 = vpop.f32.mrf.mxu0
    %v2322 = vadd.f32 0.0, %v2321
    %2323 = vmatmul.f32.gmra.mxu0 %v1104
    %v2324 = vpop.f32.mrf.mxu0
    %v2325 = vadd.f32 0.0, %v2324
    %2326 = vmatmul.f32.gmra.mxu0 %v1107
    %v2327 = vpop.f32.mrf.mxu0
    %v2328 = vadd.f32 0.0, %v2327
    %2329 = vmatmul.f32.gmra.mxu0 %v1110
    %v2330 = vpop.f32.mrf.mxu0
    %v2331 = vadd.f32 0.0, %v2330
    %2332 = vmatmul.f32.gmra.mxu0 %v1113
    %v2333 = vpop.f32.mrf.mxu0
    %v2334 = vadd.f32 0.0, %v2333
    %2335 = vmatmul.f32.gmra.mxu0 %v1116
    %v2336 = vpop.f32.mrf.mxu0
    %v2337 = vadd.f32 0.0, %v2336
    %2338 = vmatmul.f32.gmra.mxu0 %v1119
    %v2339 = vpop.f32.mrf.mxu0
    %v2340 = vadd.f32 0.0, %v2339
    %2341 = vmatmul.f32.gmra.mxu0 %v1122
    %v2342 = vpop.f32.mrf.mxu0
    %v2343 = vadd.f32 0.0, %v2342
    %2344 = vmatmul.f32.gmra.mxu0 %v1125
    %v2345 = vpop.f32.mrf.mxu0
    %v2346 = vadd.f32 0.0, %v2345
    %2347 = vmatmul.f32.gmra.mxu0 %v1128
    %v2348 = vpop.f32.mrf.mxu0
    %v2349 = vadd.f32 0.0, %v2348
    %2350 = vmatmul.f32.gmra.mxu0 %v1131
    %v2351 = vpop.f32.mrf.mxu0
    %v2352 = vadd.f32 0.0, %v2351
    %2353 = vmatmul.f32.gmra.mxu0 %v1134
    %v2354 = vpop.f32.mrf.mxu0
    %v2355 = vadd.f32 0.0, %v2354
    %2356 = vmatmul.f32.gmra.mxu0 %v1137
    %v2357 = vpop.f32.mrf.mxu0
    %v2358 = vadd.f32 0.0, %v2357
    %2359 = vmatmul.f32.gmra.mxu0 %v1140
    %v2360 = vpop.f32.mrf.mxu0
    %v2361 = vadd.f32 0.0, %v2360
    %2362 = vmatmul.f32.gmra.mxu0 %v1143
    %v2363 = vpop.f32.mrf.mxu0
    %v2364 = vadd.f32 0.0, %v2363
    %2365 = vmatmul.f32.gmra.mxu0 %v1146
    %v2366 = vpop.f32.mrf.mxu0
    %v2367 = vadd.f32 0.0, %v2366
    %2368 = vmatmul.f32.gmra.mxu0 %v1149
    %v2369 = vpop.f32.mrf.mxu0
    %v2370 = vadd.f32 0.0, %v2369
    %2371 = vmatmul.f32.gmra.mxu0 %v1152
    %v2372 = vpop.f32.mrf.mxu0
    %v2373 = vadd.f32 0.0, %v2372
    %2374 = vmatmul.f32.gmra.mxu0 %v1155
    %v2375 = vpop.f32.mrf.mxu0
    %v2376 = vadd.f32 0.0, %v2375
    %2377 = vmatmul.f32.gmra.mxu0 %v1158
    %v2378 = vpop.f32.mrf.mxu0
    %v2379 = vadd.f32 0.0, %v2378
    %2380 = vmatmul.f32.gmra.mxu0 %v1161
    %v2381 = vpop.f32.mrf.mxu0
    %v2382 = vadd.f32 0.0, %v2381
    %2383 = vmatmul.f32.gmra.mxu0 %v1164
    %v2384 = vpop.f32.mrf.mxu0
    %v2385 = vadd.f32 0.0, %v2384
    %2386 = vmatmul.f32.gmra.mxu0 %v1167
    %v2387 = vpop.f32.mrf.mxu0
    %v2388 = vadd.f32 0.0, %v2387
    %2389 = vmatmul.f32.gmra.mxu0 %v1170
    %v2390 = vpop.f32.mrf.mxu0
    %v2391 = vadd.f32 0.0, %v2390
    %2392 = vmatmul.f32.gmra.mxu0 %v1173
    %v2393 = vpop.f32.mrf.mxu0
    %v2394 = vadd.f32 0.0, %v2393
    %2395 = vmatmul.f32.gmra.mxu0 %v1176
    %v2396 = vpop.f32.mrf.mxu0
    %v2397 = vadd.f32 0.0, %v2396
    %2398 = vmatmul.f32.gmra.mxu0 %v1179
    %v2399 = vpop.f32.mrf.mxu0
    %v2400 = vadd.f32 0.0, %v2399
    %2401 = vmatmul.f32.gmra.mxu0 %v1182
    %v2402 = vpop.f32.mrf.mxu0
    %v2403 = vadd.f32 0.0, %v2402
    %2404 = vmatmul.f32.gmra.mxu0 %v1185
    %v2405 = vpop.f32.mrf.mxu0
    %v2406 = vadd.f32 0.0, %v2405
    %2407 = vmatmul.f32.gmra.mxu0 %v1188
    %v2408 = vpop.f32.mrf.mxu0
    %v2409 = vadd.f32 0.0, %v2408
    %2410 = vmatmul.f32.gmra.mxu0 %v1191
    %v2411 = vpop.f32.mrf.mxu0
    %v2412 = vadd.f32 0.0, %v2411
    %2413 = vmatmul.f32.gmra.mxu0 %v1194
    %v2414 = vpop.f32.mrf.mxu0
    %v2415 = vadd.f32 0.0, %v2414
    %2416 = vmatmul.f32.gmra.mxu0 %v1197
    %v2417 = vpop.f32.mrf.mxu0
    %v2418 = vadd.f32 0.0, %v2417
    %2419 = vmatmul.f32.gmra.mxu0 %v1200
    %v2420 = vpop.f32.mrf.mxu0
    %v2421 = vadd.f32 0.0, %v2420
    %2422 = vmatmul.f32.gmra.mxu0 %v1203
    %v2423 = vpop.f32.mrf.mxu0
    %v2424 = vadd.f32 0.0, %v2423
    %2425 = vmatmul.f32.gmra.mxu0 %v1206
    %v2426 = vpop.f32.mrf.mxu0
    %v2427 = vadd.f32 0.0, %v2426
    %2428 = vmatmul.f32.gmra.mxu0 %v1209
    %v2429 = vpop.f32.mrf.mxu0
    %v2430 = vadd.f32 0.0, %v2429
    %2431 = vmatmul.f32.gmra.mxu0 %v1212
    %v2432 = vpop.f32.mrf.mxu0
    %v2433 = vadd.f32 0.0, %v2432
    %2434 = vmatmul.f32.gmra.mxu0 %v1215
    %v2435 = vpop.f32.mrf.mxu0
    %v2436 = vadd.f32 0.0, %v2435
    %2437 = vmatmul.f32.gmra.mxu0 %v1218
    %v2438 = vpop.f32.mrf.mxu0
    %v2439 = vadd.f32 0.0, %v2438
    %2440 = vmatmul.f32.gmra.mxu0 %v1221
    %v2441 = vpop.f32.mrf.mxu0
    %v2442 = vadd.f32 0.0, %v2441
    %2443 = vmatmul.f32.gmra.mxu0 %v1224
    %v2444 = vpop.f32.mrf.mxu0
    %v2445 = vadd.f32 0.0, %v2444
    %2446 = vmatmul.f32.gmra.mxu0 %v1227
    %v2447 = vpop.f32.mrf.mxu0
    %v2448 = vadd.f32 0.0, %v2447
    %2449 = vmatmul.f32.gmra.mxu0 %v1230
    %v2450 = vpop.f32.mrf.mxu0
    %v2451 = vadd.f32 0.0, %v2450
    %2452 = vmatmul.f32.gmra.mxu0 %v1233
    %v2453 = vpop.f32.mrf.mxu0
    %v2454 = vadd.f32 0.0, %v2453
    %2455 = vmatmul.f32.gmra.mxu0 %v1236
    %v2456 = vpop.f32.mrf.mxu0
    %v2457 = vadd.f32 0.0, %v2456
    %2458 = vmatmul.f32.gmra.mxu0 %v1239
    %v2459 = vpop.f32.mrf.mxu0
    %v2460 = vadd.f32 0.0, %v2459
    %2461 = vmatmul.f32.gmra.mxu0 %v1242
    %v2462 = vpop.f32.mrf.mxu0
    %v2463 = vadd.f32 0.0, %v2462
    %2464 = vmatmul.f32.gmra.mxu0 %v1245
    %v2465 = vpop.f32.mrf.mxu0
    %v2466 = vadd.f32 0.0, %v2465
    %2467 = vmatmul.f32.gmra.mxu0 %v1248
    %v2468 = vpop.f32.mrf.mxu0
    %v2469 = vadd.f32 0.0, %v2468
    %2470 = vmatmul.f32.gmra.mxu0 %v1251
    %v2471 = vpop.f32.mrf.mxu0
    %v2472 = vadd.f32 0.0, %v2471
    %2473 = vmatmul.f32.gmra.mxu0 %v1254
    %v2474 = vpop.f32.mrf.mxu0
    %v2475 = vadd.f32 0.0, %v2474
    %2476 = vmatmul.f32.gmra.mxu0 %v1257
    %v2477 = vpop.f32.mrf.mxu0
    %v2478 = vadd.f32 0.0, %v2477
    %2479 = vmatmul.f32.gmra.mxu0 %v1260
    %v2480 = vpop.f32.mrf.mxu0
    %v2481 = vadd.f32 0.0, %v2480
    %2482 = vmatmul.f32.gmra.mxu0 %v1263
    %v2483 = vpop.f32.mrf.mxu0
    %v2484 = vadd.f32 0.0, %v2483
    %2485 = vmatmul.f32.gmra.mxu0 %v1266
    %v2486 = vpop.f32.mrf.mxu0
    %v2487 = vadd.f32 0.0, %v2486
    %2488 = vmatmul.f32.gmra.mxu0 %v1269
    %v2489 = vpop.f32.mrf.mxu0
    %v2490 = vadd.f32 0.0, %v2489
    %2491 = vmatmul.f32.gmra.mxu0 %v1272
    %v2492 = vpop.f32.mrf.mxu0
    %v2493 = vadd.f32 0.0, %v2492
    %2494 = vmatmul.f32.gmra.mxu0 %v1275
    %v2495 = vpop.f32.mrf.mxu0
    %v2496 = vadd.f32 0.0, %v2495
    %2497 = vmatmul.f32.gmra.mxu0 %v1278
    %v2498 = vpop.f32.mrf.mxu0
    %v2499 = vadd.f32 0.0, %v2498
    %2500 = vmatmul.f32.gmra.mxu0 %v1281
    %v2501 = vpop.f32.mrf.mxu0
    %v2502 = vadd.f32 0.0, %v2501
    %2503 = vmatmul.f32.gmra.mxu0 %v1284
    %v2504 = vpop.f32.mrf.mxu0
    %v2505 = vadd.f32 0.0, %v2504
    %2506 = vmatmul.f32.gmra.mxu0 %v1287
    %v2507 = vpop.f32.mrf.mxu0
    %v2508 = vadd.f32 0.0, %v2507
    %2509 = vmatmul.f32.gmra.mxu0 %v1290
    %v2510 = vpop.f32.mrf.mxu0
    %v2511 = vadd.f32 0.0, %v2510
    %2512 = vmatmul.f32.gmra.mxu0 %v1293
    %v2513 = vpop.f32.mrf.mxu0
    %v2514 = vadd.f32 0.0, %v2513
    %2515 = vmatmul.f32.gmra.mxu0 %v1296
    %v2516 = vpop.f32.mrf.mxu0
    %v2517 = vadd.f32 0.0, %v2516
    %2518 = vmatmul.f32.gmra.mxu0 %v1299
    %v2519 = vpop.f32.mrf.mxu0
    %v2520 = vadd.f32 0.0, %v2519
    %2521 = vmatmul.f32.gmra.mxu0 %v1302
    %v2522 = vpop.f32.mrf.mxu0
    %v2523 = vadd.f32 0.0, %v2522
    %2524 = vmatmul.f32.gmra.mxu0 %v1305
    %v2525 = vpop.f32.mrf.mxu0
    %v2526 = vadd.f32 0.0, %v2525
    %2527 = vmatmul.f32.gmra.mxu0 %v1308
    %v2528 = vpop.f32.mrf.mxu0
    %v2529 = vadd.f32 0.0, %v2528
    %2530 = vmatmul.f32.gmra.mxu0 %v1311
    %v2531 = vpop.f32.mrf.mxu0
    %v2532 = vadd.f32 0.0, %v2531
    %2533 = vmatmul.f32.gmra.mxu0 %v1314
    %v2534 = vpop.f32.mrf.mxu0
    %v2535 = vadd.f32 0.0, %v2534
    %2536 = vmatmul.f32.gmra.mxu0 %v1317
    %v2537 = vpop.f32.mrf.mxu0
    %v2538 = vadd.f32 0.0, %v2537
    %2539 = vmatmul.f32.gmra.mxu0 %v1320
    %v2540 = vpop.f32.mrf.mxu0
    %v2541 = vadd.f32 0.0, %v2540
    %2542 = vmatmul.f32.gmra.mxu0 %v1323
    %v2543 = vpop.f32.mrf.mxu0
    %v2544 = vadd.f32 0.0, %v2543
    %2545 = vmatmul.f32.gmra.mxu0 %v1326
    %v2546 = vpop.f32.mrf.mxu0
    %v2547 = vadd.f32 0.0, %v2546
    %2548 = vmatmul.f32.gmra.mxu0 %v1329
    %v2549 = vpop.f32.mrf.mxu0
    %v2550 = vadd.f32 0.0, %v2549
    %2551 = vmatmul.f32.gmra.mxu0 %v1332
    %v2552 = vpop.f32.mrf.mxu0
    %v2553 = vadd.f32 0.0, %v2552
    %2554 = vmatmul.f32.gmra.mxu0 %v1335
    %v2555 = vpop.f32.mrf.mxu0
    %v2556 = vadd.f32 0.0, %v2555
    %2557 = vmatmul.f32.gmra.mxu0 %v1338
    %v2558 = vpop.f32.mrf.mxu0
    %v2559 = vadd.f32 0.0, %v2558
    %2560 = vmatmul.f32.gmra.mxu0 %v1341
    %v2561 = vpop.f32.mrf.mxu0
    %v2562 = vadd.f32 0.0, %v2561
    %2563 = vmatmul.f32.gmra.mxu0 %v1344
    %v2564 = vpop.f32.mrf.mxu0
    %v2565 = vadd.f32 0.0, %v2564
    %2566 = vmatmul.f32.gmra.mxu0 %v1347
    %v2567 = vpop.f32.mrf.mxu0
    %v2568 = vadd.f32 0.0, %v2567
    %2569 = vmatmul.f32.gmra.mxu0 %v1350
    %v2570 = vpop.f32.mrf.mxu0
    %v2571 = vadd.f32 0.0, %v2570
    %2572 = vmatmul.f32.gmra.mxu0 %v1353
    %v2573 = vpop.f32.mrf.mxu0
    %v2574 = vadd.f32 0.0, %v2573
    %2575 = vmatmul.f32.gmra.mxu0 %v1356
    %v2576 = vpop.f32.mrf.mxu0
    %v2577 = vadd.f32 0.0, %v2576
    %2578 = vmatmul.f32.gmra.mxu0 %v1359
    %v2579 = vpop.f32.mrf.mxu0
    %v2580 = vadd.f32 0.0, %v2579
    %2581 = vmatmul.f32.gmra.mxu0 %v1362
    %v2582 = vpop.f32.mrf.mxu0
    %v2583 = vadd.f32 0.0, %v2582
    %2584 = vmatmul.f32.gmra.mxu0 %v1365
    %v2585 = vpop.f32.mrf.mxu0
    %v2586 = vadd.f32 0.0, %v2585
    %2587 = vmatmul.f32.gmra.mxu0 %v1368
    %v2588 = vpop.f32.mrf.mxu0
    %v2589 = vadd.f32 0.0, %v2588
    %2590 = vmatmul.f32.gmra.mxu0 %v1371
    %v2591 = vpop.f32.mrf.mxu0
    %v2592 = vadd.f32 0.0, %v2591
    %2593 = vmatmul.f32.gmra.mxu0 %v1374
    %v2594 = vpop.f32.mrf.mxu0
    %v2595 = vadd.f32 0.0, %v2594
    %2596 = vmatmul.f32.gmra.mxu0 %v1377
    %v2597 = vpop.f32.mrf.mxu0
    %v2598 = vadd.f32 0.0, %v2597
    %2599 = vmatmul.f32.gmra.mxu0 %v1380
    %v2600 = vpop.f32.mrf.mxu0
    %v2601 = vadd.f32 0.0, %v2600
    %2602 = vmatmul.f32.gmra.mxu0 %v1383
    %v2603 = vpop.f32.mrf.mxu0
    %v2604 = vadd.f32 0.0, %v2603
    %2605 = vmatmul.f32.gmra.mxu0 %v1386
    %v2606 = vpop.f32.mrf.mxu0
    %v2607 = vadd.f32 0.0, %v2606
    %2608 = vmatmul.f32.gmra.mxu0 %v1389
    %v2609 = vpop.f32.mrf.mxu0
    %v2610 = vadd.f32 0.0, %v2609
    %2611 = vmatmul.f32.gmra.mxu0 %v1392
    %v2612 = vpop.f32.mrf.mxu0
    %v2613 = vadd.f32 0.0, %v2612
    %2614 = vmatmul.f32.gmra.mxu0 %v1395
    %v2615 = vpop.f32.mrf.mxu0
    %v2616 = vadd.f32 0.0, %v2615
    %2617 = vmatmul.f32.gmra.mxu0 %v1398
    %v2618 = vpop.f32.mrf.mxu0
    %v2619 = vadd.f32 0.0, %v2618
    %2620 = vmatmul.f32.gmra.mxu0 %v1401
    %v2621 = vpop.f32.mrf.mxu0
    %v2622 = vadd.f32 0.0, %v2621
    %2623 = vmatmul.f32.gmra.mxu0 %v1404
    %v2624 = vpop.f32.mrf.mxu0
    %v2625 = vadd.f32 0.0, %v2624
    %2626 = vmatmul.f32.gmra.mxu0 %v1407
    %v2627 = vpop.f32.mrf.mxu0
    %v2628 = vadd.f32 0.0, %v2627
    %2629 = vmatmul.f32.gmra.mxu0 %v1410
    %v2630 = vpop.f32.mrf.mxu0
    %v2631 = vadd.f32 0.0, %v2630
    %2632 = vmatmul.f32.gmra.mxu0 %v1413
    %v2633 = vpop.f32.mrf.mxu0
    %v2634 = vadd.f32 0.0, %v2633
    %2635 = vmatmul.f32.gmra.mxu0 %v1416
    %v2636 = vpop.f32.mrf.mxu0
    %v2637 = vadd.f32 0.0, %v2636
    %2638 = vmatmul.f32.gmra.mxu0 %v1419
    %v2639 = vpop.f32.mrf.mxu0
    %v2640 = vadd.f32 0.0, %v2639
    %2641 = vmatmul.f32.gmra.mxu0 %v1422
    %v2642 = vpop.f32.mrf.mxu0
    %v2643 = vadd.f32 0.0, %v2642
    %2644 = vmatmul.f32.gmra.mxu0 %v1425
    %v2645 = vpop.f32.mrf.mxu0
    %v2646 = vadd.f32 0.0, %v2645
    %2647 = vmatmul.f32.gmra.mxu0 %v1428
    %v2648 = vpop.f32.mrf.mxu0
    %v2649 = vadd.f32 0.0, %v2648
    %2650 = vmatmul.f32.gmra.mxu0 %v1431
    %v2651 = vpop.f32.mrf.mxu0
    %v2652 = vadd.f32 0.0, %v2651
    %2653 = vmatmul.f32.gmra.mxu0 %v1434
    %v2654 = vpop.f32.mrf.mxu0
    %v2655 = vadd.f32 0.0, %v2654
    %2656 = vmatmul.f32.gmra.mxu0 %v1437
    %v2657 = vpop.f32.mrf.mxu0
    %v2658 = vadd.f32 0.0, %v2657
    %2659 = vmatmul.f32.gmra.mxu0 %v1440
    %v2660 = vpop.f32.mrf.mxu0
    %v2661 = vadd.f32 0.0, %v2660
    %2662 = vmatmul.f32.gmra.mxu0 %v1443
    %v2663 = vpop.f32.mrf.mxu0
    %v2664 = vadd.f32 0.0, %v2663
    %2665 = vmatmul.f32.gmra.mxu0 %v1446
    %v2666 = vpop.f32.mrf.mxu0
    %v2667 = vadd.f32 0.0, %v2666
    %2668 = vmatmul.f32.gmra.mxu0 %v1449
    %v2669 = vpop.f32.mrf.mxu0
    %v2670 = vadd.f32 0.0, %v2669
    %2671 = vmatmul.f32.gmra.mxu0 %v1452
    %v2672 = vpop.f32.mrf.mxu0
    %v2673 = vadd.f32 0.0, %v2672
    %2674 = vmatmul.f32.gmra.mxu0 %v1455
    %v2675 = vpop.f32.mrf.mxu0
    %v2676 = vadd.f32 0.0, %v2675
    %2677 = vmatmul.f32.gmra.mxu0 %v1458
    %v2678 = vpop.f32.mrf.mxu0
    %v2679 = vadd.f32 0.0, %v2678
    %2680 = vmatmul.f32.gmra.mxu0 %v1461
    %v2681 = vpop.f32.mrf.mxu0
    %v2682 = vadd.f32 0.0, %v2681
    %2683 = vmatmul.f32.gmra.mxu0 %v1464
    %v2684 = vpop.f32.mrf.mxu0
    %v2685 = vadd.f32 0.0, %v2684
    %2686 = vmatmul.f32.gmra.mxu0 %v1467
    %v2687 = vpop.f32.mrf.mxu0
    %v2688 = vadd.f32 0.0, %v2687
    %2689 = vmatmul.f32.gmra.mxu0 %v1470
    %v2690 = vpop.f32.mrf.mxu0
    %v2691 = vadd.f32 0.0, %v2690
    %2692 = vmatmul.f32.gmra.mxu0 %v1473
    %v2693 = vpop.f32.mrf.mxu0
    %v2694 = vadd.f32 0.0, %v2693
    %2695 = vmatmul.f32.gmra.mxu0 %v1476
    %v2696 = vpop.f32.mrf.mxu0
    %v2697 = vadd.f32 0.0, %v2696
    %2698 = vmatmul.f32.gmra.mxu0 %v1479
    %v2699 = vpop.f32.mrf.mxu0
    %v2700 = vadd.f32 0.0, %v2699
    %2701 = vmatmul.f32.gmra.mxu0 %v1482
    %v2702 = vpop.f32.mrf.mxu0
    %v2703 = vadd.f32 0.0, %v2702
    %2704 = vmatmul.f32.gmra.mxu0 %v1485
    %v2705 = vpop.f32.mrf.mxu0
    %v2706 = vadd.f32 0.0, %v2705
    %2707 = vmatmul.f32.gmra.mxu0 %v1488
    %v2708 = vpop.f32.mrf.mxu0
    %v2709 = vadd.f32 0.0, %v2708
    %2710 = vmatmul.f32.gmra.mxu0 %v1491
    %v2711 = vpop.f32.mrf.mxu0
    %v2712 = vadd.f32 0.0, %v2711
    %2713 = vmatmul.f32.gmra.mxu0 %v1494
    %v2714 = vpop.f32.mrf.mxu0
    %v2715 = vadd.f32 0.0, %v2714
    %2716 = vmatmul.f32.gmra.mxu0 %v1497
    %v2717 = vpop.f32.mrf.mxu0
    %v2718 = vadd.f32 0.0, %v2717
    %2719 = vmatmul.f32.gmra.mxu0 %v1500
    %v2720 = vpop.f32.mrf.mxu0
    %v2721 = vadd.f32 0.0, %v2720
    %2722 = vmatmul.f32.gmra.mxu0 %v1503
    %v2723 = vpop.f32.mrf.mxu0
    %v2724 = vadd.f32 0.0, %v2723
    %2725 = vmatmul.f32.gmra.mxu0 %v1506
    %v2726 = vpop.f32.mrf.mxu0
    %v2727 = vadd.f32 0.0, %v2726
    %2728 = vmatmul.f32.gmra.mxu0 %v1509
    %v2729 = vpop.f32.mrf.mxu0
    %v2730 = vadd.f32 0.0, %v2729
    %2731 = vmatmul.f32.gmra.mxu0 %v1512
    %v2732 = vpop.f32.mrf.mxu0
    %v2733 = vadd.f32 0.0, %v2732
    %2734 = vmatmul.f32.gmra.mxu0 %v1515
    %v2735 = vpop.f32.mrf.mxu0
    %v2736 = vadd.f32 0.0, %v2735
    %2737 = vmatmul.f32.gmra.mxu0 %v1518
    %v2738 = vpop.f32.mrf.mxu0
    %v2739 = vadd.f32 0.0, %v2738
    %2740 = vmatmul.f32.gmra.mxu0 %v1521
    %v2741 = vpop.f32.mrf.mxu0
    %v2742 = vadd.f32 0.0, %v2741
    %2743 = vmatmul.f32.gmra.mxu0 %v1524
    %v2744 = vpop.f32.mrf.mxu0
    %v2745 = vadd.f32 0.0, %v2744
    %2746 = vmatmul.f32.gmra.mxu0 %v1527
    %v2747 = vpop.f32.mrf.mxu0
    %v2748 = vadd.f32 0.0, %v2747
    %2749 = vmatmul.f32.gmra.mxu0 %v1530
    %v2750 = vpop.f32.mrf.mxu0
    %v2751 = vadd.f32 0.0, %v2750
    %2752 = vmatmul.f32.gmra.mxu0 %v1533
    %v2753 = vpop.f32.mrf.mxu0
    %v2754 = vadd.f32 0.0, %v2753
    %2755 = vmatmul.f32.gmra.mxu0 %v1536
    %v2756 = vpop.f32.mrf.mxu0
    %v2757 = vadd.f32 0.0, %v2756
    %2758 = vmatmul.f32.gmra.mxu0 %v1539
    %v2759 = vpop.f32.mrf.mxu0
    %v2760 = vadd.f32 0.0, %v2759
    %2761 = vmatmul.f32.gmra.mxu0 %v1542
    %v2762 = vpop.f32.mrf.mxu0
    %v2763 = vadd.f32 0.0, %v2762
    %2764 = vmatmul.f32.gmra.mxu0 %v1545
    %v2765 = vpop.f32.mrf.mxu0
    %v2766 = vadd.f32 0.0, %v2765
    %2767 = vmatmul.f32.gmra.mxu0 %v1548
    %v2768 = vpop.f32.mrf.mxu0
    %v2769 = vadd.f32 0.0, %v2768
    %2770 = vmatmul.f32.gmra.mxu0 %v1551
    %v2771 = vpop.f32.mrf.mxu0
    %v2772 = vadd.f32 0.0, %v2771
    %2773 = vmatmul.f32.gmra.mxu0 %v1554
    %v2774 = vpop.f32.mrf.mxu0
    %v2775 = vadd.f32 0.0, %v2774
    %2776 = vmatmul.f32.gmra.mxu0 %v1557
    %v2777 = vpop.f32.mrf.mxu0
    %v2778 = vadd.f32 0.0, %v2777
    %2779 = vmatmul.f32.gmra.mxu0 %v1560
    %v2780 = vpop.f32.mrf.mxu0
    %v2781 = vadd.f32 0.0, %v2780
    %2782 = vmatmul.f32.gmra.mxu0 %v1563
    %v2783 = vpop.f32.mrf.mxu0
    %v2784 = vadd.f32 0.0, %v2783
    %2785 = vmatmul.f32.gmra.mxu0 %v1566
    %v2786 = vpop.f32.mrf.mxu0
    %v2787 = vadd.f32 0.0, %v2786
    %2788 = vmatmul.f32.gmra.mxu0 %v1569
    %v2789 = vpop.f32.mrf.mxu0
    %v2790 = vadd.f32 0.0, %v2789
    %2791 = vmatmul.f32.gmra.mxu0 %v1572
    %v2792 = vpop.f32.mrf.mxu0
    %v2793 = vadd.f32 0.0, %v2792
    %2794 = vmatmul.f32.gmra.mxu0 %v1575
    %v2795 = vpop.f32.mrf.mxu0
    %v2796 = vadd.f32 0.0, %v2795
    %2797 = vmatmul.f32.gmra.mxu0 %v1578
    %v2798 = vpop.f32.mrf.mxu0
    %v2799 = vadd.f32 0.0, %v2798
    %2800 = vmatmul.f32.gmra.mxu0 %v1581
    %v2801 = vpop.f32.mrf.mxu0
    %v2802 = vadd.f32 0.0, %v2801
    %2803 = vmatmul.f32.gmra.mxu0 %v1584
    %v2804 = vpop.f32.mrf.mxu0
    %v2805 = vadd.f32 0.0, %v2804
    %2806 = vmatmul.f32.gmra.mxu0 %v1587
    %v2807 = vpop.f32.mrf.mxu0
    %v2808 = vadd.f32 0.0, %v2807
    %2809 = vmatmul.f32.gmra.mxu0 %v1590
    %v2810 = vpop.f32.mrf.mxu0
    %v2811 = vadd.f32 0.0, %v2810
    %2812 = vmatmul.f32.gmra.mxu0 %v1593
    %v2813 = vpop.f32.mrf.mxu0
    %v2814 = vadd.f32 0.0, %v2813
    %2815 = vmatmul.f32.gmra.mxu0 %v1596
    %v2816 = vpop.f32.mrf.mxu0
    %v2817 = vadd.f32 0.0, %v2816
    %2818 = vmatmul.f32.gmra.mxu0 %v1599
    %v2819 = vpop.f32.mrf.mxu0
    %v2820 = vadd.f32 0.0, %v2819
    %2821 = vmatmul.f32.gmra.mxu0 %v1602
    %v2822 = vpop.f32.mrf.mxu0
    %v2823 = vadd.f32 0.0, %v2822
    %2824 = vmatmul.f32.gmra.mxu0 %v1605
    %v2825 = vpop.f32.mrf.mxu0
    %v2826 = vadd.f32 0.0, %v2825
    %2827 = vmatmul.f32.gmra.mxu0 %v1608
    %v2828 = vpop.f32.mrf.mxu0
    %v2829 = vadd.f32 0.0, %v2828
    %2830 = vmatmul.f32.gmra.mxu0 %v1611
    %v2831 = vpop.f32.mrf.mxu0
    %v2832 = vadd.f32 0.0, %v2831
    %2833 = vmatmul.f32.gmra.mxu0 %v1614
    %v2834 = vpop.f32.mrf.mxu0
    %v2835 = vadd.f32 0.0, %v2834
    %2836 = vmatmul.f32.gmra.mxu0 %v1617
    %v2837 = vpop.f32.mrf.mxu0
    %v2838 = vadd.f32 0.0, %v2837
    %2839 = vmatmul.f32.gmra.mxu0 %v1620
    %v2840 = vpop.f32.mrf.mxu0
    %v2841 = vadd.f32 0.0, %v2840
    %2842 = vmatmul.f32.gmra.mxu0 %v1623
    %v2843 = vpop.f32.mrf.mxu0
    %v2844 = vadd.f32 0.0, %v2843
    %2845 = vmatmul.f32.gmra.mxu0 %v1626
    %v2846 = vpop.f32.mrf.mxu0
    %v2847 = vadd.f32 0.0, %v2846
    %2848 = vmatmul.f32.gmra.mxu0 %v1629
    %v2849 = vpop.f32.mrf.mxu0
    %v2850 = vadd.f32 0.0, %v2849
    %2851 = vmatmul.f32.gmra.mxu0 %v1632
    %v2852 = vpop.f32.mrf.mxu0
    %v2853 = vadd.f32 0.0, %v2852
    %2854 = vmatmul.f32.gmra.mxu0 %v1635
    %v2855 = vpop.f32.mrf.mxu0
    %v2856 = vadd.f32 0.0, %v2855
    %2857 = vmatmul.f32.gmra.mxu0 %v1638
    %v2858 = vpop.f32.mrf.mxu0
    %v2859 = vadd.f32 0.0, %v2858
    %2860 = vmatmul.f32.gmra.mxu0 %v1641
    %v2861 = vpop.f32.mrf.mxu0
    %v2862 = vadd.f32 0.0, %v2861
    %2863 = vmatmul.f32.gmra.mxu0 %v1644
    %v2864 = vpop.f32.mrf.mxu0
    %v2865 = vadd.f32 0.0, %v2864
    %2866 = vmatmul.f32.gmra.mxu0 %v1647
    %v2867 = vpop.f32.mrf.mxu0
    %v2868 = vadd.f32 0.0, %v2867
    %2869 = vmatmul.f32.gmra.mxu0 %v1650
    %v2870 = vpop.f32.mrf.mxu0
    %v2871 = vadd.f32 0.0, %v2870
    %2872 = vmatmul.f32.gmra.mxu0 %v1653
    %v2873 = vpop.f32.mrf.mxu0
    %v2874 = vadd.f32 0.0, %v2873
    %2875 = vmatmul.f32.gmra.mxu0 %v1656
    %v2876 = vpop.f32.mrf.mxu0
    %v2877 = vadd.f32 0.0, %v2876
    %2878 = vmatmul.f32.gmra.mxu0 %v1659
    %v2879 = vpop.f32.mrf.mxu0
    %v2880 = vadd.f32 0.0, %v2879
    %2881 = vmatmul.f32.gmra.mxu0 %v1662
    %v2882 = vpop.f32.mrf.mxu0
    %v2883 = vadd.f32 0.0, %v2882
    %2884 = vmatmul.f32.gmra.mxu0 %v1665
    %v2885 = vpop.f32.mrf.mxu0
    %v2886 = vadd.f32 0.0, %v2885
    %2887 = vmatmul.f32.gmra.mxu0 %v1668
    %v2888 = vpop.f32.mrf.mxu0
    %v2889 = vadd.f32 0.0, %v2888
    %2890 = vmatmul.f32.gmra.mxu0 %v1671
    %v2891 = vpop.f32.mrf.mxu0
    %v2892 = vadd.f32 0.0, %v2891
    %2893 = vmatmul.f32.gmra.mxu0 %v1674
    %v2894 = vpop.f32.mrf.mxu0
    %v2895 = vadd.f32 0.0, %v2894
    %2896 = vmatmul.f32.gmra.mxu0 %v1677
    %v2897 = vpop.f32.mrf.mxu0
    %v2898 = vadd.f32 0.0, %v2897
    %2899 = vmatmul.f32.gmra.mxu0 %v1680
    %v2900 = vpop.f32.mrf.mxu0
    %v2901 = vadd.f32 0.0, %v2900
    %2902 = vmatmul.f32.gmra.mxu0 %v1683
    %v2903 = vpop.f32.mrf.mxu0
    %v2904 = vadd.f32 0.0, %v2903
    %2905 = vmatmul.f32.gmra.mxu0 %v1686
    %v2906 = vpop.f32.mrf.mxu0
    %v2907 = vadd.f32 0.0, %v2906
    %2908 = vmatmul.f32.gmra.mxu0 %v1689
    %v2909 = vpop.f32.mrf.mxu0
    %v2910 = vadd.f32 0.0, %v2909
    %2911 = vmatmul.f32.gmra.mxu0 %v1692
    %v2912 = vpop.f32.mrf.mxu0
    %v2913 = vadd.f32 0.0, %v2912
    %2914 = vmatmul.f32.gmra.mxu0 %v1695
    %v2915 = vpop.f32.mrf.mxu0
    %v2916 = vadd.f32 0.0, %v2915
    %2917 = vmatmul.f32.gmra.mxu0 %v1698
    %v2918 = vpop.f32.mrf.mxu0
    %v2919 = vadd.f32 0.0, %v2918
    %2920 = vmatmul.f32.gmra.mxu0 %v1701
    %v2921 = vpop.f32.mrf.mxu0
    %v2922 = vadd.f32 0.0, %v2921
    %2923 = vmatmul.f32.gmra.mxu0 %v1704
    %v2924 = vpop.f32.mrf.mxu0
    %v2925 = vadd.f32 0.0, %v2924
    %2926 = vmatmul.f32.gmra.mxu0 %v1707
    %v2927 = vpop.f32.mrf.mxu0
    %v2928 = vadd.f32 0.0, %v2927
    %2929 = vmatmul.f32.gmra.mxu0 %v1710
    %v2930 = vpop.f32.mrf.mxu0
    %v2931 = vadd.f32 0.0, %v2930
    %2932 = vmatmul.f32.gmra.mxu0 %v1713
    %v2933 = vpop.f32.mrf.mxu0
    %v2934 = vadd.f32 0.0, %v2933
    %2935 = vmatmul.f32.gmra.mxu0 %v1716
    %v2936 = vpop.f32.mrf.mxu0
    %v2937 = vadd.f32 0.0, %v2936
    %2938 = vmatmul.f32.gmra.mxu0 %v1719
    %v2939 = vpop.f32.mrf.mxu0
    %v2940 = vadd.f32 0.0, %v2939
    %2941 = vmatmul.f32.gmra.mxu0 %v1722
    %v2942 = vpop.f32.mrf.mxu0
    %v2943 = vadd.f32 0.0, %v2942
    %2944 = vmatmul.f32.gmra.mxu0 %v1725
    %v2945 = vpop.f32.mrf.mxu0
    %v2946 = vadd.f32 0.0, %v2945
    %2947 = vmatmul.f32.gmra.mxu0 %v1728
    %v2948 = vpop.f32.mrf.mxu0
    %v2949 = vadd.f32 0.0, %v2948
    %2950 = vmatmul.f32.gmra.mxu0 %v1731
    %v2951 = vpop.f32.mrf.mxu0
    %v2952 = vadd.f32 0.0, %v2951
    %2953 = vmatmul.f32.gmra.mxu0 %v1734
    %v2954 = vpop.f32.mrf.mxu0
    %v2955 = vadd.f32 0.0, %v2954
    %2956 = vmatmul.f32.gmra.mxu0 %v1737
    %v2957 = vpop.f32.mrf.mxu0
    %v2958 = vadd.f32 0.0, %v2957
    %2959 = vmatmul.f32.gmra.mxu0 %v1740
    %v2960 = vpop.f32.mrf.mxu0
    %v2961 = vadd.f32 0.0, %v2960
    %2962 = vmatmul.f32.gmra.mxu0 %v1743
    %v2963 = vpop.f32.mrf.mxu0
    %v2964 = vadd.f32 0.0, %v2963
    %2965 = vmatmul.f32.gmra.mxu0 %v1746
    %v2966 = vpop.f32.mrf.mxu0
    %v2967 = vadd.f32 0.0, %v2966
    %2968 = vmatmul.f32.gmra.mxu0 %v1749
    %v2969 = vpop.f32.mrf.mxu0
    %v2970 = vadd.f32 0.0, %v2969
    %2971 = vmatmul.f32.gmra.mxu0 %v1752
    %v2972 = vpop.f32.mrf.mxu0
    %v2973 = vadd.f32 0.0, %v2972
    %2974 = vmatmul.f32.gmra.mxu0 %v1755
    %v2975 = vpop.f32.mrf.mxu0
    %v2976 = vadd.f32 0.0, %v2975
    %2977 = vmatmul.f32.gmra.mxu0 %v1758
    %v2978 = vpop.f32.mrf.mxu0
    %v2979 = vadd.f32 0.0, %v2978
    %2980 = vmatmul.f32.gmra.mxu0 %v1761
    %v2981 = vpop.f32.mrf.mxu0
    %v2982 = vadd.f32 0.0, %v2981
    %2983 = vmatmul.f32.gmra.mxu0 %v1764
    %v2984 = vpop.f32.mrf.mxu0
    %v2985 = vadd.f32 0.0, %v2984
    %2986 = vmatmul.f32.gmra.mxu0 %v1767
    %v2987 = vpop.f32.mrf.mxu0
    %v2988 = vadd.f32 0.0, %v2987
    %2989 = vmatmul.f32.gmra.mxu0 %v1770
    %v2990 = vpop.f32.mrf.mxu0
    %v2991 = vadd.f32 0.0, %v2990
    %2992 = vmatmul.f32.gmra.mxu0 %v1773
    %v2993 = vpop.f32.mrf.mxu0
    %v2994 = vadd.f32 0.0, %v2993
    %2995 = vmatmul.f32.gmra.mxu0 %v1776
    %v2996 = vpop.f32.mrf.mxu0
    %v2997 = vadd.f32 0.0, %v2996
    %2998 = vmatmul.f32.gmra.mxu0 %v1779
    %v2999 = vpop.f32.mrf.mxu0
    %v3000 = vadd.f32 0.0, %v2999
    %3001 = vmatmul.f32.gmra.mxu0 %v1782
    %v3002 = vpop.f32.mrf.mxu0
    %v3003 = vadd.f32 0.0, %v3002
    %3004 = vmatmul.f32.gmra.mxu0 %v1785
    %v3005 = vpop.f32.mrf.mxu0
    %v3006 = vadd.f32 0.0, %v3005
    %3007 = vmatmul.f32.gmra.mxu0 %v1788
    %v3008 = vpop.f32.mrf.mxu0
    %v3009 = vadd.f32 0.0, %v3008
    %3010 = vmatmul.f32.gmra.mxu0 %v1791
    %v3011 = vpop.f32.mrf.mxu0
    %v3012 = vadd.f32 0.0, %v3011
    %3013 = vmatmul.f32.gmra.mxu0 %v1794
    %v3014 = vpop.f32.mrf.mxu0
    %v3015 = vadd.f32 0.0, %v3014
    %3016 = vmatmul.f32.gmra.mxu0 %v1797
    %v3017 = vpop.f32.mrf.mxu0
    %v3018 = vadd.f32 0.0, %v3017
    %3019 = vmatmul.f32.gmra.mxu0 %v1800
    %v3020 = vpop.f32.mrf.mxu0
    %v3021 = vadd.f32 0.0, %v3020
    %3022 = vmatmul.f32.gmra.mxu0 %v1803
    %v3023 = vpop.f32.mrf.mxu0
    %v3024 = vadd.f32 0.0, %v3023
    %3025 = vmatmul.f32.gmra.mxu0 %v1806
    %v3026 = vpop.f32.mrf.mxu0
    %v3027 = vadd.f32 0.0, %v3026
    %3028 = vmatmul.f32.gmra.mxu0 %v1809
    %v3029 = vpop.f32.mrf.mxu0
    %v3030 = vadd.f32 0.0, %v3029
    %3031 = vmatmul.f32.gmra.mxu0 %v1812
    %v3032 = vpop.f32.mrf.mxu0
    %v3033 = vadd.f32 0.0, %v3032
    %3034 = vmatmul.f32.gmra.mxu0 %v1815
    %v3035 = vpop.f32.mrf.mxu0
    %v3036 = vadd.f32 0.0, %v3035
    %3037 = vmatmul.f32.gmra.mxu0 %v1818
    %v3038 = vpop.f32.mrf.mxu0
    %v3039 = vadd.f32 0.0, %v3038
    %3040 = vmatmul.f32.gmra.mxu0 %v1821
    %v3041 = vpop.f32.mrf.mxu0
    %v3042 = vadd.f32 0.0, %v3041
    %3043 = vmatmul.f32.gmra.mxu0 %v1824
    %v3044 = vpop.f32.mrf.mxu0
    %v3045 = vadd.f32 0.0, %v3044
    %3046 = vmatmul.f32.gmra.mxu0 %v1827
    %v3047 = vpop.f32.mrf.mxu0
    %v3048 = vadd.f32 0.0, %v3047
    %3049 = vmatmul.f32.gmra.mxu0 %v1830
    %v3050 = vpop.f32.mrf.mxu0
    %v3051 = vadd.f32 0.0, %v3050
    %3052 = vmatmul.f32.gmra.mxu0 %v1833
    %v3053 = vpop.f32.mrf.mxu0
    %v3054 = vadd.f32 0.0, %v3053
    %3055 = vmatmul.f32.gmra.mxu0 %v1836
    %v3056 = vpop.f32.mrf.mxu0
    %v3057 = vadd.f32 0.0, %v3056
    %3058 = vmatmul.f32.gmra.mxu0 %v1839
    %v3059 = vpop.f32.mrf.mxu0
    %v3060 = vadd.f32 0.0, %v3059
    %3061 = vmatmul.f32.gmra.mxu0 %v1842
    %v3062 = vpop.f32.mrf.mxu0
    %v3063 = vadd.f32 0.0, %v3062
    %3064 = vmatmul.f32.gmra.mxu0 %v1845
    %v3065 = vpop.f32.mrf.mxu0
    %v3066 = vadd.f32 0.0, %v3065
    %3067 = vmatmul.f32.gmra.mxu0 %v1848
    %v3068 = vpop.f32.mrf.mxu0
    %v3069 = vadd.f32 0.0, %v3068
    %3070 = vmatmul.f32.gmra.mxu0 %v1851
    %v3071 = vpop.f32.mrf.mxu0
    %v3072 = vadd.f32 0.0, %v3071
    %3073 = vmatmul.f32.gmra.mxu0 %v1854
    %v3074 = vpop.f32.mrf.mxu0
    %v3075 = vadd.f32 0.0, %v3074
    %3076 = vmatmul.f32.gmra.mxu0 %v1857
    %v3077 = vpop.f32.mrf.mxu0
    %v3078 = vadd.f32 0.0, %v3077
    %3079 = vmatmul.f32.gmra.mxu0 %v1860
    %v3080 = vpop.f32.mrf.mxu0
    %v3081 = vadd.f32 0.0, %v3080
    %3082 = vmatmul.f32.gmra.mxu0 %v1863
    %v3083 = vpop.f32.mrf.mxu0
    %v3084 = vadd.f32 0.0, %v3083
    %3085 = vmatmul.f32.gmra.mxu0 %v1866
    %v3086 = vpop.f32.mrf.mxu0
    %v3087 = vadd.f32 0.0, %v3086
    %3088 = vmatmul.f32.gmra.mxu0 %v1869
    %v3089 = vpop.f32.mrf.mxu0
    %v3090 = vadd.f32 0.0, %v3089
    %3091 = vmatmul.f32.gmra.mxu0 %v1872
    %v3092 = vpop.f32.mrf.mxu0
    %v3093 = vadd.f32 0.0, %v3092
    %3094 = vmatmul.f32.gmra.mxu0 %v1875
    %v3095 = vpop.f32.mrf.mxu0
    %v3096 = vadd.f32 0.0, %v3095
    %3097 = vmatmul.f32.gmra.mxu0 %v1878
    %v3098 = vpop.f32.mrf.mxu0
    %v3099 = vadd.f32 0.0, %v3098
    %3100 = vmatmul.f32.gmra.mxu0 %v1881
    %v3101 = vpop.f32.mrf.mxu0
    %v3102 = vadd.f32 0.0, %v3101
    %3103 = vmatmul.f32.gmra.mxu0 %v1884
    %v3104 = vpop.f32.mrf.mxu0
    %v3105 = vadd.f32 0.0, %v3104
    %3106 = vmatmul.f32.gmra.mxu0 %v1887
    %v3107 = vpop.f32.mrf.mxu0
    %v3108 = vadd.f32 0.0, %v3107
    %3109 = vmatmul.f32.gmra.mxu0 %v1890
    %v3110 = vpop.f32.mrf.mxu0
    %v3111 = vadd.f32 0.0, %v3110
    %3112 = vmatmul.f32.gmra.mxu0 %v1893
    %v3113 = vpop.f32.mrf.mxu0
    %v3114 = vadd.f32 0.0, %v3113
    %3115 = vmatmul.f32.gmra.mxu0 %v1896
    %v3116 = vpop.f32.mrf.mxu0
    %v3117 = vadd.f32 0.0, %v3116
    %3118 = vmatmul.f32.gmra.mxu0 %v1899
    %v3119 = vpop.f32.mrf.mxu0
    %v3120 = vadd.f32 0.0, %v3119
    %3121 = vmatmul.f32.gmra.mxu0 %v1902
    %v3122 = vpop.f32.mrf.mxu0
    %v3123 = vadd.f32 0.0, %v3122
    %3124 = vmatmul.f32.gmra.mxu0 %v1905
    %v3125 = vpop.f32.mrf.mxu0
    %v3126 = vadd.f32 0.0, %v3125
    %3127 = vmatmul.f32.gmra.mxu0 %v1908
    %v3128 = vpop.f32.mrf.mxu0
    %v3129 = vadd.f32 0.0, %v3128
    %3130 = vmatmul.f32.gmra.mxu0 %v1911
    %v3131 = vpop.f32.mrf.mxu0
    %v3132 = vadd.f32 0.0, %v3131
    %3133 = vmatmul.f32.gmra.mxu0 %v1914
    %v3134 = vpop.f32.mrf.mxu0
    %v3135 = vadd.f32 0.0, %v3134
    %3136 = vmatmul.f32.gmra.mxu0 %v1917
    %v3137 = vpop.f32.mrf.mxu0
    %v3138 = vadd.f32 0.0, %v3137
    %3139 = vmatmul.f32.gmra.mxu0 %v1920
    %v3140 = vpop.f32.mrf.mxu0
    %v3141 = vadd.f32 0.0, %v3140
    %3142 = vmatmul.f32.gmra.mxu0 %v1923
    %v3143 = vpop.f32.mrf.mxu0
    %v3144 = vadd.f32 0.0, %v3143
    %3145 = vmatmul.f32.gmra.mxu0 %v1926
    %v3146 = vpop.f32.mrf.mxu0
    %v3147 = vadd.f32 0.0, %v3146
    %3148 = vmatmul.f32.gmra.mxu0 %v1929
    %v3149 = vpop.f32.mrf.mxu0
    %v3150 = vadd.f32 0.0, %v3149
    %3151 = vmatmul.f32.gmra.mxu0 %v1932
    %v3152 = vpop.f32.mrf.mxu0
    %v3153 = vadd.f32 0.0, %v3152
    %3154 = vmatmul.f32.gmra.mxu0 %v1935
    %v3155 = vpop.f32.mrf.mxu0
    %v3156 = vadd.f32 0.0, %v3155
    %3157 = vmatmul.f32.gmra.mxu0 %v1938
    %v3158 = vpop.f32.mrf.mxu0
    %v3159 = vadd.f32 0.0, %v3158
    %3160 = vmatmul.f32.gmra.mxu0 %v1941
    %v3161 = vpop.f32.mrf.mxu0
    %v3162 = vadd.f32 0.0, %v3161
    %3163 = vmatmul.f32.gmra.mxu0 %v1944
    %v3164 = vpop.f32.mrf.mxu0
    %v3165 = vadd.f32 0.0, %v3164
    %3166 = vmatmul.f32.gmra.mxu0 %v1947
    %v3167 = vpop.f32.mrf.mxu0
    %v3168 = vadd.f32 0.0, %v3167
    %3169 = vmatmul.f32.gmra.mxu0 %v1950
    %v3170 = vpop.f32.mrf.mxu0
    %v3171 = vadd.f32 0.0, %v3170
    %3172 = vmatmul.f32.gmra.mxu0 %v1953
    %v3173 = vpop.f32.mrf.mxu0
    %v3174 = vadd.f32 0.0, %v3173
    %3175 = vmatmul.f32.gmra.mxu0 %v1956
    %v3176 = vpop.f32.mrf.mxu0
    %v3177 = vadd.f32 0.0, %v3176
    %3178 = vmatmul.f32.gmra.mxu0 %v1959
    %v3179 = vpop.f32.mrf.mxu0
    %v3180 = vadd.f32 0.0, %v3179
    %3181 = vmatmul.f32.gmra.mxu0 %v1962
    %v3182 = vpop.f32.mrf.mxu0
    %v3183 = vadd.f32 0.0, %v3182
    %3184 = vmatmul.f32.gmra.mxu0 %v1965
    %v3185 = vpop.f32.mrf.mxu0
    %v3186 = vadd.f32 0.0, %v3185
    %3187 = vmatmul.f32.gmra.mxu0 %v1968
    %v3188 = vpop.f32.mrf.mxu0
    %v3189 = vadd.f32 0.0, %v3188
    %3190 = vmatmul.f32.gmra.mxu0 %v1971
    %v3191 = vpop.f32.mrf.mxu0
    %v3192 = vadd.f32 0.0, %v3191
    %3193 = vmatmul.f32.gmra.mxu0 %v1974
    %v3194 = vpop.f32.mrf.mxu0
    %v3195 = vadd.f32 0.0, %v3194
    %3196 = vmatmul.f32.gmra.mxu0 %v1977
    %v3197 = vpop.f32.mrf.mxu0
    %v3198 = vadd.f32 0.0, %v3197
    %3199 = vmatmul.f32.gmra.mxu0 %v1980
    %v3200 = vpop.f32.mrf.mxu0
    %v3201 = vadd.f32 0.0, %v3200
    %3202 = vmatmul.f32.gmra.mxu0 %v1983
    %v3203 = vpop.f32.mrf.mxu0
    %v3204 = vadd.f32 0.0, %v3203
    %3205 = vmatmul.f32.gmra.mxu0 %v1986
    %v3206 = vpop.f32.mrf.mxu0
    %v3207 = vadd.f32 0.0, %v3206
    %3208 = vmatmul.f32.gmra.mxu0 %v1989
    %v3209 = vpop.f32.mrf.mxu0
    %v3210 = vadd.f32 0.0, %v3209
    %3211 = vmatmul.f32.gmra.mxu0 %v1992
    %v3212 = vpop.f32.mrf.mxu0
    %v3213 = vadd.f32 0.0, %v3212
    %3214 = vmatmul.f32.gmra.mxu0 %v1995
    %v3215 = vpop.f32.mrf.mxu0
    %v3216 = vadd.f32 0.0, %v3215
    %3217 = vmatmul.f32.gmra.mxu0 %v1998
    %v3218 = vpop.f32.mrf.mxu0
    %v3219 = vadd.f32 0.0, %v3218
    %3220 = vmatmul.f32.gmra.mxu0 %v2001
    %v3221 = vpop.f32.mrf.mxu0
    %v3222 = vadd.f32 0.0, %v3221
    %3223 = vmatmul.f32.gmra.mxu0 %v2004
    %v3224 = vpop.f32.mrf.mxu0
    %v3225 = vadd.f32 0.0, %v3224
    %3226 = vmatmul.f32.gmra.mxu0 %v2007
    %v3227 = vpop.f32.mrf.mxu0
    %v3228 = vadd.f32 0.0, %v3227
    %3229 = vmatmul.f32.gmra.mxu0 %v2010
    %v3230 = vpop.f32.mrf.mxu0
    %v3231 = vadd.f32 0.0, %v3230
    %3232 = vmatmul.f32.gmra.mxu0 %v2013
    %v3233 = vpop.f32.mrf.mxu0
    %v3234 = vadd.f32 0.0, %v3233
    %3235 = vmatmul.f32.gmra.mxu0 %v2016
    %v3236 = vpop.f32.mrf.mxu0
    %v3237 = vadd.f32 0.0, %v3236
    %3238 = vmatmul.f32.gmra.mxu0 %v2019
    %v3239 = vpop.f32.mrf.mxu0
    %v3240 = vadd.f32 0.0, %v3239
    %3241 = vmatmul.f32.gmra.mxu0 %v2022
    %v3242 = vpop.f32.mrf.mxu0
    %v3243 = vadd.f32 0.0, %v3242
    %3244 = vmatmul.f32.gmra.mxu0 %v2025
    %v3245 = vpop.f32.mrf.mxu0
    %v3246 = vadd.f32 0.0, %v3245
    %3247 = vmatmul.f32.gmra.mxu0 %v2028
    %v3248 = vpop.f32.mrf.mxu0
    %v3249 = vadd.f32 0.0, %v3248
    %3250 = vmatmul.f32.gmra.mxu0 %v2031
    %v3251 = vpop.f32.mrf.mxu0
    %v3252 = vadd.f32 0.0, %v3251
    %3253 = vmatmul.f32.gmra.mxu0 %v2034
    %v3254 = vpop.f32.mrf.mxu0
    %v3255 = vadd.f32 0.0, %v3254
    %3256 = vmatmul.f32.gmra.mxu0 %v2037
    %v3257 = vpop.f32.mrf.mxu0
    %v3258 = vadd.f32 0.0, %v3257
    %3259 = vmatmul.f32.gmra.mxu0 %v2040
    %v3260 = vpop.f32.mrf.mxu0
    %v3261 = vadd.f32 0.0, %v3260
    %3262 = vmatmul.f32.gmra.mxu0 %v2043
    %v3263 = vpop.f32.mrf.mxu0
    %v3264 = vadd.f32 0.0, %v3263
    %3265 = vmatmul.f32.gmra.mxu0 %v2046
    %v3266 = vpop.f32.mrf.mxu0
    %v3267 = vadd.f32 0.0, %v3266
    %3268 = vmatmul.f32.gmra.mxu0 %v2049
    %v3269 = vpop.f32.mrf.mxu0
    %v3270 = vadd.f32 0.0, %v3269
    %3271 = vmatmul.f32.gmra.mxu0 %v2052
    %v3272 = vpop.f32.mrf.mxu0
    %v3273 = vadd.f32 0.0, %v3272
    %3274 = vmatmul.f32.gmra.mxu0 %v2055
    %v3275 = vpop.f32.mrf.mxu0
    %v3276 = vadd.f32 0.0, %v3275
    %3277 = vmatmul.f32.gmra.mxu0 %v2058
    %v3278 = vpop.f32.mrf.mxu0
    %v3279 = vadd.f32 0.0, %v3278
    %3280 = vmatmul.f32.gmra.mxu0 %v2061
    %v3281 = vpop.f32.mrf.mxu0
    %v3282 = vadd.f32 0.0, %v3281
    %3283 = vmatmul.f32.gmra.mxu0 %v2064
    %v3284 = vpop.f32.mrf.mxu0
    %v3285 = vadd.f32 0.0, %v3284
    %3286 = vmatmul.f32.gmra.mxu0 %v2067
    %v3287 = vpop.f32.mrf.mxu0
    %v3288 = vadd.f32 0.0, %v3287
    %3289 = vdwg.mxu0
    %v3291 = vsel %vm868, %v48, 0
    %v3294 = vsel %vm868, %v49, 0
    %v3297 = vsel %vm868, %v50, 0
    %v3300 = vsel %vm868, %v51, 0
    %v3303 = vsel %vm868, %v52, 0
    %v3306 = vsel %vm868, %v53, 0
    %v3309 = vsel %vm868, %v54, 0
    %v3312 = vsel %vm868, %v55, 0
    %v3315 = vsel %vm868, %v56, 0
    %v3318 = vsel %vm868, %v57, 0
    %v3321 = vsel %vm868, %v58, 0
    %v3324 = vsel %vm868, %v59, 0
    %v3327 = vsel %vm868, %v60, 0
    %v3330 = vsel %vm868, %v61, 0
    %v3333 = vsel %vm868, %v62, 0
    %v3336 = vsel %vm868, %v63, 0
    %v3339 = vsel %vm868, %v80, 0
    %v3342 = vsel %vm868, %v81, 0
    %v3345 = vsel %vm868, %v82, 0
    %v3348 = vsel %vm868, %v83, 0
    %v3351 = vsel %vm868, %v84, 0
    %v3354 = vsel %vm868, %v85, 0
    %v3357 = vsel %vm868, %v86, 0
    %v3360 = vsel %vm868, %v87, 0
    %v3363 = vsel %vm868, %v88, 0
    %v3366 = vsel %vm868, %v89, 0
    %v3369 = vsel %vm868, %v90, 0
    %v3372 = vsel %vm868, %v91, 0
    %v3375 = vsel %vm868, %v92, 0
    %v3378 = vsel %vm868, %v93, 0
    %v3381 = vsel %vm868, %v94, 0
    %v3384 = vsel %vm868, %v95, 0
    %v3387 = vsel %vm868, %v112, 0
    %v3390 = vsel %vm868, %v113, 0
    %v3393 = vsel %vm868, %v114, 0
    %v3396 = vsel %vm868, %v115, 0
    %v3399 = vsel %vm868, %v116, 0
    %v3402 = vsel %vm868, %v117, 0
    %v3405 = vsel %vm868, %v118, 0
    %v3408 = vsel %vm868, %v119, 0
    %v3411 = vsel %vm868, %v120, 0
    %v3414 = vsel %vm868, %v121, 0
    %v3417 = vsel %vm868, %v122, 0
    %v3420 = vsel %vm868, %v123, 0
    %v3423 = vsel %vm868, %v124, 0
    %v3426 = vsel %vm868, %v125, 0
    %v3429 = vsel %vm868, %v126, 0
    %v3432 = vsel %vm868, %v127, 0
    %v3435 = vsel %vm868, %v144, 0
    %v3438 = vsel %vm868, %v145, 0
    %v3441 = vsel %vm868, %v146, 0
    %v3444 = vsel %vm868, %v147, 0
    %v3447 = vsel %vm868, %v148, 0
    %v3450 = vsel %vm868, %v149, 0
    %v3453 = vsel %vm868, %v150, 0
    %v3456 = vsel %vm868, %v151, 0
    %v3459 = vsel %vm868, %v152, 0
    %v3462 = vsel %vm868, %v153, 0
    %v3465 = vsel %vm868, %v154, 0
    %v3468 = vsel %vm868, %v155, 0
    %v3471 = vsel %vm868, %v156, 0
    %v3474 = vsel %vm868, %v157, 0
    %v3477 = vsel %vm868, %v158, 0
    %v3480 = vsel %vm868, %v159, 0
    %v3483 = vsel %vm868, %v176, 0
    %v3486 = vsel %vm868, %v177, 0
    %v3489 = vsel %vm868, %v178, 0
    %v3492 = vsel %vm868, %v179, 0
    %v3495 = vsel %vm868, %v180, 0
    %v3498 = vsel %vm868, %v181, 0
    %v3501 = vsel %vm868, %v182, 0
    %v3504 = vsel %vm868, %v183, 0
    %v3507 = vsel %vm868, %v184, 0
    %v3510 = vsel %vm868, %v185, 0
    %v3513 = vsel %vm868, %v186, 0
    %v3516 = vsel %vm868, %v187, 0
    %v3519 = vsel %vm868, %v188, 0
    %v3522 = vsel %vm868, %v189, 0
    %v3525 = vsel %vm868, %v190, 0
    %v3528 = vsel %vm868, %v191, 0
    %v3531 = vsel %vm868, %v208, 0
    %v3534 = vsel %vm868, %v209, 0
    %v3537 = vsel %vm868, %v210, 0
    %v3540 = vsel %vm868, %v211, 0
    %v3543 = vsel %vm868, %v212, 0
    %v3546 = vsel %vm868, %v213, 0
    %v3549 = vsel %vm868, %v214, 0
    %v3552 = vsel %vm868, %v215, 0
    %v3555 = vsel %vm868, %v216, 0
    %v3558 = vsel %vm868, %v217, 0
    %v3561 = vsel %vm868, %v218, 0
    %v3564 = vsel %vm868, %v219, 0
    %v3567 = vsel %vm868, %v220, 0
    %v3570 = vsel %vm868, %v221, 0
    %v3573 = vsel %vm868, %v222, 0
    %v3576 = vsel %vm868, %v223, 0
    %v3579 = vsel %vm868, %v240, 0
    %v3582 = vsel %vm868, %v241, 0
    %v3585 = vsel %vm868, %v242, 0
    %v3588 = vsel %vm868, %v243, 0
    %v3591 = vsel %vm868, %v244, 0
    %v3594 = vsel %vm868, %v245, 0
    %v3597 = vsel %vm868, %v246, 0
    %v3600 = vsel %vm868, %v247, 0
    %v3603 = vsel %vm868, %v248, 0
    %v3606 = vsel %vm868, %v249, 0
    %v3609 = vsel %vm868, %v250, 0
    %v3612 = vsel %vm868, %v251, 0
    %v3615 = vsel %vm868, %v252, 0
    %v3618 = vsel %vm868, %v253, 0
    %v3621 = vsel %vm868, %v254, 0
    %v3624 = vsel %vm868, %v255, 0
    %v3627 = vsel %vm868, %v272, 0
    %v3630 = vsel %vm868, %v273, 0
    %v3633 = vsel %vm868, %v274, 0
    %v3636 = vsel %vm868, %v275, 0
    %v3639 = vsel %vm868, %v276, 0
    %v3642 = vsel %vm868, %v277, 0
    %v3645 = vsel %vm868, %v278, 0
    %v3648 = vsel %vm868, %v279, 0
    %v3651 = vsel %vm868, %v280, 0
    %v3654 = vsel %vm868, %v281, 0
    %v3657 = vsel %vm868, %v282, 0
    %v3660 = vsel %vm868, %v283, 0
    %v3663 = vsel %vm868, %v284, 0
    %v3666 = vsel %vm868, %v285, 0
    %v3669 = vsel %vm868, %v286, 0
    %v3672 = vsel %vm868, %v287, 0
    %v3675 = vsel %vm868, %v304, 0
    %v3678 = vsel %vm868, %v305, 0
    %v3681 = vsel %vm868, %v306, 0
    %v3684 = vsel %vm868, %v307, 0
    %v3687 = vsel %vm868, %v308, 0
    %v3690 = vsel %vm868, %v309, 0
    %v3693 = vsel %vm868, %v310, 0
    %v3696 = vsel %vm868, %v311, 0
    %v3699 = vsel %vm868, %v312, 0
    %v3702 = vsel %vm868, %v313, 0
    %v3705 = vsel %vm868, %v314, 0
    %v3708 = vsel %vm868, %v315, 0
    %v3711 = vsel %vm868, %v316, 0
    %v3714 = vsel %vm868, %v317, 0
    %v3717 = vsel %vm868, %v318, 0
    %v3720 = vsel %vm868, %v319, 0
    %v3723 = vsel %vm868, %v336, 0
    %v3726 = vsel %vm868, %v337, 0
    %v3729 = vsel %vm868, %v338, 0
    %v3732 = vsel %vm868, %v339, 0
    %v3735 = vsel %vm868, %v340, 0
    %v3738 = vsel %vm868, %v341, 0
    %v3741 = vsel %vm868, %v342, 0
    %v3744 = vsel %vm868, %v343, 0
    %v3747 = vsel %vm868, %v344, 0
    %v3750 = vsel %vm868, %v345, 0
    %v3753 = vsel %vm868, %v346, 0
    %v3756 = vsel %vm868, %v347, 0
    %v3759 = vsel %vm868, %v348, 0
    %v3762 = vsel %vm868, %v349, 0
    %v3765 = vsel %vm868, %v350, 0
    %v3768 = vsel %vm868, %v351, 0
    %v3771 = vsel %vm868, %v368, 0
    %v3774 = vsel %vm868, %v369, 0
    %v3777 = vsel %vm868, %v370, 0
    %v3780 = vsel %vm868, %v371, 0
    %v3783 = vsel %vm868, %v372, 0
    %v3786 = vsel %vm868, %v373, 0
    %v3789 = vsel %vm868, %v374, 0
    %v3792 = vsel %vm868, %v375, 0
    %v3795 = vsel %vm868, %v376, 0
    %v3798 = vsel %vm868, %v377, 0
    %v3801 = vsel %vm868, %v378, 0
    %v3804 = vsel %vm868, %v379, 0
    %v3807 = vsel %vm868, %v380, 0
    %v3810 = vsel %vm868, %v381, 0
    %v3813 = vsel %vm868, %v382, 0
    %v3816 = vsel %vm868, %v383, 0
    %v3819 = vsel %vm868, %v400, 0
    %v3822 = vsel %vm868, %v401, 0
    %v3825 = vsel %vm868, %v402, 0
    %v3828 = vsel %vm868, %v403, 0
    %v3831 = vsel %vm868, %v404, 0
    %v3834 = vsel %vm868, %v405, 0
    %v3837 = vsel %vm868, %v406, 0
    %v3840 = vsel %vm868, %v407, 0
    %v3843 = vsel %vm868, %v408, 0
    %v3846 = vsel %vm868, %v409, 0
    %v3849 = vsel %vm868, %v410, 0
    %v3852 = vsel %vm868, %v411, 0
    %v3855 = vsel %vm868, %v412, 0
    %v3858 = vsel %vm868, %v413, 0
    %v3861 = vsel %vm868, %v414, 0
    %v3864 = vsel %vm868, %v415, 0
    %v3867 = vsel %vm868, %v432, 0
    %v3870 = vsel %vm868, %v433, 0
    %v3873 = vsel %vm868, %v434, 0
    %v3876 = vsel %vm868, %v435, 0
    %v3879 = vsel %vm868, %v436, 0
    %v3882 = vsel %vm868, %v437, 0
    %v3885 = vsel %vm868, %v438, 0
    %v3888 = vsel %vm868, %v439, 0
    %v3891 = vsel %vm868, %v440, 0
    %v3894 = vsel %vm868, %v441, 0
    %v3897 = vsel %vm868, %v442, 0
    %v3900 = vsel %vm868, %v443, 0
    %v3903 = vsel %vm868, %v444, 0
    %v3906 = vsel %vm868, %v445, 0
    %v3909 = vsel %vm868, %v446, 0
    %v3912 = vsel %vm868, %v447, 0
    %v3915 = vsel %vm868, %v464, 0
    %v3918 = vsel %vm868, %v465, 0
    %v3921 = vsel %vm868, %v466, 0
    %v3924 = vsel %vm868, %v467, 0
    %v3927 = vsel %vm868, %v468, 0
    %v3930 = vsel %vm868, %v469, 0
    %v3933 = vsel %vm868, %v470, 0
    %v3936 = vsel %vm868, %v471, 0
    %v3939 = vsel %vm868, %v472, 0
    %v3942 = vsel %vm868, %v473, 0
    %v3945 = vsel %vm868, %v474, 0
    %v3948 = vsel %vm868, %v475, 0
    %v3951 = vsel %vm868, %v476, 0
    %v3954 = vsel %vm868, %v477, 0
    %v3957 = vsel %vm868, %v478, 0
    %v3960 = vsel %vm868, %v479, 0
    %v3963 = vsel %vm868, %v496, 0
    %v3966 = vsel %vm868, %v497, 0
    %v3969 = vsel %vm868, %v498, 0
    %v3972 = vsel %vm868, %v499, 0
    %v3975 = vsel %vm868, %v500, 0
    %v3978 = vsel %vm868, %v501, 0
    %v3981 = vsel %vm868, %v502, 0
    %v3984 = vsel %vm868, %v503, 0
    %v3987 = vsel %vm868, %v504, 0
    %v3990 = vsel %vm868, %v505, 0
    %v3993 = vsel %vm868, %v506, 0
    %v3996 = vsel %vm868, %v507, 0
    %v3999 = vsel %vm868, %v508, 0
    %v4002 = vsel %vm868, %v509, 0
    %v4005 = vsel %vm868, %v510, 0
    %v4008 = vsel %vm868, %v511, 0
    %v4011 = vsel %vm868, %v528, 0
    %v4014 = vsel %vm868, %v529, 0
    %v4017 = vsel %vm868, %v530, 0
    %v4020 = vsel %vm868, %v531, 0
    %v4023 = vsel %vm868, %v532, 0
    %v4026 = vsel %vm868, %v533, 0
    %v4029 = vsel %vm868, %v534, 0
    %v4032 = vsel %vm868, %v535, 0
    %v4035 = vsel %vm868, %v536, 0
    %v4038 = vsel %vm868, %v537, 0
    %v4041 = vsel %vm868, %v538, 0
    %v4044 = vsel %vm868, %v539, 0
    %v4047 = vsel %vm868, %v540, 0
    %v4050 = vsel %vm868, %v541, 0
    %v4053 = vsel %vm868, %v542, 0
    %v4056 = vsel %vm868, %v543, 0
    %v4059 = vsel %vm868, %v560, 0
    %v4062 = vsel %vm868, %v561, 0
    %v4065 = vsel %vm868, %v562, 0
    %v4068 = vsel %vm868, %v563, 0
    %v4071 = vsel %vm868, %v564, 0
    %v4074 = vsel %vm868, %v565, 0
    %v4077 = vsel %vm868, %v566, 0
    %v4080 = vsel %vm868, %v567, 0
    %v4083 = vsel %vm868, %v568, 0
    %v4086 = vsel %vm868, %v569, 0
    %v4089 = vsel %vm868, %v570, 0
    %v4092 = vsel %vm868, %v571, 0
    %v4095 = vsel %vm868, %v572, 0
    %v4098 = vsel %vm868, %v573, 0
    %v4101 = vsel %vm868, %v574, 0
    %v4104 = vsel %vm868, %v575, 0
    %v4107 = vsel %vm868, %v592, 0
    %v4110 = vsel %vm868, %v593, 0
    %v4113 = vsel %vm868, %v594, 0
    %v4116 = vsel %vm868, %v595, 0
    %v4119 = vsel %vm868, %v596, 0
    %v4122 = vsel %vm868, %v597, 0
    %v4125 = vsel %vm868, %v598, 0
    %v4128 = vsel %vm868, %v599, 0
    %v4131 = vsel %vm868, %v600, 0
    %v4134 = vsel %vm868, %v601, 0
    %v4137 = vsel %vm868, %v602, 0
    %v4140 = vsel %vm868, %v603, 0
    %v4143 = vsel %vm868, %v604, 0
    %v4146 = vsel %vm868, %v605, 0
    %v4149 = vsel %vm868, %v606, 0
    %v4152 = vsel %vm868, %v607, 0
    %v4155 = vsel %vm868, %v624, 0
    %v4158 = vsel %vm868, %v625, 0
    %v4161 = vsel %vm868, %v626, 0
    %v4164 = vsel %vm868, %v627, 0
    %v4167 = vsel %vm868, %v628, 0
    %v4170 = vsel %vm868, %v629, 0
    %v4173 = vsel %vm868, %v630, 0
    %v4176 = vsel %vm868, %v631, 0
    %v4179 = vsel %vm868, %v632, 0
    %v4182 = vsel %vm868, %v633, 0
    %v4185 = vsel %vm868, %v634, 0
    %v4188 = vsel %vm868, %v635, 0
    %v4191 = vsel %vm868, %v636, 0
    %v4194 = vsel %vm868, %v637, 0
    %v4197 = vsel %vm868, %v638, 0
    %v4200 = vsel %vm868, %v639, 0
    %v4203 = vsel %vm868, %v656, 0
    %v4206 = vsel %vm868, %v657, 0
    %v4209 = vsel %vm868, %v658, 0
    %v4212 = vsel %vm868, %v659, 0
    %v4215 = vsel %vm868, %v660, 0
    %v4218 = vsel %vm868, %v661, 0
    %v4221 = vsel %vm868, %v662, 0
    %v4224 = vsel %vm868, %v663, 0
    %v4227 = vsel %vm868, %v664, 0
    %v4230 = vsel %vm868, %v665, 0
    %v4233 = vsel %vm868, %v666, 0
    %v4236 = vsel %vm868, %v667, 0
    %v4239 = vsel %vm868, %v668, 0
    %v4242 = vsel %vm868, %v669, 0
    %v4245 = vsel %vm868, %v670, 0
    %v4248 = vsel %vm868, %v671, 0
    %v4251 = vsel %vm868, %v688, 0
    %v4254 = vsel %vm868, %v689, 0
    %v4257 = vsel %vm868, %v690, 0
    %v4260 = vsel %vm868, %v691, 0
    %v4263 = vsel %vm868, %v692, 0
    %v4266 = vsel %vm868, %v693, 0
    %v4269 = vsel %vm868, %v694, 0
    %v4272 = vsel %vm868, %v695, 0
    %v4275 = vsel %vm868, %v696, 0
    %v4278 = vsel %vm868, %v697, 0
    %v4281 = vsel %vm868, %v698, 0
    %v4284 = vsel %vm868, %v699, 0
    %v4287 = vsel %vm868, %v700, 0
    %v4290 = vsel %vm868, %v701, 0
    %v4293 = vsel %vm868, %v702, 0
    %v4296 = vsel %vm868, %v703, 0
    %v4299 = vsel %vm868, %v720, 0
    %v4302 = vsel %vm868, %v721, 0
    %v4305 = vsel %vm868, %v722, 0
    %v4308 = vsel %vm868, %v723, 0
    %v4311 = vsel %vm868, %v724, 0
    %v4314 = vsel %vm868, %v725, 0
    %v4317 = vsel %vm868, %v726, 0
    %v4320 = vsel %vm868, %v727, 0
    %v4323 = vsel %vm868, %v728, 0
    %v4326 = vsel %vm868, %v729, 0
    %v4329 = vsel %vm868, %v730, 0
    %v4332 = vsel %vm868, %v731, 0
    %v4335 = vsel %vm868, %v732, 0
    %v4338 = vsel %vm868, %v733, 0
    %v4341 = vsel %vm868, %v734, 0
    %v4344 = vsel %vm868, %v735, 0
    %v4347 = vsel %vm868, %v752, 0
    %v4350 = vsel %vm868, %v753, 0
    %v4353 = vsel %vm868, %v754, 0
    %v4356 = vsel %vm868, %v755, 0
    %v4359 = vsel %vm868, %v756, 0
    %v4362 = vsel %vm868, %v757, 0
    %v4365 = vsel %vm868, %v758, 0
    %v4368 = vsel %vm868, %v759, 0
    %v4371 = vsel %vm868, %v760, 0
    %v4374 = vsel %vm868, %v761, 0
    %v4377 = vsel %vm868, %v762, 0
    %v4380 = vsel %vm868, %v763, 0
    %v4383 = vsel %vm868, %v764, 0
    %v4386 = vsel %vm868, %v765, 0
    %v4389 = vsel %vm868, %v766, 0
    %v4392 = vsel %vm868, %v767, 0
    %v4395 = vsel %vm868, %v784, 0
    %v4398 = vsel %vm868, %v785, 0
    %v4401 = vsel %vm868, %v786, 0
    %v4404 = vsel %vm868, %v787, 0
    %v4407 = vsel %vm868, %v788, 0
    %v4410 = vsel %vm868, %v789, 0
    %v4413 = vsel %vm868, %v790, 0
    %v4416 = vsel %vm868, %v791, 0
    %v4419 = vsel %vm868, %v792, 0
    %v4422 = vsel %vm868, %v793, 0
    %v4425 = vsel %vm868, %v794, 0
    %v4428 = vsel %vm868, %v795, 0
    %v4431 = vsel %vm868, %v796, 0
    %v4434 = vsel %vm868, %v797, 0
    %v4437 = vsel %vm868, %v798, 0
    %v4440 = vsel %vm868, %v799, 0
    %v4443 = vsel %vm868, %v816, 0
    %v4446 = vsel %vm868, %v817, 0
    %v4449 = vsel %vm868, %v818, 0
    %v4452 = vsel %vm868, %v819, 0
    %v4455 = vsel %vm868, %v820, 0
    %v4458 = vsel %vm868, %v821, 0
    %v4461 = vsel %vm868, %v822, 0
    %v4464 = vsel %vm868, %v823, 0
    %v4467 = vsel %vm868, %v824, 0
    %v4470 = vsel %vm868, %v825, 0
    %v4473 = vsel %vm868, %v826, 0
    %v4476 = vsel %vm868, %v827, 0
    %v4479 = vsel %vm868, %v828, 0
    %v4482 = vsel %vm868, %v829, 0
    %v4485 = vsel %vm868, %v830, 0
    %v4488 = vsel %vm868, %v831, 0
    %v4491 = vsel %vm2069, %v865, 0
    %4493 = vmatpush.msra.mxu0 0.0
    %4494 = vmatpush.msra.mxu0 0.0
    %4495 = vmatpush.msra.mxu0 0.0
    %4496 = vmatpush.msra.mxu0 0.0
    %4497 = vmatpush.msra.mxu0 0.0
    %4498 = vmatpush.msra.mxu0 0.0
    %4499 = vmatpush.msra.mxu0 0.0
    %4500 = vmatpush.msra.mxu0 0.0
    %4501 = vmatpush.msra.mxu0 0.0
    %4502 = vmatpush.msra.mxu0 0.0
    %4503 = vmatpush.msra.mxu0 0.0
    %4504 = vmatpush.msra.mxu0 0.0
    %4505 = vmatpush.msra.mxu0 0.0
    %4506 = vmatpush.msra.mxu0 0.0
    %4507 = vmatpush.msra.mxu0 %v4491
    %4508 = vmatpush.msra.mxu0 %v864
    %4509 = vmatmul.f32.gmra.mxu0 %v3291
    %v4510 = vpop.f32.mrf.mxu0
    %v4511 = vadd.f32 %v2091, %v4510
    %4512 = vmatmul.f32.gmra.mxu0 %v3294
    %v4513 = vpop.f32.mrf.mxu0
    %v4514 = vadd.f32 %v2094, %v4513
    %4515 = vmatmul.f32.gmra.mxu0 %v3297
    %v4516 = vpop.f32.mrf.mxu0
    %v4517 = vadd.f32 %v2097, %v4516
    %4518 = vmatmul.f32.gmra.mxu0 %v3300
    %v4519 = vpop.f32.mrf.mxu0
    %v4520 = vadd.f32 %v2100, %v4519
    %4521 = vmatmul.f32.gmra.mxu0 %v3303
    %v4522 = vpop.f32.mrf.mxu0
    %v4523 = vadd.f32 %v2103, %v4522
    %4524 = vmatmul.f32.gmra.mxu0 %v3306
    %v4525 = vpop.f32.mrf.mxu0
    %v4526 = vadd.f32 %v2106, %v4525
    %4527 = vmatmul.f32.gmra.mxu0 %v3309
    %v4528 = vpop.f32.mrf.mxu0
    %v4529 = vadd.f32 %v2109, %v4528
    %4530 = vmatmul.f32.gmra.mxu0 %v3312
    %v4531 = vpop.f32.mrf.mxu0
    %v4532 = vadd.f32 %v2112, %v4531
    %4533 = vmatmul.f32.gmra.mxu0 %v3315
    %v4534 = vpop.f32.mrf.mxu0
    %v4535 = vadd.f32 %v2115, %v4534
    %4536 = vmatmul.f32.gmra.mxu0 %v3318
    %v4537 = vpop.f32.mrf.mxu0
    %v4538 = vadd.f32 %v2118, %v4537
    %4539 = vmatmul.f32.gmra.mxu0 %v3321
    %v4540 = vpop.f32.mrf.mxu0
    %v4541 = vadd.f32 %v2121, %v4540
    %4542 = vmatmul.f32.gmra.mxu0 %v3324
    %v4543 = vpop.f32.mrf.mxu0
    %v4544 = vadd.f32 %v2124, %v4543
    %4545 = vmatmul.f32.gmra.mxu0 %v3327
    %v4546 = vpop.f32.mrf.mxu0
    %v4547 = vadd.f32 %v2127, %v4546
    %4548 = vmatmul.f32.gmra.mxu0 %v3330
    %v4549 = vpop.f32.mrf.mxu0
    %v4550 = vadd.f32 %v2130, %v4549
    %4551 = vmatmul.f32.gmra.mxu0 %v3333
    %v4552 = vpop.f32.mrf.mxu0
    %v4553 = vadd.f32 %v2133, %v4552
    %4554 = vmatmul.f32.gmra.mxu0 %v3336
    %v4555 = vpop.f32.mrf.mxu0
    %v4556 = vadd.f32 %v2136, %v4555
    %4557 = vmatmul.f32.gmra.mxu0 %v3339
    %v4558 = vpop.f32.mrf.mxu0
    %v4559 = vadd.f32 %v2139, %v4558
    %4560 = vmatmul.f32.gmra.mxu0 %v3342
    %v4561 = vpop.f32.mrf.mxu0
    %v4562 = vadd.f32 %v2142, %v4561
    %4563 = vmatmul.f32.gmra.mxu0 %v3345
    %v4564 = vpop.f32.mrf.mxu0
    %v4565 = vadd.f32 %v2145, %v4564
    %4566 = vmatmul.f32.gmra.mxu0 %v3348
    %v4567 = vpop.f32.mrf.mxu0
    %v4568 = vadd.f32 %v2148, %v4567
    %4569 = vmatmul.f32.gmra.mxu0 %v3351
    %v4570 = vpop.f32.mrf.mxu0
    %v4571 = vadd.f32 %v2151, %v4570
    %4572 = vmatmul.f32.gmra.mxu0 %v3354
    %v4573 = vpop.f32.mrf.mxu0
    %v4574 = vadd.f32 %v2154, %v4573
    %4575 = vmatmul.f32.gmra.mxu0 %v3357
    %v4576 = vpop.f32.mrf.mxu0
    %v4577 = vadd.f32 %v2157, %v4576
    %4578 = vmatmul.f32.gmra.mxu0 %v3360
    %v4579 = vpop.f32.mrf.mxu0
    %v4580 = vadd.f32 %v2160, %v4579
    %4581 = vmatmul.f32.gmra.mxu0 %v3363
    %v4582 = vpop.f32.mrf.mxu0
    %v4583 = vadd.f32 %v2163, %v4582
    %4584 = vmatmul.f32.gmra.mxu0 %v3366
    %v4585 = vpop.f32.mrf.mxu0
    %v4586 = vadd.f32 %v2166, %v4585
    %4587 = vmatmul.f32.gmra.mxu0 %v3369
    %v4588 = vpop.f32.mrf.mxu0
    %v4589 = vadd.f32 %v2169, %v4588
    %4590 = vmatmul.f32.gmra.mxu0 %v3372
    %v4591 = vpop.f32.mrf.mxu0
    %v4592 = vadd.f32 %v2172, %v4591
    %4593 = vmatmul.f32.gmra.mxu0 %v3375
    %v4594 = vpop.f32.mrf.mxu0
    %v4595 = vadd.f32 %v2175, %v4594
    %4596 = vmatmul.f32.gmra.mxu0 %v3378
    %v4597 = vpop.f32.mrf.mxu0
    %v4598 = vadd.f32 %v2178, %v4597
    %4599 = vmatmul.f32.gmra.mxu0 %v3381
    %v4600 = vpop.f32.mrf.mxu0
    %v4601 = vadd.f32 %v2181, %v4600
    %4602 = vmatmul.f32.gmra.mxu0 %v3384
    %v4603 = vpop.f32.mrf.mxu0
    %v4604 = vadd.f32 %v2184, %v4603
    %4605 = vmatmul.f32.gmra.mxu0 %v3387
    %v4606 = vpop.f32.mrf.mxu0
    %v4607 = vadd.f32 %v2187, %v4606
    %4608 = vmatmul.f32.gmra.mxu0 %v3390
    %v4609 = vpop.f32.mrf.mxu0
    %v4610 = vadd.f32 %v2190, %v4609
    %4611 = vmatmul.f32.gmra.mxu0 %v3393
    %v4612 = vpop.f32.mrf.mxu0
    %v4613 = vadd.f32 %v2193, %v4612
    %4614 = vmatmul.f32.gmra.mxu0 %v3396
    %v4615 = vpop.f32.mrf.mxu0
    %v4616 = vadd.f32 %v2196, %v4615
    %4617 = vmatmul.f32.gmra.mxu0 %v3399
    %v4618 = vpop.f32.mrf.mxu0
    %v4619 = vadd.f32 %v2199, %v4618
    %4620 = vmatmul.f32.gmra.mxu0 %v3402
    %v4621 = vpop.f32.mrf.mxu0
    %v4622 = vadd.f32 %v2202, %v4621
    %4623 = vmatmul.f32.gmra.mxu0 %v3405
    %v4624 = vpop.f32.mrf.mxu0
    %v4625 = vadd.f32 %v2205, %v4624
    %4626 = vmatmul.f32.gmra.mxu0 %v3408
    %v4627 = vpop.f32.mrf.mxu0
    %v4628 = vadd.f32 %v2208, %v4627
    %4629 = vmatmul.f32.gmra.mxu0 %v3411
    %v4630 = vpop.f32.mrf.mxu0
    %v4631 = vadd.f32 %v2211, %v4630
    %4632 = vmatmul.f32.gmra.mxu0 %v3414
    %v4633 = vpop.f32.mrf.mxu0
    %v4634 = vadd.f32 %v2214, %v4633
    %4635 = vmatmul.f32.gmra.mxu0 %v3417
    %v4636 = vpop.f32.mrf.mxu0
    %v4637 = vadd.f32 %v2217, %v4636
    %4638 = vmatmul.f32.gmra.mxu0 %v3420
    %v4639 = vpop.f32.mrf.mxu0
    %v4640 = vadd.f32 %v2220, %v4639
    %4641 = vmatmul.f32.gmra.mxu0 %v3423
    %v4642 = vpop.f32.mrf.mxu0
    %v4643 = vadd.f32 %v2223, %v4642
    %4644 = vmatmul.f32.gmra.mxu0 %v3426
    %v4645 = vpop.f32.mrf.mxu0
    %v4646 = vadd.f32 %v2226, %v4645
    %4647 = vmatmul.f32.gmra.mxu0 %v3429
    %v4648 = vpop.f32.mrf.mxu0
    %v4649 = vadd.f32 %v2229, %v4648
    %4650 = vmatmul.f32.gmra.mxu0 %v3432
    %v4651 = vpop.f32.mrf.mxu0
    %v4652 = vadd.f32 %v2232, %v4651
    %4653 = vmatmul.f32.gmra.mxu0 %v3435
    %v4654 = vpop.f32.mrf.mxu0
    %v4655 = vadd.f32 %v2235, %v4654
    %4656 = vmatmul.f32.gmra.mxu0 %v3438
    %v4657 = vpop.f32.mrf.mxu0
    %v4658 = vadd.f32 %v2238, %v4657
    %4659 = vmatmul.f32.gmra.mxu0 %v3441
    %v4660 = vpop.f32.mrf.mxu0
    %v4661 = vadd.f32 %v2241, %v4660
    %4662 = vmatmul.f32.gmra.mxu0 %v3444
    %v4663 = vpop.f32.mrf.mxu0
    %v4664 = vadd.f32 %v2244, %v4663
    %4665 = vmatmul.f32.gmra.mxu0 %v3447
    %v4666 = vpop.f32.mrf.mxu0
    %v4667 = vadd.f32 %v2247, %v4666
    %4668 = vmatmul.f32.gmra.mxu0 %v3450
    %v4669 = vpop.f32.mrf.mxu0
    %v4670 = vadd.f32 %v2250, %v4669
    %4671 = vmatmul.f32.gmra.mxu0 %v3453
    %v4672 = vpop.f32.mrf.mxu0
    %v4673 = vadd.f32 %v2253, %v4672
    %4674 = vmatmul.f32.gmra.mxu0 %v3456
    %v4675 = vpop.f32.mrf.mxu0
    %v4676 = vadd.f32 %v2256, %v4675
    %4677 = vmatmul.f32.gmra.mxu0 %v3459
    %v4678 = vpop.f32.mrf.mxu0
    %v4679 = vadd.f32 %v2259, %v4678
    %4680 = vmatmul.f32.gmra.mxu0 %v3462
    %v4681 = vpop.f32.mrf.mxu0
    %v4682 = vadd.f32 %v2262, %v4681
    %4683 = vmatmul.f32.gmra.mxu0 %v3465
    %v4684 = vpop.f32.mrf.mxu0
    %v4685 = vadd.f32 %v2265, %v4684
    %4686 = vmatmul.f32.gmra.mxu0 %v3468
    %v4687 = vpop.f32.mrf.mxu0
    %v4688 = vadd.f32 %v2268, %v4687
    %4689 = vmatmul.f32.gmra.mxu0 %v3471
    %v4690 = vpop.f32.mrf.mxu0
    %v4691 = vadd.f32 %v2271, %v4690
    %4692 = vmatmul.f32.gmra.mxu0 %v3474
    %v4693 = vpop.f32.mrf.mxu0
    %v4694 = vadd.f32 %v2274, %v4693
    %4695 = vmatmul.f32.gmra.mxu0 %v3477
    %v4696 = vpop.f32.mrf.mxu0
    %v4697 = vadd.f32 %v2277, %v4696
    %4698 = vmatmul.f32.gmra.mxu0 %v3480
    %v4699 = vpop.f32.mrf.mxu0
    %v4700 = vadd.f32 %v2280, %v4699
    %4701 = vmatmul.f32.gmra.mxu0 %v3483
    %v4702 = vpop.f32.mrf.mxu0
    %v4703 = vadd.f32 %v2283, %v4702
    %4704 = vmatmul.f32.gmra.mxu0 %v3486
    %v4705 = vpop.f32.mrf.mxu0
    %v4706 = vadd.f32 %v2286, %v4705
    %4707 = vmatmul.f32.gmra.mxu0 %v3489
    %v4708 = vpop.f32.mrf.mxu0
    %v4709 = vadd.f32 %v2289, %v4708
    %4710 = vmatmul.f32.gmra.mxu0 %v3492
    %v4711 = vpop.f32.mrf.mxu0
    %v4712 = vadd.f32 %v2292, %v4711
    %4713 = vmatmul.f32.gmra.mxu0 %v3495
    %v4714 = vpop.f32.mrf.mxu0
    %v4715 = vadd.f32 %v2295, %v4714
    %4716 = vmatmul.f32.gmra.mxu0 %v3498
    %v4717 = vpop.f32.mrf.mxu0
    %v4718 = vadd.f32 %v2298, %v4717
    %4719 = vmatmul.f32.gmra.mxu0 %v3501
    %v4720 = vpop.f32.mrf.mxu0
    %v4721 = vadd.f32 %v2301, %v4720
    %4722 = vmatmul.f32.gmra.mxu0 %v3504
    %v4723 = vpop.f32.mrf.mxu0
    %v4724 = vadd.f32 %v2304, %v4723
    %4725 = vmatmul.f32.gmra.mxu0 %v3507
    %v4726 = vpop.f32.mrf.mxu0
    %v4727 = vadd.f32 %v2307, %v4726
    %4728 = vmatmul.f32.gmra.mxu0 %v3510
    %v4729 = vpop.f32.mrf.mxu0
    %v4730 = vadd.f32 %v2310, %v4729
    %4731 = vmatmul.f32.gmra.mxu0 %v3513
    %v4732 = vpop.f32.mrf.mxu0
    %v4733 = vadd.f32 %v2313, %v4732
    %4734 = vmatmul.f32.gmra.mxu0 %v3516
    %v4735 = vpop.f32.mrf.mxu0
    %v4736 = vadd.f32 %v2316, %v4735
    %4737 = vmatmul.f32.gmra.mxu0 %v3519
    %v4738 = vpop.f32.mrf.mxu0
    %v4739 = vadd.f32 %v2319, %v4738
    %4740 = vmatmul.f32.gmra.mxu0 %v3522
    %v4741 = vpop.f32.mrf.mxu0
    %v4742 = vadd.f32 %v2322, %v4741
    %4743 = vmatmul.f32.gmra.mxu0 %v3525
    %v4744 = vpop.f32.mrf.mxu0
    %v4745 = vadd.f32 %v2325, %v4744
    %4746 = vmatmul.f32.gmra.mxu0 %v3528
    %v4747 = vpop.f32.mrf.mxu0
    %v4748 = vadd.f32 %v2328, %v4747
    %4749 = vmatmul.f32.gmra.mxu0 %v3531
    %v4750 = vpop.f32.mrf.mxu0
    %v4751 = vadd.f32 %v2331, %v4750
    %4752 = vmatmul.f32.gmra.mxu0 %v3534
    %v4753 = vpop.f32.mrf.mxu0
    %v4754 = vadd.f32 %v2334, %v4753
    %4755 = vmatmul.f32.gmra.mxu0 %v3537
    %v4756 = vpop.f32.mrf.mxu0
    %v4757 = vadd.f32 %v2337, %v4756
    %4758 = vmatmul.f32.gmra.mxu0 %v3540
    %v4759 = vpop.f32.mrf.mxu0
    %v4760 = vadd.f32 %v2340, %v4759
    %4761 = vmatmul.f32.gmra.mxu0 %v3543
    %v4762 = vpop.f32.mrf.mxu0
    %v4763 = vadd.f32 %v2343, %v4762
    %4764 = vmatmul.f32.gmra.mxu0 %v3546
    %v4765 = vpop.f32.mrf.mxu0
    %v4766 = vadd.f32 %v2346, %v4765
    %4767 = vmatmul.f32.gmra.mxu0 %v3549
    %v4768 = vpop.f32.mrf.mxu0
    %v4769 = vadd.f32 %v2349, %v4768
    %4770 = vmatmul.f32.gmra.mxu0 %v3552
    %v4771 = vpop.f32.mrf.mxu0
    %v4772 = vadd.f32 %v2352, %v4771
    %4773 = vmatmul.f32.gmra.mxu0 %v3555
    %v4774 = vpop.f32.mrf.mxu0
    %v4775 = vadd.f32 %v2355, %v4774
    %4776 = vmatmul.f32.gmra.mxu0 %v3558
    %v4777 = vpop.f32.mrf.mxu0
    %v4778 = vadd.f32 %v2358, %v4777
    %4779 = vmatmul.f32.gmra.mxu0 %v3561
    %v4780 = vpop.f32.mrf.mxu0
    %v4781 = vadd.f32 %v2361, %v4780
    %4782 = vmatmul.f32.gmra.mxu0 %v3564
    %v4783 = vpop.f32.mrf.mxu0
    %v4784 = vadd.f32 %v2364, %v4783
    %4785 = vmatmul.f32.gmra.mxu0 %v3567
    %v4786 = vpop.f32.mrf.mxu0
    %v4787 = vadd.f32 %v2367, %v4786
    %4788 = vmatmul.f32.gmra.mxu0 %v3570
    %v4789 = vpop.f32.mrf.mxu0
    %v4790 = vadd.f32 %v2370, %v4789
    %4791 = vmatmul.f32.gmra.mxu0 %v3573
    %v4792 = vpop.f32.mrf.mxu0
    %v4793 = vadd.f32 %v2373, %v4792
    %4794 = vmatmul.f32.gmra.mxu0 %v3576
    %v4795 = vpop.f32.mrf.mxu0
    %v4796 = vadd.f32 %v2376, %v4795
    %4797 = vmatmul.f32.gmra.mxu0 %v3579
    %v4798 = vpop.f32.mrf.mxu0
    %v4799 = vadd.f32 %v2379, %v4798
    %4800 = vmatmul.f32.gmra.mxu0 %v3582
    %v4801 = vpop.f32.mrf.mxu0
    %v4802 = vadd.f32 %v2382, %v4801
    %4803 = vmatmul.f32.gmra.mxu0 %v3585
    %v4804 = vpop.f32.mrf.mxu0
    %v4805 = vadd.f32 %v2385, %v4804
    %4806 = vmatmul.f32.gmra.mxu0 %v3588
    %v4807 = vpop.f32.mrf.mxu0
    %v4808 = vadd.f32 %v2388, %v4807
    %4809 = vmatmul.f32.gmra.mxu0 %v3591
    %v4810 = vpop.f32.mrf.mxu0
    %v4811 = vadd.f32 %v2391, %v4810
    %4812 = vmatmul.f32.gmra.mxu0 %v3594
    %v4813 = vpop.f32.mrf.mxu0
    %v4814 = vadd.f32 %v2394, %v4813
    %4815 = vmatmul.f32.gmra.mxu0 %v3597
    %v4816 = vpop.f32.mrf.mxu0
    %v4817 = vadd.f32 %v2397, %v4816
    %4818 = vmatmul.f32.gmra.mxu0 %v3600
    %v4819 = vpop.f32.mrf.mxu0
    %v4820 = vadd.f32 %v2400, %v4819
    %4821 = vmatmul.f32.gmra.mxu0 %v3603
    %v4822 = vpop.f32.mrf.mxu0
    %v4823 = vadd.f32 %v2403, %v4822
    %4824 = vmatmul.f32.gmra.mxu0 %v3606
    %v4825 = vpop.f32.mrf.mxu0
    %v4826 = vadd.f32 %v2406, %v4825
    %4827 = vmatmul.f32.gmra.mxu0 %v3609
    %v4828 = vpop.f32.mrf.mxu0
    %v4829 = vadd.f32 %v2409, %v4828
    %4830 = vmatmul.f32.gmra.mxu0 %v3612
    %v4831 = vpop.f32.mrf.mxu0
    %v4832 = vadd.f32 %v2412, %v4831
    %4833 = vmatmul.f32.gmra.mxu0 %v3615
    %v4834 = vpop.f32.mrf.mxu0
    %v4835 = vadd.f32 %v2415, %v4834
    %4836 = vmatmul.f32.gmra.mxu0 %v3618
    %v4837 = vpop.f32.mrf.mxu0
    %v4838 = vadd.f32 %v2418, %v4837
    %4839 = vmatmul.f32.gmra.mxu0 %v3621
    %v4840 = vpop.f32.mrf.mxu0
    %v4841 = vadd.f32 %v2421, %v4840
    %4842 = vmatmul.f32.gmra.mxu0 %v3624
    %v4843 = vpop.f32.mrf.mxu0
    %v4844 = vadd.f32 %v2424, %v4843
    %4845 = vmatmul.f32.gmra.mxu0 %v3627
    %v4846 = vpop.f32.mrf.mxu0
    %v4847 = vadd.f32 %v2427, %v4846
    %4848 = vmatmul.f32.gmra.mxu0 %v3630
    %v4849 = vpop.f32.mrf.mxu0
    %v4850 = vadd.f32 %v2430, %v4849
    %4851 = vmatmul.f32.gmra.mxu0 %v3633
    %v4852 = vpop.f32.mrf.mxu0
    %v4853 = vadd.f32 %v2433, %v4852
    %4854 = vmatmul.f32.gmra.mxu0 %v3636
    %v4855 = vpop.f32.mrf.mxu0
    %v4856 = vadd.f32 %v2436, %v4855
    %4857 = vmatmul.f32.gmra.mxu0 %v3639
    %v4858 = vpop.f32.mrf.mxu0
    %v4859 = vadd.f32 %v2439, %v4858
    %4860 = vmatmul.f32.gmra.mxu0 %v3642
    %v4861 = vpop.f32.mrf.mxu0
    %v4862 = vadd.f32 %v2442, %v4861
    %4863 = vmatmul.f32.gmra.mxu0 %v3645
    %v4864 = vpop.f32.mrf.mxu0
    %v4865 = vadd.f32 %v2445, %v4864
    %4866 = vmatmul.f32.gmra.mxu0 %v3648
    %v4867 = vpop.f32.mrf.mxu0
    %v4868 = vadd.f32 %v2448, %v4867
    %4869 = vmatmul.f32.gmra.mxu0 %v3651
    %v4870 = vpop.f32.mrf.mxu0
    %v4871 = vadd.f32 %v2451, %v4870
    %4872 = vmatmul.f32.gmra.mxu0 %v3654
    %v4873 = vpop.f32.mrf.mxu0
    %v4874 = vadd.f32 %v2454, %v4873
    %4875 = vmatmul.f32.gmra.mxu0 %v3657
    %v4876 = vpop.f32.mrf.mxu0
    %v4877 = vadd.f32 %v2457, %v4876
    %4878 = vmatmul.f32.gmra.mxu0 %v3660
    %v4879 = vpop.f32.mrf.mxu0
    %v4880 = vadd.f32 %v2460, %v4879
    %4881 = vmatmul.f32.gmra.mxu0 %v3663
    %v4882 = vpop.f32.mrf.mxu0
    %v4883 = vadd.f32 %v2463, %v4882
    %4884 = vmatmul.f32.gmra.mxu0 %v3666
    %v4885 = vpop.f32.mrf.mxu0
    %v4886 = vadd.f32 %v2466, %v4885
    %4887 = vmatmul.f32.gmra.mxu0 %v3669
    %v4888 = vpop.f32.mrf.mxu0
    %v4889 = vadd.f32 %v2469, %v4888
    %4890 = vmatmul.f32.gmra.mxu0 %v3672
    %v4891 = vpop.f32.mrf.mxu0
    %v4892 = vadd.f32 %v2472, %v4891
    %4893 = vmatmul.f32.gmra.mxu0 %v3675
    %v4894 = vpop.f32.mrf.mxu0
    %v4895 = vadd.f32 %v2475, %v4894
    %4896 = vmatmul.f32.gmra.mxu0 %v3678
    %v4897 = vpop.f32.mrf.mxu0
    %v4898 = vadd.f32 %v2478, %v4897
    %4899 = vmatmul.f32.gmra.mxu0 %v3681
    %v4900 = vpop.f32.mrf.mxu0
    %v4901 = vadd.f32 %v2481, %v4900
    %4902 = vmatmul.f32.gmra.mxu0 %v3684
    %v4903 = vpop.f32.mrf.mxu0
    %v4904 = vadd.f32 %v2484, %v4903
    %4905 = vmatmul.f32.gmra.mxu0 %v3687
    %v4906 = vpop.f32.mrf.mxu0
    %v4907 = vadd.f32 %v2487, %v4906
    %4908 = vmatmul.f32.gmra.mxu0 %v3690
    %v4909 = vpop.f32.mrf.mxu0
    %v4910 = vadd.f32 %v2490, %v4909
    %4911 = vmatmul.f32.gmra.mxu0 %v3693
    %v4912 = vpop.f32.mrf.mxu0
    %v4913 = vadd.f32 %v2493, %v4912
    %4914 = vmatmul.f32.gmra.mxu0 %v3696
    %v4915 = vpop.f32.mrf.mxu0
    %v4916 = vadd.f32 %v2496, %v4915
    %4917 = vmatmul.f32.gmra.mxu0 %v3699
    %v4918 = vpop.f32.mrf.mxu0
    %v4919 = vadd.f32 %v2499, %v4918
    %4920 = vmatmul.f32.gmra.mxu0 %v3702
    %v4921 = vpop.f32.mrf.mxu0
    %v4922 = vadd.f32 %v2502, %v4921
    %4923 = vmatmul.f32.gmra.mxu0 %v3705
    %v4924 = vpop.f32.mrf.mxu0
    %v4925 = vadd.f32 %v2505, %v4924
    %4926 = vmatmul.f32.gmra.mxu0 %v3708
    %v4927 = vpop.f32.mrf.mxu0
    %v4928 = vadd.f32 %v2508, %v4927
    %4929 = vmatmul.f32.gmra.mxu0 %v3711
    %v4930 = vpop.f32.mrf.mxu0
    %v4931 = vadd.f32 %v2511, %v4930
    %4932 = vmatmul.f32.gmra.mxu0 %v3714
    %v4933 = vpop.f32.mrf.mxu0
    %v4934 = vadd.f32 %v2514, %v4933
    %4935 = vmatmul.f32.gmra.mxu0 %v3717
    %v4936 = vpop.f32.mrf.mxu0
    %v4937 = vadd.f32 %v2517, %v4936
    %4938 = vmatmul.f32.gmra.mxu0 %v3720
    %v4939 = vpop.f32.mrf.mxu0
    %v4940 = vadd.f32 %v2520, %v4939
    %4941 = vmatmul.f32.gmra.mxu0 %v3723
    %v4942 = vpop.f32.mrf.mxu0
    %v4943 = vadd.f32 %v2523, %v4942
    %4944 = vmatmul.f32.gmra.mxu0 %v3726
    %v4945 = vpop.f32.mrf.mxu0
    %v4946 = vadd.f32 %v2526, %v4945
    %4947 = vmatmul.f32.gmra.mxu0 %v3729
    %v4948 = vpop.f32.mrf.mxu0
    %v4949 = vadd.f32 %v2529, %v4948
    %4950 = vmatmul.f32.gmra.mxu0 %v3732
    %v4951 = vpop.f32.mrf.mxu0
    %v4952 = vadd.f32 %v2532, %v4951
    %4953 = vmatmul.f32.gmra.mxu0 %v3735
    %v4954 = vpop.f32.mrf.mxu0
    %v4955 = vadd.f32 %v2535, %v4954
    %4956 = vmatmul.f32.gmra.mxu0 %v3738
    %v4957 = vpop.f32.mrf.mxu0
    %v4958 = vadd.f32 %v2538, %v4957
    %4959 = vmatmul.f32.gmra.mxu0 %v3741
    %v4960 = vpop.f32.mrf.mxu0
    %v4961 = vadd.f32 %v2541, %v4960
    %4962 = vmatmul.f32.gmra.mxu0 %v3744
    %v4963 = vpop.f32.mrf.mxu0
    %v4964 = vadd.f32 %v2544, %v4963
    %4965 = vmatmul.f32.gmra.mxu0 %v3747
    %v4966 = vpop.f32.mrf.mxu0
    %v4967 = vadd.f32 %v2547, %v4966
    %4968 = vmatmul.f32.gmra.mxu0 %v3750
    %v4969 = vpop.f32.mrf.mxu0
    %v4970 = vadd.f32 %v2550, %v4969
    %4971 = vmatmul.f32.gmra.mxu0 %v3753
    %v4972 = vpop.f32.mrf.mxu0
    %v4973 = vadd.f32 %v2553, %v4972
    %4974 = vmatmul.f32.gmra.mxu0 %v3756
    %v4975 = vpop.f32.mrf.mxu0
    %v4976 = vadd.f32 %v2556, %v4975
    %4977 = vmatmul.f32.gmra.mxu0 %v3759
    %v4978 = vpop.f32.mrf.mxu0
    %v4979 = vadd.f32 %v2559, %v4978
    %4980 = vmatmul.f32.gmra.mxu0 %v3762
    %v4981 = vpop.f32.mrf.mxu0
    %v4982 = vadd.f32 %v2562, %v4981
    %4983 = vmatmul.f32.gmra.mxu0 %v3765
    %v4984 = vpop.f32.mrf.mxu0
    %v4985 = vadd.f32 %v2565, %v4984
    %4986 = vmatmul.f32.gmra.mxu0 %v3768
    %v4987 = vpop.f32.mrf.mxu0
    %v4988 = vadd.f32 %v2568, %v4987
    %4989 = vmatmul.f32.gmra.mxu0 %v3771
    %v4990 = vpop.f32.mrf.mxu0
    %v4991 = vadd.f32 %v2571, %v4990
    %4992 = vmatmul.f32.gmra.mxu0 %v3774
    %v4993 = vpop.f32.mrf.mxu0
    %v4994 = vadd.f32 %v2574, %v4993
    %4995 = vmatmul.f32.gmra.mxu0 %v3777
    %v4996 = vpop.f32.mrf.mxu0
    %v4997 = vadd.f32 %v2577, %v4996
    %4998 = vmatmul.f32.gmra.mxu0 %v3780
    %v4999 = vpop.f32.mrf.mxu0
    %v5000 = vadd.f32 %v2580, %v4999
    %5001 = vmatmul.f32.gmra.mxu0 %v3783
    %v5002 = vpop.f32.mrf.mxu0
    %v5003 = vadd.f32 %v2583, %v5002
    %5004 = vmatmul.f32.gmra.mxu0 %v3786
    %v5005 = vpop.f32.mrf.mxu0
    %v5006 = vadd.f32 %v2586, %v5005
    %5007 = vmatmul.f32.gmra.mxu0 %v3789
    %v5008 = vpop.f32.mrf.mxu0
    %v5009 = vadd.f32 %v2589, %v5008
    %5010 = vmatmul.f32.gmra.mxu0 %v3792
    %v5011 = vpop.f32.mrf.mxu0
    %v5012 = vadd.f32 %v2592, %v5011
    %5013 = vmatmul.f32.gmra.mxu0 %v3795
    %v5014 = vpop.f32.mrf.mxu0
    %v5015 = vadd.f32 %v2595, %v5014
    %5016 = vmatmul.f32.gmra.mxu0 %v3798
    %v5017 = vpop.f32.mrf.mxu0
    %v5018 = vadd.f32 %v2598, %v5017
    %5019 = vmatmul.f32.gmra.mxu0 %v3801
    %v5020 = vpop.f32.mrf.mxu0
    %v5021 = vadd.f32 %v2601, %v5020
    %5022 = vmatmul.f32.gmra.mxu0 %v3804
    %v5023 = vpop.f32.mrf.mxu0
    %v5024 = vadd.f32 %v2604, %v5023
    %5025 = vmatmul.f32.gmra.mxu0 %v3807
    %v5026 = vpop.f32.mrf.mxu0
    %v5027 = vadd.f32 %v2607, %v5026
    %5028 = vmatmul.f32.gmra.mxu0 %v3810
    %v5029 = vpop.f32.mrf.mxu0
    %v5030 = vadd.f32 %v2610, %v5029
    %5031 = vmatmul.f32.gmra.mxu0 %v3813
    %v5032 = vpop.f32.mrf.mxu0
    %v5033 = vadd.f32 %v2613, %v5032
    %5034 = vmatmul.f32.gmra.mxu0 %v3816
    %v5035 = vpop.f32.mrf.mxu0
    %v5036 = vadd.f32 %v2616, %v5035
    %5037 = vmatmul.f32.gmra.mxu0 %v3819
    %v5038 = vpop.f32.mrf.mxu0
    %v5039 = vadd.f32 %v2619, %v5038
    %5040 = vmatmul.f32.gmra.mxu0 %v3822
    %v5041 = vpop.f32.mrf.mxu0
    %v5042 = vadd.f32 %v2622, %v5041
    %5043 = vmatmul.f32.gmra.mxu0 %v3825
    %v5044 = vpop.f32.mrf.mxu0
    %v5045 = vadd.f32 %v2625, %v5044
    %5046 = vmatmul.f32.gmra.mxu0 %v3828
    %v5047 = vpop.f32.mrf.mxu0
    %v5048 = vadd.f32 %v2628, %v5047
    %5049 = vmatmul.f32.gmra.mxu0 %v3831
    %v5050 = vpop.f32.mrf.mxu0
    %v5051 = vadd.f32 %v2631, %v5050
    %5052 = vmatmul.f32.gmra.mxu0 %v3834
    %v5053 = vpop.f32.mrf.mxu0
    %v5054 = vadd.f32 %v2634, %v5053
    %5055 = vmatmul.f32.gmra.mxu0 %v3837
    %v5056 = vpop.f32.mrf.mxu0
    %v5057 = vadd.f32 %v2637, %v5056
    %5058 = vmatmul.f32.gmra.mxu0 %v3840
    %v5059 = vpop.f32.mrf.mxu0
    %v5060 = vadd.f32 %v2640, %v5059
    %5061 = vmatmul.f32.gmra.mxu0 %v3843
    %v5062 = vpop.f32.mrf.mxu0
    %v5063 = vadd.f32 %v2643, %v5062
    %5064 = vmatmul.f32.gmra.mxu0 %v3846
    %v5065 = vpop.f32.mrf.mxu0
    %v5066 = vadd.f32 %v2646, %v5065
    %5067 = vmatmul.f32.gmra.mxu0 %v3849
    %v5068 = vpop.f32.mrf.mxu0
    %v5069 = vadd.f32 %v2649, %v5068
    %5070 = vmatmul.f32.gmra.mxu0 %v3852
    %v5071 = vpop.f32.mrf.mxu0
    %v5072 = vadd.f32 %v2652, %v5071
    %5073 = vmatmul.f32.gmra.mxu0 %v3855
    %v5074 = vpop.f32.mrf.mxu0
    %v5075 = vadd.f32 %v2655, %v5074
    %5076 = vmatmul.f32.gmra.mxu0 %v3858
    %v5077 = vpop.f32.mrf.mxu0
    %v5078 = vadd.f32 %v2658, %v5077
    %5079 = vmatmul.f32.gmra.mxu0 %v3861
    %v5080 = vpop.f32.mrf.mxu0
    %v5081 = vadd.f32 %v2661, %v5080
    %5082 = vmatmul.f32.gmra.mxu0 %v3864
    %v5083 = vpop.f32.mrf.mxu0
    %v5084 = vadd.f32 %v2664, %v5083
    %5085 = vmatmul.f32.gmra.mxu0 %v3867
    %v5086 = vpop.f32.mrf.mxu0
    %v5087 = vadd.f32 %v2667, %v5086
    %5088 = vmatmul.f32.gmra.mxu0 %v3870
    %v5089 = vpop.f32.mrf.mxu0
    %v5090 = vadd.f32 %v2670, %v5089
    %5091 = vmatmul.f32.gmra.mxu0 %v3873
    %v5092 = vpop.f32.mrf.mxu0
    %v5093 = vadd.f32 %v2673, %v5092
    %5094 = vmatmul.f32.gmra.mxu0 %v3876
    %v5095 = vpop.f32.mrf.mxu0
    %v5096 = vadd.f32 %v2676, %v5095
    %5097 = vmatmul.f32.gmra.mxu0 %v3879
    %v5098 = vpop.f32.mrf.mxu0
    %v5099 = vadd.f32 %v2679, %v5098
    %5100 = vmatmul.f32.gmra.mxu0 %v3882
    %v5101 = vpop.f32.mrf.mxu0
    %v5102 = vadd.f32 %v2682, %v5101
    %5103 = vmatmul.f32.gmra.mxu0 %v3885
    %v5104 = vpop.f32.mrf.mxu0
    %v5105 = vadd.f32 %v2685, %v5104
    %5106 = vmatmul.f32.gmra.mxu0 %v3888
    %v5107 = vpop.f32.mrf.mxu0
    %v5108 = vadd.f32 %v2688, %v5107
    %5109 = vmatmul.f32.gmra.mxu0 %v3891
    %v5110 = vpop.f32.mrf.mxu0
    %v5111 = vadd.f32 %v2691, %v5110
    %5112 = vmatmul.f32.gmra.mxu0 %v3894
    %v5113 = vpop.f32.mrf.mxu0
    %v5114 = vadd.f32 %v2694, %v5113
    %5115 = vmatmul.f32.gmra.mxu0 %v3897
    %v5116 = vpop.f32.mrf.mxu0
    %v5117 = vadd.f32 %v2697, %v5116
    %5118 = vmatmul.f32.gmra.mxu0 %v3900
    %v5119 = vpop.f32.mrf.mxu0
    %v5120 = vadd.f32 %v2700, %v5119
    %5121 = vmatmul.f32.gmra.mxu0 %v3903
    %v5122 = vpop.f32.mrf.mxu0
    %v5123 = vadd.f32 %v2703, %v5122
    %5124 = vmatmul.f32.gmra.mxu0 %v3906
    %v5125 = vpop.f32.mrf.mxu0
    %v5126 = vadd.f32 %v2706, %v5125
    %5127 = vmatmul.f32.gmra.mxu0 %v3909
    %v5128 = vpop.f32.mrf.mxu0
    %v5129 = vadd.f32 %v2709, %v5128
    %5130 = vmatmul.f32.gmra.mxu0 %v3912
    %v5131 = vpop.f32.mrf.mxu0
    %v5132 = vadd.f32 %v2712, %v5131
    %5133 = vmatmul.f32.gmra.mxu0 %v3915
    %v5134 = vpop.f32.mrf.mxu0
    %v5135 = vadd.f32 %v2715, %v5134
    %5136 = vmatmul.f32.gmra.mxu0 %v3918
    %v5137 = vpop.f32.mrf.mxu0
    %v5138 = vadd.f32 %v2718, %v5137
    %5139 = vmatmul.f32.gmra.mxu0 %v3921
    %v5140 = vpop.f32.mrf.mxu0
    %v5141 = vadd.f32 %v2721, %v5140
    %5142 = vmatmul.f32.gmra.mxu0 %v3924
    %v5143 = vpop.f32.mrf.mxu0
    %v5144 = vadd.f32 %v2724, %v5143
    %5145 = vmatmul.f32.gmra.mxu0 %v3927
    %v5146 = vpop.f32.mrf.mxu0
    %v5147 = vadd.f32 %v2727, %v5146
    %5148 = vmatmul.f32.gmra.mxu0 %v3930
    %v5149 = vpop.f32.mrf.mxu0
    %v5150 = vadd.f32 %v2730, %v5149
    %5151 = vmatmul.f32.gmra.mxu0 %v3933
    %v5152 = vpop.f32.mrf.mxu0
    %v5153 = vadd.f32 %v2733, %v5152
    %5154 = vmatmul.f32.gmra.mxu0 %v3936
    %v5155 = vpop.f32.mrf.mxu0
    %v5156 = vadd.f32 %v2736, %v5155
    %5157 = vmatmul.f32.gmra.mxu0 %v3939
    %v5158 = vpop.f32.mrf.mxu0
    %v5159 = vadd.f32 %v2739, %v5158
    %5160 = vmatmul.f32.gmra.mxu0 %v3942
    %v5161 = vpop.f32.mrf.mxu0
    %v5162 = vadd.f32 %v2742, %v5161
    %5163 = vmatmul.f32.gmra.mxu0 %v3945
    %v5164 = vpop.f32.mrf.mxu0
    %v5165 = vadd.f32 %v2745, %v5164
    %5166 = vmatmul.f32.gmra.mxu0 %v3948
    %v5167 = vpop.f32.mrf.mxu0
    %v5168 = vadd.f32 %v2748, %v5167
    %5169 = vmatmul.f32.gmra.mxu0 %v3951
    %v5170 = vpop.f32.mrf.mxu0
    %v5171 = vadd.f32 %v2751, %v5170
    %5172 = vmatmul.f32.gmra.mxu0 %v3954
    %v5173 = vpop.f32.mrf.mxu0
    %v5174 = vadd.f32 %v2754, %v5173
    %5175 = vmatmul.f32.gmra.mxu0 %v3957
    %v5176 = vpop.f32.mrf.mxu0
    %v5177 = vadd.f32 %v2757, %v5176
    %5178 = vmatmul.f32.gmra.mxu0 %v3960
    %v5179 = vpop.f32.mrf.mxu0
    %v5180 = vadd.f32 %v2760, %v5179
    %5181 = vmatmul.f32.gmra.mxu0 %v3963
    %v5182 = vpop.f32.mrf.mxu0
    %v5183 = vadd.f32 %v2763, %v5182
    %5184 = vmatmul.f32.gmra.mxu0 %v3966
    %v5185 = vpop.f32.mrf.mxu0
    %v5186 = vadd.f32 %v2766, %v5185
    %5187 = vmatmul.f32.gmra.mxu0 %v3969
    %v5188 = vpop.f32.mrf.mxu0
    %v5189 = vadd.f32 %v2769, %v5188
    %5190 = vmatmul.f32.gmra.mxu0 %v3972
    %v5191 = vpop.f32.mrf.mxu0
    %v5192 = vadd.f32 %v2772, %v5191
    %5193 = vmatmul.f32.gmra.mxu0 %v3975
    %v5194 = vpop.f32.mrf.mxu0
    %v5195 = vadd.f32 %v2775, %v5194
    %5196 = vmatmul.f32.gmra.mxu0 %v3978
    %v5197 = vpop.f32.mrf.mxu0
    %v5198 = vadd.f32 %v2778, %v5197
    %5199 = vmatmul.f32.gmra.mxu0 %v3981
    %v5200 = vpop.f32.mrf.mxu0
    %v5201 = vadd.f32 %v2781, %v5200
    %5202 = vmatmul.f32.gmra.mxu0 %v3984
    %v5203 = vpop.f32.mrf.mxu0
    %v5204 = vadd.f32 %v2784, %v5203
    %5205 = vmatmul.f32.gmra.mxu0 %v3987
    %v5206 = vpop.f32.mrf.mxu0
    %v5207 = vadd.f32 %v2787, %v5206
    %5208 = vmatmul.f32.gmra.mxu0 %v3990
    %v5209 = vpop.f32.mrf.mxu0
    %v5210 = vadd.f32 %v2790, %v5209
    %5211 = vmatmul.f32.gmra.mxu0 %v3993
    %v5212 = vpop.f32.mrf.mxu0
    %v5213 = vadd.f32 %v2793, %v5212
    %5214 = vmatmul.f32.gmra.mxu0 %v3996
    %v5215 = vpop.f32.mrf.mxu0
    %v5216 = vadd.f32 %v2796, %v5215
    %5217 = vmatmul.f32.gmra.mxu0 %v3999
    %v5218 = vpop.f32.mrf.mxu0
    %v5219 = vadd.f32 %v2799, %v5218
    %5220 = vmatmul.f32.gmra.mxu0 %v4002
    %v5221 = vpop.f32.mrf.mxu0
    %v5222 = vadd.f32 %v2802, %v5221
    %5223 = vmatmul.f32.gmra.mxu0 %v4005
    %v5224 = vpop.f32.mrf.mxu0
    %v5225 = vadd.f32 %v2805, %v5224
    %5226 = vmatmul.f32.gmra.mxu0 %v4008
    %v5227 = vpop.f32.mrf.mxu0
    %v5228 = vadd.f32 %v2808, %v5227
    %5229 = vmatmul.f32.gmra.mxu0 %v4011
    %v5230 = vpop.f32.mrf.mxu0
    %v5231 = vadd.f32 %v2811, %v5230
    %5232 = vmatmul.f32.gmra.mxu0 %v4014
    %v5233 = vpop.f32.mrf.mxu0
    %v5234 = vadd.f32 %v2814, %v5233
    %5235 = vmatmul.f32.gmra.mxu0 %v4017
    %v5236 = vpop.f32.mrf.mxu0
    %v5237 = vadd.f32 %v2817, %v5236
    %5238 = vmatmul.f32.gmra.mxu0 %v4020
    %v5239 = vpop.f32.mrf.mxu0
    %v5240 = vadd.f32 %v2820, %v5239
    %5241 = vmatmul.f32.gmra.mxu0 %v4023
    %v5242 = vpop.f32.mrf.mxu0
    %v5243 = vadd.f32 %v2823, %v5242
    %5244 = vmatmul.f32.gmra.mxu0 %v4026
    %v5245 = vpop.f32.mrf.mxu0
    %v5246 = vadd.f32 %v2826, %v5245
    %5247 = vmatmul.f32.gmra.mxu0 %v4029
    %v5248 = vpop.f32.mrf.mxu0
    %v5249 = vadd.f32 %v2829, %v5248
    %5250 = vmatmul.f32.gmra.mxu0 %v4032
    %v5251 = vpop.f32.mrf.mxu0
    %v5252 = vadd.f32 %v2832, %v5251
    %5253 = vmatmul.f32.gmra.mxu0 %v4035
    %v5254 = vpop.f32.mrf.mxu0
    %v5255 = vadd.f32 %v2835, %v5254
    %5256 = vmatmul.f32.gmra.mxu0 %v4038
    %v5257 = vpop.f32.mrf.mxu0
    %v5258 = vadd.f32 %v2838, %v5257
    %5259 = vmatmul.f32.gmra.mxu0 %v4041
    %v5260 = vpop.f32.mrf.mxu0
    %v5261 = vadd.f32 %v2841, %v5260
    %5262 = vmatmul.f32.gmra.mxu0 %v4044
    %v5263 = vpop.f32.mrf.mxu0
    %v5264 = vadd.f32 %v2844, %v5263
    %5265 = vmatmul.f32.gmra.mxu0 %v4047
    %v5266 = vpop.f32.mrf.mxu0
    %v5267 = vadd.f32 %v2847, %v5266
    %5268 = vmatmul.f32.gmra.mxu0 %v4050
    %v5269 = vpop.f32.mrf.mxu0
    %v5270 = vadd.f32 %v2850, %v5269
    %5271 = vmatmul.f32.gmra.mxu0 %v4053
    %v5272 = vpop.f32.mrf.mxu0
    %v5273 = vadd.f32 %v2853, %v5272
    %5274 = vmatmul.f32.gmra.mxu0 %v4056
    %v5275 = vpop.f32.mrf.mxu0
    %v5276 = vadd.f32 %v2856, %v5275
    %5277 = vmatmul.f32.gmra.mxu0 %v4059
    %v5278 = vpop.f32.mrf.mxu0
    %v5279 = vadd.f32 %v2859, %v5278
    %5280 = vmatmul.f32.gmra.mxu0 %v4062
    %v5281 = vpop.f32.mrf.mxu0
    %v5282 = vadd.f32 %v2862, %v5281
    %5283 = vmatmul.f32.gmra.mxu0 %v4065
    %v5284 = vpop.f32.mrf.mxu0
    %v5285 = vadd.f32 %v2865, %v5284
    %5286 = vmatmul.f32.gmra.mxu0 %v4068
    %v5287 = vpop.f32.mrf.mxu0
    %v5288 = vadd.f32 %v2868, %v5287
    %5289 = vmatmul.f32.gmra.mxu0 %v4071
    %v5290 = vpop.f32.mrf.mxu0
    %v5291 = vadd.f32 %v2871, %v5290
    %5292 = vmatmul.f32.gmra.mxu0 %v4074
    %v5293 = vpop.f32.mrf.mxu0
    %v5294 = vadd.f32 %v2874, %v5293
    %5295 = vmatmul.f32.gmra.mxu0 %v4077
    %v5296 = vpop.f32.mrf.mxu0
    %v5297 = vadd.f32 %v2877, %v5296
    %5298 = vmatmul.f32.gmra.mxu0 %v4080
    %v5299 = vpop.f32.mrf.mxu0
    %v5300 = vadd.f32 %v2880, %v5299
    %5301 = vmatmul.f32.gmra.mxu0 %v4083
    %v5302 = vpop.f32.mrf.mxu0
    %v5303 = vadd.f32 %v2883, %v5302
    %5304 = vmatmul.f32.gmra.mxu0 %v4086
    %v5305 = vpop.f32.mrf.mxu0
    %v5306 = vadd.f32 %v2886, %v5305
    %5307 = vmatmul.f32.gmra.mxu0 %v4089
    %v5308 = vpop.f32.mrf.mxu0
    %v5309 = vadd.f32 %v2889, %v5308
    %5310 = vmatmul.f32.gmra.mxu0 %v4092
    %v5311 = vpop.f32.mrf.mxu0
    %v5312 = vadd.f32 %v2892, %v5311
    %5313 = vmatmul.f32.gmra.mxu0 %v4095
    %v5314 = vpop.f32.mrf.mxu0
    %v5315 = vadd.f32 %v2895, %v5314
    %5316 = vmatmul.f32.gmra.mxu0 %v4098
    %v5317 = vpop.f32.mrf.mxu0
    %v5318 = vadd.f32 %v2898, %v5317
    %5319 = vmatmul.f32.gmra.mxu0 %v4101
    %v5320 = vpop.f32.mrf.mxu0
    %v5321 = vadd.f32 %v2901, %v5320
    %5322 = vmatmul.f32.gmra.mxu0 %v4104
    %v5323 = vpop.f32.mrf.mxu0
    %v5324 = vadd.f32 %v2904, %v5323
    %5325 = vmatmul.f32.gmra.mxu0 %v4107
    %v5326 = vpop.f32.mrf.mxu0
    %v5327 = vadd.f32 %v2907, %v5326
    %5328 = vmatmul.f32.gmra.mxu0 %v4110
    %v5329 = vpop.f32.mrf.mxu0
    %v5330 = vadd.f32 %v2910, %v5329
    %5331 = vmatmul.f32.gmra.mxu0 %v4113
    %v5332 = vpop.f32.mrf.mxu0
    %v5333 = vadd.f32 %v2913, %v5332
    %5334 = vmatmul.f32.gmra.mxu0 %v4116
    %v5335 = vpop.f32.mrf.mxu0
    %v5336 = vadd.f32 %v2916, %v5335
    %5337 = vmatmul.f32.gmra.mxu0 %v4119
    %v5338 = vpop.f32.mrf.mxu0
    %v5339 = vadd.f32 %v2919, %v5338
    %5340 = vmatmul.f32.gmra.mxu0 %v4122
    %v5341 = vpop.f32.mrf.mxu0
    %v5342 = vadd.f32 %v2922, %v5341
    %5343 = vmatmul.f32.gmra.mxu0 %v4125
    %v5344 = vpop.f32.mrf.mxu0
    %v5345 = vadd.f32 %v2925, %v5344
    %5346 = vmatmul.f32.gmra.mxu0 %v4128
    %v5347 = vpop.f32.mrf.mxu0
    %v5348 = vadd.f32 %v2928, %v5347
    %5349 = vmatmul.f32.gmra.mxu0 %v4131
    %v5350 = vpop.f32.mrf.mxu0
    %v5351 = vadd.f32 %v2931, %v5350
    %5352 = vmatmul.f32.gmra.mxu0 %v4134
    %v5353 = vpop.f32.mrf.mxu0
    %v5354 = vadd.f32 %v2934, %v5353
    %5355 = vmatmul.f32.gmra.mxu0 %v4137
    %v5356 = vpop.f32.mrf.mxu0
    %v5357 = vadd.f32 %v2937, %v5356
    %5358 = vmatmul.f32.gmra.mxu0 %v4140
    %v5359 = vpop.f32.mrf.mxu0
    %v5360 = vadd.f32 %v2940, %v5359
    %5361 = vmatmul.f32.gmra.mxu0 %v4143
    %v5362 = vpop.f32.mrf.mxu0
    %v5363 = vadd.f32 %v2943, %v5362
    %5364 = vmatmul.f32.gmra.mxu0 %v4146
    %v5365 = vpop.f32.mrf.mxu0
    %v5366 = vadd.f32 %v2946, %v5365
    %5367 = vmatmul.f32.gmra.mxu0 %v4149
    %v5368 = vpop.f32.mrf.mxu0
    %v5369 = vadd.f32 %v2949, %v5368
    %5370 = vmatmul.f32.gmra.mxu0 %v4152
    %v5371 = vpop.f32.mrf.mxu0
    %v5372 = vadd.f32 %v2952, %v5371
    %5373 = vmatmul.f32.gmra.mxu0 %v4155
    %v5374 = vpop.f32.mrf.mxu0
    %v5375 = vadd.f32 %v2955, %v5374
    %5376 = vmatmul.f32.gmra.mxu0 %v4158
    %v5377 = vpop.f32.mrf.mxu0
    %v5378 = vadd.f32 %v2958, %v5377
    %5379 = vmatmul.f32.gmra.mxu0 %v4161
    %v5380 = vpop.f32.mrf.mxu0
    %v5381 = vadd.f32 %v2961, %v5380
    %5382 = vmatmul.f32.gmra.mxu0 %v4164
    %v5383 = vpop.f32.mrf.mxu0
    %v5384 = vadd.f32 %v2964, %v5383
    %5385 = vmatmul.f32.gmra.mxu0 %v4167
    %v5386 = vpop.f32.mrf.mxu0
    %v5387 = vadd.f32 %v2967, %v5386
    %5388 = vmatmul.f32.gmra.mxu0 %v4170
    %v5389 = vpop.f32.mrf.mxu0
    %v5390 = vadd.f32 %v2970, %v5389
    %5391 = vmatmul.f32.gmra.mxu0 %v4173
    %v5392 = vpop.f32.mrf.mxu0
    %v5393 = vadd.f32 %v2973, %v5392
    %5394 = vmatmul.f32.gmra.mxu0 %v4176
    %v5395 = vpop.f32.mrf.mxu0
    %v5396 = vadd.f32 %v2976, %v5395
    %5397 = vmatmul.f32.gmra.mxu0 %v4179
    %v5398 = vpop.f32.mrf.mxu0
    %v5399 = vadd.f32 %v2979, %v5398
    %5400 = vmatmul.f32.gmra.mxu0 %v4182
    %v5401 = vpop.f32.mrf.mxu0
    %v5402 = vadd.f32 %v2982, %v5401
    %5403 = vmatmul.f32.gmra.mxu0 %v4185
    %v5404 = vpop.f32.mrf.mxu0
    %v5405 = vadd.f32 %v2985, %v5404
    %5406 = vmatmul.f32.gmra.mxu0 %v4188
    %v5407 = vpop.f32.mrf.mxu0
    %v5408 = vadd.f32 %v2988, %v5407
    %5409 = vmatmul.f32.gmra.mxu0 %v4191
    %v5410 = vpop.f32.mrf.mxu0
    %v5411 = vadd.f32 %v2991, %v5410
    %5412 = vmatmul.f32.gmra.mxu0 %v4194
    %v5413 = vpop.f32.mrf.mxu0
    %v5414 = vadd.f32 %v2994, %v5413
    %5415 = vmatmul.f32.gmra.mxu0 %v4197
    %v5416 = vpop.f32.mrf.mxu0
    %v5417 = vadd.f32 %v2997, %v5416
    %5418 = vmatmul.f32.gmra.mxu0 %v4200
    %v5419 = vpop.f32.mrf.mxu0
    %v5420 = vadd.f32 %v3000, %v5419
    %5421 = vmatmul.f32.gmra.mxu0 %v4203
    %v5422 = vpop.f32.mrf.mxu0
    %v5423 = vadd.f32 %v3003, %v5422
    %5424 = vmatmul.f32.gmra.mxu0 %v4206
    %v5425 = vpop.f32.mrf.mxu0
    %v5426 = vadd.f32 %v3006, %v5425
    %5427 = vmatmul.f32.gmra.mxu0 %v4209
    %v5428 = vpop.f32.mrf.mxu0
    %v5429 = vadd.f32 %v3009, %v5428
    %5430 = vmatmul.f32.gmra.mxu0 %v4212
    %v5431 = vpop.f32.mrf.mxu0
    %v5432 = vadd.f32 %v3012, %v5431
    %5433 = vmatmul.f32.gmra.mxu0 %v4215
    %v5434 = vpop.f32.mrf.mxu0
    %v5435 = vadd.f32 %v3015, %v5434
    %5436 = vmatmul.f32.gmra.mxu0 %v4218
    %v5437 = vpop.f32.mrf.mxu0
    %v5438 = vadd.f32 %v3018, %v5437
    %5439 = vmatmul.f32.gmra.mxu0 %v4221
    %v5440 = vpop.f32.mrf.mxu0
    %v5441 = vadd.f32 %v3021, %v5440
    %5442 = vmatmul.f32.gmra.mxu0 %v4224
    %v5443 = vpop.f32.mrf.mxu0
    %v5444 = vadd.f32 %v3024, %v5443
    %5445 = vmatmul.f32.gmra.mxu0 %v4227
    %v5446 = vpop.f32.mrf.mxu0
    %v5447 = vadd.f32 %v3027, %v5446
    %5448 = vmatmul.f32.gmra.mxu0 %v4230
    %v5449 = vpop.f32.mrf.mxu0
    %v5450 = vadd.f32 %v3030, %v5449
    %5451 = vmatmul.f32.gmra.mxu0 %v4233
    %v5452 = vpop.f32.mrf.mxu0
    %v5453 = vadd.f32 %v3033, %v5452
    %5454 = vmatmul.f32.gmra.mxu0 %v4236
    %v5455 = vpop.f32.mrf.mxu0
    %v5456 = vadd.f32 %v3036, %v5455
    %5457 = vmatmul.f32.gmra.mxu0 %v4239
    %v5458 = vpop.f32.mrf.mxu0
    %v5459 = vadd.f32 %v3039, %v5458
    %5460 = vmatmul.f32.gmra.mxu0 %v4242
    %v5461 = vpop.f32.mrf.mxu0
    %v5462 = vadd.f32 %v3042, %v5461
    %5463 = vmatmul.f32.gmra.mxu0 %v4245
    %v5464 = vpop.f32.mrf.mxu0
    %v5465 = vadd.f32 %v3045, %v5464
    %5466 = vmatmul.f32.gmra.mxu0 %v4248
    %v5467 = vpop.f32.mrf.mxu0
    %v5468 = vadd.f32 %v3048, %v5467
    %5469 = vmatmul.f32.gmra.mxu0 %v4251
    %v5470 = vpop.f32.mrf.mxu0
    %v5471 = vadd.f32 %v3051, %v5470
    %5472 = vmatmul.f32.gmra.mxu0 %v4254
    %v5473 = vpop.f32.mrf.mxu0
    %v5474 = vadd.f32 %v3054, %v5473
    %5475 = vmatmul.f32.gmra.mxu0 %v4257
    %v5476 = vpop.f32.mrf.mxu0
    %v5477 = vadd.f32 %v3057, %v5476
    %5478 = vmatmul.f32.gmra.mxu0 %v4260
    %v5479 = vpop.f32.mrf.mxu0
    %v5480 = vadd.f32 %v3060, %v5479
    %5481 = vmatmul.f32.gmra.mxu0 %v4263
    %v5482 = vpop.f32.mrf.mxu0
    %v5483 = vadd.f32 %v3063, %v5482
    %5484 = vmatmul.f32.gmra.mxu0 %v4266
    %v5485 = vpop.f32.mrf.mxu0
    %v5486 = vadd.f32 %v3066, %v5485
    %5487 = vmatmul.f32.gmra.mxu0 %v4269
    %v5488 = vpop.f32.mrf.mxu0
    %v5489 = vadd.f32 %v3069, %v5488
    %5490 = vmatmul.f32.gmra.mxu0 %v4272
    %v5491 = vpop.f32.mrf.mxu0
    %v5492 = vadd.f32 %v3072, %v5491
    %5493 = vmatmul.f32.gmra.mxu0 %v4275
    %v5494 = vpop.f32.mrf.mxu0
    %v5495 = vadd.f32 %v3075, %v5494
    %5496 = vmatmul.f32.gmra.mxu0 %v4278
    %v5497 = vpop.f32.mrf.mxu0
    %v5498 = vadd.f32 %v3078, %v5497
    %5499 = vmatmul.f32.gmra.mxu0 %v4281
    %v5500 = vpop.f32.mrf.mxu0
    %v5501 = vadd.f32 %v3081, %v5500
    %5502 = vmatmul.f32.gmra.mxu0 %v4284
    %v5503 = vpop.f32.mrf.mxu0
    %v5504 = vadd.f32 %v3084, %v5503
    %5505 = vmatmul.f32.gmra.mxu0 %v4287
    %v5506 = vpop.f32.mrf.mxu0
    %v5507 = vadd.f32 %v3087, %v5506
    %5508 = vmatmul.f32.gmra.mxu0 %v4290
    %v5509 = vpop.f32.mrf.mxu0
    %v5510 = vadd.f32 %v3090, %v5509
    %5511 = vmatmul.f32.gmra.mxu0 %v4293
    %v5512 = vpop.f32.mrf.mxu0
    %v5513 = vadd.f32 %v3093, %v5512
    %5514 = vmatmul.f32.gmra.mxu0 %v4296
    %v5515 = vpop.f32.mrf.mxu0
    %v5516 = vadd.f32 %v3096, %v5515
    %5517 = vmatmul.f32.gmra.mxu0 %v4299
    %v5518 = vpop.f32.mrf.mxu0
    %v5519 = vadd.f32 %v3099, %v5518
    %5520 = vmatmul.f32.gmra.mxu0 %v4302
    %v5521 = vpop.f32.mrf.mxu0
    %v5522 = vadd.f32 %v3102, %v5521
    %5523 = vmatmul.f32.gmra.mxu0 %v4305
    %v5524 = vpop.f32.mrf.mxu0
    %v5525 = vadd.f32 %v3105, %v5524
    %5526 = vmatmul.f32.gmra.mxu0 %v4308
    %v5527 = vpop.f32.mrf.mxu0
    %v5528 = vadd.f32 %v3108, %v5527
    %5529 = vmatmul.f32.gmra.mxu0 %v4311
    %v5530 = vpop.f32.mrf.mxu0
    %v5531 = vadd.f32 %v3111, %v5530
    %5532 = vmatmul.f32.gmra.mxu0 %v4314
    %v5533 = vpop.f32.mrf.mxu0
    %v5534 = vadd.f32 %v3114, %v5533
    %5535 = vmatmul.f32.gmra.mxu0 %v4317
    %v5536 = vpop.f32.mrf.mxu0
    %v5537 = vadd.f32 %v3117, %v5536
    %5538 = vmatmul.f32.gmra.mxu0 %v4320
    %v5539 = vpop.f32.mrf.mxu0
    %v5540 = vadd.f32 %v3120, %v5539
    %5541 = vmatmul.f32.gmra.mxu0 %v4323
    %v5542 = vpop.f32.mrf.mxu0
    %v5543 = vadd.f32 %v3123, %v5542
    %5544 = vmatmul.f32.gmra.mxu0 %v4326
    %v5545 = vpop.f32.mrf.mxu0
    %v5546 = vadd.f32 %v3126, %v5545
    %5547 = vmatmul.f32.gmra.mxu0 %v4329
    %v5548 = vpop.f32.mrf.mxu0
    %v5549 = vadd.f32 %v3129, %v5548
    %5550 = vmatmul.f32.gmra.mxu0 %v4332
    %v5551 = vpop.f32.mrf.mxu0
    %v5552 = vadd.f32 %v3132, %v5551
    %5553 = vmatmul.f32.gmra.mxu0 %v4335
    %v5554 = vpop.f32.mrf.mxu0
    %v5555 = vadd.f32 %v3135, %v5554
    %5556 = vmatmul.f32.gmra.mxu0 %v4338
    %v5557 = vpop.f32.mrf.mxu0
    %v5558 = vadd.f32 %v3138, %v5557
    %5559 = vmatmul.f32.gmra.mxu0 %v4341
    %v5560 = vpop.f32.mrf.mxu0
    %v5561 = vadd.f32 %v3141, %v5560
    %5562 = vmatmul.f32.gmra.mxu0 %v4344
    %v5563 = vpop.f32.mrf.mxu0
    %v5564 = vadd.f32 %v3144, %v5563
    %5565 = vmatmul.f32.gmra.mxu0 %v4347
    %v5566 = vpop.f32.mrf.mxu0
    %v5567 = vadd.f32 %v3147, %v5566
    %5568 = vmatmul.f32.gmra.mxu0 %v4350
    %v5569 = vpop.f32.mrf.mxu0
    %v5570 = vadd.f32 %v3150, %v5569
    %5571 = vmatmul.f32.gmra.mxu0 %v4353
    %v5572 = vpop.f32.mrf.mxu0
    %v5573 = vadd.f32 %v3153, %v5572
    %5574 = vmatmul.f32.gmra.mxu0 %v4356
    %v5575 = vpop.f32.mrf.mxu0
    %v5576 = vadd.f32 %v3156, %v5575
    %5577 = vmatmul.f32.gmra.mxu0 %v4359
    %v5578 = vpop.f32.mrf.mxu0
    %v5579 = vadd.f32 %v3159, %v5578
    %5580 = vmatmul.f32.gmra.mxu0 %v4362
    %v5581 = vpop.f32.mrf.mxu0
    %v5582 = vadd.f32 %v3162, %v5581
    %5583 = vmatmul.f32.gmra.mxu0 %v4365
    %v5584 = vpop.f32.mrf.mxu0
    %v5585 = vadd.f32 %v3165, %v5584
    %5586 = vmatmul.f32.gmra.mxu0 %v4368
    %v5587 = vpop.f32.mrf.mxu0
    %v5588 = vadd.f32 %v3168, %v5587
    %5589 = vmatmul.f32.gmra.mxu0 %v4371
    %v5590 = vpop.f32.mrf.mxu0
    %v5591 = vadd.f32 %v3171, %v5590
    %5592 = vmatmul.f32.gmra.mxu0 %v4374
    %v5593 = vpop.f32.mrf.mxu0
    %v5594 = vadd.f32 %v3174, %v5593
    %5595 = vmatmul.f32.gmra.mxu0 %v4377
    %v5596 = vpop.f32.mrf.mxu0
    %v5597 = vadd.f32 %v3177, %v5596
    %5598 = vmatmul.f32.gmra.mxu0 %v4380
    %v5599 = vpop.f32.mrf.mxu0
    %v5600 = vadd.f32 %v3180, %v5599
    %5601 = vmatmul.f32.gmra.mxu0 %v4383
    %v5602 = vpop.f32.mrf.mxu0
    %v5603 = vadd.f32 %v3183, %v5602
    %5604 = vmatmul.f32.gmra.mxu0 %v4386
    %v5605 = vpop.f32.mrf.mxu0
    %v5606 = vadd.f32 %v3186, %v5605
    %5607 = vmatmul.f32.gmra.mxu0 %v4389
    %v5608 = vpop.f32.mrf.mxu0
    %v5609 = vadd.f32 %v3189, %v5608
    %5610 = vmatmul.f32.gmra.mxu0 %v4392
    %v5611 = vpop.f32.mrf.mxu0
    %v5612 = vadd.f32 %v3192, %v5611
    %5613 = vmatmul.f32.gmra.mxu0 %v4395
    %v5614 = vpop.f32.mrf.mxu0
    %v5615 = vadd.f32 %v3195, %v5614
    %5616 = vmatmul.f32.gmra.mxu0 %v4398
    %v5617 = vpop.f32.mrf.mxu0
    %v5618 = vadd.f32 %v3198, %v5617
    %5619 = vmatmul.f32.gmra.mxu0 %v4401
    %v5620 = vpop.f32.mrf.mxu0
    %v5621 = vadd.f32 %v3201, %v5620
    %5622 = vmatmul.f32.gmra.mxu0 %v4404
    %v5623 = vpop.f32.mrf.mxu0
    %v5624 = vadd.f32 %v3204, %v5623
    %5625 = vmatmul.f32.gmra.mxu0 %v4407
    %v5626 = vpop.f32.mrf.mxu0
    %v5627 = vadd.f32 %v3207, %v5626
    %5628 = vmatmul.f32.gmra.mxu0 %v4410
    %v5629 = vpop.f32.mrf.mxu0
    %v5630 = vadd.f32 %v3210, %v5629
    %5631 = vmatmul.f32.gmra.mxu0 %v4413
    %v5632 = vpop.f32.mrf.mxu0
    %v5633 = vadd.f32 %v3213, %v5632
    %5634 = vmatmul.f32.gmra.mxu0 %v4416
    %v5635 = vpop.f32.mrf.mxu0
    %v5636 = vadd.f32 %v3216, %v5635
    %5637 = vmatmul.f32.gmra.mxu0 %v4419
    %v5638 = vpop.f32.mrf.mxu0
    %v5639 = vadd.f32 %v3219, %v5638
    %5640 = vmatmul.f32.gmra.mxu0 %v4422
    %v5641 = vpop.f32.mrf.mxu0
    %v5642 = vadd.f32 %v3222, %v5641
    %5643 = vmatmul.f32.gmra.mxu0 %v4425
    %v5644 = vpop.f32.mrf.mxu0
    %v5645 = vadd.f32 %v3225, %v5644
    %5646 = vmatmul.f32.gmra.mxu0 %v4428
    %v5647 = vpop.f32.mrf.mxu0
    %v5648 = vadd.f32 %v3228, %v5647
    %5649 = vmatmul.f32.gmra.mxu0 %v4431
    %v5650 = vpop.f32.mrf.mxu0
    %v5651 = vadd.f32 %v3231, %v5650
    %5652 = vmatmul.f32.gmra.mxu0 %v4434
    %v5653 = vpop.f32.mrf.mxu0
    %v5654 = vadd.f32 %v3234, %v5653
    %5655 = vmatmul.f32.gmra.mxu0 %v4437
    %v5656 = vpop.f32.mrf.mxu0
    %v5657 = vadd.f32 %v3237, %v5656
    %5658 = vmatmul.f32.gmra.mxu0 %v4440
    %v5659 = vpop.f32.mrf.mxu0
    %v5660 = vadd.f32 %v3240, %v5659
    %5661 = vmatmul.f32.gmra.mxu0 %v4443
    %v5662 = vpop.f32.mrf.mxu0
    %v5663 = vadd.f32 %v3243, %v5662
    %5664 = vmatmul.f32.gmra.mxu0 %v4446
    %v5665 = vpop.f32.mrf.mxu0
    %v5666 = vadd.f32 %v3246, %v5665
    %5667 = vmatmul.f32.gmra.mxu0 %v4449
    %v5668 = vpop.f32.mrf.mxu0
    %v5669 = vadd.f32 %v3249, %v5668
    %5670 = vmatmul.f32.gmra.mxu0 %v4452
    %v5671 = vpop.f32.mrf.mxu0
    %v5672 = vadd.f32 %v3252, %v5671
    %5673 = vmatmul.f32.gmra.mxu0 %v4455
    %v5674 = vpop.f32.mrf.mxu0
    %v5675 = vadd.f32 %v3255, %v5674
    %5676 = vmatmul.f32.gmra.mxu0 %v4458
    %v5677 = vpop.f32.mrf.mxu0
    %v5678 = vadd.f32 %v3258, %v5677
    %5679 = vmatmul.f32.gmra.mxu0 %v4461
    %v5680 = vpop.f32.mrf.mxu0
    %v5681 = vadd.f32 %v3261, %v5680
    %5682 = vmatmul.f32.gmra.mxu0 %v4464
    %v5683 = vpop.f32.mrf.mxu0
    %v5684 = vadd.f32 %v3264, %v5683
    %5685 = vmatmul.f32.gmra.mxu0 %v4467
    %v5686 = vpop.f32.mrf.mxu0
    %v5687 = vadd.f32 %v3267, %v5686
    %5688 = vmatmul.f32.gmra.mxu0 %v4470
    %v5689 = vpop.f32.mrf.mxu0
    %v5690 = vadd.f32 %v3270, %v5689
    %5691 = vmatmul.f32.gmra.mxu0 %v4473
    %v5692 = vpop.f32.mrf.mxu0
    %v5693 = vadd.f32 %v3273, %v5692
    %5694 = vmatmul.f32.gmra.mxu0 %v4476
    %v5695 = vpop.f32.mrf.mxu0
    %v5696 = vadd.f32 %v3276, %v5695
    %5697 = vmatmul.f32.gmra.mxu0 %v4479
    %v5698 = vpop.f32.mrf.mxu0
    %v5699 = vadd.f32 %v3279, %v5698
    %5700 = vmatmul.f32.gmra.mxu0 %v4482
    %v5701 = vpop.f32.mrf.mxu0
    %v5702 = vadd.f32 %v3282, %v5701
    %5703 = vmatmul.f32.gmra.mxu0 %v4485
    %v5704 = vpop.f32.mrf.mxu0
    %v5705 = vadd.f32 %v3285, %v5704
    %5706 = vmatmul.f32.gmra.mxu0 %v4488
    %v5707 = vpop.f32.mrf.mxu0
    %v5708 = vadd.f32 %v3288, %v5707
    %5709 = vdwg.mxu0
    %v5710 = vld [vmem:[%s1 + $0x20] sm:$0xff]
    %v5711 = vld [vmem:[%s1 + $0x28] sm:$0x7]
    %v5713 = vsel %vm868, %v848, 0
    %v5716 = vsel %vm868, %v849, 0
    %v5719 = vsel %vm868, %v850, 0
    %v5722 = vsel %vm868, %v851, 0
    %v5725 = vsel %vm868, %v852, 0
    %v5728 = vsel %vm868, %v853, 0
    %v5731 = vsel %vm868, %v854, 0
    %v5734 = vsel %vm868, %v855, 0
    %v5737 = vsel %vm868, %v856, 0
    %v5740 = vsel %vm868, %v857, 0
    %v5743 = vsel %vm868, %v858, 0
    %v5746 = vsel %vm868, %v859, 0
    %v5749 = vsel %vm868, %v860, 0
    %v5752 = vsel %vm868, %v861, 0
    %v5755 = vsel %vm868, %v862, 0
    %v5758 = vsel %vm868, %v863, 0
    %v5761 = vsel %vm2069, %v5711, 0
    %5763 = vmatpush.msra.mxu0 0.0
    %5764 = vmatpush.msra.mxu0 0.0
    %5765 = vmatpush.msra.mxu0 0.0
    %5766 = vmatpush.msra.mxu0 0.0
    %5767 = vmatpush.msra.mxu0 0.0
    %5768 = vmatpush.msra.mxu0 0.0
    %5769 = vmatpush.msra.mxu0 0.0
    %5770 = vmatpush.msra.mxu0 0.0
    %5771 = vmatpush.msra.mxu0 0.0
    %5772 = vmatpush.msra.mxu0 0.0
    %5773 = vmatpush.msra.mxu0 0.0
    %5774 = vmatpush.msra.mxu0 0.0
    %5775 = vmatpush.msra.mxu0 0.0
    %5776 = vmatpush.msra.mxu0 0.0
    %5777 = vmatpush.msra.mxu0 %v5761
    %5778 = vmatpush.msra.mxu0 %v5710
    %5779 = vmatmul.f32.gmra.mxu0 %v3339
    %v5780 = vpop.f32.mrf.mxu0
    %v5781 = vadd.f32 0.0, %v5780
    %5782 = vmatmul.f32.gmra.mxu0 %v3342
    %v5783 = vpop.f32.mrf.mxu0
    %v5784 = vadd.f32 0.0, %v5783
    %5785 = vmatmul.f32.gmra.mxu0 %v3345
    %v5786 = vpop.f32.mrf.mxu0
    %v5787 = vadd.f32 0.0, %v5786
    %5788 = vmatmul.f32.gmra.mxu0 %v3348
    %v5789 = vpop.f32.mrf.mxu0
    %v5790 = vadd.f32 0.0, %v5789
    %5791 = vmatmul.f32.gmra.mxu0 %v3351
    %v5792 = vpop.f32.mrf.mxu0
    %v5793 = vadd.f32 0.0, %v5792
    %5794 = vmatmul.f32.gmra.mxu0 %v3354
    %v5795 = vpop.f32.mrf.mxu0
    %v5796 = vadd.f32 0.0, %v5795
    %5797 = vmatmul.f32.gmra.mxu0 %v3357
    %v5798 = vpop.f32.mrf.mxu0
    %v5799 = vadd.f32 0.0, %v5798
    %5800 = vmatmul.f32.gmra.mxu0 %v3360
    %v5801 = vpop.f32.mrf.mxu0
    %v5802 = vadd.f32 0.0, %v5801
    %5803 = vmatmul.f32.gmra.mxu0 %v3363
    %v5804 = vpop.f32.mrf.mxu0
    %v5805 = vadd.f32 0.0, %v5804
    %5806 = vmatmul.f32.gmra.mxu0 %v3366
    %v5807 = vpop.f32.mrf.mxu0
    %v5808 = vadd.f32 0.0, %v5807
    %5809 = vmatmul.f32.gmra.mxu0 %v3369
    %v5810 = vpop.f32.mrf.mxu0
    %v5811 = vadd.f32 0.0, %v5810
    %5812 = vmatmul.f32.gmra.mxu0 %v3372
    %v5813 = vpop.f32.mrf.mxu0
    %v5814 = vadd.f32 0.0, %v5813
    %5815 = vmatmul.f32.gmra.mxu0 %v3375
    %v5816 = vpop.f32.mrf.mxu0
    %v5817 = vadd.f32 0.0, %v5816
    %5818 = vmatmul.f32.gmra.mxu0 %v3378
    %v5819 = vpop.f32.mrf.mxu0
    %v5820 = vadd.f32 0.0, %v5819
    %5821 = vmatmul.f32.gmra.mxu0 %v3381
    %v5822 = vpop.f32.mrf.mxu0
    %v5823 = vadd.f32 0.0, %v5822
    %5824 = vmatmul.f32.gmra.mxu0 %v3384
    %v5825 = vpop.f32.mrf.mxu0
    %v5826 = vadd.f32 0.0, %v5825
    %5827 = vmatmul.f32.gmra.mxu0 %v3387
    %v5828 = vpop.f32.mrf.mxu0
    %v5829 = vadd.f32 0.0, %v5828
    %5830 = vmatmul.f32.gmra.mxu0 %v3390
    %v5831 = vpop.f32.mrf.mxu0
    %v5832 = vadd.f32 0.0, %v5831
    %5833 = vmatmul.f32.gmra.mxu0 %v3393
    %v5834 = vpop.f32.mrf.mxu0
    %v5835 = vadd.f32 0.0, %v5834
    %5836 = vmatmul.f32.gmra.mxu0 %v3396
    %v5837 = vpop.f32.mrf.mxu0
    %v5838 = vadd.f32 0.0, %v5837
    %5839 = vmatmul.f32.gmra.mxu0 %v3399
    %v5840 = vpop.f32.mrf.mxu0
    %v5841 = vadd.f32 0.0, %v5840
    %5842 = vmatmul.f32.gmra.mxu0 %v3402
    %v5843 = vpop.f32.mrf.mxu0
    %v5844 = vadd.f32 0.0, %v5843
    %5845 = vmatmul.f32.gmra.mxu0 %v3405
    %v5846 = vpop.f32.mrf.mxu0
    %v5847 = vadd.f32 0.0, %v5846
    %5848 = vmatmul.f32.gmra.mxu0 %v3408
    %v5849 = vpop.f32.mrf.mxu0
    %v5850 = vadd.f32 0.0, %v5849
    %5851 = vmatmul.f32.gmra.mxu0 %v3411
    %v5852 = vpop.f32.mrf.mxu0
    %v5853 = vadd.f32 0.0, %v5852
    %5854 = vmatmul.f32.gmra.mxu0 %v3414
    %v5855 = vpop.f32.mrf.mxu0
    %v5856 = vadd.f32 0.0, %v5855
    %5857 = vmatmul.f32.gmra.mxu0 %v3417
    %v5858 = vpop.f32.mrf.mxu0
    %v5859 = vadd.f32 0.0, %v5858
    %5860 = vmatmul.f32.gmra.mxu0 %v3420
    %v5861 = vpop.f32.mrf.mxu0
    %v5862 = vadd.f32 0.0, %v5861
    %5863 = vmatmul.f32.gmra.mxu0 %v3423
    %v5864 = vpop.f32.mrf.mxu0
    %v5865 = vadd.f32 0.0, %v5864
    %5866 = vmatmul.f32.gmra.mxu0 %v3426
    %v5867 = vpop.f32.mrf.mxu0
    %v5868 = vadd.f32 0.0, %v5867
    %5869 = vmatmul.f32.gmra.mxu0 %v3429
    %v5870 = vpop.f32.mrf.mxu0
    %v5871 = vadd.f32 0.0, %v5870
    %5872 = vmatmul.f32.gmra.mxu0 %v3432
    %v5873 = vpop.f32.mrf.mxu0
    %v5874 = vadd.f32 0.0, %v5873
    %5875 = vmatmul.f32.gmra.mxu0 %v3435
    %v5876 = vpop.f32.mrf.mxu0
    %v5877 = vadd.f32 0.0, %v5876
    %5878 = vmatmul.f32.gmra.mxu0 %v3438
    %v5879 = vpop.f32.mrf.mxu0
    %v5880 = vadd.f32 0.0, %v5879
    %5881 = vmatmul.f32.gmra.mxu0 %v3441
    %v5882 = vpop.f32.mrf.mxu0
    %v5883 = vadd.f32 0.0, %v5882
    %5884 = vmatmul.f32.gmra.mxu0 %v3444
    %v5885 = vpop.f32.mrf.mxu0
    %v5886 = vadd.f32 0.0, %v5885
    %5887 = vmatmul.f32.gmra.mxu0 %v3447
    %v5888 = vpop.f32.mrf.mxu0
    %v5889 = vadd.f32 0.0, %v5888
    %5890 = vmatmul.f32.gmra.mxu0 %v3450
    %v5891 = vpop.f32.mrf.mxu0
    %v5892 = vadd.f32 0.0, %v5891
    %5893 = vmatmul.f32.gmra.mxu0 %v3453
    %v5894 = vpop.f32.mrf.mxu0
    %v5895 = vadd.f32 0.0, %v5894
    %5896 = vmatmul.f32.gmra.mxu0 %v3456
    %v5897 = vpop.f32.mrf.mxu0
    %v5898 = vadd.f32 0.0, %v5897
    %5899 = vmatmul.f32.gmra.mxu0 %v3459
    %v5900 = vpop.f32.mrf.mxu0
    %v5901 = vadd.f32 0.0, %v5900
    %5902 = vmatmul.f32.gmra.mxu0 %v3462
    %v5903 = vpop.f32.mrf.mxu0
    %v5904 = vadd.f32 0.0, %v5903
    %5905 = vmatmul.f32.gmra.mxu0 %v3465
    %v5906 = vpop.f32.mrf.mxu0
    %v5907 = vadd.f32 0.0, %v5906
    %5908 = vmatmul.f32.gmra.mxu0 %v3468
    %v5909 = vpop.f32.mrf.mxu0
    %v5910 = vadd.f32 0.0, %v5909
    %5911 = vmatmul.f32.gmra.mxu0 %v3471
    %v5912 = vpop.f32.mrf.mxu0
    %v5913 = vadd.f32 0.0, %v5912
    %5914 = vmatmul.f32.gmra.mxu0 %v3474
    %v5915 = vpop.f32.mrf.mxu0
    %v5916 = vadd.f32 0.0, %v5915
    %5917 = vmatmul.f32.gmra.mxu0 %v3477
    %v5918 = vpop.f32.mrf.mxu0
    %v5919 = vadd.f32 0.0, %v5918
    %5920 = vmatmul.f32.gmra.mxu0 %v3480
    %v5921 = vpop.f32.mrf.mxu0
    %v5922 = vadd.f32 0.0, %v5921
    %5923 = vmatmul.f32.gmra.mxu0 %v3483
    %v5924 = vpop.f32.mrf.mxu0
    %v5925 = vadd.f32 0.0, %v5924
    %5926 = vmatmul.f32.gmra.mxu0 %v3486
    %v5927 = vpop.f32.mrf.mxu0
    %v5928 = vadd.f32 0.0, %v5927
    %5929 = vmatmul.f32.gmra.mxu0 %v3489
    %v5930 = vpop.f32.mrf.mxu0
    %v5931 = vadd.f32 0.0, %v5930
    %5932 = vmatmul.f32.gmra.mxu0 %v3492
    %v5933 = vpop.f32.mrf.mxu0
    %v5934 = vadd.f32 0.0, %v5933
    %5935 = vmatmul.f32.gmra.mxu0 %v3495
    %v5936 = vpop.f32.mrf.mxu0
    %v5937 = vadd.f32 0.0, %v5936
    %5938 = vmatmul.f32.gmra.mxu0 %v3498
    %v5939 = vpop.f32.mrf.mxu0
    %v5940 = vadd.f32 0.0, %v5939
    %5941 = vmatmul.f32.gmra.mxu0 %v3501
    %v5942 = vpop.f32.mrf.mxu0
    %v5943 = vadd.f32 0.0, %v5942
    %5944 = vmatmul.f32.gmra.mxu0 %v3504
    %v5945 = vpop.f32.mrf.mxu0
    %v5946 = vadd.f32 0.0, %v5945
    %5947 = vmatmul.f32.gmra.mxu0 %v3507
    %v5948 = vpop.f32.mrf.mxu0
    %v5949 = vadd.f32 0.0, %v5948
    %5950 = vmatmul.f32.gmra.mxu0 %v3510
    %v5951 = vpop.f32.mrf.mxu0
    %v5952 = vadd.f32 0.0, %v5951
    %5953 = vmatmul.f32.gmra.mxu0 %v3513
    %v5954 = vpop.f32.mrf.mxu0
    %v5955 = vadd.f32 0.0, %v5954
    %5956 = vmatmul.f32.gmra.mxu0 %v3516
    %v5957 = vpop.f32.mrf.mxu0
    %v5958 = vadd.f32 0.0, %v5957
    %5959 = vmatmul.f32.gmra.mxu0 %v3519
    %v5960 = vpop.f32.mrf.mxu0
    %v5961 = vadd.f32 0.0, %v5960
    %5962 = vmatmul.f32.gmra.mxu0 %v3522
    %v5963 = vpop.f32.mrf.mxu0
    %v5964 = vadd.f32 0.0, %v5963
    %5965 = vmatmul.f32.gmra.mxu0 %v3525
    %v5966 = vpop.f32.mrf.mxu0
    %v5967 = vadd.f32 0.0, %v5966
    %5968 = vmatmul.f32.gmra.mxu0 %v3528
    %v5969 = vpop.f32.mrf.mxu0
    %v5970 = vadd.f32 0.0, %v5969
    %5971 = vmatmul.f32.gmra.mxu0 %v3531
    %v5972 = vpop.f32.mrf.mxu0
    %v5973 = vadd.f32 0.0, %v5972
    %5974 = vmatmul.f32.gmra.mxu0 %v3534
    %v5975 = vpop.f32.mrf.mxu0
    %v5976 = vadd.f32 0.0, %v5975
    %5977 = vmatmul.f32.gmra.mxu0 %v3537
    %v5978 = vpop.f32.mrf.mxu0
    %v5979 = vadd.f32 0.0, %v5978
    %5980 = vmatmul.f32.gmra.mxu0 %v3540
    %v5981 = vpop.f32.mrf.mxu0
    %v5982 = vadd.f32 0.0, %v5981
    %5983 = vmatmul.f32.gmra.mxu0 %v3543
    %v5984 = vpop.f32.mrf.mxu0
    %v5985 = vadd.f32 0.0, %v5984
    %5986 = vmatmul.f32.gmra.mxu0 %v3546
    %v5987 = vpop.f32.mrf.mxu0
    %v5988 = vadd.f32 0.0, %v5987
    %5989 = vmatmul.f32.gmra.mxu0 %v3549
    %v5990 = vpop.f32.mrf.mxu0
    %v5991 = vadd.f32 0.0, %v5990
    %5992 = vmatmul.f32.gmra.mxu0 %v3552
    %v5993 = vpop.f32.mrf.mxu0
    %v5994 = vadd.f32 0.0, %v5993
    %5995 = vmatmul.f32.gmra.mxu0 %v3555
    %v5996 = vpop.f32.mrf.mxu0
    %v5997 = vadd.f32 0.0, %v5996
    %5998 = vmatmul.f32.gmra.mxu0 %v3558
    %v5999 = vpop.f32.mrf.mxu0
    %v6000 = vadd.f32 0.0, %v5999
    %6001 = vmatmul.f32.gmra.mxu0 %v3561
    %v6002 = vpop.f32.mrf.mxu0
    %v6003 = vadd.f32 0.0, %v6002
    %6004 = vmatmul.f32.gmra.mxu0 %v3564
    %v6005 = vpop.f32.mrf.mxu0
    %v6006 = vadd.f32 0.0, %v6005
    %6007 = vmatmul.f32.gmra.mxu0 %v3567
    %v6008 = vpop.f32.mrf.mxu0
    %v6009 = vadd.f32 0.0, %v6008
    %6010 = vmatmul.f32.gmra.mxu0 %v3570
    %v6011 = vpop.f32.mrf.mxu0
    %v6012 = vadd.f32 0.0, %v6011
    %6013 = vmatmul.f32.gmra.mxu0 %v3573
    %v6014 = vpop.f32.mrf.mxu0
    %v6015 = vadd.f32 0.0, %v6014
    %6016 = vmatmul.f32.gmra.mxu0 %v3576
    %v6017 = vpop.f32.mrf.mxu0
    %v6018 = vadd.f32 0.0, %v6017
    %6019 = vmatmul.f32.gmra.mxu0 %v3579
    %v6020 = vpop.f32.mrf.mxu0
    %v6021 = vadd.f32 0.0, %v6020
    %6022 = vmatmul.f32.gmra.mxu0 %v3582
    %v6023 = vpop.f32.mrf.mxu0
    %v6024 = vadd.f32 0.0, %v6023
    %6025 = vmatmul.f32.gmra.mxu0 %v3585
    %v6026 = vpop.f32.mrf.mxu0
    %v6027 = vadd.f32 0.0, %v6026
    %6028 = vmatmul.f32.gmra.mxu0 %v3588
    %v6029 = vpop.f32.mrf.mxu0
    %v6030 = vadd.f32 0.0, %v6029
    %6031 = vmatmul.f32.gmra.mxu0 %v3591
    %v6032 = vpop.f32.mrf.mxu0
    %v6033 = vadd.f32 0.0, %v6032
    %6034 = vmatmul.f32.gmra.mxu0 %v3594
    %v6035 = vpop.f32.mrf.mxu0
    %v6036 = vadd.f32 0.0, %v6035
    %6037 = vmatmul.f32.gmra.mxu0 %v3597
    %v6038 = vpop.f32.mrf.mxu0
    %v6039 = vadd.f32 0.0, %v6038
    %6040 = vmatmul.f32.gmra.mxu0 %v3600
    %v6041 = vpop.f32.mrf.mxu0
    %v6042 = vadd.f32 0.0, %v6041
    %6043 = vmatmul.f32.gmra.mxu0 %v3603
    %v6044 = vpop.f32.mrf.mxu0
    %v6045 = vadd.f32 0.0, %v6044
    %6046 = vmatmul.f32.gmra.mxu0 %v3606
    %v6047 = vpop.f32.mrf.mxu0
    %v6048 = vadd.f32 0.0, %v6047
    %6049 = vmatmul.f32.gmra.mxu0 %v3609
    %v6050 = vpop.f32.mrf.mxu0
    %v6051 = vadd.f32 0.0, %v6050
    %6052 = vmatmul.f32.gmra.mxu0 %v3612
    %v6053 = vpop.f32.mrf.mxu0
    %v6054 = vadd.f32 0.0, %v6053
    %6055 = vmatmul.f32.gmra.mxu0 %v3615
    %v6056 = vpop.f32.mrf.mxu0
    %v6057 = vadd.f32 0.0, %v6056
    %6058 = vmatmul.f32.gmra.mxu0 %v3618
    %v6059 = vpop.f32.mrf.mxu0
    %v6060 = vadd.f32 0.0, %v6059
    %6061 = vmatmul.f32.gmra.mxu0 %v3621
    %v6062 = vpop.f32.mrf.mxu0
    %v6063 = vadd.f32 0.0, %v6062
    %6064 = vmatmul.f32.gmra.mxu0 %v3624
    %v6065 = vpop.f32.mrf.mxu0
    %v6066 = vadd.f32 0.0, %v6065
    %6067 = vmatmul.f32.gmra.mxu0 %v3627
    %v6068 = vpop.f32.mrf.mxu0
    %v6069 = vadd.f32 0.0, %v6068
    %6070 = vmatmul.f32.gmra.mxu0 %v3630
    %v6071 = vpop.f32.mrf.mxu0
    %v6072 = vadd.f32 0.0, %v6071
    %6073 = vmatmul.f32.gmra.mxu0 %v3633
    %v6074 = vpop.f32.mrf.mxu0
    %v6075 = vadd.f32 0.0, %v6074
    %6076 = vmatmul.f32.gmra.mxu0 %v3636
    %v6077 = vpop.f32.mrf.mxu0
    %v6078 = vadd.f32 0.0, %v6077
    %6079 = vmatmul.f32.gmra.mxu0 %v3639
    %v6080 = vpop.f32.mrf.mxu0
    %v6081 = vadd.f32 0.0, %v6080
    %6082 = vmatmul.f32.gmra.mxu0 %v3642
    %v6083 = vpop.f32.mrf.mxu0
    %v6084 = vadd.f32 0.0, %v6083
    %6085 = vmatmul.f32.gmra.mxu0 %v3645
    %v6086 = vpop.f32.mrf.mxu0
    %v6087 = vadd.f32 0.0, %v6086
    %6088 = vmatmul.f32.gmra.mxu0 %v3648
    %v6089 = vpop.f32.mrf.mxu0
    %v6090 = vadd.f32 0.0, %v6089
    %6091 = vmatmul.f32.gmra.mxu0 %v3651
    %v6092 = vpop.f32.mrf.mxu0
    %v6093 = vadd.f32 0.0, %v6092
    %6094 = vmatmul.f32.gmra.mxu0 %v3654
    %v6095 = vpop.f32.mrf.mxu0
    %v6096 = vadd.f32 0.0, %v6095
    %6097 = vmatmul.f32.gmra.mxu0 %v3657
    %v6098 = vpop.f32.mrf.mxu0
    %v6099 = vadd.f32 0.0, %v6098
    %6100 = vmatmul.f32.gmra.mxu0 %v3660
    %v6101 = vpop.f32.mrf.mxu0
    %v6102 = vadd.f32 0.0, %v6101
    %6103 = vmatmul.f32.gmra.mxu0 %v3663
    %v6104 = vpop.f32.mrf.mxu0
    %v6105 = vadd.f32 0.0, %v6104
    %6106 = vmatmul.f32.gmra.mxu0 %v3666
    %v6107 = vpop.f32.mrf.mxu0
    %v6108 = vadd.f32 0.0, %v6107
    %6109 = vmatmul.f32.gmra.mxu0 %v3669
    %v6110 = vpop.f32.mrf.mxu0
    %v6111 = vadd.f32 0.0, %v6110
    %6112 = vmatmul.f32.gmra.mxu0 %v3672
    %v6113 = vpop.f32.mrf.mxu0
    %v6114 = vadd.f32 0.0, %v6113
    %6115 = vmatmul.f32.gmra.mxu0 %v3675
    %v6116 = vpop.f32.mrf.mxu0
    %v6117 = vadd.f32 0.0, %v6116
    %6118 = vmatmul.f32.gmra.mxu0 %v3678
    %v6119 = vpop.f32.mrf.mxu0
    %v6120 = vadd.f32 0.0, %v6119
    %6121 = vmatmul.f32.gmra.mxu0 %v3681
    %v6122 = vpop.f32.mrf.mxu0
    %v6123 = vadd.f32 0.0, %v6122
    %6124 = vmatmul.f32.gmra.mxu0 %v3684
    %v6125 = vpop.f32.mrf.mxu0
    %v6126 = vadd.f32 0.0, %v6125
    %6127 = vmatmul.f32.gmra.mxu0 %v3687
    %v6128 = vpop.f32.mrf.mxu0
    %v6129 = vadd.f32 0.0, %v6128
    %6130 = vmatmul.f32.gmra.mxu0 %v3690
    %v6131 = vpop.f32.mrf.mxu0
    %v6132 = vadd.f32 0.0, %v6131
    %6133 = vmatmul.f32.gmra.mxu0 %v3693
    %v6134 = vpop.f32.mrf.mxu0
    %v6135 = vadd.f32 0.0, %v6134
    %6136 = vmatmul.f32.gmra.mxu0 %v3696
    %v6137 = vpop.f32.mrf.mxu0
    %v6138 = vadd.f32 0.0, %v6137
    %6139 = vmatmul.f32.gmra.mxu0 %v3699
    %v6140 = vpop.f32.mrf.mxu0
    %v6141 = vadd.f32 0.0, %v6140
    %6142 = vmatmul.f32.gmra.mxu0 %v3702
    %v6143 = vpop.f32.mrf.mxu0
    %v6144 = vadd.f32 0.0, %v6143
    %6145 = vmatmul.f32.gmra.mxu0 %v3705
    %v6146 = vpop.f32.mrf.mxu0
    %v6147 = vadd.f32 0.0, %v6146
    %6148 = vmatmul.f32.gmra.mxu0 %v3708
    %v6149 = vpop.f32.mrf.mxu0
    %v6150 = vadd.f32 0.0, %v6149
    %6151 = vmatmul.f32.gmra.mxu0 %v3711
    %v6152 = vpop.f32.mrf.mxu0
    %v6153 = vadd.f32 0.0, %v6152
    %6154 = vmatmul.f32.gmra.mxu0 %v3714
    %v6155 = vpop.f32.mrf.mxu0
    %v6156 = vadd.f32 0.0, %v6155
    %6157 = vmatmul.f32.gmra.mxu0 %v3717
    %v6158 = vpop.f32.mrf.mxu0
    %v6159 = vadd.f32 0.0, %v6158
    %6160 = vmatmul.f32.gmra.mxu0 %v3720
    %v6161 = vpop.f32.mrf.mxu0
    %v6162 = vadd.f32 0.0, %v6161
    %6163 = vmatmul.f32.gmra.mxu0 %v3723
    %v6164 = vpop.f32.mrf.mxu0
    %v6165 = vadd.f32 0.0, %v6164
    %6166 = vmatmul.f32.gmra.mxu0 %v3726
    %v6167 = vpop.f32.mrf.mxu0
    %v6168 = vadd.f32 0.0, %v6167
    %6169 = vmatmul.f32.gmra.mxu0 %v3729
    %v6170 = vpop.f32.mrf.mxu0
    %v6171 = vadd.f32 0.0, %v6170
    %6172 = vmatmul.f32.gmra.mxu0 %v3732
    %v6173 = vpop.f32.mrf.mxu0
    %v6174 = vadd.f32 0.0, %v6173
    %6175 = vmatmul.f32.gmra.mxu0 %v3735
    %v6176 = vpop.f32.mrf.mxu0
    %v6177 = vadd.f32 0.0, %v6176
    %6178 = vmatmul.f32.gmra.mxu0 %v3738
    %v6179 = vpop.f32.mrf.mxu0
    %v6180 = vadd.f32 0.0, %v6179
    %6181 = vmatmul.f32.gmra.mxu0 %v3741
    %v6182 = vpop.f32.mrf.mxu0
    %v6183 = vadd.f32 0.0, %v6182
    %6184 = vmatmul.f32.gmra.mxu0 %v3744
    %v6185 = vpop.f32.mrf.mxu0
    %v6186 = vadd.f32 0.0, %v6185
    %6187 = vmatmul.f32.gmra.mxu0 %v3747
    %v6188 = vpop.f32.mrf.mxu0
    %v6189 = vadd.f32 0.0, %v6188
    %6190 = vmatmul.f32.gmra.mxu0 %v3750
    %v6191 = vpop.f32.mrf.mxu0
    %v6192 = vadd.f32 0.0, %v6191
    %6193 = vmatmul.f32.gmra.mxu0 %v3753
    %v6194 = vpop.f32.mrf.mxu0
    %v6195 = vadd.f32 0.0, %v6194
    %6196 = vmatmul.f32.gmra.mxu0 %v3756
    %v6197 = vpop.f32.mrf.mxu0
    %v6198 = vadd.f32 0.0, %v6197
    %6199 = vmatmul.f32.gmra.mxu0 %v3759
    %v6200 = vpop.f32.mrf.mxu0
    %v6201 = vadd.f32 0.0, %v6200
    %6202 = vmatmul.f32.gmra.mxu0 %v3762
    %v6203 = vpop.f32.mrf.mxu0
    %v6204 = vadd.f32 0.0, %v6203
    %6205 = vmatmul.f32.gmra.mxu0 %v3765
    %v6206 = vpop.f32.mrf.mxu0
    %v6207 = vadd.f32 0.0, %v6206
    %6208 = vmatmul.f32.gmra.mxu0 %v3768
    %v6209 = vpop.f32.mrf.mxu0
    %v6210 = vadd.f32 0.0, %v6209
    %6211 = vmatmul.f32.gmra.mxu0 %v3771
    %v6212 = vpop.f32.mrf.mxu0
    %v6213 = vadd.f32 0.0, %v6212
    %6214 = vmatmul.f32.gmra.mxu0 %v3774
    %v6215 = vpop.f32.mrf.mxu0
    %v6216 = vadd.f32 0.0, %v6215
    %6217 = vmatmul.f32.gmra.mxu0 %v3777
    %v6218 = vpop.f32.mrf.mxu0
    %v6219 = vadd.f32 0.0, %v6218
    %6220 = vmatmul.f32.gmra.mxu0 %v3780
    %v6221 = vpop.f32.mrf.mxu0
    %v6222 = vadd.f32 0.0, %v6221
    %6223 = vmatmul.f32.gmra.mxu0 %v3783
    %v6224 = vpop.f32.mrf.mxu0
    %v6225 = vadd.f32 0.0, %v6224
    %6226 = vmatmul.f32.gmra.mxu0 %v3786
    %v6227 = vpop.f32.mrf.mxu0
    %v6228 = vadd.f32 0.0, %v6227
    %6229 = vmatmul.f32.gmra.mxu0 %v3789
    %v6230 = vpop.f32.mrf.mxu0
    %v6231 = vadd.f32 0.0, %v6230
    %6232 = vmatmul.f32.gmra.mxu0 %v3792
    %v6233 = vpop.f32.mrf.mxu0
    %v6234 = vadd.f32 0.0, %v6233
    %6235 = vmatmul.f32.gmra.mxu0 %v3795
    %v6236 = vpop.f32.mrf.mxu0
    %v6237 = vadd.f32 0.0, %v6236
    %6238 = vmatmul.f32.gmra.mxu0 %v3798
    %v6239 = vpop.f32.mrf.mxu0
    %v6240 = vadd.f32 0.0, %v6239
    %6241 = vmatmul.f32.gmra.mxu0 %v3801
    %v6242 = vpop.f32.mrf.mxu0
    %v6243 = vadd.f32 0.0, %v6242
    %6244 = vmatmul.f32.gmra.mxu0 %v3804
    %v6245 = vpop.f32.mrf.mxu0
    %v6246 = vadd.f32 0.0, %v6245
    %6247 = vmatmul.f32.gmra.mxu0 %v3807
    %v6248 = vpop.f32.mrf.mxu0
    %v6249 = vadd.f32 0.0, %v6248
    %6250 = vmatmul.f32.gmra.mxu0 %v3810
    %v6251 = vpop.f32.mrf.mxu0
    %v6252 = vadd.f32 0.0, %v6251
    %6253 = vmatmul.f32.gmra.mxu0 %v3813
    %v6254 = vpop.f32.mrf.mxu0
    %v6255 = vadd.f32 0.0, %v6254
    %6256 = vmatmul.f32.gmra.mxu0 %v3816
    %v6257 = vpop.f32.mrf.mxu0
    %v6258 = vadd.f32 0.0, %v6257
    %6259 = vmatmul.f32.gmra.mxu0 %v3819
    %v6260 = vpop.f32.mrf.mxu0
    %v6261 = vadd.f32 0.0, %v6260
    %6262 = vmatmul.f32.gmra.mxu0 %v3822
    %v6263 = vpop.f32.mrf.mxu0
    %v6264 = vadd.f32 0.0, %v6263
    %6265 = vmatmul.f32.gmra.mxu0 %v3825
    %v6266 = vpop.f32.mrf.mxu0
    %v6267 = vadd.f32 0.0, %v6266
    %6268 = vmatmul.f32.gmra.mxu0 %v3828
    %v6269 = vpop.f32.mrf.mxu0
    %v6270 = vadd.f32 0.0, %v6269
    %6271 = vmatmul.f32.gmra.mxu0 %v3831
    %v6272 = vpop.f32.mrf.mxu0
    %v6273 = vadd.f32 0.0, %v6272
    %6274 = vmatmul.f32.gmra.mxu0 %v3834
    %v6275 = vpop.f32.mrf.mxu0
    %v6276 = vadd.f32 0.0, %v6275
    %6277 = vmatmul.f32.gmra.mxu0 %v3837
    %v6278 = vpop.f32.mrf.mxu0
    %v6279 = vadd.f32 0.0, %v6278
    %6280 = vmatmul.f32.gmra.mxu0 %v3840
    %v6281 = vpop.f32.mrf.mxu0
    %v6282 = vadd.f32 0.0, %v6281
    %6283 = vmatmul.f32.gmra.mxu0 %v3843
    %v6284 = vpop.f32.mrf.mxu0
    %v6285 = vadd.f32 0.0, %v6284
    %6286 = vmatmul.f32.gmra.mxu0 %v3846
    %v6287 = vpop.f32.mrf.mxu0
    %v6288 = vadd.f32 0.0, %v6287
    %6289 = vmatmul.f32.gmra.mxu0 %v3849
    %v6290 = vpop.f32.mrf.mxu0
    %v6291 = vadd.f32 0.0, %v6290
    %6292 = vmatmul.f32.gmra.mxu0 %v3852
    %v6293 = vpop.f32.mrf.mxu0
    %v6294 = vadd.f32 0.0, %v6293
    %6295 = vmatmul.f32.gmra.mxu0 %v3855
    %v6296 = vpop.f32.mrf.mxu0
    %v6297 = vadd.f32 0.0, %v6296
    %6298 = vmatmul.f32.gmra.mxu0 %v3858
    %v6299 = vpop.f32.mrf.mxu0
    %v6300 = vadd.f32 0.0, %v6299
    %6301 = vmatmul.f32.gmra.mxu0 %v3861
    %v6302 = vpop.f32.mrf.mxu0
    %v6303 = vadd.f32 0.0, %v6302
    %6304 = vmatmul.f32.gmra.mxu0 %v3864
    %v6305 = vpop.f32.mrf.mxu0
    %v6306 = vadd.f32 0.0, %v6305
    %6307 = vmatmul.f32.gmra.mxu0 %v3867
    %v6308 = vpop.f32.mrf.mxu0
    %v6309 = vadd.f32 0.0, %v6308
    %6310 = vmatmul.f32.gmra.mxu0 %v3870
    %v6311 = vpop.f32.mrf.mxu0
    %v6312 = vadd.f32 0.0, %v6311
    %6313 = vmatmul.f32.gmra.mxu0 %v3873
    %v6314 = vpop.f32.mrf.mxu0
    %v6315 = vadd.f32 0.0, %v6314
    %6316 = vmatmul.f32.gmra.mxu0 %v3876
    %v6317 = vpop.f32.mrf.mxu0
    %v6318 = vadd.f32 0.0, %v6317
    %6319 = vmatmul.f32.gmra.mxu0 %v3879
    %v6320 = vpop.f32.mrf.mxu0
    %v6321 = vadd.f32 0.0, %v6320
    %6322 = vmatmul.f32.gmra.mxu0 %v3882
    %v6323 = vpop.f32.mrf.mxu0
    %v6324 = vadd.f32 0.0, %v6323
    %6325 = vmatmul.f32.gmra.mxu0 %v3885
    %v6326 = vpop.f32.mrf.mxu0
    %v6327 = vadd.f32 0.0, %v6326
    %6328 = vmatmul.f32.gmra.mxu0 %v3888
    %v6329 = vpop.f32.mrf.mxu0
    %v6330 = vadd.f32 0.0, %v6329
    %6331 = vmatmul.f32.gmra.mxu0 %v3891
    %v6332 = vpop.f32.mrf.mxu0
    %v6333 = vadd.f32 0.0, %v6332
    %6334 = vmatmul.f32.gmra.mxu0 %v3894
    %v6335 = vpop.f32.mrf.mxu0
    %v6336 = vadd.f32 0.0, %v6335
    %6337 = vmatmul.f32.gmra.mxu0 %v3897
    %v6338 = vpop.f32.mrf.mxu0
    %v6339 = vadd.f32 0.0, %v6338
    %6340 = vmatmul.f32.gmra.mxu0 %v3900
    %v6341 = vpop.f32.mrf.mxu0
    %v6342 = vadd.f32 0.0, %v6341
    %6343 = vmatmul.f32.gmra.mxu0 %v3903
    %v6344 = vpop.f32.mrf.mxu0
    %v6345 = vadd.f32 0.0, %v6344
    %6346 = vmatmul.f32.gmra.mxu0 %v3906
    %v6347 = vpop.f32.mrf.mxu0
    %v6348 = vadd.f32 0.0, %v6347
    %6349 = vmatmul.f32.gmra.mxu0 %v3909
    %v6350 = vpop.f32.mrf.mxu0
    %v6351 = vadd.f32 0.0, %v6350
    %6352 = vmatmul.f32.gmra.mxu0 %v3912
    %v6353 = vpop.f32.mrf.mxu0
    %v6354 = vadd.f32 0.0, %v6353
    %6355 = vmatmul.f32.gmra.mxu0 %v3915
    %v6356 = vpop.f32.mrf.mxu0
    %v6357 = vadd.f32 0.0, %v6356
    %6358 = vmatmul.f32.gmra.mxu0 %v3918
    %v6359 = vpop.f32.mrf.mxu0
    %v6360 = vadd.f32 0.0, %v6359
    %6361 = vmatmul.f32.gmra.mxu0 %v3921
    %v6362 = vpop.f32.mrf.mxu0
    %v6363 = vadd.f32 0.0, %v6362
    %6364 = vmatmul.f32.gmra.mxu0 %v3924
    %v6365 = vpop.f32.mrf.mxu0
    %v6366 = vadd.f32 0.0, %v6365
    %6367 = vmatmul.f32.gmra.mxu0 %v3927
    %v6368 = vpop.f32.mrf.mxu0
    %v6369 = vadd.f32 0.0, %v6368
    %6370 = vmatmul.f32.gmra.mxu0 %v3930
    %v6371 = vpop.f32.mrf.mxu0
    %v6372 = vadd.f32 0.0, %v6371
    %6373 = vmatmul.f32.gmra.mxu0 %v3933
    %v6374 = vpop.f32.mrf.mxu0
    %v6375 = vadd.f32 0.0, %v6374
    %6376 = vmatmul.f32.gmra.mxu0 %v3936
    %v6377 = vpop.f32.mrf.mxu0
    %v6378 = vadd.f32 0.0, %v6377
    %6379 = vmatmul.f32.gmra.mxu0 %v3939
    %v6380 = vpop.f32.mrf.mxu0
    %v6381 = vadd.f32 0.0, %v6380
    %6382 = vmatmul.f32.gmra.mxu0 %v3942
    %v6383 = vpop.f32.mrf.mxu0
    %v6384 = vadd.f32 0.0, %v6383
    %6385 = vmatmul.f32.gmra.mxu0 %v3945
    %v6386 = vpop.f32.mrf.mxu0
    %v6387 = vadd.f32 0.0, %v6386
    %6388 = vmatmul.f32.gmra.mxu0 %v3948
    %v6389 = vpop.f32.mrf.mxu0
    %v6390 = vadd.f32 0.0, %v6389
    %6391 = vmatmul.f32.gmra.mxu0 %v3951
    %v6392 = vpop.f32.mrf.mxu0
    %v6393 = vadd.f32 0.0, %v6392
    %6394 = vmatmul.f32.gmra.mxu0 %v3954
    %v6395 = vpop.f32.mrf.mxu0
    %v6396 = vadd.f32 0.0, %v6395
    %6397 = vmatmul.f32.gmra.mxu0 %v3957
    %v6398 = vpop.f32.mrf.mxu0
    %v6399 = vadd.f32 0.0, %v6398
    %6400 = vmatmul.f32.gmra.mxu0 %v3960
    %v6401 = vpop.f32.mrf.mxu0
    %v6402 = vadd.f32 0.0, %v6401
    %6403 = vmatmul.f32.gmra.mxu0 %v3963
    %v6404 = vpop.f32.mrf.mxu0
    %v6405 = vadd.f32 0.0, %v6404
    %6406 = vmatmul.f32.gmra.mxu0 %v3966
    %v6407 = vpop.f32.mrf.mxu0
    %v6408 = vadd.f32 0.0, %v6407
    %6409 = vmatmul.f32.gmra.mxu0 %v3969
    %v6410 = vpop.f32.mrf.mxu0
    %v6411 = vadd.f32 0.0, %v6410
    %6412 = vmatmul.f32.gmra.mxu0 %v3972
    %v6413 = vpop.f32.mrf.mxu0
    %v6414 = vadd.f32 0.0, %v6413
    %6415 = vmatmul.f32.gmra.mxu0 %v3975
    %v6416 = vpop.f32.mrf.mxu0
    %v6417 = vadd.f32 0.0, %v6416
    %6418 = vmatmul.f32.gmra.mxu0 %v3978
    %v6419 = vpop.f32.mrf.mxu0
    %v6420 = vadd.f32 0.0, %v6419
    %6421 = vmatmul.f32.gmra.mxu0 %v3981
    %v6422 = vpop.f32.mrf.mxu0
    %v6423 = vadd.f32 0.0, %v6422
    %6424 = vmatmul.f32.gmra.mxu0 %v3984
    %v6425 = vpop.f32.mrf.mxu0
    %v6426 = vadd.f32 0.0, %v6425
    %6427 = vmatmul.f32.gmra.mxu0 %v3987
    %v6428 = vpop.f32.mrf.mxu0
    %v6429 = vadd.f32 0.0, %v6428
    %6430 = vmatmul.f32.gmra.mxu0 %v3990
    %v6431 = vpop.f32.mrf.mxu0
    %v6432 = vadd.f32 0.0, %v6431
    %6433 = vmatmul.f32.gmra.mxu0 %v3993
    %v6434 = vpop.f32.mrf.mxu0
    %v6435 = vadd.f32 0.0, %v6434
    %6436 = vmatmul.f32.gmra.mxu0 %v3996
    %v6437 = vpop.f32.mrf.mxu0
    %v6438 = vadd.f32 0.0, %v6437
    %6439 = vmatmul.f32.gmra.mxu0 %v3999
    %v6440 = vpop.f32.mrf.mxu0
    %v6441 = vadd.f32 0.0, %v6440
    %6442 = vmatmul.f32.gmra.mxu0 %v4002
    %v6443 = vpop.f32.mrf.mxu0
    %v6444 = vadd.f32 0.0, %v6443
    %6445 = vmatmul.f32.gmra.mxu0 %v4005
    %v6446 = vpop.f32.mrf.mxu0
    %v6447 = vadd.f32 0.0, %v6446
    %6448 = vmatmul.f32.gmra.mxu0 %v4008
    %v6449 = vpop.f32.mrf.mxu0
    %v6450 = vadd.f32 0.0, %v6449
    %6451 = vmatmul.f32.gmra.mxu0 %v4011
    %v6452 = vpop.f32.mrf.mxu0
    %v6453 = vadd.f32 0.0, %v6452
    %6454 = vmatmul.f32.gmra.mxu0 %v4014
    %v6455 = vpop.f32.mrf.mxu0
    %v6456 = vadd.f32 0.0, %v6455
    %6457 = vmatmul.f32.gmra.mxu0 %v4017
    %v6458 = vpop.f32.mrf.mxu0
    %v6459 = vadd.f32 0.0, %v6458
    %6460 = vmatmul.f32.gmra.mxu0 %v4020
    %v6461 = vpop.f32.mrf.mxu0
    %v6462 = vadd.f32 0.0, %v6461
    %6463 = vmatmul.f32.gmra.mxu0 %v4023
    %v6464 = vpop.f32.mrf.mxu0
    %v6465 = vadd.f32 0.0, %v6464
    %6466 = vmatmul.f32.gmra.mxu0 %v4026
    %v6467 = vpop.f32.mrf.mxu0
    %v6468 = vadd.f32 0.0, %v6467
    %6469 = vmatmul.f32.gmra.mxu0 %v4029
    %v6470 = vpop.f32.mrf.mxu0
    %v6471 = vadd.f32 0.0, %v6470
    %6472 = vmatmul.f32.gmra.mxu0 %v4032
    %v6473 = vpop.f32.mrf.mxu0
    %v6474 = vadd.f32 0.0, %v6473
    %6475 = vmatmul.f32.gmra.mxu0 %v4035
    %v6476 = vpop.f32.mrf.mxu0
    %v6477 = vadd.f32 0.0, %v6476
    %6478 = vmatmul.f32.gmra.mxu0 %v4038
    %v6479 = vpop.f32.mrf.mxu0
    %v6480 = vadd.f32 0.0, %v6479
    %6481 = vmatmul.f32.gmra.mxu0 %v4041
    %v6482 = vpop.f32.mrf.mxu0
    %v6483 = vadd.f32 0.0, %v6482
    %6484 = vmatmul.f32.gmra.mxu0 %v4044
    %v6485 = vpop.f32.mrf.mxu0
    %v6486 = vadd.f32 0.0, %v6485
    %6487 = vmatmul.f32.gmra.mxu0 %v4047
    %v6488 = vpop.f32.mrf.mxu0
    %v6489 = vadd.f32 0.0, %v6488
    %6490 = vmatmul.f32.gmra.mxu0 %v4050
    %v6491 = vpop.f32.mrf.mxu0
    %v6492 = vadd.f32 0.0, %v6491
    %6493 = vmatmul.f32.gmra.mxu0 %v4053
    %v6494 = vpop.f32.mrf.mxu0
    %v6495 = vadd.f32 0.0, %v6494
    %6496 = vmatmul.f32.gmra.mxu0 %v4056
    %v6497 = vpop.f32.mrf.mxu0
    %v6498 = vadd.f32 0.0, %v6497
    %6499 = vmatmul.f32.gmra.mxu0 %v4059
    %v6500 = vpop.f32.mrf.mxu0
    %v6501 = vadd.f32 0.0, %v6500
    %6502 = vmatmul.f32.gmra.mxu0 %v4062
    %v6503 = vpop.f32.mrf.mxu0
    %v6504 = vadd.f32 0.0, %v6503
    %6505 = vmatmul.f32.gmra.mxu0 %v4065
    %v6506 = vpop.f32.mrf.mxu0
    %v6507 = vadd.f32 0.0, %v6506
    %6508 = vmatmul.f32.gmra.mxu0 %v4068
    %v6509 = vpop.f32.mrf.mxu0
    %v6510 = vadd.f32 0.0, %v6509
    %6511 = vmatmul.f32.gmra.mxu0 %v4071
    %v6512 = vpop.f32.mrf.mxu0
    %v6513 = vadd.f32 0.0, %v6512
    %6514 = vmatmul.f32.gmra.mxu0 %v4074
    %v6515 = vpop.f32.mrf.mxu0
    %v6516 = vadd.f32 0.0, %v6515
    %6517 = vmatmul.f32.gmra.mxu0 %v4077
    %v6518 = vpop.f32.mrf.mxu0
    %v6519 = vadd.f32 0.0, %v6518
    %6520 = vmatmul.f32.gmra.mxu0 %v4080
    %v6521 = vpop.f32.mrf.mxu0
    %v6522 = vadd.f32 0.0, %v6521
    %6523 = vmatmul.f32.gmra.mxu0 %v4083
    %v6524 = vpop.f32.mrf.mxu0
    %v6525 = vadd.f32 0.0, %v6524
    %6526 = vmatmul.f32.gmra.mxu0 %v4086
    %v6527 = vpop.f32.mrf.mxu0
    %v6528 = vadd.f32 0.0, %v6527
    %6529 = vmatmul.f32.gmra.mxu0 %v4089
    %v6530 = vpop.f32.mrf.mxu0
    %v6531 = vadd.f32 0.0, %v6530
    %6532 = vmatmul.f32.gmra.mxu0 %v4092
    %v6533 = vpop.f32.mrf.mxu0
    %v6534 = vadd.f32 0.0, %v6533
    %6535 = vmatmul.f32.gmra.mxu0 %v4095
    %v6536 = vpop.f32.mrf.mxu0
    %v6537 = vadd.f32 0.0, %v6536
    %6538 = vmatmul.f32.gmra.mxu0 %v4098
    %v6539 = vpop.f32.mrf.mxu0
    %v6540 = vadd.f32 0.0, %v6539
    %6541 = vmatmul.f32.gmra.mxu0 %v4101
    %v6542 = vpop.f32.mrf.mxu0
    %v6543 = vadd.f32 0.0, %v6542
    %6544 = vmatmul.f32.gmra.mxu0 %v4104
    %v6545 = vpop.f32.mrf.mxu0
    %v6546 = vadd.f32 0.0, %v6545
    %6547 = vmatmul.f32.gmra.mxu0 %v4107
    %v6548 = vpop.f32.mrf.mxu0
    %v6549 = vadd.f32 0.0, %v6548
    %6550 = vmatmul.f32.gmra.mxu0 %v4110
    %v6551 = vpop.f32.mrf.mxu0
    %v6552 = vadd.f32 0.0, %v6551
    %6553 = vmatmul.f32.gmra.mxu0 %v4113
    %v6554 = vpop.f32.mrf.mxu0
    %v6555 = vadd.f32 0.0, %v6554
    %6556 = vmatmul.f32.gmra.mxu0 %v4116
    %v6557 = vpop.f32.mrf.mxu0
    %v6558 = vadd.f32 0.0, %v6557
    %6559 = vmatmul.f32.gmra.mxu0 %v4119
    %v6560 = vpop.f32.mrf.mxu0
    %v6561 = vadd.f32 0.0, %v6560
    %6562 = vmatmul.f32.gmra.mxu0 %v4122
    %v6563 = vpop.f32.mrf.mxu0
    %v6564 = vadd.f32 0.0, %v6563
    %6565 = vmatmul.f32.gmra.mxu0 %v4125
    %v6566 = vpop.f32.mrf.mxu0
    %v6567 = vadd.f32 0.0, %v6566
    %6568 = vmatmul.f32.gmra.mxu0 %v4128
    %v6569 = vpop.f32.mrf.mxu0
    %v6570 = vadd.f32 0.0, %v6569
    %6571 = vmatmul.f32.gmra.mxu0 %v4131
    %v6572 = vpop.f32.mrf.mxu0
    %v6573 = vadd.f32 0.0, %v6572
    %6574 = vmatmul.f32.gmra.mxu0 %v4134
    %v6575 = vpop.f32.mrf.mxu0
    %v6576 = vadd.f32 0.0, %v6575
    %6577 = vmatmul.f32.gmra.mxu0 %v4137
    %v6578 = vpop.f32.mrf.mxu0
    %v6579 = vadd.f32 0.0, %v6578
    %6580 = vmatmul.f32.gmra.mxu0 %v4140
    %v6581 = vpop.f32.mrf.mxu0
    %v6582 = vadd.f32 0.0, %v6581
    %6583 = vmatmul.f32.gmra.mxu0 %v4143
    %v6584 = vpop.f32.mrf.mxu0
    %v6585 = vadd.f32 0.0, %v6584
    %6586 = vmatmul.f32.gmra.mxu0 %v4146
    %v6587 = vpop.f32.mrf.mxu0
    %v6588 = vadd.f32 0.0, %v6587
    %6589 = vmatmul.f32.gmra.mxu0 %v4149
    %v6590 = vpop.f32.mrf.mxu0
    %v6591 = vadd.f32 0.0, %v6590
    %6592 = vmatmul.f32.gmra.mxu0 %v4152
    %v6593 = vpop.f32.mrf.mxu0
    %v6594 = vadd.f32 0.0, %v6593
    %6595 = vmatmul.f32.gmra.mxu0 %v4155
    %v6596 = vpop.f32.mrf.mxu0
    %v6597 = vadd.f32 0.0, %v6596
    %6598 = vmatmul.f32.gmra.mxu0 %v4158
    %v6599 = vpop.f32.mrf.mxu0
    %v6600 = vadd.f32 0.0, %v6599
    %6601 = vmatmul.f32.gmra.mxu0 %v4161
    %v6602 = vpop.f32.mrf.mxu0
    %v6603 = vadd.f32 0.0, %v6602
    %6604 = vmatmul.f32.gmra.mxu0 %v4164
    %v6605 = vpop.f32.mrf.mxu0
    %v6606 = vadd.f32 0.0, %v6605
    %6607 = vmatmul.f32.gmra.mxu0 %v4167
    %v6608 = vpop.f32.mrf.mxu0
    %v6609 = vadd.f32 0.0, %v6608
    %6610 = vmatmul.f32.gmra.mxu0 %v4170
    %v6611 = vpop.f32.mrf.mxu0
    %v6612 = vadd.f32 0.0, %v6611
    %6613 = vmatmul.f32.gmra.mxu0 %v4173
    %v6614 = vpop.f32.mrf.mxu0
    %v6615 = vadd.f32 0.0, %v6614
    %6616 = vmatmul.f32.gmra.mxu0 %v4176
    %v6617 = vpop.f32.mrf.mxu0
    %v6618 = vadd.f32 0.0, %v6617
    %6619 = vmatmul.f32.gmra.mxu0 %v4179
    %v6620 = vpop.f32.mrf.mxu0
    %v6621 = vadd.f32 0.0, %v6620
    %6622 = vmatmul.f32.gmra.mxu0 %v4182
    %v6623 = vpop.f32.mrf.mxu0
    %v6624 = vadd.f32 0.0, %v6623
    %6625 = vmatmul.f32.gmra.mxu0 %v4185
    %v6626 = vpop.f32.mrf.mxu0
    %v6627 = vadd.f32 0.0, %v6626
    %6628 = vmatmul.f32.gmra.mxu0 %v4188
    %v6629 = vpop.f32.mrf.mxu0
    %v6630 = vadd.f32 0.0, %v6629
    %6631 = vmatmul.f32.gmra.mxu0 %v4191
    %v6632 = vpop.f32.mrf.mxu0
    %v6633 = vadd.f32 0.0, %v6632
    %6634 = vmatmul.f32.gmra.mxu0 %v4194
    %v6635 = vpop.f32.mrf.mxu0
    %v6636 = vadd.f32 0.0, %v6635
    %6637 = vmatmul.f32.gmra.mxu0 %v4197
    %v6638 = vpop.f32.mrf.mxu0
    %v6639 = vadd.f32 0.0, %v6638
    %6640 = vmatmul.f32.gmra.mxu0 %v4200
    %v6641 = vpop.f32.mrf.mxu0
    %v6642 = vadd.f32 0.0, %v6641
    %6643 = vmatmul.f32.gmra.mxu0 %v4203
    %v6644 = vpop.f32.mrf.mxu0
    %v6645 = vadd.f32 0.0, %v6644
    %6646 = vmatmul.f32.gmra.mxu0 %v4206
    %v6647 = vpop.f32.mrf.mxu0
    %v6648 = vadd.f32 0.0, %v6647
    %6649 = vmatmul.f32.gmra.mxu0 %v4209
    %v6650 = vpop.f32.mrf.mxu0
    %v6651 = vadd.f32 0.0, %v6650
    %6652 = vmatmul.f32.gmra.mxu0 %v4212
    %v6653 = vpop.f32.mrf.mxu0
    %v6654 = vadd.f32 0.0, %v6653
    %6655 = vmatmul.f32.gmra.mxu0 %v4215
    %v6656 = vpop.f32.mrf.mxu0
    %v6657 = vadd.f32 0.0, %v6656
    %6658 = vmatmul.f32.gmra.mxu0 %v4218
    %v6659 = vpop.f32.mrf.mxu0
    %v6660 = vadd.f32 0.0, %v6659
    %6661 = vmatmul.f32.gmra.mxu0 %v4221
    %v6662 = vpop.f32.mrf.mxu0
    %v6663 = vadd.f32 0.0, %v6662
    %6664 = vmatmul.f32.gmra.mxu0 %v4224
    %v6665 = vpop.f32.mrf.mxu0
    %v6666 = vadd.f32 0.0, %v6665
    %6667 = vmatmul.f32.gmra.mxu0 %v4227
    %v6668 = vpop.f32.mrf.mxu0
    %v6669 = vadd.f32 0.0, %v6668
    %6670 = vmatmul.f32.gmra.mxu0 %v4230
    %v6671 = vpop.f32.mrf.mxu0
    %v6672 = vadd.f32 0.0, %v6671
    %6673 = vmatmul.f32.gmra.mxu0 %v4233
    %v6674 = vpop.f32.mrf.mxu0
    %v6675 = vadd.f32 0.0, %v6674
    %6676 = vmatmul.f32.gmra.mxu0 %v4236
    %v6677 = vpop.f32.mrf.mxu0
    %v6678 = vadd.f32 0.0, %v6677
    %6679 = vmatmul.f32.gmra.mxu0 %v4239
    %v6680 = vpop.f32.mrf.mxu0
    %v6681 = vadd.f32 0.0, %v6680
    %6682 = vmatmul.f32.gmra.mxu0 %v4242
    %v6683 = vpop.f32.mrf.mxu0
    %v6684 = vadd.f32 0.0, %v6683
    %6685 = vmatmul.f32.gmra.mxu0 %v4245
    %v6686 = vpop.f32.mrf.mxu0
    %v6687 = vadd.f32 0.0, %v6686
    %6688 = vmatmul.f32.gmra.mxu0 %v4248
    %v6689 = vpop.f32.mrf.mxu0
    %v6690 = vadd.f32 0.0, %v6689
    %6691 = vmatmul.f32.gmra.mxu0 %v4251
    %v6692 = vpop.f32.mrf.mxu0
    %v6693 = vadd.f32 0.0, %v6692
    %6694 = vmatmul.f32.gmra.mxu0 %v4254
    %v6695 = vpop.f32.mrf.mxu0
    %v6696 = vadd.f32 0.0, %v6695
    %6697 = vmatmul.f32.gmra.mxu0 %v4257
    %v6698 = vpop.f32.mrf.mxu0
    %v6699 = vadd.f32 0.0, %v6698
    %6700 = vmatmul.f32.gmra.mxu0 %v4260
    %v6701 = vpop.f32.mrf.mxu0
    %v6702 = vadd.f32 0.0, %v6701
    %6703 = vmatmul.f32.gmra.mxu0 %v4263
    %v6704 = vpop.f32.mrf.mxu0
    %v6705 = vadd.f32 0.0, %v6704
    %6706 = vmatmul.f32.gmra.mxu0 %v4266
    %v6707 = vpop.f32.mrf.mxu0
    %v6708 = vadd.f32 0.0, %v6707
    %6709 = vmatmul.f32.gmra.mxu0 %v4269
    %v6710 = vpop.f32.mrf.mxu0
    %v6711 = vadd.f32 0.0, %v6710
    %6712 = vmatmul.f32.gmra.mxu0 %v4272
    %v6713 = vpop.f32.mrf.mxu0
    %v6714 = vadd.f32 0.0, %v6713
    %6715 = vmatmul.f32.gmra.mxu0 %v4275
    %v6716 = vpop.f32.mrf.mxu0
    %v6717 = vadd.f32 0.0, %v6716
    %6718 = vmatmul.f32.gmra.mxu0 %v4278
    %v6719 = vpop.f32.mrf.mxu0
    %v6720 = vadd.f32 0.0, %v6719
    %6721 = vmatmul.f32.gmra.mxu0 %v4281
    %v6722 = vpop.f32.mrf.mxu0
    %v6723 = vadd.f32 0.0, %v6722
    %6724 = vmatmul.f32.gmra.mxu0 %v4284
    %v6725 = vpop.f32.mrf.mxu0
    %v6726 = vadd.f32 0.0, %v6725
    %6727 = vmatmul.f32.gmra.mxu0 %v4287
    %v6728 = vpop.f32.mrf.mxu0
    %v6729 = vadd.f32 0.0, %v6728
    %6730 = vmatmul.f32.gmra.mxu0 %v4290
    %v6731 = vpop.f32.mrf.mxu0
    %v6732 = vadd.f32 0.0, %v6731
    %6733 = vmatmul.f32.gmra.mxu0 %v4293
    %v6734 = vpop.f32.mrf.mxu0
    %v6735 = vadd.f32 0.0, %v6734
    %6736 = vmatmul.f32.gmra.mxu0 %v4296
    %v6737 = vpop.f32.mrf.mxu0
    %v6738 = vadd.f32 0.0, %v6737
    %6739 = vmatmul.f32.gmra.mxu0 %v4299
    %v6740 = vpop.f32.mrf.mxu0
    %v6741 = vadd.f32 0.0, %v6740
    %6742 = vmatmul.f32.gmra.mxu0 %v4302
    %v6743 = vpop.f32.mrf.mxu0
    %v6744 = vadd.f32 0.0, %v6743
    %6745 = vmatmul.f32.gmra.mxu0 %v4305
    %v6746 = vpop.f32.mrf.mxu0
    %v6747 = vadd.f32 0.0, %v6746
    %6748 = vmatmul.f32.gmra.mxu0 %v4308
    %v6749 = vpop.f32.mrf.mxu0
    %v6750 = vadd.f32 0.0, %v6749
    %6751 = vmatmul.f32.gmra.mxu0 %v4311
    %v6752 = vpop.f32.mrf.mxu0
    %v6753 = vadd.f32 0.0, %v6752
    %6754 = vmatmul.f32.gmra.mxu0 %v4314
    %v6755 = vpop.f32.mrf.mxu0
    %v6756 = vadd.f32 0.0, %v6755
    %6757 = vmatmul.f32.gmra.mxu0 %v4317
    %v6758 = vpop.f32.mrf.mxu0
    %v6759 = vadd.f32 0.0, %v6758
    %6760 = vmatmul.f32.gmra.mxu0 %v4320
    %v6761 = vpop.f32.mrf.mxu0
    %v6762 = vadd.f32 0.0, %v6761
    %6763 = vmatmul.f32.gmra.mxu0 %v4323
    %v6764 = vpop.f32.mrf.mxu0
    %v6765 = vadd.f32 0.0, %v6764
    %6766 = vmatmul.f32.gmra.mxu0 %v4326
    %v6767 = vpop.f32.mrf.mxu0
    %v6768 = vadd.f32 0.0, %v6767
    %6769 = vmatmul.f32.gmra.mxu0 %v4329
    %v6770 = vpop.f32.mrf.mxu0
    %v6771 = vadd.f32 0.0, %v6770
    %6772 = vmatmul.f32.gmra.mxu0 %v4332
    %v6773 = vpop.f32.mrf.mxu0
    %v6774 = vadd.f32 0.0, %v6773
    %6775 = vmatmul.f32.gmra.mxu0 %v4335
    %v6776 = vpop.f32.mrf.mxu0
    %v6777 = vadd.f32 0.0, %v6776
    %6778 = vmatmul.f32.gmra.mxu0 %v4338
    %v6779 = vpop.f32.mrf.mxu0
    %v6780 = vadd.f32 0.0, %v6779
    %6781 = vmatmul.f32.gmra.mxu0 %v4341
    %v6782 = vpop.f32.mrf.mxu0
    %v6783 = vadd.f32 0.0, %v6782
    %6784 = vmatmul.f32.gmra.mxu0 %v4344
    %v6785 = vpop.f32.mrf.mxu0
    %v6786 = vadd.f32 0.0, %v6785
    %6787 = vmatmul.f32.gmra.mxu0 %v4347
    %v6788 = vpop.f32.mrf.mxu0
    %v6789 = vadd.f32 0.0, %v6788
    %6790 = vmatmul.f32.gmra.mxu0 %v4350
    %v6791 = vpop.f32.mrf.mxu0
    %v6792 = vadd.f32 0.0, %v6791
    %6793 = vmatmul.f32.gmra.mxu0 %v4353
    %v6794 = vpop.f32.mrf.mxu0
    %v6795 = vadd.f32 0.0, %v6794
    %6796 = vmatmul.f32.gmra.mxu0 %v4356
    %v6797 = vpop.f32.mrf.mxu0
    %v6798 = vadd.f32 0.0, %v6797
    %6799 = vmatmul.f32.gmra.mxu0 %v4359
    %v6800 = vpop.f32.mrf.mxu0
    %v6801 = vadd.f32 0.0, %v6800
    %6802 = vmatmul.f32.gmra.mxu0 %v4362
    %v6803 = vpop.f32.mrf.mxu0
    %v6804 = vadd.f32 0.0, %v6803
    %6805 = vmatmul.f32.gmra.mxu0 %v4365
    %v6806 = vpop.f32.mrf.mxu0
    %v6807 = vadd.f32 0.0, %v6806
    %6808 = vmatmul.f32.gmra.mxu0 %v4368
    %v6809 = vpop.f32.mrf.mxu0
    %v6810 = vadd.f32 0.0, %v6809
    %6811 = vmatmul.f32.gmra.mxu0 %v4371
    %v6812 = vpop.f32.mrf.mxu0
    %v6813 = vadd.f32 0.0, %v6812
    %6814 = vmatmul.f32.gmra.mxu0 %v4374
    %v6815 = vpop.f32.mrf.mxu0
    %v6816 = vadd.f32 0.0, %v6815
    %6817 = vmatmul.f32.gmra.mxu0 %v4377
    %v6818 = vpop.f32.mrf.mxu0
    %v6819 = vadd.f32 0.0, %v6818
    %6820 = vmatmul.f32.gmra.mxu0 %v4380
    %v6821 = vpop.f32.mrf.mxu0
    %v6822 = vadd.f32 0.0, %v6821
    %6823 = vmatmul.f32.gmra.mxu0 %v4383
    %v6824 = vpop.f32.mrf.mxu0
    %v6825 = vadd.f32 0.0, %v6824
    %6826 = vmatmul.f32.gmra.mxu0 %v4386
    %v6827 = vpop.f32.mrf.mxu0
    %v6828 = vadd.f32 0.0, %v6827
    %6829 = vmatmul.f32.gmra.mxu0 %v4389
    %v6830 = vpop.f32.mrf.mxu0
    %v6831 = vadd.f32 0.0, %v6830
    %6832 = vmatmul.f32.gmra.mxu0 %v4392
    %v6833 = vpop.f32.mrf.mxu0
    %v6834 = vadd.f32 0.0, %v6833
    %6835 = vmatmul.f32.gmra.mxu0 %v4395
    %v6836 = vpop.f32.mrf.mxu0
    %v6837 = vadd.f32 0.0, %v6836
    %6838 = vmatmul.f32.gmra.mxu0 %v4398
    %v6839 = vpop.f32.mrf.mxu0
    %v6840 = vadd.f32 0.0, %v6839
    %6841 = vmatmul.f32.gmra.mxu0 %v4401
    %v6842 = vpop.f32.mrf.mxu0
    %v6843 = vadd.f32 0.0, %v6842
    %6844 = vmatmul.f32.gmra.mxu0 %v4404
    %v6845 = vpop.f32.mrf.mxu0
    %v6846 = vadd.f32 0.0, %v6845
    %6847 = vmatmul.f32.gmra.mxu0 %v4407
    %v6848 = vpop.f32.mrf.mxu0
    %v6849 = vadd.f32 0.0, %v6848
    %6850 = vmatmul.f32.gmra.mxu0 %v4410
    %v6851 = vpop.f32.mrf.mxu0
    %v6852 = vadd.f32 0.0, %v6851
    %6853 = vmatmul.f32.gmra.mxu0 %v4413
    %v6854 = vpop.f32.mrf.mxu0
    %v6855 = vadd.f32 0.0, %v6854
    %6856 = vmatmul.f32.gmra.mxu0 %v4416
    %v6857 = vpop.f32.mrf.mxu0
    %v6858 = vadd.f32 0.0, %v6857
    %6859 = vmatmul.f32.gmra.mxu0 %v4419
    %v6860 = vpop.f32.mrf.mxu0
    %v6861 = vadd.f32 0.0, %v6860
    %6862 = vmatmul.f32.gmra.mxu0 %v4422
    %v6863 = vpop.f32.mrf.mxu0
    %v6864 = vadd.f32 0.0, %v6863
    %6865 = vmatmul.f32.gmra.mxu0 %v4425
    %v6866 = vpop.f32.mrf.mxu0
    %v6867 = vadd.f32 0.0, %v6866
    %6868 = vmatmul.f32.gmra.mxu0 %v4428
    %v6869 = vpop.f32.mrf.mxu0
    %v6870 = vadd.f32 0.0, %v6869
    %6871 = vmatmul.f32.gmra.mxu0 %v4431
    %v6872 = vpop.f32.mrf.mxu0
    %v6873 = vadd.f32 0.0, %v6872
    %6874 = vmatmul.f32.gmra.mxu0 %v4434
    %v6875 = vpop.f32.mrf.mxu0
    %v6876 = vadd.f32 0.0, %v6875
    %6877 = vmatmul.f32.gmra.mxu0 %v4437
    %v6878 = vpop.f32.mrf.mxu0
    %v6879 = vadd.f32 0.0, %v6878
    %6880 = vmatmul.f32.gmra.mxu0 %v4440
    %v6881 = vpop.f32.mrf.mxu0
    %v6882 = vadd.f32 0.0, %v6881
    %6883 = vmatmul.f32.gmra.mxu0 %v4443
    %v6884 = vpop.f32.mrf.mxu0
    %v6885 = vadd.f32 0.0, %v6884
    %6886 = vmatmul.f32.gmra.mxu0 %v4446
    %v6887 = vpop.f32.mrf.mxu0
    %v6888 = vadd.f32 0.0, %v6887
    %6889 = vmatmul.f32.gmra.mxu0 %v4449
    %v6890 = vpop.f32.mrf.mxu0
    %v6891 = vadd.f32 0.0, %v6890
    %6892 = vmatmul.f32.gmra.mxu0 %v4452
    %v6893 = vpop.f32.mrf.mxu0
    %v6894 = vadd.f32 0.0, %v6893
    %6895 = vmatmul.f32.gmra.mxu0 %v4455
    %v6896 = vpop.f32.mrf.mxu0
    %v6897 = vadd.f32 0.0, %v6896
    %6898 = vmatmul.f32.gmra.mxu0 %v4458
    %v6899 = vpop.f32.mrf.mxu0
    %v6900 = vadd.f32 0.0, %v6899
    %6901 = vmatmul.f32.gmra.mxu0 %v4461
    %v6902 = vpop.f32.mrf.mxu0
    %v6903 = vadd.f32 0.0, %v6902
    %6904 = vmatmul.f32.gmra.mxu0 %v4464
    %v6905 = vpop.f32.mrf.mxu0
    %v6906 = vadd.f32 0.0, %v6905
    %6907 = vmatmul.f32.gmra.mxu0 %v4467
    %v6908 = vpop.f32.mrf.mxu0
    %v6909 = vadd.f32 0.0, %v6908
    %6910 = vmatmul.f32.gmra.mxu0 %v4470
    %v6911 = vpop.f32.mrf.mxu0
    %v6912 = vadd.f32 0.0, %v6911
    %6913 = vmatmul.f32.gmra.mxu0 %v4473
    %v6914 = vpop.f32.mrf.mxu0
    %v6915 = vadd.f32 0.0, %v6914
    %6916 = vmatmul.f32.gmra.mxu0 %v4476
    %v6917 = vpop.f32.mrf.mxu0
    %v6918 = vadd.f32 0.0, %v6917
    %6919 = vmatmul.f32.gmra.mxu0 %v4479
    %v6920 = vpop.f32.mrf.mxu0
    %v6921 = vadd.f32 0.0, %v6920
    %6922 = vmatmul.f32.gmra.mxu0 %v4482
    %v6923 = vpop.f32.mrf.mxu0
    %v6924 = vadd.f32 0.0, %v6923
    %6925 = vmatmul.f32.gmra.mxu0 %v4485
    %v6926 = vpop.f32.mrf.mxu0
    %v6927 = vadd.f32 0.0, %v6926
    %6928 = vmatmul.f32.gmra.mxu0 %v4488
    %v6929 = vpop.f32.mrf.mxu0
    %v6930 = vadd.f32 0.0, %v6929
    %6931 = vmatmul.f32.gmra.mxu0 %v5713
    %v6932 = vpop.f32.mrf.mxu0
    %v6933 = vadd.f32 0.0, %v6932
    %6934 = vmatmul.f32.gmra.mxu0 %v5716
    %v6935 = vpop.f32.mrf.mxu0
    %v6936 = vadd.f32 0.0, %v6935
    %6937 = vmatmul.f32.gmra.mxu0 %v5719
    %v6938 = vpop.f32.mrf.mxu0
    %v6939 = vadd.f32 0.0, %v6938
    %6940 = vmatmul.f32.gmra.mxu0 %v5722
    %v6941 = vpop.f32.mrf.mxu0
    %v6942 = vadd.f32 0.0, %v6941
    %6943 = vmatmul.f32.gmra.mxu0 %v5725
    %v6944 = vpop.f32.mrf.mxu0
    %v6945 = vadd.f32 0.0, %v6944
    %6946 = vmatmul.f32.gmra.mxu0 %v5728
    %v6947 = vpop.f32.mrf.mxu0
    %v6948 = vadd.f32 0.0, %v6947
    %6949 = vmatmul.f32.gmra.mxu0 %v5731
    %v6950 = vpop.f32.mrf.mxu0
    %v6951 = vadd.f32 0.0, %v6950
    %6952 = vmatmul.f32.gmra.mxu0 %v5734
    %v6953 = vpop.f32.mrf.mxu0
    %v6954 = vadd.f32 0.0, %v6953
    %6955 = vmatmul.f32.gmra.mxu0 %v5737
    %v6956 = vpop.f32.mrf.mxu0
    %v6957 = vadd.f32 0.0, %v6956
    %6958 = vmatmul.f32.gmra.mxu0 %v5740
    %v6959 = vpop.f32.mrf.mxu0
    %v6960 = vadd.f32 0.0, %v6959
    %6961 = vmatmul.f32.gmra.mxu0 %v5743
    %v6962 = vpop.f32.mrf.mxu0
    %v6963 = vadd.f32 0.0, %v6962
    %6964 = vmatmul.f32.gmra.mxu0 %v5746
    %v6965 = vpop.f32.mrf.mxu0
    %v6966 = vadd.f32 0.0, %v6965
    %6967 = vmatmul.f32.gmra.mxu0 %v5749
    %v6968 = vpop.f32.mrf.mxu0
    %v6969 = vadd.f32 0.0, %v6968
    %6970 = vmatmul.f32.gmra.mxu0 %v5752
    %v6971 = vpop.f32.mrf.mxu0
    %v6972 = vadd.f32 0.0, %v6971
    %6973 = vmatmul.f32.gmra.mxu0 %v5755
    %v6974 = vpop.f32.mrf.mxu0
    %v6975 = vadd.f32 0.0, %v6974
    %6976 = vmatmul.f32.gmra.mxu0 %v5758
    %v6977 = vpop.f32.mrf.mxu0
    %v6978 = vadd.f32 0.0, %v6977
    %6979 = vdwg.mxu0
    %v6980 = vadd.f32 %v4511, %v5781
    %v6981 = vadd.f32 %v4514, %v5784
    %v6982 = vadd.f32 %v4517, %v5787
    %v6983 = vadd.f32 %v4520, %v5790
    %v6984 = vadd.f32 %v4523, %v5793
    %v6985 = vadd.f32 %v4526, %v5796
    %v6986 = vadd.f32 %v4529, %v5799
    %v6987 = vadd.f32 %v4532, %v5802
    %v6988 = vadd.f32 %v4535, %v5805
    %v6989 = vadd.f32 %v4538, %v5808
    %v6990 = vadd.f32 %v4541, %v5811
    %v6991 = vadd.f32 %v4544, %v5814
    %v6992 = vadd.f32 %v4547, %v5817
    %v6993 = vadd.f32 %v4550, %v5820
    %v6994 = vadd.f32 %v4553, %v5823
    %v6995 = vadd.f32 %v4556, %v5826
    %v6996 = vadd.f32 %v4559, %v5829
    %v6997 = vadd.f32 %v4562, %v5832
    %v6998 = vadd.f32 %v4565, %v5835
    %v6999 = vadd.f32 %v4568, %v5838
    %v7000 = vadd.f32 %v4571, %v5841
    %v7001 = vadd.f32 %v4574, %v5844
    %v7002 = vadd.f32 %v4577, %v5847
    %v7003 = vadd.f32 %v4580, %v5850
    %v7004 = vadd.f32 %v4583, %v5853
    %v7005 = vadd.f32 %v4586, %v5856
    %v7006 = vadd.f32 %v4589, %v5859
    %v7007 = vadd.f32 %v4592, %v5862
    %v7008 = vadd.f32 %v4595, %v5865
    %v7009 = vadd.f32 %v4598, %v5868
    %v7010 = vadd.f32 %v4601, %v5871
    %v7011 = vadd.f32 %v4604, %v5874
    %v7012 = vadd.f32 %v4607, %v5877
    %v7013 = vadd.f32 %v4610, %v5880
    %v7014 = vadd.f32 %v4613, %v5883
    %v7015 = vadd.f32 %v4616, %v5886
    %v7016 = vadd.f32 %v4619, %v5889
    %v7017 = vadd.f32 %v4622, %v5892
    %v7018 = vadd.f32 %v4625, %v5895
    %v7019 = vadd.f32 %v4628, %v5898
    %v7020 = vadd.f32 %v4631, %v5901
    %v7021 = vadd.f32 %v4634, %v5904
    %v7022 = vadd.f32 %v4637, %v5907
    %v7023 = vadd.f32 %v4640, %v5910
    %v7024 = vadd.f32 %v4643, %v5913
    %v7025 = vadd.f32 %v4646, %v5916
    %v7026 = vadd.f32 %v4649, %v5919
    %v7027 = vadd.f32 %v4652, %v5922
    %v7028 = vadd.f32 %v4655, %v5925
    %v7029 = vadd.f32 %v4658, %v5928
    %v7030 = vadd.f32 %v4661, %v5931
    %v7031 = vadd.f32 %v4664, %v5934
    %v7032 = vadd.f32 %v4667, %v5937
    %v7033 = vadd.f32 %v4670, %v5940
    %v7034 = vadd.f32 %v4673, %v5943
    %v7035 = vadd.f32 %v4676, %v5946
    %v7036 = vadd.f32 %v4679, %v5949
    %v7037 = vadd.f32 %v4682, %v5952
    %v7038 = vadd.f32 %v4685, %v5955
    %v7039 = vadd.f32 %v4688, %v5958
    %v7040 = vadd.f32 %v4691, %v5961
    %v7041 = vadd.f32 %v4694, %v5964
    %v7042 = vadd.f32 %v4697, %v5967
    %v7043 = vadd.f32 %v4700, %v5970
    %v7044 = vadd.f32 %v4703, %v5973
    %v7045 = vadd.f32 %v4706, %v5976
    %v7046 = vadd.f32 %v4709, %v5979
    %v7047 = vadd.f32 %v4712, %v5982
    %v7048 = vadd.f32 %v4715, %v5985
    %v7049 = vadd.f32 %v4718, %v5988
    %v7050 = vadd.f32 %v4721, %v5991
    %v7051 = vadd.f32 %v4724, %v5994
    %v7052 = vadd.f32 %v4727, %v5997
    %v7053 = vadd.f32 %v4730, %v6000
    %v7054 = vadd.f32 %v4733, %v6003
    %v7055 = vadd.f32 %v4736, %v6006
    %v7056 = vadd.f32 %v4739, %v6009
    %v7057 = vadd.f32 %v4742, %v6012
    %v7058 = vadd.f32 %v4745, %v6015
    %v7059 = vadd.f32 %v4748, %v6018
    %v7060 = vadd.f32 %v4751, %v6021
    %v7061 = vadd.f32 %v4754, %v6024
    %v7062 = vadd.f32 %v4757, %v6027
    %v7063 = vadd.f32 %v4760, %v6030
    %v7064 = vadd.f32 %v4763, %v6033
    %v7065 = vadd.f32 %v4766, %v6036
    %v7066 = vadd.f32 %v4769, %v6039
    %v7067 = vadd.f32 %v4772, %v6042
    %v7068 = vadd.f32 %v4775, %v6045
    %v7069 = vadd.f32 %v4778, %v6048
    %v7070 = vadd.f32 %v4781, %v6051
    %v7071 = vadd.f32 %v4784, %v6054
    %v7072 = vadd.f32 %v4787, %v6057
    %v7073 = vadd.f32 %v4790, %v6060
    %v7074 = vadd.f32 %v4793, %v6063
    %v7075 = vadd.f32 %v4796, %v6066
    %v7076 = vadd.f32 %v4799, %v6069
    %v7077 = vadd.f32 %v4802, %v6072
    %v7078 = vadd.f32 %v4805, %v6075
    %v7079 = vadd.f32 %v4808, %v6078
    %v7080 = vadd.f32 %v4811, %v6081
    %v7081 = vadd.f32 %v4814, %v6084
    %v7082 = vadd.f32 %v4817, %v6087
    %v7083 = vadd.f32 %v4820, %v6090
    %v7084 = vadd.f32 %v4823, %v6093
    %v7085 = vadd.f32 %v4826, %v6096
    %v7086 = vadd.f32 %v4829, %v6099
    %v7087 = vadd.f32 %v4832, %v6102
    %v7088 = vadd.f32 %v4835, %v6105
    %v7089 = vadd.f32 %v4838, %v6108
    %v7090 = vadd.f32 %v4841, %v6111
    %v7091 = vadd.f32 %v4844, %v6114
    %v7092 = vadd.f32 %v4847, %v6117
    %v7093 = vadd.f32 %v4850, %v6120
    %v7094 = vadd.f32 %v4853, %v6123
    %v7095 = vadd.f32 %v4856, %v6126
    %v7096 = vadd.f32 %v4859, %v6129
    %v7097 = vadd.f32 %v4862, %v6132
    %v7098 = vadd.f32 %v4865, %v6135
    %v7099 = vadd.f32 %v4868, %v6138
    %v7100 = vadd.f32 %v4871, %v6141
    %v7101 = vadd.f32 %v4874, %v6144
    %v7102 = vadd.f32 %v4877, %v6147
    %v7103 = vadd.f32 %v4880, %v6150
    %v7104 = vadd.f32 %v4883, %v6153
    %v7105 = vadd.f32 %v4886, %v6156
    %v7106 = vadd.f32 %v4889, %v6159
    %v7107 = vadd.f32 %v4892, %v6162
    %v7108 = vadd.f32 %v4895, %v6165
    %v7109 = vadd.f32 %v4898, %v6168
    %v7110 = vadd.f32 %v4901, %v6171
    %v7111 = vadd.f32 %v4904, %v6174
    %v7112 = vadd.f32 %v4907, %v6177
    %v7113 = vadd.f32 %v4910, %v6180
    %v7114 = vadd.f32 %v4913, %v6183
    %v7115 = vadd.f32 %v4916, %v6186
    %v7116 = vadd.f32 %v4919, %v6189
    %v7117 = vadd.f32 %v4922, %v6192
    %v7118 = vadd.f32 %v4925, %v6195
    %v7119 = vadd.f32 %v4928, %v6198
    %v7120 = vadd.f32 %v4931, %v6201
    %v7121 = vadd.f32 %v4934, %v6204
    %v7122 = vadd.f32 %v4937, %v6207
    %v7123 = vadd.f32 %v4940, %v6210
    %v7124 = vadd.f32 %v4943, %v6213
    %v7125 = vadd.f32 %v4946, %v6216
    %v7126 = vadd.f32 %v4949, %v6219
    %v7127 = vadd.f32 %v4952, %v6222
    %v7128 = vadd.f32 %v4955, %v6225
    %v7129 = vadd.f32 %v4958, %v6228
    %v7130 = vadd.f32 %v4961, %v6231
    %v7131 = vadd.f32 %v4964, %v6234
    %v7132 = vadd.f32 %v4967, %v6237
    %v7133 = vadd.f32 %v4970, %v6240
    %v7134 = vadd.f32 %v4973, %v6243
    %v7135 = vadd.f32 %v4976, %v6246
    %v7136 = vadd.f32 %v4979, %v6249
    %v7137 = vadd.f32 %v4982, %v6252
    %v7138 = vadd.f32 %v4985, %v6255
    %v7139 = vadd.f32 %v4988, %v6258
    %v7140 = vadd.f32 %v4991, %v6261
    %v7141 = vadd.f32 %v4994, %v6264
    %v7142 = vadd.f32 %v4997, %v6267
    %v7143 = vadd.f32 %v5000, %v6270
    %v7144 = vadd.f32 %v5003, %v6273
    %v7145 = vadd.f32 %v5006, %v6276
    %v7146 = vadd.f32 %v5009, %v6279
    %v7147 = vadd.f32 %v5012, %v6282
    %v7148 = vadd.f32 %v5015, %v6285
    %v7149 = vadd.f32 %v5018, %v6288
    %v7150 = vadd.f32 %v5021, %v6291
    %v7151 = vadd.f32 %v5024, %v6294
    %v7152 = vadd.f32 %v5027, %v6297
    %v7153 = vadd.f32 %v5030, %v6300
    %v7154 = vadd.f32 %v5033, %v6303
    %v7155 = vadd.f32 %v5036, %v6306
    %v7156 = vadd.f32 %v5039, %v6309
    %v7157 = vadd.f32 %v5042, %v6312
    %v7158 = vadd.f32 %v5045, %v6315
    %v7159 = vadd.f32 %v5048, %v6318
    %v7160 = vadd.f32 %v5051, %v6321
    %v7161 = vadd.f32 %v5054, %v6324
    %v7162 = vadd.f32 %v5057, %v6327
    %v7163 = vadd.f32 %v5060, %v6330
    %v7164 = vadd.f32 %v5063, %v6333
    %v7165 = vadd.f32 %v5066, %v6336
    %v7166 = vadd.f32 %v5069, %v6339
    %v7167 = vadd.f32 %v5072, %v6342
    %v7168 = vadd.f32 %v5075, %v6345
    %v7169 = vadd.f32 %v5078, %v6348
    %v7170 = vadd.f32 %v5081, %v6351
    %v7171 = vadd.f32 %v5084, %v6354
    %v7172 = vadd.f32 %v5087, %v6357
    %v7173 = vadd.f32 %v5090, %v6360
    %v7174 = vadd.f32 %v5093, %v6363
    %v7175 = vadd.f32 %v5096, %v6366
    %v7176 = vadd.f32 %v5099, %v6369
    %v7177 = vadd.f32 %v5102, %v6372
    %v7178 = vadd.f32 %v5105, %v6375
    %v7179 = vadd.f32 %v5108, %v6378
    %v7180 = vadd.f32 %v5111, %v6381
    %v7181 = vadd.f32 %v5114, %v6384
    %v7182 = vadd.f32 %v5117, %v6387
    %v7183 = vadd.f32 %v5120, %v6390
    %v7184 = vadd.f32 %v5123, %v6393
    %v7185 = vadd.f32 %v5126, %v6396
    %v7186 = vadd.f32 %v5129, %v6399
    %v7187 = vadd.f32 %v5132, %v6402
    %v7188 = vadd.f32 %v5135, %v6405
    %v7189 = vadd.f32 %v5138, %v6408
    %v7190 = vadd.f32 %v5141, %v6411
    %v7191 = vadd.f32 %v5144, %v6414
    %v7192 = vadd.f32 %v5147, %v6417
    %v7193 = vadd.f32 %v5150, %v6420
    %v7194 = vadd.f32 %v5153, %v6423
    %v7195 = vadd.f32 %v5156, %v6426
    %v7196 = vadd.f32 %v5159, %v6429
    %v7197 = vadd.f32 %v5162, %v6432
    %v7198 = vadd.f32 %v5165, %v6435
    %v7199 = vadd.f32 %v5168, %v6438
    %v7200 = vadd.f32 %v5171, %v6441
    %v7201 = vadd.f32 %v5174, %v6444
    %v7202 = vadd.f32 %v5177, %v6447
    %v7203 = vadd.f32 %v5180, %v6450
    %v7204 = vadd.f32 %v5183, %v6453
    %v7205 = vadd.f32 %v5186, %v6456
    %v7206 = vadd.f32 %v5189, %v6459
    %v7207 = vadd.f32 %v5192, %v6462
    %v7208 = vadd.f32 %v5195, %v6465
    %v7209 = vadd.f32 %v5198, %v6468
    %v7210 = vadd.f32 %v5201, %v6471
    %v7211 = vadd.f32 %v5204, %v6474
    %v7212 = vadd.f32 %v5207, %v6477
    %v7213 = vadd.f32 %v5210, %v6480
    %v7214 = vadd.f32 %v5213, %v6483
    %v7215 = vadd.f32 %v5216, %v6486
    %v7216 = vadd.f32 %v5219, %v6489
    %v7217 = vadd.f32 %v5222, %v6492
    %v7218 = vadd.f32 %v5225, %v6495
    %v7219 = vadd.f32 %v5228, %v6498
    %v7220 = vadd.f32 %v5231, %v6501
    %v7221 = vadd.f32 %v5234, %v6504
    %v7222 = vadd.f32 %v5237, %v6507
    %v7223 = vadd.f32 %v5240, %v6510
    %v7224 = vadd.f32 %v5243, %v6513
    %v7225 = vadd.f32 %v5246, %v6516
    %v7226 = vadd.f32 %v5249, %v6519
    %v7227 = vadd.f32 %v5252, %v6522
    %v7228 = vadd.f32 %v5255, %v6525
    %v7229 = vadd.f32 %v5258, %v6528
    %v7230 = vadd.f32 %v5261, %v6531
    %v7231 = vadd.f32 %v5264, %v6534
    %v7232 = vadd.f32 %v5267, %v6537
    %v7233 = vadd.f32 %v5270, %v6540
    %v7234 = vadd.f32 %v5273, %v6543
    %v7235 = vadd.f32 %v5276, %v6546
    %v7236 = vadd.f32 %v5279, %v6549
    %v7237 = vadd.f32 %v5282, %v6552
    %v7238 = vadd.f32 %v5285, %v6555
    %v7239 = vadd.f32 %v5288, %v6558
    %v7240 = vadd.f32 %v5291, %v6561
    %v7241 = vadd.f32 %v5294, %v6564
    %v7242 = vadd.f32 %v5297, %v6567
    %v7243 = vadd.f32 %v5300, %v6570
    %v7244 = vadd.f32 %v5303, %v6573
    %v7245 = vadd.f32 %v5306, %v6576
    %v7246 = vadd.f32 %v5309, %v6579
    %v7247 = vadd.f32 %v5312, %v6582
    %v7248 = vadd.f32 %v5315, %v6585
    %v7249 = vadd.f32 %v5318, %v6588
    %v7250 = vadd.f32 %v5321, %v6591
    %v7251 = vadd.f32 %v5324, %v6594
    %v7252 = vadd.f32 %v5327, %v6597
    %v7253 = vadd.f32 %v5330, %v6600
    %v7254 = vadd.f32 %v5333, %v6603
    %v7255 = vadd.f32 %v5336, %v6606
    %v7256 = vadd.f32 %v5339, %v6609
    %v7257 = vadd.f32 %v5342, %v6612
    %v7258 = vadd.f32 %v5345, %v6615
    %v7259 = vadd.f32 %v5348, %v6618
    %v7260 = vadd.f32 %v5351, %v6621
    %v7261 = vadd.f32 %v5354, %v6624
    %v7262 = vadd.f32 %v5357, %v6627
    %v7263 = vadd.f32 %v5360, %v6630
    %v7264 = vadd.f32 %v5363, %v6633
    %v7265 = vadd.f32 %v5366, %v6636
    %v7266 = vadd.f32 %v5369, %v6639
    %v7267 = vadd.f32 %v5372, %v6642
    %v7268 = vadd.f32 %v5375, %v6645
    %v7269 = vadd.f32 %v5378, %v6648
    %v7270 = vadd.f32 %v5381, %v6651
    %v7271 = vadd.f32 %v5384, %v6654
    %v7272 = vadd.f32 %v5387, %v6657
    %v7273 = vadd.f32 %v5390, %v6660
    %v7274 = vadd.f32 %v5393, %v6663
    %v7275 = vadd.f32 %v5396, %v6666
    %v7276 = vadd.f32 %v5399, %v6669
    %v7277 = vadd.f32 %v5402, %v6672
    %v7278 = vadd.f32 %v5405, %v6675
    %v7279 = vadd.f32 %v5408, %v6678
    %v7280 = vadd.f32 %v5411, %v6681
    %v7281 = vadd.f32 %v5414, %v6684
    %v7282 = vadd.f32 %v5417, %v6687
    %v7283 = vadd.f32 %v5420, %v6690
    %v7284 = vadd.f32 %v5423, %v6693
    %v7285 = vadd.f32 %v5426, %v6696
    %v7286 = vadd.f32 %v5429, %v6699
    %v7287 = vadd.f32 %v5432, %v6702
    %v7288 = vadd.f32 %v5435, %v6705
    %v7289 = vadd.f32 %v5438, %v6708
    %v7290 = vadd.f32 %v5441, %v6711
    %v7291 = vadd.f32 %v5444, %v6714
    %v7292 = vadd.f32 %v5447, %v6717
    %v7293 = vadd.f32 %v5450, %v6720
    %v7294 = vadd.f32 %v5453, %v6723
    %v7295 = vadd.f32 %v5456, %v6726
    %v7296 = vadd.f32 %v5459, %v6729
    %v7297 = vadd.f32 %v5462, %v6732
    %v7298 = vadd.f32 %v5465, %v6735
    %v7299 = vadd.f32 %v5468, %v6738
    %v7300 = vadd.f32 %v5471, %v6741
    %v7301 = vadd.f32 %v5474, %v6744
    %v7302 = vadd.f32 %v5477, %v6747
    %v7303 = vadd.f32 %v5480, %v6750
    %v7304 = vadd.f32 %v5483, %v6753
    %v7305 = vadd.f32 %v5486, %v6756
    %v7306 = vadd.f32 %v5489, %v6759
    %v7307 = vadd.f32 %v5492, %v6762
    %v7308 = vadd.f32 %v5495, %v6765
    %v7309 = vadd.f32 %v5498, %v6768
    %v7310 = vadd.f32 %v5501, %v6771
    %v7311 = vadd.f32 %v5504, %v6774
    %v7312 = vadd.f32 %v5507, %v6777
    %v7313 = vadd.f32 %v5510, %v6780
    %v7314 = vadd.f32 %v5513, %v6783
    %v7315 = vadd.f32 %v5516, %v6786
    %v7316 = vadd.f32 %v5519, %v6789
    %v7317 = vadd.f32 %v5522, %v6792
    %v7318 = vadd.f32 %v5525, %v6795
    %v7319 = vadd.f32 %v5528, %v6798
    %v7320 = vadd.f32 %v5531, %v6801
    %v7321 = vadd.f32 %v5534, %v6804
    %v7322 = vadd.f32 %v5537, %v6807
    %v7323 = vadd.f32 %v5540, %v6810
    %v7324 = vadd.f32 %v5543, %v6813
    %v7325 = vadd.f32 %v5546, %v6816
    %v7326 = vadd.f32 %v5549, %v6819
    %v7327 = vadd.f32 %v5552, %v6822
    %v7328 = vadd.f32 %v5555, %v6825
    %v7329 = vadd.f32 %v5558, %v6828
    %v7330 = vadd.f32 %v5561, %v6831
    %v7331 = vadd.f32 %v5564, %v6834
    %v7332 = vadd.f32 %v5567, %v6837
    %v7333 = vadd.f32 %v5570, %v6840
    %v7334 = vadd.f32 %v5573, %v6843
    %v7335 = vadd.f32 %v5576, %v6846
    %v7336 = vadd.f32 %v5579, %v6849
    %v7337 = vadd.f32 %v5582, %v6852
    %v7338 = vadd.f32 %v5585, %v6855
    %v7339 = vadd.f32 %v5588, %v6858
    %v7340 = vadd.f32 %v5591, %v6861
    %v7341 = vadd.f32 %v5594, %v6864
    %v7342 = vadd.f32 %v5597, %v6867
    %v7343 = vadd.f32 %v5600, %v6870
    %v7344 = vadd.f32 %v5603, %v6873
    %v7345 = vadd.f32 %v5606, %v6876
    %v7346 = vadd.f32 %v5609, %v6879
    %v7347 = vadd.f32 %v5612, %v6882
    %v7348 = vadd.f32 %v5615, %v6885
    %v7349 = vadd.f32 %v5618, %v6888
    %v7350 = vadd.f32 %v5621, %v6891
    %v7351 = vadd.f32 %v5624, %v6894
    %v7352 = vadd.f32 %v5627, %v6897
    %v7353 = vadd.f32 %v5630, %v6900
    %v7354 = vadd.f32 %v5633, %v6903
    %v7355 = vadd.f32 %v5636, %v6906
    %v7356 = vadd.f32 %v5639, %v6909
    %v7357 = vadd.f32 %v5642, %v6912
    %v7358 = vadd.f32 %v5645, %v6915
    %v7359 = vadd.f32 %v5648, %v6918
    %v7360 = vadd.f32 %v5651, %v6921
    %v7361 = vadd.f32 %v5654, %v6924
    %v7362 = vadd.f32 %v5657, %v6927
    %v7363 = vadd.f32 %v5660, %v6930
    %v7364 = vadd.f32 %v5663, %v6933
    %v7365 = vadd.f32 %v5666, %v6936
    %v7366 = vadd.f32 %v5669, %v6939
    %v7367 = vadd.f32 %v5672, %v6942
    %v7368 = vadd.f32 %v5675, %v6945
    %v7369 = vadd.f32 %v5678, %v6948
    %v7370 = vadd.f32 %v5681, %v6951
    %v7371 = vadd.f32 %v5684, %v6954
    %v7372 = vadd.f32 %v5687, %v6957
    %v7373 = vadd.f32 %v5690, %v6960
    %v7374 = vadd.f32 %v5693, %v6963
    %v7375 = vadd.f32 %v5696, %v6966
    %v7376 = vadd.f32 %v5699, %v6969
    %v7377 = vadd.f32 %v5702, %v6972
    %v7378 = vadd.f32 %v5705, %v6975
    %v7379 = vadd.f32 %v5708, %v6978
    %v7380 = vld [vmem:[%s2] sm:$0x1]
    %v7382 = vperm.slane %v7380, 0
    %v7384 = vadd.f32 %v6980, %v7382
    %v7385 = vadd.f32 %v6981, %v7382
    %v7386 = vadd.f32 %v6982, %v7382
    %v7387 = vadd.f32 %v6983, %v7382
    %v7388 = vadd.f32 %v6984, %v7382
    %v7389 = vadd.f32 %v6985, %v7382
    %v7390 = vadd.f32 %v6986, %v7382
    %v7391 = vadd.f32 %v6987, %v7382
    %v7392 = vadd.f32 %v6988, %v7382
    %v7393 = vadd.f32 %v6989, %v7382
    %v7394 = vadd.f32 %v6990, %v7382
    %v7395 = vadd.f32 %v6991, %v7382
    %v7396 = vadd.f32 %v6992, %v7382
    %v7397 = vadd.f32 %v6993, %v7382
    %v7398 = vadd.f32 %v6994, %v7382
    %v7399 = vadd.f32 %v6995, %v7382
    %v7400 = vadd.f32 %v6996, %v7382
    %v7401 = vadd.f32 %v6997, %v7382
    %v7402 = vadd.f32 %v6998, %v7382
    %v7403 = vadd.f32 %v6999, %v7382
    %v7404 = vadd.f32 %v7000, %v7382
    %v7405 = vadd.f32 %v7001, %v7382
    %v7406 = vadd.f32 %v7002, %v7382
    %v7407 = vadd.f32 %v7003, %v7382
    %v7408 = vadd.f32 %v7004, %v7382
    %v7409 = vadd.f32 %v7005, %v7382
    %v7410 = vadd.f32 %v7006, %v7382
    %v7411 = vadd.f32 %v7007, %v7382
    %v7412 = vadd.f32 %v7008, %v7382
    %v7413 = vadd.f32 %v7009, %v7382
    %v7414 = vadd.f32 %v7010, %v7382
    %v7415 = vadd.f32 %v7011, %v7382
    %v7416 = vadd.f32 %v7012, %v7382
    %v7417 = vadd.f32 %v7013, %v7382
    %v7418 = vadd.f32 %v7014, %v7382
    %v7419 = vadd.f32 %v7015, %v7382
    %v7420 = vadd.f32 %v7016, %v7382
    %v7421 = vadd.f32 %v7017, %v7382
    %v7422 = vadd.f32 %v7018, %v7382
    %v7423 = vadd.f32 %v7019, %v7382
    %v7424 = vadd.f32 %v7020, %v7382
    %v7425 = vadd.f32 %v7021, %v7382
    %v7426 = vadd.f32 %v7022, %v7382
    %v7427 = vadd.f32 %v7023, %v7382
    %v7428 = vadd.f32 %v7024, %v7382
    %v7429 = vadd.f32 %v7025, %v7382
    %v7430 = vadd.f32 %v7026, %v7382
    %v7431 = vadd.f32 %v7027, %v7382
    %v7432 = vadd.f32 %v7028, %v7382
    %v7433 = vadd.f32 %v7029, %v7382
    %v7434 = vadd.f32 %v7030, %v7382
    %v7435 = vadd.f32 %v7031, %v7382
    %v7436 = vadd.f32 %v7032, %v7382
    %v7437 = vadd.f32 %v7033, %v7382
    %v7438 = vadd.f32 %v7034, %v7382
    %v7439 = vadd.f32 %v7035, %v7382
    %v7440 = vadd.f32 %v7036, %v7382
    %v7441 = vadd.f32 %v7037, %v7382
    %v7442 = vadd.f32 %v7038, %v7382
    %v7443 = vadd.f32 %v7039, %v7382
    %v7444 = vadd.f32 %v7040, %v7382
    %v7445 = vadd.f32 %v7041, %v7382
    %v7446 = vadd.f32 %v7042, %v7382
    %v7447 = vadd.f32 %v7043, %v7382
    %v7448 = vadd.f32 %v7044, %v7382
    %v7449 = vadd.f32 %v7045, %v7382
    %v7450 = vadd.f32 %v7046, %v7382
    %v7451 = vadd.f32 %v7047, %v7382
    %v7452 = vadd.f32 %v7048, %v7382
    %v7453 = vadd.f32 %v7049, %v7382
    %v7454 = vadd.f32 %v7050, %v7382
    %v7455 = vadd.f32 %v7051, %v7382
    %v7456 = vadd.f32 %v7052, %v7382
    %v7457 = vadd.f32 %v7053, %v7382
    %v7458 = vadd.f32 %v7054, %v7382
    %v7459 = vadd.f32 %v7055, %v7382
    %v7460 = vadd.f32 %v7056, %v7382
    %v7461 = vadd.f32 %v7057, %v7382
    %v7462 = vadd.f32 %v7058, %v7382
    %v7463 = vadd.f32 %v7059, %v7382
    %v7464 = vadd.f32 %v7060, %v7382
    %v7465 = vadd.f32 %v7061, %v7382
    %v7466 = vadd.f32 %v7062, %v7382
    %v7467 = vadd.f32 %v7063, %v7382
    %v7468 = vadd.f32 %v7064, %v7382
    %v7469 = vadd.f32 %v7065, %v7382
    %v7470 = vadd.f32 %v7066, %v7382
    %v7471 = vadd.f32 %v7067, %v7382
    %v7472 = vadd.f32 %v7068, %v7382
    %v7473 = vadd.f32 %v7069, %v7382
    %v7474 = vadd.f32 %v7070, %v7382
    %v7475 = vadd.f32 %v7071, %v7382
    %v7476 = vadd.f32 %v7072, %v7382
    %v7477 = vadd.f32 %v7073, %v7382
    %v7478 = vadd.f32 %v7074, %v7382
    %v7479 = vadd.f32 %v7075, %v7382
    %v7480 = vadd.f32 %v7076, %v7382
    %v7481 = vadd.f32 %v7077, %v7382
    %v7482 = vadd.f32 %v7078, %v7382
    %v7483 = vadd.f32 %v7079, %v7382
    %v7484 = vadd.f32 %v7080, %v7382
    %v7485 = vadd.f32 %v7081, %v7382
    %v7486 = vadd.f32 %v7082, %v7382
    %v7487 = vadd.f32 %v7083, %v7382
    %v7488 = vadd.f32 %v7084, %v7382
    %v7489 = vadd.f32 %v7085, %v7382
    %v7490 = vadd.f32 %v7086, %v7382
    %v7491 = vadd.f32 %v7087, %v7382
    %v7492 = vadd.f32 %v7088, %v7382
    %v7493 = vadd.f32 %v7089, %v7382
    %v7494 = vadd.f32 %v7090, %v7382
    %v7495 = vadd.f32 %v7091, %v7382
    %v7496 = vadd.f32 %v7092, %v7382
    %v7497 = vadd.f32 %v7093, %v7382
    %v7498 = vadd.f32 %v7094, %v7382
    %v7499 = vadd.f32 %v7095, %v7382
    %v7500 = vadd.f32 %v7096, %v7382
    %v7501 = vadd.f32 %v7097, %v7382
    %v7502 = vadd.f32 %v7098, %v7382
    %v7503 = vadd.f32 %v7099, %v7382
    %v7504 = vadd.f32 %v7100, %v7382
    %v7505 = vadd.f32 %v7101, %v7382
    %v7506 = vadd.f32 %v7102, %v7382
    %v7507 = vadd.f32 %v7103, %v7382
    %v7508 = vadd.f32 %v7104, %v7382
    %v7509 = vadd.f32 %v7105, %v7382
    %v7510 = vadd.f32 %v7106, %v7382
    %v7511 = vadd.f32 %v7107, %v7382
    %v7512 = vadd.f32 %v7108, %v7382
    %v7513 = vadd.f32 %v7109, %v7382
    %v7514 = vadd.f32 %v7110, %v7382
    %v7515 = vadd.f32 %v7111, %v7382
    %v7516 = vadd.f32 %v7112, %v7382
    %v7517 = vadd.f32 %v7113, %v7382
    %v7518 = vadd.f32 %v7114, %v7382
    %v7519 = vadd.f32 %v7115, %v7382
    %v7520 = vadd.f32 %v7116, %v7382
    %v7521 = vadd.f32 %v7117, %v7382
    %v7522 = vadd.f32 %v7118, %v7382
    %v7523 = vadd.f32 %v7119, %v7382
    %v7524 = vadd.f32 %v7120, %v7382
    %v7525 = vadd.f32 %v7121, %v7382
    %v7526 = vadd.f32 %v7122, %v7382
    %v7527 = vadd.f32 %v7123, %v7382
    %v7528 = vadd.f32 %v7124, %v7382
    %v7529 = vadd.f32 %v7125, %v7382
    %v7530 = vadd.f32 %v7126, %v7382
    %v7531 = vadd.f32 %v7127, %v7382
    %v7532 = vadd.f32 %v7128, %v7382
    %v7533 = vadd.f32 %v7129, %v7382
    %v7534 = vadd.f32 %v7130, %v7382
    %v7535 = vadd.f32 %v7131, %v7382
    %v7536 = vadd.f32 %v7132, %v7382
    %v7537 = vadd.f32 %v7133, %v7382
    %v7538 = vadd.f32 %v7134, %v7382
    %v7539 = vadd.f32 %v7135, %v7382
    %v7540 = vadd.f32 %v7136, %v7382
    %v7541 = vadd.f32 %v7137, %v7382
    %v7542 = vadd.f32 %v7138, %v7382
    %v7543 = vadd.f32 %v7139, %v7382
    %v7544 = vadd.f32 %v7140, %v7382
    %v7545 = vadd.f32 %v7141, %v7382
    %v7546 = vadd.f32 %v7142, %v7382
    %v7547 = vadd.f32 %v7143, %v7382
    %v7548 = vadd.f32 %v7144, %v7382
    %v7549 = vadd.f32 %v7145, %v7382
    %v7550 = vadd.f32 %v7146, %v7382
    %v7551 = vadd.f32 %v7147, %v7382
    %v7552 = vadd.f32 %v7148, %v7382
    %v7553 = vadd.f32 %v7149, %v7382
    %v7554 = vadd.f32 %v7150, %v7382
    %v7555 = vadd.f32 %v7151, %v7382
    %v7556 = vadd.f32 %v7152, %v7382
    %v7557 = vadd.f32 %v7153, %v7382
    %v7558 = vadd.f32 %v7154, %v7382
    %v7559 = vadd.f32 %v7155, %v7382
    %v7560 = vadd.f32 %v7156, %v7382
    %v7561 = vadd.f32 %v7157, %v7382
    %v7562 = vadd.f32 %v7158, %v7382
    %v7563 = vadd.f32 %v7159, %v7382
    %v7564 = vadd.f32 %v7160, %v7382
    %v7565 = vadd.f32 %v7161, %v7382
    %v7566 = vadd.f32 %v7162, %v7382
    %v7567 = vadd.f32 %v7163, %v7382
    %v7568 = vadd.f32 %v7164, %v7382
    %v7569 = vadd.f32 %v7165, %v7382
    %v7570 = vadd.f32 %v7166, %v7382
    %v7571 = vadd.f32 %v7167, %v7382
    %v7572 = vadd.f32 %v7168, %v7382
    %v7573 = vadd.f32 %v7169, %v7382
    %v7574 = vadd.f32 %v7170, %v7382
    %v7575 = vadd.f32 %v7171, %v7382
    %v7576 = vadd.f32 %v7172, %v7382
    %v7577 = vadd.f32 %v7173, %v7382
    %v7578 = vadd.f32 %v7174, %v7382
    %v7579 = vadd.f32 %v7175, %v7382
    %v7580 = vadd.f32 %v7176, %v7382
    %v7581 = vadd.f32 %v7177, %v7382
    %v7582 = vadd.f32 %v7178, %v7382
    %v7583 = vadd.f32 %v7179, %v7382
    %v7584 = vadd.f32 %v7180, %v7382
    %v7585 = vadd.f32 %v7181, %v7382
    %v7586 = vadd.f32 %v7182, %v7382
    %v7587 = vadd.f32 %v7183, %v7382
    %v7588 = vadd.f32 %v7184, %v7382
    %v7589 = vadd.f32 %v7185, %v7382
    %v7590 = vadd.f32 %v7186, %v7382
    %v7591 = vadd.f32 %v7187, %v7382
    %v7592 = vadd.f32 %v7188, %v7382
    %v7593 = vadd.f32 %v7189, %v7382
    %v7594 = vadd.f32 %v7190, %v7382
    %v7595 = vadd.f32 %v7191, %v7382
    %v7596 = vadd.f32 %v7192, %v7382
    %v7597 = vadd.f32 %v7193, %v7382
    %v7598 = vadd.f32 %v7194, %v7382
    %v7599 = vadd.f32 %v7195, %v7382
    %v7600 = vadd.f32 %v7196, %v7382
    %v7601 = vadd.f32 %v7197, %v7382
    %v7602 = vadd.f32 %v7198, %v7382
    %v7603 = vadd.f32 %v7199, %v7382
    %v7604 = vadd.f32 %v7200, %v7382
    %v7605 = vadd.f32 %v7201, %v7382
    %v7606 = vadd.f32 %v7202, %v7382
    %v7607 = vadd.f32 %v7203, %v7382
    %v7608 = vadd.f32 %v7204, %v7382
    %v7609 = vadd.f32 %v7205, %v7382
    %v7610 = vadd.f32 %v7206, %v7382
    %v7611 = vadd.f32 %v7207, %v7382
    %v7612 = vadd.f32 %v7208, %v7382
    %v7613 = vadd.f32 %v7209, %v7382
    %v7614 = vadd.f32 %v7210, %v7382
    %v7615 = vadd.f32 %v7211, %v7382
    %v7616 = vadd.f32 %v7212, %v7382
    %v7617 = vadd.f32 %v7213, %v7382
    %v7618 = vadd.f32 %v7214, %v7382
    %v7619 = vadd.f32 %v7215, %v7382
    %v7620 = vadd.f32 %v7216, %v7382
    %v7621 = vadd.f32 %v7217, %v7382
    %v7622 = vadd.f32 %v7218, %v7382
    %v7623 = vadd.f32 %v7219, %v7382
    %v7624 = vadd.f32 %v7220, %v7382
    %v7625 = vadd.f32 %v7221, %v7382
    %v7626 = vadd.f32 %v7222, %v7382
    %v7627 = vadd.f32 %v7223, %v7382
    %v7628 = vadd.f32 %v7224, %v7382
    %v7629 = vadd.f32 %v7225, %v7382
    %v7630 = vadd.f32 %v7226, %v7382
    %v7631 = vadd.f32 %v7227, %v7382
    %v7632 = vadd.f32 %v7228, %v7382
    %v7633 = vadd.f32 %v7229, %v7382
    %v7634 = vadd.f32 %v7230, %v7382
    %v7635 = vadd.f32 %v7231, %v7382
    %v7636 = vadd.f32 %v7232, %v7382
    %v7637 = vadd.f32 %v7233, %v7382
    %v7638 = vadd.f32 %v7234, %v7382
    %v7639 = vadd.f32 %v7235, %v7382
    %v7640 = vadd.f32 %v7236, %v7382
    %v7641 = vadd.f32 %v7237, %v7382
    %v7642 = vadd.f32 %v7238, %v7382
    %v7643 = vadd.f32 %v7239, %v7382
    %v7644 = vadd.f32 %v7240, %v7382
    %v7645 = vadd.f32 %v7241, %v7382
    %v7646 = vadd.f32 %v7242, %v7382
    %v7647 = vadd.f32 %v7243, %v7382
    %v7648 = vadd.f32 %v7244, %v7382
    %v7649 = vadd.f32 %v7245, %v7382
    %v7650 = vadd.f32 %v7246, %v7382
    %v7651 = vadd.f32 %v7247, %v7382
    %v7652 = vadd.f32 %v7248, %v7382
    %v7653 = vadd.f32 %v7249, %v7382
    %v7654 = vadd.f32 %v7250, %v7382
    %v7655 = vadd.f32 %v7251, %v7382
    %v7656 = vadd.f32 %v7252, %v7382
    %v7657 = vadd.f32 %v7253, %v7382
    %v7658 = vadd.f32 %v7254, %v7382
    %v7659 = vadd.f32 %v7255, %v7382
    %v7660 = vadd.f32 %v7256, %v7382
    %v7661 = vadd.f32 %v7257, %v7382
    %v7662 = vadd.f32 %v7258, %v7382
    %v7663 = vadd.f32 %v7259, %v7382
    %v7664 = vadd.f32 %v7260, %v7382
    %v7665 = vadd.f32 %v7261, %v7382
    %v7666 = vadd.f32 %v7262, %v7382
    %v7667 = vadd.f32 %v7263, %v7382
    %v7668 = vadd.f32 %v7264, %v7382
    %v7669 = vadd.f32 %v7265, %v7382
    %v7670 = vadd.f32 %v7266, %v7382
    %v7671 = vadd.f32 %v7267, %v7382
    %v7672 = vadd.f32 %v7268, %v7382
    %v7673 = vadd.f32 %v7269, %v7382
    %v7674 = vadd.f32 %v7270, %v7382
    %v7675 = vadd.f32 %v7271, %v7382
    %v7676 = vadd.f32 %v7272, %v7382
    %v7677 = vadd.f32 %v7273, %v7382
    %v7678 = vadd.f32 %v7274, %v7382
    %v7679 = vadd.f32 %v7275, %v7382
    %v7680 = vadd.f32 %v7276, %v7382
    %v7681 = vadd.f32 %v7277, %v7382
    %v7682 = vadd.f32 %v7278, %v7382
    %v7683 = vadd.f32 %v7279, %v7382
    %v7684 = vadd.f32 %v7280, %v7382
    %v7685 = vadd.f32 %v7281, %v7382
    %v7686 = vadd.f32 %v7282, %v7382
    %v7687 = vadd.f32 %v7283, %v7382
    %v7688 = vadd.f32 %v7284, %v7382
    %v7689 = vadd.f32 %v7285, %v7382
    %v7690 = vadd.f32 %v7286, %v7382
    %v7691 = vadd.f32 %v7287, %v7382
    %v7692 = vadd.f32 %v7288, %v7382
    %v7693 = vadd.f32 %v7289, %v7382
    %v7694 = vadd.f32 %v7290, %v7382
    %v7695 = vadd.f32 %v7291, %v7382
    %v7696 = vadd.f32 %v7292, %v7382
    %v7697 = vadd.f32 %v7293, %v7382
    %v7698 = vadd.f32 %v7294, %v7382
    %v7699 = vadd.f32 %v7295, %v7382
    %v7700 = vadd.f32 %v7296, %v7382
    %v7701 = vadd.f32 %v7297, %v7382
    %v7702 = vadd.f32 %v7298, %v7382
    %v7703 = vadd.f32 %v7299, %v7382
    %v7704 = vadd.f32 %v7300, %v7382
    %v7705 = vadd.f32 %v7301, %v7382
    %v7706 = vadd.f32 %v7302, %v7382
    %v7707 = vadd.f32 %v7303, %v7382
    %v7708 = vadd.f32 %v7304, %v7382
    %v7709 = vadd.f32 %v7305, %v7382
    %v7710 = vadd.f32 %v7306, %v7382
    %v7711 = vadd.f32 %v7307, %v7382
    %v7712 = vadd.f32 %v7308, %v7382
    %v7713 = vadd.f32 %v7309, %v7382
    %v7714 = vadd.f32 %v7310, %v7382
    %v7715 = vadd.f32 %v7311, %v7382
    %v7716 = vadd.f32 %v7312, %v7382
    %v7717 = vadd.f32 %v7313, %v7382
    %v7718 = vadd.f32 %v7314, %v7382
    %v7719 = vadd.f32 %v7315, %v7382
    %v7720 = vadd.f32 %v7316, %v7382
    %v7721 = vadd.f32 %v7317, %v7382
    %v7722 = vadd.f32 %v7318, %v7382
    %v7723 = vadd.f32 %v7319, %v7382
    %v7724 = vadd.f32 %v7320, %v7382
    %v7725 = vadd.f32 %v7321, %v7382
    %v7726 = vadd.f32 %v7322, %v7382
    %v7727 = vadd.f32 %v7323, %v7382
    %v7728 = vadd.f32 %v7324, %v7382
    %v7729 = vadd.f32 %v7325, %v7382
    %v7730 = vadd.f32 %v7326, %v7382
    %v7731 = vadd.f32 %v7327, %v7382
    %v7732 = vadd.f32 %v7328, %v7382
    %v7733 = vadd.f32 %v7329, %v7382
    %v7734 = vadd.f32 %v7330, %v7382
    %v7735 = vadd.f32 %v7331, %v7382
    %v7736 = vadd.f32 %v7332, %v7382
    %v7737 = vadd.f32 %v7333, %v7382
    %v7738 = vadd.f32 %v7334, %v7382
    %v7739 = vadd.f32 %v7335, %v7382
    %v7740 = vadd.f32 %v7336, %v7382
    %v7741 = vadd.f32 %v7337, %v7382
    %v7742 = vadd.f32 %v7338, %v7382
    %v7743 = vadd.f32 %v7339, %v7382
    %v7744 = vadd.f32 %v7340, %v7382
    %v7745 = vadd.f32 %v7341, %v7382
    %v7746 = vadd.f32 %v7342, %v7382
    %v7747 = vadd.f32 %v7343, %v7382
    %v7748 = vadd.f32 %v7344, %v7382
    %v7749 = vadd.f32 %v7345, %v7382
    %v7750 = vadd.f32 %v7346, %v7382
    %v7751 = vadd.f32 %v7347, %v7382
    %v7752 = vadd.f32 %v7348, %v7382
    %v7753 = vadd.f32 %v7349, %v7382
    %v7754 = vadd.f32 %v7350, %v7382
    %v7755 = vadd.f32 %v7351, %v7382
    %v7756 = vadd.f32 %v7352, %v7382
    %v7757 = vadd.f32 %v7353, %v7382
    %v7758 = vadd.f32 %v7354, %v7382
    %v7759 = vadd.f32 %v7355, %v7382
    %v7760 = vadd.f32 %v7356, %v7382
    %v7761 = vadd.f32 %v7357, %v7382
    %v7762 = vadd.f32 %v7358, %v7382
    %v7763 = vadd.f32 %v7359, %v7382
    %v7764 = vadd.f32 %v7360, %v7382
    %v7765 = vadd.f32 %v7361, %v7382
    %v7766 = vadd.f32 %v7362, %v7382
    %v7767 = vadd.f32 %v7363, %v7382
    %v7768 = vadd.f32 %v7364, %v7382
    %v7769 = vadd.f32 %v7365, %v7382
    %v7770 = vadd.f32 %v7366, %v7382
    %v7771 = vadd.f32 %v7367, %v7382
    %v7772 = vadd.f32 %v7368, %v7382
    %v7773 = vadd.f32 %v7369, %v7382
    %v7774 = vadd.f32 %v7370, %v7382
    %v7775 = vadd.f32 %v7371, %v7382
    %v7776 = vadd.f32 %v7372, %v7382
    %v7777 = vadd.f32 %v7373, %v7382
    %v7778 = vadd.f32 %v7374, %v7382
    %v7779 = vadd.f32 %v7375, %v7382
    %v7780 = vadd.f32 %v7376, %v7382
    %v7781 = vadd.f32 %v7377, %v7382
    %v7782 = vadd.f32 %v7378, %v7382
    %v7783 = vadd.f32 %v7379, %v7382
    %v7784 = vmax.f32 %v7384, 0.0
    %v7785 = vmax.f32 %v7385, 0.0
    %v7786 = vmax.f32 %v7386, 0.0
    %v7787 = vmax.f32 %v7387, 0.0
    %v7788 = vmax.f32 %v7388, 0.0
    %v7789 = vmax.f32 %v7389, 0.0
    %v7790 = vmax.f32 %v7390, 0.0
    %v7791 = vmax.f32 %v7391, 0.0
    %v7792 = vmax.f32 %v7392, 0.0
    %v7793 = vmax.f32 %v7393, 0.0
    %v7794 = vmax.f32 %v7394, 0.0
    %v7795 = vmax.f32 %v7395, 0.0
    %v7796 = vmax.f32 %v7396, 0.0
    %v7797 = vmax.f32 %v7397, 0.0
    %v7798 = vmax.f32 %v7398, 0.0
    %v7799 = vmax.f32 %v7399, 0.0
    %v7800 = vmax.f32 %v7400, 0.0
    %v7801 = vmax.f32 %v7401, 0.0
    %v7802 = vmax.f32 %v7402, 0.0
    %v7803 = vmax.f32 %v7403, 0.0
    %v7804 = vmax.f32 %v7404, 0.0
    %v7805 = vmax.f32 %v7405, 0.0
    %v7806 = vmax.f32 %v7406, 0.0
    %v7807 = vmax.f32 %v7407, 0.0
    %v7808 = vmax.f32 %v7408, 0.0
    %v7809 = vmax.f32 %v7409, 0.0
    %v7810 = vmax.f32 %v7410, 0.0
    %v7811 = vmax.f32 %v7411, 0.0
    %v7812 = vmax.f32 %v7412, 0.0
    %v7813 = vmax.f32 %v7413, 0.0
    %v7814 = vmax.f32 %v7414, 0.0
    %v7815 = vmax.f32 %v7415, 0.0
    %v7816 = vmax.f32 %v7416, 0.0
    %v7817 = vmax.f32 %v7417, 0.0
    %v7818 = vmax.f32 %v7418, 0.0
    %v7819 = vmax.f32 %v7419, 0.0
    %v7820 = vmax.f32 %v7420, 0.0
    %v7821 = vmax.f32 %v7421, 0.0
    %v7822 = vmax.f32 %v7422, 0.0
    %v7823 = vmax.f32 %v7423, 0.0
    %v7824 = vmax.f32 %v7424, 0.0
    %v7825 = vmax.f32 %v7425, 0.0
    %v7826 = vmax.f32 %v7426, 0.0
    %v7827 = vmax.f32 %v7427, 0.0
    %v7828 = vmax.f32 %v7428, 0.0
    %v7829 = vmax.f32 %v7429, 0.0
    %v7830 = vmax.f32 %v7430, 0.0
    %v7831 = vmax.f32 %v7431, 0.0
    %v7832 = vmax.f32 %v7432, 0.0
    %v7833 = vmax.f32 %v7433, 0.0
    %v7834 = vmax.f32 %v7434, 0.0
    %v7835 = vmax.f32 %v7435, 0.0
    %v7836 = vmax.f32 %v7436, 0.0
    %v7837 = vmax.f32 %v7437, 0.0
    %v7838 = vmax.f32 %v7438, 0.0
    %v7839 = vmax.f32 %v7439, 0.0
    %v7840 = vmax.f32 %v7440, 0.0
    %v7841 = vmax.f32 %v7441, 0.0
    %v7842 = vmax.f32 %v7442, 0.0
    %v7843 = vmax.f32 %v7443, 0.0
    %v7844 = vmax.f32 %v7444, 0.0
    %v7845 = vmax.f32 %v7445, 0.0
    %v7846 = vmax.f32 %v7446, 0.0
    %v7847 = vmax.f32 %v7447, 0.0
    %v7848 = vmax.f32 %v7448, 0.0
    %v7849 = vmax.f32 %v7449, 0.0
    %v7850 = vmax.f32 %v7450, 0.0
    %v7851 = vmax.f32 %v7451, 0.0
    %v7852 = vmax.f32 %v7452, 0.0
    %v7853 = vmax.f32 %v7453, 0.0
    %v7854 = vmax.f32 %v7454, 0.0
    %v7855 = vmax.f32 %v7455, 0.0
    %v7856 = vmax.f32 %v7456, 0.0
    %v7857 = vmax.f32 %v7457, 0.0
    %v7858 = vmax.f32 %v7458, 0.0
    %v7859 = vmax.f32 %v7459, 0.0
    %v7860 = vmax.f32 %v7460, 0.0
    %v7861 = vmax.f32 %v7461, 0.0
    %v7862 = vmax.f32 %v7462, 0.0
    %v7863 = vmax.f32 %v7463, 0.0
    %v7864 = vmax.f32 %v7464, 0.0
    %v7865 = vmax.f32 %v7465, 0.0
    %v7866 = vmax.f32 %v7466, 0.0
    %v7867 = vmax.f32 %v7467, 0.0
    %v7868 = vmax.f32 %v7468, 0.0
    %v7869 = vmax.f32 %v7469, 0.0
    %v7870 = vmax.f32 %v7470, 0.0
    %v7871 = vmax.f32 %v7471, 0.0
    %v7872 = vmax.f32 %v7472, 0.0
    %v7873 = vmax.f32 %v7473, 0.0
    %v7874 = vmax.f32 %v7474, 0.0
    %v7875 = vmax.f32 %v7475, 0.0
    %v7876 = vmax.f32 %v7476, 0.0
    %v7877 = vmax.f32 %v7477, 0.0
    %v7878 = vmax.f32 %v7478, 0.0
    %v7879 = vmax.f32 %v7479, 0.0
    %v7880 = vmax.f32 %v7480, 0.0
    %v7881 = vmax.f32 %v7481, 0.0
    %v7882 = vmax.f32 %v7482, 0.0
    %v7883 = vmax.f32 %v7483, 0.0
    %v7884 = vmax.f32 %v7484, 0.0
    %v7885 = vmax.f32 %v7485, 0.0
    %v7886 = vmax.f32 %v7486, 0.0
    %v7887 = vmax.f32 %v7487, 0.0
    %v7888 = vmax.f32 %v7488, 0.0
    %v7889 = vmax.f32 %v7489, 0.0
    %v7890 = vmax.f32 %v7490, 0.0
    %v7891 = vmax.f32 %v7491, 0.0
    %v7892 = vmax.f32 %v7492, 0.0
    %v7893 = vmax.f32 %v7493, 0.0
    %v7894 = vmax.f32 %v7494, 0.0
    %v7895 = vmax.f32 %v7495, 0.0
    %v7896 = vmax.f32 %v7496, 0.0
    %v7897 = vmax.f32 %v7497, 0.0
    %v7898 = vmax.f32 %v7498, 0.0
    %v7899 = vmax.f32 %v7499, 0.0
    %v7900 = vmax.f32 %v7500, 0.0
    %v7901 = vmax.f32 %v7501, 0.0
    %v7902 = vmax.f32 %v7502, 0.0
    %v7903 = vmax.f32 %v7503, 0.0
    %v7904 = vmax.f32 %v7504, 0.0
    %v7905 = vmax.f32 %v7505, 0.0
    %v7906 = vmax.f32 %v7506, 0.0
    %v7907 = vmax.f32 %v7507, 0.0
    %v7908 = vmax.f32 %v7508, 0.0
    %v7909 = vmax.f32 %v7509, 0.0
    %v7910 = vmax.f32 %v7510, 0.0
    %v7911 = vmax.f32 %v7511, 0.0
    %v7912 = vmax.f32 %v7512, 0.0
    %v7913 = vmax.f32 %v7513, 0.0
    %v7914 = vmax.f32 %v7514, 0.0
    %v7915 = vmax.f32 %v7515, 0.0
    %v7916 = vmax.f32 %v7516, 0.0
    %v7917 = vmax.f32 %v7517, 0.0
    %v7918 = vmax.f32 %v7518, 0.0
    %v7919 = vmax.f32 %v7519, 0.0
    %v7920 = vmax.f32 %v7520, 0.0
    %v7921 = vmax.f32 %v7521, 0.0
    %v7922 = vmax.f32 %v7522, 0.0
    %v7923 = vmax.f32 %v7523, 0.0
    %v7924 = vmax.f32 %v7524, 0.0
    %v7925 = vmax.f32 %v7525, 0.0
    %v7926 = vmax.f32 %v7526, 0.0
    %v7927 = vmax.f32 %v7527, 0.0
    %v7928 = vmax.f32 %v7528, 0.0
    %v7929 = vmax.f32 %v7529, 0.0
    %v7930 = vmax.f32 %v7530, 0.0
    %v7931 = vmax.f32 %v7531, 0.0
    %v7932 = vmax.f32 %v7532, 0.0
    %v7933 = vmax.f32 %v7533, 0.0
    %v7934 = vmax.f32 %v7534, 0.0
    %v7935 = vmax.f32 %v7535, 0.0
    %v7936 = vmax.f32 %v7536, 0.0
    %v7937 = vmax.f32 %v7537, 0.0
    %v7938 = vmax.f32 %v7538, 0.0
    %v7939 = vmax.f32 %v7539, 0.0
    %v7940 = vmax.f32 %v7540, 0.0
    %v7941 = vmax.f32 %v7541, 0.0
    %v7942 = vmax.f32 %v7542, 0.0
    %v7943 = vmax.f32 %v7543, 0.0
    %v7944 = vmax.f32 %v7544, 0.0
    %v7945 = vmax.f32 %v7545, 0.0
    %v7946 = vmax.f32 %v7546, 0.0
    %v7947 = vmax.f32 %v7547, 0.0
    %v7948 = vmax.f32 %v7548, 0.0
    %v7949 = vmax.f32 %v7549, 0.0
    %v7950 = vmax.f32 %v7550, 0.0
    %v7951 = vmax.f32 %v7551, 0.0
    %v7952 = vmax.f32 %v7552, 0.0
    %v7953 = vmax.f32 %v7553, 0.0
    %v7954 = vmax.f32 %v7554, 0.0
    %v7955 = vmax.f32 %v7555, 0.0
    %v7956 = vmax.f32 %v7556, 0.0
    %v7957 = vmax.f32 %v7557, 0.0
    %v7958 = vmax.f32 %v7558, 0.0
    %v7959 = vmax.f32 %v7559, 0.0
    %v7960 = vmax.f32 %v7560, 0.0
    %v7961 = vmax.f32 %v7561, 0.0
    %v7962 = vmax.f32 %v7562, 0.0
    %v7963 = vmax.f32 %v7563, 0.0
    %v7964 = vmax.f32 %v7564, 0.0
    %v7965 = vmax.f32 %v7565, 0.0
    %v7966 = vmax.f32 %v7566, 0.0
    %v7967 = vmax.f32 %v7567, 0.0
    %v7968 = vmax.f32 %v7568, 0.0
    %v7969 = vmax.f32 %v7569, 0.0
    %v7970 = vmax.f32 %v7570, 0.0
    %v7971 = vmax.f32 %v7571, 0.0
    %v7972 = vmax.f32 %v7572, 0.0
    %v7973 = vmax.f32 %v7573, 0.0
    %v7974 = vmax.f32 %v7574, 0.0
    %v7975 = vmax.f32 %v7575, 0.0
    %v7976 = vmax.f32 %v7576, 0.0
    %v7977 = vmax.f32 %v7577, 0.0
    %v7978 = vmax.f32 %v7578, 0.0
    %v7979 = vmax.f32 %v7579, 0.0
    %v7980 = vmax.f32 %v7580, 0.0
    %v7981 = vmax.f32 %v7581, 0.0
    %v7982 = vmax.f32 %v7582, 0.0
    %v7983 = vmax.f32 %v7583, 0.0
    %v7984 = vmax.f32 %v7584, 0.0
    %v7985 = vmax.f32 %v7585, 0.0
    %v7986 = vmax.f32 %v7586, 0.0
    %v7987 = vmax.f32 %v7587, 0.0
    %v7988 = vmax.f32 %v7588, 0.0
    %v7989 = vmax.f32 %v7589, 0.0
    %v7990 = vmax.f32 %v7590, 0.0
    %v7991 = vmax.f32 %v7591, 0.0
    %v7992 = vmax.f32 %v7592, 0.0
    %v7993 = vmax.f32 %v7593, 0.0
    %v7994 = vmax.f32 %v7594, 0.0
    %v7995 = vmax.f32 %v7595, 0.0
    %v7996 = vmax.f32 %v7596, 0.0
    %v7997 = vmax.f32 %v7597, 0.0
    %v7998 = vmax.f32 %v7598, 0.0
    %v7999 = vmax.f32 %v7599, 0.0
    %v8000 = vmax.f32 %v7600, 0.0
    %v8001 = vmax.f32 %v7601, 0.0
    %v8002 = vmax.f32 %v7602, 0.0
    %v8003 = vmax.f32 %v7603, 0.0
    %v8004 = vmax.f32 %v7604, 0.0
    %v8005 = vmax.f32 %v7605, 0.0
    %v8006 = vmax.f32 %v7606, 0.0
    %v8007 = vmax.f32 %v7607, 0.0
    %v8008 = vmax.f32 %v7608, 0.0
    %v8009 = vmax.f32 %v7609, 0.0
    %v8010 = vmax.f32 %v7610, 0.0
    %v8011 = vmax.f32 %v7611, 0.0
    %v8012 = vmax.f32 %v7612, 0.0
    %v8013 = vmax.f32 %v7613, 0.0
    %v8014 = vmax.f32 %v7614, 0.0
    %v8015 = vmax.f32 %v7615, 0.0
    %v8016 = vmax.f32 %v7616, 0.0
    %v8017 = vmax.f32 %v7617, 0.0
    %v8018 = vmax.f32 %v7618, 0.0
    %v8019 = vmax.f32 %v7619, 0.0
    %v8020 = vmax.f32 %v7620, 0.0
    %v8021 = vmax.f32 %v7621, 0.0
    %v8022 = vmax.f32 %v7622, 0.0
    %v8023 = vmax.f32 %v7623, 0.0
    %v8024 = vmax.f32 %v7624, 0.0
    %v8025 = vmax.f32 %v7625, 0.0
    %v8026 = vmax.f32 %v7626, 0.0
    %v8027 = vmax.f32 %v7627, 0.0
    %v8028 = vmax.f32 %v7628, 0.0
    %v8029 = vmax.f32 %v7629, 0.0
    %v8030 = vmax.f32 %v7630, 0.0
    %v8031 = vmax.f32 %v7631, 0.0
    %v8032 = vmax.f32 %v7632, 0.0
    %v8033 = vmax.f32 %v7633, 0.0
    %v8034 = vmax.f32 %v7634, 0.0
    %v8035 = vmax.f32 %v7635, 0.0
    %v8036 = vmax.f32 %v7636, 0.0
    %v8037 = vmax.f32 %v7637, 0.0
    %v8038 = vmax.f32 %v7638, 0.0
    %v8039 = vmax.f32 %v7639, 0.0
    %v8040 = vmax.f32 %v7640, 0.0
    %v8041 = vmax.f32 %v7641, 0.0
    %v8042 = vmax.f32 %v7642, 0.0
    %v8043 = vmax.f32 %v7643, 0.0
    %v8044 = vmax.f32 %v7644, 0.0
    %v8045 = vmax.f32 %v7645, 0.0
    %v8046 = vmax.f32 %v7646, 0.0
    %v8047 = vmax.f32 %v7647, 0.0
    %v8048 = vmax.f32 %v7648, 0.0
    %v8049 = vmax.f32 %v7649, 0.0
    %v8050 = vmax.f32 %v7650, 0.0
    %v8051 = vmax.f32 %v7651, 0.0
    %v8052 = vmax.f32 %v7652, 0.0
    %v8053 = vmax.f32 %v7653, 0.0
    %v8054 = vmax.f32 %v7654, 0.0
    %v8055 = vmax.f32 %v7655, 0.0
    %v8056 = vmax.f32 %v7656, 0.0
    %v8057 = vmax.f32 %v7657, 0.0
    %v8058 = vmax.f32 %v7658, 0.0
    %v8059 = vmax.f32 %v7659, 0.0
    %v8060 = vmax.f32 %v7660, 0.0
    %v8061 = vmax.f32 %v7661, 0.0
    %v8062 = vmax.f32 %v7662, 0.0
    %v8063 = vmax.f32 %v7663, 0.0
    %v8064 = vmax.f32 %v7664, 0.0
    %v8065 = vmax.f32 %v7665, 0.0
    %v8066 = vmax.f32 %v7666, 0.0
    %v8067 = vmax.f32 %v7667, 0.0
    %v8068 = vmax.f32 %v7668, 0.0
    %v8069 = vmax.f32 %v7669, 0.0
    %v8070 = vmax.f32 %v7670, 0.0
    %v8071 = vmax.f32 %v7671, 0.0
    %v8072 = vmax.f32 %v7672, 0.0
    %v8073 = vmax.f32 %v7673, 0.0
    %v8074 = vmax.f32 %v7674, 0.0
    %v8075 = vmax.f32 %v7675, 0.0
    %v8076 = vmax.f32 %v7676, 0.0
    %v8077 = vmax.f32 %v7677, 0.0
    %v8078 = vmax.f32 %v7678, 0.0
    %v8079 = vmax.f32 %v7679, 0.0
    %v8080 = vmax.f32 %v7680, 0.0
    %v8081 = vmax.f32 %v7681, 0.0
    %v8082 = vmax.f32 %v7682, 0.0
    %v8083 = vmax.f32 %v7683, 0.0
    %v8084 = vmax.f32 %v7684, 0.0
    %v8085 = vmax.f32 %v7685, 0.0
    %v8086 = vmax.f32 %v7686, 0.0
    %v8087 = vmax.f32 %v7687, 0.0
    %v8088 = vmax.f32 %v7688, 0.0
    %v8089 = vmax.f32 %v7689, 0.0
    %v8090 = vmax.f32 %v7690, 0.0
    %v8091 = vmax.f32 %v7691, 0.0
    %v8092 = vmax.f32 %v7692, 0.0
    %v8093 = vmax.f32 %v7693, 0.0
    %v8094 = vmax.f32 %v7694, 0.0
    %v8095 = vmax.f32 %v7695, 0.0
    %v8096 = vmax.f32 %v7696, 0.0
    %v8097 = vmax.f32 %v7697, 0.0
    %v8098 = vmax.f32 %v7698, 0.0
    %v8099 = vmax.f32 %v7699, 0.0
    %v8100 = vmax.f32 %v7700, 0.0
    %v8101 = vmax.f32 %v7701, 0.0
    %v8102 = vmax.f32 %v7702, 0.0
    %v8103 = vmax.f32 %v7703, 0.0
    %v8104 = vmax.f32 %v7704, 0.0
    %v8105 = vmax.f32 %v7705, 0.0
    %v8106 = vmax.f32 %v7706, 0.0
    %v8107 = vmax.f32 %v7707, 0.0
    %v8108 = vmax.f32 %v7708, 0.0
    %v8109 = vmax.f32 %v7709, 0.0
    %v8110 = vmax.f32 %v7710, 0.0
    %v8111 = vmax.f32 %v7711, 0.0
    %v8112 = vmax.f32 %v7712, 0.0
    %v8113 = vmax.f32 %v7713, 0.0
    %v8114 = vmax.f32 %v7714, 0.0
    %v8115 = vmax.f32 %v7715, 0.0
    %v8116 = vmax.f32 %v7716, 0.0
    %v8117 = vmax.f32 %v7717, 0.0
    %v8118 = vmax.f32 %v7718, 0.0
    %v8119 = vmax.f32 %v7719, 0.0
    %v8120 = vmax.f32 %v7720, 0.0
    %v8121 = vmax.f32 %v7721, 0.0
    %v8122 = vmax.f32 %v7722, 0.0
    %v8123 = vmax.f32 %v7723, 0.0
    %v8124 = vmax.f32 %v7724, 0.0
    %v8125 = vmax.f32 %v7725, 0.0
    %v8126 = vmax.f32 %v7726, 0.0
    %v8127 = vmax.f32 %v7727, 0.0
    %v8128 = vmax.f32 %v7728, 0.0
    %v8129 = vmax.f32 %v7729, 0.0
    %v8130 = vmax.f32 %v7730, 0.0
    %v8131 = vmax.f32 %v7731, 0.0
    %v8132 = vmax.f32 %v7732, 0.0
    %v8133 = vmax.f32 %v7733, 0.0
    %v8134 = vmax.f32 %v7734, 0.0
    %v8135 = vmax.f32 %v7735, 0.0
    %v8136 = vmax.f32 %v7736, 0.0
    %v8137 = vmax.f32 %v7737, 0.0
    %v8138 = vmax.f32 %v7738, 0.0
    %v8139 = vmax.f32 %v7739, 0.0
    %v8140 = vmax.f32 %v7740, 0.0
    %v8141 = vmax.f32 %v7741, 0.0
    %v8142 = vmax.f32 %v7742, 0.0
    %v8143 = vmax.f32 %v7743, 0.0
    %v8144 = vmax.f32 %v7744, 0.0
    %v8145 = vmax.f32 %v7745, 0.0
    %v8146 = vmax.f32 %v7746, 0.0
    %v8147 = vmax.f32 %v7747, 0.0
    %v8148 = vmax.f32 %v7748, 0.0
    %v8149 = vmax.f32 %v7749, 0.0
    %v8150 = vmax.f32 %v7750, 0.0
    %v8151 = vmax.f32 %v7751, 0.0
    %v8152 = vmax.f32 %v7752, 0.0
    %v8153 = vmax.f32 %v7753, 0.0
    %v8154 = vmax.f32 %v7754, 0.0
    %v8155 = vmax.f32 %v7755, 0.0
    %v8156 = vmax.f32 %v7756, 0.0
    %v8157 = vmax.f32 %v7757, 0.0
    %v8158 = vmax.f32 %v7758, 0.0
    %v8159 = vmax.f32 %v7759, 0.0
    %v8160 = vmax.f32 %v7760, 0.0
    %v8161 = vmax.f32 %v7761, 0.0
    %v8162 = vmax.f32 %v7762, 0.0
    %v8163 = vmax.f32 %v7763, 0.0
    %v8164 = vmax.f32 %v7764, 0.0
    %v8165 = vmax.f32 %v7765, 0.0
    %v8166 = vmax.f32 %v7766, 0.0
    %v8167 = vmax.f32 %v7767, 0.0
    %v8168 = vmax.f32 %v7768, 0.0
    %v8169 = vmax.f32 %v7769, 0.0
    %v8170 = vmax.f32 %v7770, 0.0
    %v8171 = vmax.f32 %v7771, 0.0
    %v8172 = vmax.f32 %v7772, 0.0
    %v8173 = vmax.f32 %v7773, 0.0
    %v8174 = vmax.f32 %v7774, 0.0
    %v8175 = vmax.f32 %v7775, 0.0
    %v8176 = vmax.f32 %v7776, 0.0
    %v8177 = vmax.f32 %v7777, 0.0
    %v8178 = vmax.f32 %v7778, 0.0
    %v8179 = vmax.f32 %v7779, 0.0
    %v8180 = vmax.f32 %v7780, 0.0
    %v8181 = vmax.f32 %v7781, 0.0
    %v8182 = vmax.f32 %v7782, 0.0
    %v8183 = vmax.f32 %v7783, 0.0
    %v8184 = vld [vmem:[%s3] sm:$0xff]
    %v8185 = vld [vmem:[%s3 + $0x8] sm:$0xff]
    %v8186 = vld [vmem:[%s3 + $0x10] sm:$0xff]
    %v8187 = vld [vmem:[%s3 + $0x18] sm:$0xff]
    %v8188 = vld [vmem:[%s3 + $0x20] sm:$0xff]
    %v8189 = vld [vmem:[%s3 + $0x28] sm:$0xf]
    %v8190 = vld [vmem:[%s3 + $0x30] sm:$0xff]
    %v8191 = vld [vmem:[%s3 + $0x38] sm:$0xff]
    %v8192 = vld [vmem:[%s3 + $0x40] sm:$0xff]
    %v8193 = vld [vmem:[%s3 + $0x48] sm:$0xff]
    %v8194 = vld [vmem:[%s3 + $0x50] sm:$0xff]
    %v8195 = vld [vmem:[%s3 + $0x58] sm:$0xf]
    %vm8196 = vcmask 359424
    %v8198 = vsel %vm8196, %v7800, 0
    %v8201 = vsel %vm8196, %v7801, 0
    %v8204 = vsel %vm8196, %v7802, 0
    %v8207 = vsel %vm8196, %v7803, 0
    %v8210 = vsel %vm8196, %v7804, 0
    %v8213 = vsel %vm8196, %v7805, 0
    %v8216 = vsel %vm8196, %v7806, 0
    %v8219 = vsel %vm8196, %v7807, 0
    %v8222 = vsel %vm8196, %v7808, 0
    %v8225 = vsel %vm8196, %v7809, 0
    %v8228 = vsel %vm8196, %v7810, 0
    %v8231 = vsel %vm8196, %v7811, 0
    %v8234 = vsel %vm8196, %v7812, 0
    %v8237 = vsel %vm8196, %v7813, 0
    %v8240 = vsel %vm8196, %v7814, 0
    %v8243 = vsel %vm8196, %v7815, 0
    %v8246 = vsel %vm8196, %v7832, 0
    %v8249 = vsel %vm8196, %v7833, 0
    %v8252 = vsel %vm8196, %v7834, 0
    %v8255 = vsel %vm8196, %v7835, 0
    %v8258 = vsel %vm8196, %v7836, 0
    %v8261 = vsel %vm8196, %v7837, 0
    %v8264 = vsel %vm8196, %v7838, 0
    %v8267 = vsel %vm8196, %v7839, 0
    %v8270 = vsel %vm8196, %v7840, 0
    %v8273 = vsel %vm8196, %v7841, 0
    %v8276 = vsel %vm8196, %v7842, 0
    %v8279 = vsel %vm8196, %v7843, 0
    %v8282 = vsel %vm8196, %v7844, 0
    %v8285 = vsel %vm8196, %v7845, 0
    %v8288 = vsel %vm8196, %v7846, 0
    %v8291 = vsel %vm8196, %v7847, 0
    %v8294 = vsel %vm8196, %v7864, 0
    %v8297 = vsel %vm8196, %v7865, 0
    %v8300 = vsel %vm8196, %v7866, 0
    %v8303 = vsel %vm8196, %v7867, 0
    %v8306 = vsel %vm8196, %v7868, 0
    %v8309 = vsel %vm8196, %v7869, 0
    %v8312 = vsel %vm8196, %v7870, 0
    %v8315 = vsel %vm8196, %v7871, 0
    %v8318 = vsel %vm8196, %v7872, 0
    %v8321 = vsel %vm8196, %v7873, 0
    %v8324 = vsel %vm8196, %v7874, 0
    %v8327 = vsel %vm8196, %v7875, 0
    %v8330 = vsel %vm8196, %v7876, 0
    %v8333 = vsel %vm8196, %v7877, 0
    %v8336 = vsel %vm8196, %v7878, 0
    %v8339 = vsel %vm8196, %v7879, 0
    %v8342 = vsel %vm8196, %v7896, 0
    %v8345 = vsel %vm8196, %v7897, 0
    %v8348 = vsel %vm8196, %v7898, 0
    %v8351 = vsel %vm8196, %v7899, 0
    %v8354 = vsel %vm8196, %v7900, 0
    %v8357 = vsel %vm8196, %v7901, 0
    %v8360 = vsel %vm8196, %v7902, 0
    %v8363 = vsel %vm8196, %v7903, 0
    %v8366 = vsel %vm8196, %v7904, 0
    %v8369 = vsel %vm8196, %v7905, 0
    %v8372 = vsel %vm8196, %v7906, 0
    %v8375 = vsel %vm8196, %v7907, 0
    %v8378 = vsel %vm8196, %v7908, 0
    %v8381 = vsel %vm8196, %v7909, 0
    %v8384 = vsel %vm8196, %v7910, 0
    %v8387 = vsel %vm8196, %v7911, 0
    %v8390 = vsel %vm8196, %v7928, 0
    %v8393 = vsel %vm8196, %v7929, 0
    %v8396 = vsel %vm8196, %v7930, 0
    %v8399 = vsel %vm8196, %v7931, 0
    %v8402 = vsel %vm8196, %v7932, 0
    %v8405 = vsel %vm8196, %v7933, 0
    %v8408 = vsel %vm8196, %v7934, 0
    %v8411 = vsel %vm8196, %v7935, 0
    %v8414 = vsel %vm8196, %v7936, 0
    %v8417 = vsel %vm8196, %v7937, 0
    %v8420 = vsel %vm8196, %v7938, 0
    %v8423 = vsel %vm8196, %v7939, 0
    %v8426 = vsel %vm8196, %v7940, 0
    %v8429 = vsel %vm8196, %v7941, 0
    %v8432 = vsel %vm8196, %v7942, 0
    %v8435 = vsel %vm8196, %v7943, 0
    %v8438 = vsel %vm8196, %v7960, 0
    %v8441 = vsel %vm8196, %v7961, 0
    %v8444 = vsel %vm8196, %v7962, 0
    %v8447 = vsel %vm8196, %v7963, 0
    %v8450 = vsel %vm8196, %v7964, 0
    %v8453 = vsel %vm8196, %v7965, 0
    %v8456 = vsel %vm8196, %v7966, 0
    %v8459 = vsel %vm8196, %v7967, 0
    %v8462 = vsel %vm8196, %v7968, 0
    %v8465 = vsel %vm8196, %v7969, 0
    %v8468 = vsel %vm8196, %v7970, 0
    %v8471 = vsel %vm8196, %v7971, 0
    %v8474 = vsel %vm8196, %v7972, 0
    %v8477 = vsel %vm8196, %v7973, 0
    %v8480 = vsel %vm8196, %v7974, 0
    %v8483 = vsel %vm8196, %v7975, 0
    %v8486 = vsel %vm8196, %v7992, 0
    %v8489 = vsel %vm8196, %v7993, 0
    %v8492 = vsel %vm8196, %v7994, 0
    %v8495 = vsel %vm8196, %v7995, 0
    %v8498 = vsel %vm8196, %v7996, 0
    %v8501 = vsel %vm8196, %v7997, 0
    %v8504 = vsel %vm8196, %v7998, 0
    %v8507 = vsel %vm8196, %v7999, 0
    %v8510 = vsel %vm8196, %v8000, 0
    %v8513 = vsel %vm8196, %v8001, 0
    %v8516 = vsel %vm8196, %v8002, 0
    %v8519 = vsel %vm8196, %v8003, 0
    %v8522 = vsel %vm8196, %v8004, 0
    %v8525 = vsel %vm8196, %v8005, 0
    %v8528 = vsel %vm8196, %v8006, 0
    %v8531 = vsel %vm8196, %v8007, 0
    %v8534 = vsel %vm8196, %v8024, 0
    %v8537 = vsel %vm8196, %v8025, 0
    %v8540 = vsel %vm8196, %v8026, 0
    %v8543 = vsel %vm8196, %v8027, 0
    %v8546 = vsel %vm8196, %v8028, 0
    %v8549 = vsel %vm8196, %v8029, 0
    %v8552 = vsel %vm8196, %v8030, 0
    %v8555 = vsel %vm8196, %v8031, 0
    %v8558 = vsel %vm8196, %v8032, 0
    %v8561 = vsel %vm8196, %v8033, 0
    %v8564 = vsel %vm8196, %v8034, 0
    %v8567 = vsel %vm8196, %v8035, 0
    %v8570 = vsel %vm8196, %v8036, 0
    %v8573 = vsel %vm8196, %v8037, 0
    %v8576 = vsel %vm8196, %v8038, 0
    %v8579 = vsel %vm8196, %v8039, 0
    %v8582 = vsel %vm8196, %v8056, 0
    %v8585 = vsel %vm8196, %v8057, 0
    %v8588 = vsel %vm8196, %v8058, 0
    %v8591 = vsel %vm8196, %v8059, 0
    %v8594 = vsel %vm8196, %v8060, 0
    %v8597 = vsel %vm8196, %v8061, 0
    %v8600 = vsel %vm8196, %v8062, 0
    %v8603 = vsel %vm8196, %v8063, 0
    %v8606 = vsel %vm8196, %v8064, 0
    %v8609 = vsel %vm8196, %v8065, 0
    %v8612 = vsel %vm8196, %v8066, 0
    %v8615 = vsel %vm8196, %v8067, 0
    %v8618 = vsel %vm8196, %v8068, 0
    %v8621 = vsel %vm8196, %v8069, 0
    %v8624 = vsel %vm8196, %v8070, 0
    %v8627 = vsel %vm8196, %v8071, 0
    %v8630 = vsel %vm8196, %v8088, 0
    %v8633 = vsel %vm8196, %v8089, 0
    %v8636 = vsel %vm8196, %v8090, 0
    %v8639 = vsel %vm8196, %v8091, 0
    %v8642 = vsel %vm8196, %v8092, 0
    %v8645 = vsel %vm8196, %v8093, 0
    %v8648 = vsel %vm8196, %v8094, 0
    %v8651 = vsel %vm8196, %v8095, 0
    %v8654 = vsel %vm8196, %v8096, 0
    %v8657 = vsel %vm8196, %v8097, 0
    %v8660 = vsel %vm8196, %v8098, 0
    %v8663 = vsel %vm8196, %v8099, 0
    %v8666 = vsel %vm8196, %v8100, 0
    %v8669 = vsel %vm8196, %v8101, 0
    %v8672 = vsel %vm8196, %v8102, 0
    %v8675 = vsel %vm8196, %v8103, 0
    %v8678 = vsel %vm8196, %v8120, 0
    %v8681 = vsel %vm8196, %v8121, 0
    %v8684 = vsel %vm8196, %v8122, 0
    %v8687 = vsel %vm8196, %v8123, 0
    %v8690 = vsel %vm8196, %v8124, 0
    %v8693 = vsel %vm8196, %v8125, 0
    %v8696 = vsel %vm8196, %v8126, 0
    %v8699 = vsel %vm8196, %v8127, 0
    %v8702 = vsel %vm8196, %v8128, 0
    %v8705 = vsel %vm8196, %v8129, 0
    %v8708 = vsel %vm8196, %v8130, 0
    %v8711 = vsel %vm8196, %v8131, 0
    %v8714 = vsel %vm8196, %v8132, 0
    %v8717 = vsel %vm8196, %v8133, 0
    %v8720 = vsel %vm8196, %v8134, 0
    %v8723 = vsel %vm8196, %v8135, 0
    %v8726 = vsel %vm8196, %v8152, 0
    %v8729 = vsel %vm8196, %v8153, 0
    %v8732 = vsel %vm8196, %v8154, 0
    %v8735 = vsel %vm8196, %v8155, 0
    %v8738 = vsel %vm8196, %v8156, 0
    %v8741 = vsel %vm8196, %v8157, 0
    %v8744 = vsel %vm8196, %v8158, 0
    %v8747 = vsel %vm8196, %v8159, 0
    %v8750 = vsel %vm8196, %v8160, 0
    %v8753 = vsel %vm8196, %v8161, 0
    %v8756 = vsel %vm8196, %v8162, 0
    %v8759 = vsel %vm8196, %v8163, 0
    %v8762 = vsel %vm8196, %v8164, 0
    %v8765 = vsel %vm8196, %v8165, 0
    %v8768 = vsel %vm8196, %v8166, 0
    %v8771 = vsel %vm8196, %v8167, 0
    %vm8773 = vcmask 1043456
    %v8775 = vsel %vm8773, %v8195, 0
    %8777 = vmatpush.msra.mxu0 0.0
    %8778 = vmatpush.msra.mxu0 0.0
    %8779 = vmatpush.msra.mxu0 0.0
    %8780 = vmatpush.msra.mxu0 0.0
    %8781 = vmatpush.msra.mxu0 0.0
    %8782 = vmatpush.msra.mxu0 0.0
    %8783 = vmatpush.msra.mxu0 0.0
    %8784 = vmatpush.msra.mxu0 0.0
    %8785 = vmatpush.msra.mxu0 0.0
    %8786 = vmatpush.msra.mxu0 0.0
    %8787 = vmatpush.msra.mxu0 %v8775
    %8788 = vmatpush.msra.mxu0 %v8194
    %8789 = vmatpush.msra.mxu0 %v8193
    %8790 = vmatpush.msra.mxu0 %v8192
    %8791 = vmatpush.msra.mxu0 %v8191
    %8792 = vmatpush.msra.mxu0 %v8190
    %8793 = vmatmul.f32.gmra.mxu0 %v8198
    %v8794 = vpop.f32.mrf.mxu0
    %v8795 = vadd.f32 0.0, %v8794
    %8796 = vmatmul.f32.gmra.mxu0 %v8201
    %v8797 = vpop.f32.mrf.mxu0
    %v8798 = vadd.f32 0.0, %v8797
    %8799 = vmatmul.f32.gmra.mxu0 %v8204
    %v8800 = vpop.f32.mrf.mxu0
    %v8801 = vadd.f32 0.0, %v8800
    %8802 = vmatmul.f32.gmra.mxu0 %v8207
    %v8803 = vpop.f32.mrf.mxu0
    %v8804 = vadd.f32 0.0, %v8803
    %8805 = vmatmul.f32.gmra.mxu0 %v8210
    %v8806 = vpop.f32.mrf.mxu0
    %v8807 = vadd.f32 0.0, %v8806
    %8808 = vmatmul.f32.gmra.mxu0 %v8213
    %v8809 = vpop.f32.mrf.mxu0
    %v8810 = vadd.f32 0.0, %v8809
    %8811 = vmatmul.f32.gmra.mxu0 %v8216
    %v8812 = vpop.f32.mrf.mxu0
    %v8813 = vadd.f32 0.0, %v8812
    %8814 = vmatmul.f32.gmra.mxu0 %v8219
    %v8815 = vpop.f32.mrf.mxu0
    %v8816 = vadd.f32 0.0, %v8815
    %8817 = vmatmul.f32.gmra.mxu0 %v8222
    %v8818 = vpop.f32.mrf.mxu0
    %v8819 = vadd.f32 0.0, %v8818
    %8820 = vmatmul.f32.gmra.mxu0 %v8225
    %v8821 = vpop.f32.mrf.mxu0
    %v8822 = vadd.f32 0.0, %v8821
    %8823 = vmatmul.f32.gmra.mxu0 %v8228
    %v8824 = vpop.f32.mrf.mxu0
    %v8825 = vadd.f32 0.0, %v8824
    %8826 = vmatmul.f32.gmra.mxu0 %v8231
    %v8827 = vpop.f32.mrf.mxu0
    %v8828 = vadd.f32 0.0, %v8827
    %8829 = vmatmul.f32.gmra.mxu0 %v8234
    %v8830 = vpop.f32.mrf.mxu0
    %v8831 = vadd.f32 0.0, %v8830
    %8832 = vmatmul.f32.gmra.mxu0 %v8237
    %v8833 = vpop.f32.mrf.mxu0
    %v8834 = vadd.f32 0.0, %v8833
    %8835 = vmatmul.f32.gmra.mxu0 %v8240
    %v8836 = vpop.f32.mrf.mxu0
    %v8837 = vadd.f32 0.0, %v8836
    %8838 = vmatmul.f32.gmra.mxu0 %v8243
    %v8839 = vpop.f32.mrf.mxu0
    %v8840 = vadd.f32 0.0, %v8839
    %8841 = vmatmul.f32.gmra.mxu0 %v8246
    %v8842 = vpop.f32.mrf.mxu0
    %v8843 = vadd.f32 0.0, %v8842
    %8844 = vmatmul.f32.gmra.mxu0 %v8249
    %v8845 = vpop.f32.mrf.mxu0
    %v8846 = vadd.f32 0.0, %v8845
    %8847 = vmatmul.f32.gmra.mxu0 %v8252
    %v8848 = vpop.f32.mrf.mxu0
    %v8849 = vadd.f32 0.0, %v8848
    %8850 = vmatmul.f32.gmra.mxu0 %v8255
    %v8851 = vpop.f32.mrf.mxu0
    %v8852 = vadd.f32 0.0, %v8851
    %8853 = vmatmul.f32.gmra.mxu0 %v8258
    %v8854 = vpop.f32.mrf.mxu0
    %v8855 = vadd.f32 0.0, %v8854
    %8856 = vmatmul.f32.gmra.mxu0 %v8261
    %v8857 = vpop.f32.mrf.mxu0
    %v8858 = vadd.f32 0.0, %v8857
    %8859 = vmatmul.f32.gmra.mxu0 %v8264
    %v8860 = vpop.f32.mrf.mxu0
    %v8861 = vadd.f32 0.0, %v8860
    %8862 = vmatmul.f32.gmra.mxu0 %v8267
    %v8863 = vpop.f32.mrf.mxu0
    %v8864 = vadd.f32 0.0, %v8863
    %8865 = vmatmul.f32.gmra.mxu0 %v8270
    %v8866 = vpop.f32.mrf.mxu0
    %v8867 = vadd.f32 0.0, %v8866
    %8868 = vmatmul.f32.gmra.mxu0 %v8273
    %v8869 = vpop.f32.mrf.mxu0
    %v8870 = vadd.f32 0.0, %v8869
    %8871 = vmatmul.f32.gmra.mxu0 %v8276
    %v8872 = vpop.f32.mrf.mxu0
    %v8873 = vadd.f32 0.0, %v8872
    %8874 = vmatmul.f32.gmra.mxu0 %v8279
    %v8875 = vpop.f32.mrf.mxu0
    %v8876 = vadd.f32 0.0, %v8875
    %8877 = vmatmul.f32.gmra.mxu0 %v8282
    %v8878 = vpop.f32.mrf.mxu0
    %v8879 = vadd.f32 0.0, %v8878
    %8880 = vmatmul.f32.gmra.mxu0 %v8285
    %v8881 = vpop.f32.mrf.mxu0
    %v8882 = vadd.f32 0.0, %v8881
    %8883 = vmatmul.f32.gmra.mxu0 %v8288
    %v8884 = vpop.f32.mrf.mxu0
    %v8885 = vadd.f32 0.0, %v8884
    %8886 = vmatmul.f32.gmra.mxu0 %v8291
    %v8887 = vpop.f32.mrf.mxu0
    %v8888 = vadd.f32 0.0, %v8887
    %8889 = vmatmul.f32.gmra.mxu0 %v8294
    %v8890 = vpop.f32.mrf.mxu0
    %v8891 = vadd.f32 0.0, %v8890
    %8892 = vmatmul.f32.gmra.mxu0 %v8297
    %v8893 = vpop.f32.mrf.mxu0
    %v8894 = vadd.f32 0.0, %v8893
    %8895 = vmatmul.f32.gmra.mxu0 %v8300
    %v8896 = vpop.f32.mrf.mxu0
    %v8897 = vadd.f32 0.0, %v8896
    %8898 = vmatmul.f32.gmra.mxu0 %v8303
    %v8899 = vpop.f32.mrf.mxu0
    %v8900 = vadd.f32 0.0, %v8899
    %8901 = vmatmul.f32.gmra.mxu0 %v8306
    %v8902 = vpop.f32.mrf.mxu0
    %v8903 = vadd.f32 0.0, %v8902
    %8904 = vmatmul.f32.gmra.mxu0 %v8309
    %v8905 = vpop.f32.mrf.mxu0
    %v8906 = vadd.f32 0.0, %v8905
    %8907 = vmatmul.f32.gmra.mxu0 %v8312
    %v8908 = vpop.f32.mrf.mxu0
    %v8909 = vadd.f32 0.0, %v8908
    %8910 = vmatmul.f32.gmra.mxu0 %v8315
    %v8911 = vpop.f32.mrf.mxu0
    %v8912 = vadd.f32 0.0, %v8911
    %8913 = vmatmul.f32.gmra.mxu0 %v8318
    %v8914 = vpop.f32.mrf.mxu0
    %v8915 = vadd.f32 0.0, %v8914
    %8916 = vmatmul.f32.gmra.mxu0 %v8321
    %v8917 = vpop.f32.mrf.mxu0
    %v8918 = vadd.f32 0.0, %v8917
    %8919 = vmatmul.f32.gmra.mxu0 %v8324
    %v8920 = vpop.f32.mrf.mxu0
    %v8921 = vadd.f32 0.0, %v8920
    %8922 = vmatmul.f32.gmra.mxu0 %v8327
    %v8923 = vpop.f32.mrf.mxu0
    %v8924 = vadd.f32 0.0, %v8923
    %8925 = vmatmul.f32.gmra.mxu0 %v8330
    %v8926 = vpop.f32.mrf.mxu0
    %v8927 = vadd.f32 0.0, %v8926
    %8928 = vmatmul.f32.gmra.mxu0 %v8333
    %v8929 = vpop.f32.mrf.mxu0
    %v8930 = vadd.f32 0.0, %v8929
    %8931 = vmatmul.f32.gmra.mxu0 %v8336
    %v8932 = vpop.f32.mrf.mxu0
    %v8933 = vadd.f32 0.0, %v8932
    %8934 = vmatmul.f32.gmra.mxu0 %v8339
    %v8935 = vpop.f32.mrf.mxu0
    %v8936 = vadd.f32 0.0, %v8935
    %8937 = vmatmul.f32.gmra.mxu0 %v8342
    %v8938 = vpop.f32.mrf.mxu0
    %v8939 = vadd.f32 0.0, %v8938
    %8940 = vmatmul.f32.gmra.mxu0 %v8345
    %v8941 = vpop.f32.mrf.mxu0
    %v8942 = vadd.f32 0.0, %v8941
    %8943 = vmatmul.f32.gmra.mxu0 %v8348
    %v8944 = vpop.f32.mrf.mxu0
    %v8945 = vadd.f32 0.0, %v8944
    %8946 = vmatmul.f32.gmra.mxu0 %v8351
    %v8947 = vpop.f32.mrf.mxu0
    %v8948 = vadd.f32 0.0, %v8947
    %8949 = vmatmul.f32.gmra.mxu0 %v8354
    %v8950 = vpop.f32.mrf.mxu0
    %v8951 = vadd.f32 0.0, %v8950
    %8952 = vmatmul.f32.gmra.mxu0 %v8357
    %v8953 = vpop.f32.mrf.mxu0
    %v8954 = vadd.f32 0.0, %v8953
    %8955 = vmatmul.f32.gmra.mxu0 %v8360
    %v8956 = vpop.f32.mrf.mxu0
    %v8957 = vadd.f32 0.0, %v8956
    %8958 = vmatmul.f32.gmra.mxu0 %v8363
    %v8959 = vpop.f32.mrf.mxu0
    %v8960 = vadd.f32 0.0, %v8959
    %8961 = vmatmul.f32.gmra.mxu0 %v8366
    %v8962 = vpop.f32.mrf.mxu0
    %v8963 = vadd.f32 0.0, %v8962
    %8964 = vmatmul.f32.gmra.mxu0 %v8369
    %v8965 = vpop.f32.mrf.mxu0
    %v8966 = vadd.f32 0.0, %v8965
    %8967 = vmatmul.f32.gmra.mxu0 %v8372
    %v8968 = vpop.f32.mrf.mxu0
    %v8969 = vadd.f32 0.0, %v8968
    %8970 = vmatmul.f32.gmra.mxu0 %v8375
    %v8971 = vpop.f32.mrf.mxu0
    %v8972 = vadd.f32 0.0, %v8971
    %8973 = vmatmul.f32.gmra.mxu0 %v8378
    %v8974 = vpop.f32.mrf.mxu0
    %v8975 = vadd.f32 0.0, %v8974
    %8976 = vmatmul.f32.gmra.mxu0 %v8381
    %v8977 = vpop.f32.mrf.mxu0
    %v8978 = vadd.f32 0.0, %v8977
    %8979 = vmatmul.f32.gmra.mxu0 %v8384
    %v8980 = vpop.f32.mrf.mxu0
    %v8981 = vadd.f32 0.0, %v8980
    %8982 = vmatmul.f32.gmra.mxu0 %v8387
    %v8983 = vpop.f32.mrf.mxu0
    %v8984 = vadd.f32 0.0, %v8983
    %8985 = vmatmul.f32.gmra.mxu0 %v8390
    %v8986 = vpop.f32.mrf.mxu0
    %v8987 = vadd.f32 0.0, %v8986
    %8988 = vmatmul.f32.gmra.mxu0 %v8393
    %v8989 = vpop.f32.mrf.mxu0
    %v8990 = vadd.f32 0.0, %v8989
    %8991 = vmatmul.f32.gmra.mxu0 %v8396
    %v8992 = vpop.f32.mrf.mxu0
    %v8993 = vadd.f32 0.0, %v8992
    %8994 = vmatmul.f32.gmra.mxu0 %v8399
    %v8995 = vpop.f32.mrf.mxu0
    %v8996 = vadd.f32 0.0, %v8995
    %8997 = vmatmul.f32.gmra.mxu0 %v8402
    %v8998 = vpop.f32.mrf.mxu0
    %v8999 = vadd.f32 0.0, %v8998
    %9000 = vmatmul.f32.gmra.mxu0 %v8405
    %v9001 = vpop.f32.mrf.mxu0
    %v9002 = vadd.f32 0.0, %v9001
    %9003 = vmatmul.f32.gmra.mxu0 %v8408
    %v9004 = vpop.f32.mrf.mxu0
    %v9005 = vadd.f32 0.0, %v9004
    %9006 = vmatmul.f32.gmra.mxu0 %v8411
    %v9007 = vpop.f32.mrf.mxu0
    %v9008 = vadd.f32 0.0, %v9007
    %9009 = vmatmul.f32.gmra.mxu0 %v8414
    %v9010 = vpop.f32.mrf.mxu0
    %v9011 = vadd.f32 0.0, %v9010
    %9012 = vmatmul.f32.gmra.mxu0 %v8417
    %v9013 = vpop.f32.mrf.mxu0
    %v9014 = vadd.f32 0.0, %v9013
    %9015 = vmatmul.f32.gmra.mxu0 %v8420
    %v9016 = vpop.f32.mrf.mxu0
    %v9017 = vadd.f32 0.0, %v9016
    %9018 = vmatmul.f32.gmra.mxu0 %v8423
    %v9019 = vpop.f32.mrf.mxu0
    %v9020 = vadd.f32 0.0, %v9019
    %9021 = vmatmul.f32.gmra.mxu0 %v8426
    %v9022 = vpop.f32.mrf.mxu0
    %v9023 = vadd.f32 0.0, %v9022
    %9024 = vmatmul.f32.gmra.mxu0 %v8429
    %v9025 = vpop.f32.mrf.mxu0
    %v9026 = vadd.f32 0.0, %v9025
    %9027 = vmatmul.f32.gmra.mxu0 %v8432
    %v9028 = vpop.f32.mrf.mxu0
    %v9029 = vadd.f32 0.0, %v9028
    %9030 = vmatmul.f32.gmra.mxu0 %v8435
    %v9031 = vpop.f32.mrf.mxu0
    %v9032 = vadd.f32 0.0, %v9031
    %9033 = vmatmul.f32.gmra.mxu0 %v8438
    %v9034 = vpop.f32.mrf.mxu0
    %v9035 = vadd.f32 0.0, %v9034
    %9036 = vmatmul.f32.gmra.mxu0 %v8441
    %v9037 = vpop.f32.mrf.mxu0
    %v9038 = vadd.f32 0.0, %v9037
    %9039 = vmatmul.f32.gmra.mxu0 %v8444
    %v9040 = vpop.f32.mrf.mxu0
    %v9041 = vadd.f32 0.0, %v9040
    %9042 = vmatmul.f32.gmra.mxu0 %v8447
    %v9043 = vpop.f32.mrf.mxu0
    %v9044 = vadd.f32 0.0, %v9043
    %9045 = vmatmul.f32.gmra.mxu0 %v8450
    %v9046 = vpop.f32.mrf.mxu0
    %v9047 = vadd.f32 0.0, %v9046
    %9048 = vmatmul.f32.gmra.mxu0 %v8453
    %v9049 = vpop.f32.mrf.mxu0
    %v9050 = vadd.f32 0.0, %v9049
    %9051 = vmatmul.f32.gmra.mxu0 %v8456
    %v9052 = vpop.f32.mrf.mxu0
    %v9053 = vadd.f32 0.0, %v9052
    %9054 = vmatmul.f32.gmra.mxu0 %v8459
    %v9055 = vpop.f32.mrf.mxu0
    %v9056 = vadd.f32 0.0, %v9055
    %9057 = vmatmul.f32.gmra.mxu0 %v8462
    %v9058 = vpop.f32.mrf.mxu0
    %v9059 = vadd.f32 0.0, %v9058
    %9060 = vmatmul.f32.gmra.mxu0 %v8465
    %v9061 = vpop.f32.mrf.mxu0
    %v9062 = vadd.f32 0.0, %v9061
    %9063 = vmatmul.f32.gmra.mxu0 %v8468
    %v9064 = vpop.f32.mrf.mxu0
    %v9065 = vadd.f32 0.0, %v9064
    %9066 = vmatmul.f32.gmra.mxu0 %v8471
    %v9067 = vpop.f32.mrf.mxu0
    %v9068 = vadd.f32 0.0, %v9067
    %9069 = vmatmul.f32.gmra.mxu0 %v8474
    %v9070 = vpop.f32.mrf.mxu0
    %v9071 = vadd.f32 0.0, %v9070
    %9072 = vmatmul.f32.gmra.mxu0 %v8477
    %v9073 = vpop.f32.mrf.mxu0
    %v9074 = vadd.f32 0.0, %v9073
    %9075 = vmatmul.f32.gmra.mxu0 %v8480
    %v9076 = vpop.f32.mrf.mxu0
    %v9077 = vadd.f32 0.0, %v9076
    %9078 = vmatmul.f32.gmra.mxu0 %v8483
    %v9079 = vpop.f32.mrf.mxu0
    %v9080 = vadd.f32 0.0, %v9079
    %9081 = vmatmul.f32.gmra.mxu0 %v8486
    %v9082 = vpop.f32.mrf.mxu0
    %v9083 = vadd.f32 0.0, %v9082
    %9084 = vmatmul.f32.gmra.mxu0 %v8489
    %v9085 = vpop.f32.mrf.mxu0
    %v9086 = vadd.f32 0.0, %v9085
    %9087 = vmatmul.f32.gmra.mxu0 %v8492
    %v9088 = vpop.f32.mrf.mxu0
    %v9089 = vadd.f32 0.0, %v9088
    %9090 = vmatmul.f32.gmra.mxu0 %v8495
    %v9091 = vpop.f32.mrf.mxu0
    %v9092 = vadd.f32 0.0, %v9091
    %9093 = vmatmul.f32.gmra.mxu0 %v8498
    %v9094 = vpop.f32.mrf.mxu0
    %v9095 = vadd.f32 0.0, %v9094
    %9096 = vmatmul.f32.gmra.mxu0 %v8501
    %v9097 = vpop.f32.mrf.mxu0
    %v9098 = vadd.f32 0.0, %v9097
    %9099 = vmatmul.f32.gmra.mxu0 %v8504
    %v9100 = vpop.f32.mrf.mxu0
    %v9101 = vadd.f32 0.0, %v9100
    %9102 = vmatmul.f32.gmra.mxu0 %v8507
    %v9103 = vpop.f32.mrf.mxu0
    %v9104 = vadd.f32 0.0, %v9103
    %9105 = vmatmul.f32.gmra.mxu0 %v8510
    %v9106 = vpop.f32.mrf.mxu0
    %v9107 = vadd.f32 0.0, %v9106
    %9108 = vmatmul.f32.gmra.mxu0 %v8513
    %v9109 = vpop.f32.mrf.mxu0
    %v9110 = vadd.f32 0.0, %v9109
    %9111 = vmatmul.f32.gmra.mxu0 %v8516
    %v9112 = vpop.f32.mrf.mxu0
    %v9113 = vadd.f32 0.0, %v9112
    %9114 = vmatmul.f32.gmra.mxu0 %v8519
    %v9115 = vpop.f32.mrf.mxu0
    %v9116 = vadd.f32 0.0, %v9115
    %9117 = vmatmul.f32.gmra.mxu0 %v8522
    %v9118 = vpop.f32.mrf.mxu0
    %v9119 = vadd.f32 0.0, %v9118
    %9120 = vmatmul.f32.gmra.mxu0 %v8525
    %v9121 = vpop.f32.mrf.mxu0
    %v9122 = vadd.f32 0.0, %v9121
    %9123 = vmatmul.f32.gmra.mxu0 %v8528
    %v9124 = vpop.f32.mrf.mxu0
    %v9125 = vadd.f32 0.0, %v9124
    %9126 = vmatmul.f32.gmra.mxu0 %v8531
    %v9127 = vpop.f32.mrf.mxu0
    %v9128 = vadd.f32 0.0, %v9127
    %9129 = vmatmul.f32.gmra.mxu0 %v8534
    %v9130 = vpop.f32.mrf.mxu0
    %v9131 = vadd.f32 0.0, %v9130
    %9132 = vmatmul.f32.gmra.mxu0 %v8537
    %v9133 = vpop.f32.mrf.mxu0
    %v9134 = vadd.f32 0.0, %v9133
    %9135 = vmatmul.f32.gmra.mxu0 %v8540
    %v9136 = vpop.f32.mrf.mxu0
    %v9137 = vadd.f32 0.0, %v9136
    %9138 = vmatmul.f32.gmra.mxu0 %v8543
    %v9139 = vpop.f32.mrf.mxu0
    %v9140 = vadd.f32 0.0, %v9139
    %9141 = vmatmul.f32.gmra.mxu0 %v8546
    %v9142 = vpop.f32.mrf.mxu0
    %v9143 = vadd.f32 0.0, %v9142
    %9144 = vmatmul.f32.gmra.mxu0 %v8549
    %v9145 = vpop.f32.mrf.mxu0
    %v9146 = vadd.f32 0.0, %v9145
    %9147 = vmatmul.f32.gmra.mxu0 %v8552
    %v9148 = vpop.f32.mrf.mxu0
    %v9149 = vadd.f32 0.0, %v9148
    %9150 = vmatmul.f32.gmra.mxu0 %v8555
    %v9151 = vpop.f32.mrf.mxu0
    %v9152 = vadd.f32 0.0, %v9151
    %9153 = vmatmul.f32.gmra.mxu0 %v8558
    %v9154 = vpop.f32.mrf.mxu0
    %v9155 = vadd.f32 0.0, %v9154
    %9156 = vmatmul.f32.gmra.mxu0 %v8561
    %v9157 = vpop.f32.mrf.mxu0
    %v9158 = vadd.f32 0.0, %v9157
    %9159 = vmatmul.f32.gmra.mxu0 %v8564
    %v9160 = vpop.f32.mrf.mxu0
    %v9161 = vadd.f32 0.0, %v9160
    %9162 = vmatmul.f32.gmra.mxu0 %v8567
    %v9163 = vpop.f32.mrf.mxu0
    %v9164 = vadd.f32 0.0, %v9163
    %9165 = vmatmul.f32.gmra.mxu0 %v8570
    %v9166 = vpop.f32.mrf.mxu0
    %v9167 = vadd.f32 0.0, %v9166
    %9168 = vmatmul.f32.gmra.mxu0 %v8573
    %v9169 = vpop.f32.mrf.mxu0
    %v9170 = vadd.f32 0.0, %v9169
    %9171 = vmatmul.f32.gmra.mxu0 %v8576
    %v9172 = vpop.f32.mrf.mxu0
    %v9173 = vadd.f32 0.0, %v9172
    %9174 = vmatmul.f32.gmra.mxu0 %v8579
    %v9175 = vpop.f32.mrf.mxu0
    %v9176 = vadd.f32 0.0, %v9175
    %9177 = vmatmul.f32.gmra.mxu0 %v8582
    %v9178 = vpop.f32.mrf.mxu0
    %v9179 = vadd.f32 0.0, %v9178
    %9180 = vmatmul.f32.gmra.mxu0 %v8585
    %v9181 = vpop.f32.mrf.mxu0
    %v9182 = vadd.f32 0.0, %v9181
    %9183 = vmatmul.f32.gmra.mxu0 %v8588
    %v9184 = vpop.f32.mrf.mxu0
    %v9185 = vadd.f32 0.0, %v9184
    %9186 = vmatmul.f32.gmra.mxu0 %v8591
    %v9187 = vpop.f32.mrf.mxu0
    %v9188 = vadd.f32 0.0, %v9187
    %9189 = vmatmul.f32.gmra.mxu0 %v8594
    %v9190 = vpop.f32.mrf.mxu0
    %v9191 = vadd.f32 0.0, %v9190
    %9192 = vmatmul.f32.gmra.mxu0 %v8597
    %v9193 = vpop.f32.mrf.mxu0
    %v9194 = vadd.f32 0.0, %v9193
    %9195 = vmatmul.f32.gmra.mxu0 %v8600
    %v9196 = vpop.f32.mrf.mxu0
    %v9197 = vadd.f32 0.0, %v9196
    %9198 = vmatmul.f32.gmra.mxu0 %v8603
    %v9199 = vpop.f32.mrf.mxu0
    %v9200 = vadd.f32 0.0, %v9199
    %9201 = vmatmul.f32.gmra.mxu0 %v8606
    %v9202 = vpop.f32.mrf.mxu0
    %v9203 = vadd.f32 0.0, %v9202
    %9204 = vmatmul.f32.gmra.mxu0 %v8609
    %v9205 = vpop.f32.mrf.mxu0
    %v9206 = vadd.f32 0.0, %v9205
    %9207 = vmatmul.f32.gmra.mxu0 %v8612
    %v9208 = vpop.f32.mrf.mxu0
    %v9209 = vadd.f32 0.0, %v9208
    %9210 = vmatmul.f32.gmra.mxu0 %v8615
    %v9211 = vpop.f32.mrf.mxu0
    %v9212 = vadd.f32 0.0, %v9211
    %9213 = vmatmul.f32.gmra.mxu0 %v8618
    %v9214 = vpop.f32.mrf.mxu0
    %v9215 = vadd.f32 0.0, %v9214
    %9216 = vmatmul.f32.gmra.mxu0 %v8621
    %v9217 = vpop.f32.mrf.mxu0
    %v9218 = vadd.f32 0.0, %v9217
    %9219 = vmatmul.f32.gmra.mxu0 %v8624
    %v9220 = vpop.f32.mrf.mxu0
    %v9221 = vadd.f32 0.0, %v9220
    %9222 = vmatmul.f32.gmra.mxu0 %v8627
    %v9223 = vpop.f32.mrf.mxu0
    %v9224 = vadd.f32 0.0, %v9223
    %9225 = vmatmul.f32.gmra.mxu0 %v8630
    %v9226 = vpop.f32.mrf.mxu0
    %v9227 = vadd.f32 0.0, %v9226
    %9228 = vmatmul.f32.gmra.mxu0 %v8633
    %v9229 = vpop.f32.mrf.mxu0
    %v9230 = vadd.f32 0.0, %v9229
    %9231 = vmatmul.f32.gmra.mxu0 %v8636
    %v9232 = vpop.f32.mrf.mxu0
    %v9233 = vadd.f32 0.0, %v9232
    %9234 = vmatmul.f32.gmra.mxu0 %v8639
    %v9235 = vpop.f32.mrf.mxu0
    %v9236 = vadd.f32 0.0, %v9235
    %9237 = vmatmul.f32.gmra.mxu0 %v8642
    %v9238 = vpop.f32.mrf.mxu0
    %v9239 = vadd.f32 0.0, %v9238
    %9240 = vmatmul.f32.gmra.mxu0 %v8645
    %v9241 = vpop.f32.mrf.mxu0
    %v9242 = vadd.f32 0.0, %v9241
    %9243 = vmatmul.f32.gmra.mxu0 %v8648
    %v9244 = vpop.f32.mrf.mxu0
    %v9245 = vadd.f32 0.0, %v9244
    %9246 = vmatmul.f32.gmra.mxu0 %v8651
    %v9247 = vpop.f32.mrf.mxu0
    %v9248 = vadd.f32 0.0, %v9247
    %9249 = vmatmul.f32.gmra.mxu0 %v8654
    %v9250 = vpop.f32.mrf.mxu0
    %v9251 = vadd.f32 0.0, %v9250
    %9252 = vmatmul.f32.gmra.mxu0 %v8657
    %v9253 = vpop.f32.mrf.mxu0
    %v9254 = vadd.f32 0.0, %v9253
    %9255 = vmatmul.f32.gmra.mxu0 %v8660
    %v9256 = vpop.f32.mrf.mxu0
    %v9257 = vadd.f32 0.0, %v9256
    %9258 = vmatmul.f32.gmra.mxu0 %v8663
    %v9259 = vpop.f32.mrf.mxu0
    %v9260 = vadd.f32 0.0, %v9259
    %9261 = vmatmul.f32.gmra.mxu0 %v8666
    %v9262 = vpop.f32.mrf.mxu0
    %v9263 = vadd.f32 0.0, %v9262
    %9264 = vmatmul.f32.gmra.mxu0 %v8669
    %v9265 = vpop.f32.mrf.mxu0
    %v9266 = vadd.f32 0.0, %v9265
    %9267 = vmatmul.f32.gmra.mxu0 %v8672
    %v9268 = vpop.f32.mrf.mxu0
    %v9269 = vadd.f32 0.0, %v9268
    %9270 = vmatmul.f32.gmra.mxu0 %v8675
    %v9271 = vpop.f32.mrf.mxu0
    %v9272 = vadd.f32 0.0, %v9271
    %9273 = vmatmul.f32.gmra.mxu0 %v8678
    %v9274 = vpop.f32.mrf.mxu0
    %v9275 = vadd.f32 0.0, %v9274
    %9276 = vmatmul.f32.gmra.mxu0 %v8681
    %v9277 = vpop.f32.mrf.mxu0
    %v9278 = vadd.f32 0.0, %v9277
    %9279 = vmatmul.f32.gmra.mxu0 %v8684
    %v9280 = vpop.f32.mrf.mxu0
    %v9281 = vadd.f32 0.0, %v9280
    %9282 = vmatmul.f32.gmra.mxu0 %v8687
    %v9283 = vpop.f32.mrf.mxu0
    %v9284 = vadd.f32 0.0, %v9283
    %9285 = vmatmul.f32.gmra.mxu0 %v8690
    %v9286 = vpop.f32.mrf.mxu0
    %v9287 = vadd.f32 0.0, %v9286
    %9288 = vmatmul.f32.gmra.mxu0 %v8693
    %v9289 = vpop.f32.mrf.mxu0
    %v9290 = vadd.f32 0.0, %v9289
    %9291 = vmatmul.f32.gmra.mxu0 %v8696
    %v9292 = vpop.f32.mrf.mxu0
    %v9293 = vadd.f32 0.0, %v9292
    %9294 = vmatmul.f32.gmra.mxu0 %v8699
    %v9295 = vpop.f32.mrf.mxu0
    %v9296 = vadd.f32 0.0, %v9295
    %9297 = vmatmul.f32.gmra.mxu0 %v8702
    %v9298 = vpop.f32.mrf.mxu0
    %v9299 = vadd.f32 0.0, %v9298
    %9300 = vmatmul.f32.gmra.mxu0 %v8705
    %v9301 = vpop.f32.mrf.mxu0
    %v9302 = vadd.f32 0.0, %v9301
    %9303 = vmatmul.f32.gmra.mxu0 %v8708
    %v9304 = vpop.f32.mrf.mxu0
    %v9305 = vadd.f32 0.0, %v9304
    %9306 = vmatmul.f32.gmra.mxu0 %v8711
    %v9307 = vpop.f32.mrf.mxu0
    %v9308 = vadd.f32 0.0, %v9307
    %9309 = vmatmul.f32.gmra.mxu0 %v8714
    %v9310 = vpop.f32.mrf.mxu0
    %v9311 = vadd.f32 0.0, %v9310
    %9312 = vmatmul.f32.gmra.mxu0 %v8717
    %v9313 = vpop.f32.mrf.mxu0
    %v9314 = vadd.f32 0.0, %v9313
    %9315 = vmatmul.f32.gmra.mxu0 %v8720
    %v9316 = vpop.f32.mrf.mxu0
    %v9317 = vadd.f32 0.0, %v9316
    %9318 = vmatmul.f32.gmra.mxu0 %v8723
    %v9319 = vpop.f32.mrf.mxu0
    %v9320 = vadd.f32 0.0, %v9319
    %9321 = vmatmul.f32.gmra.mxu0 %v8726
    %v9322 = vpop.f32.mrf.mxu0
    %v9323 = vadd.f32 0.0, %v9322
    %9324 = vmatmul.f32.gmra.mxu0 %v8729
    %v9325 = vpop.f32.mrf.mxu0
    %v9326 = vadd.f32 0.0, %v9325
    %9327 = vmatmul.f32.gmra.mxu0 %v8732
    %v9328 = vpop.f32.mrf.mxu0
    %v9329 = vadd.f32 0.0, %v9328
    %9330 = vmatmul.f32.gmra.mxu0 %v8735
    %v9331 = vpop.f32.mrf.mxu0
    %v9332 = vadd.f32 0.0, %v9331
    %9333 = vmatmul.f32.gmra.mxu0 %v8738
    %v9334 = vpop.f32.mrf.mxu0
    %v9335 = vadd.f32 0.0, %v9334
    %9336 = vmatmul.f32.gmra.mxu0 %v8741
    %v9337 = vpop.f32.mrf.mxu0
    %v9338 = vadd.f32 0.0, %v9337
    %9339 = vmatmul.f32.gmra.mxu0 %v8744
    %v9340 = vpop.f32.mrf.mxu0
    %v9341 = vadd.f32 0.0, %v9340
    %9342 = vmatmul.f32.gmra.mxu0 %v8747
    %v9343 = vpop.f32.mrf.mxu0
    %v9344 = vadd.f32 0.0, %v9343
    %9345 = vmatmul.f32.gmra.mxu0 %v8750
    %v9346 = vpop.f32.mrf.mxu0
    %v9347 = vadd.f32 0.0, %v9346
    %9348 = vmatmul.f32.gmra.mxu0 %v8753
    %v9349 = vpop.f32.mrf.mxu0
    %v9350 = vadd.f32 0.0, %v9349
    %9351 = vmatmul.f32.gmra.mxu0 %v8756
    %v9352 = vpop.f32.mrf.mxu0
    %v9353 = vadd.f32 0.0, %v9352
    %9354 = vmatmul.f32.gmra.mxu0 %v8759
    %v9355 = vpop.f32.mrf.mxu0
    %v9356 = vadd.f32 0.0, %v9355
    %9357 = vmatmul.f32.gmra.mxu0 %v8762
    %v9358 = vpop.f32.mrf.mxu0
    %v9359 = vadd.f32 0.0, %v9358
    %9360 = vmatmul.f32.gmra.mxu0 %v8765
    %v9361 = vpop.f32.mrf.mxu0
    %v9362 = vadd.f32 0.0, %v9361
    %9363 = vmatmul.f32.gmra.mxu0 %v8768
    %v9364 = vpop.f32.mrf.mxu0
    %v9365 = vadd.f32 0.0, %v9364
    %9366 = vmatmul.f32.gmra.mxu0 %v8771
    %v9367 = vpop.f32.mrf.mxu0
    %v9368 = vadd.f32 0.0, %v9367
    %9369 = vdwg.mxu0
    %v9371 = vsel %vm8196, %v7784, 0
    %v9374 = vsel %vm8196, %v7785, 0
    %v9377 = vsel %vm8196, %v7786, 0
    %v9380 = vsel %vm8196, %v7787, 0
    %v9383 = vsel %vm8196, %v7788, 0
    %v9386 = vsel %vm8196, %v7789, 0
    %v9389 = vsel %vm8196, %v7790, 0
    %v9392 = vsel %vm8196, %v7791, 0
    %v9395 = vsel %vm8196, %v7792, 0
    %v9398 = vsel %vm8196, %v7793, 0
    %v9401 = vsel %vm8196, %v7794, 0
    %v9404 = vsel %vm8196, %v7795, 0
    %v9407 = vsel %vm8196, %v7796, 0
    %v9410 = vsel %vm8196, %v7797, 0
    %v9413 = vsel %vm8196, %v7798, 0
    %v9416 = vsel %vm8196, %v7799, 0
    %v9419 = vsel %vm8196, %v7816, 0
    %v9422 = vsel %vm8196, %v7817, 0
    %v9425 = vsel %vm8196, %v7818, 0
    %v9428 = vsel %vm8196, %v7819, 0
    %v9431 = vsel %vm8196, %v7820, 0
    %v9434 = vsel %vm8196, %v7821, 0
    %v9437 = vsel %vm8196, %v7822, 0
    %v9440 = vsel %vm8196, %v7823, 0
    %v9443 = vsel %vm8196, %v7824, 0
    %v9446 = vsel %vm8196, %v7825, 0
    %v9449 = vsel %vm8196, %v7826, 0
    %v9452 = vsel %vm8196, %v7827, 0
    %v9455 = vsel %vm8196, %v7828, 0
    %v9458 = vsel %vm8196, %v7829, 0
    %v9461 = vsel %vm8196, %v7830, 0
    %v9464 = vsel %vm8196, %v7831, 0
    %v9467 = vsel %vm8196, %v7848, 0
    %v9470 = vsel %vm8196, %v7849, 0
    %v9473 = vsel %vm8196, %v7850, 0
    %v9476 = vsel %vm8196, %v7851, 0
    %v9479 = vsel %vm8196, %v7852, 0
    %v9482 = vsel %vm8196, %v7853, 0
    %v9485 = vsel %vm8196, %v7854, 0
    %v9488 = vsel %vm8196, %v7855, 0
    %v9491 = vsel %vm8196, %v7856, 0
    %v9494 = vsel %vm8196, %v7857, 0
    %v9497 = vsel %vm8196, %v7858, 0
    %v9500 = vsel %vm8196, %v7859, 0
    %v9503 = vsel %vm8196, %v7860, 0
    %v9506 = vsel %vm8196, %v7861, 0
    %v9509 = vsel %vm8196, %v7862, 0
    %v9512 = vsel %vm8196, %v7863, 0
    %v9515 = vsel %vm8196, %v7880, 0
    %v9518 = vsel %vm8196, %v7881, 0
    %v9521 = vsel %vm8196, %v7882, 0
    %v9524 = vsel %vm8196, %v7883, 0
    %v9527 = vsel %vm8196, %v7884, 0
    %v9530 = vsel %vm8196, %v7885, 0
    %v9533 = vsel %vm8196, %v7886, 0
    %v9536 = vsel %vm8196, %v7887, 0
    %v9539 = vsel %vm8196, %v7888, 0
    %v9542 = vsel %vm8196, %v7889, 0
    %v9545 = vsel %vm8196, %v7890, 0
    %v9548 = vsel %vm8196, %v7891, 0
    %v9551 = vsel %vm8196, %v7892, 0
    %v9554 = vsel %vm8196, %v7893, 0
    %v9557 = vsel %vm8196, %v7894, 0
    %v9560 = vsel %vm8196, %v7895, 0
    %v9563 = vsel %vm8196, %v7912, 0
    %v9566 = vsel %vm8196, %v7913, 0
    %v9569 = vsel %vm8196, %v7914, 0
    %v9572 = vsel %vm8196, %v7915, 0
    %v9575 = vsel %vm8196, %v7916, 0
    %v9578 = vsel %vm8196, %v7917, 0
    %v9581 = vsel %vm8196, %v7918, 0
    %v9584 = vsel %vm8196, %v7919, 0
    %v9587 = vsel %vm8196, %v7920, 0
    %v9590 = vsel %vm8196, %v7921, 0
    %v9593 = vsel %vm8196, %v7922, 0
    %v9596 = vsel %vm8196, %v7923, 0
    %v9599 = vsel %vm8196, %v7924, 0
    %v9602 = vsel %vm8196, %v7925, 0
    %v9605 = vsel %vm8196, %v7926, 0
    %v9608 = vsel %vm8196, %v7927, 0
    %v9611 = vsel %vm8196, %v7944, 0
    %v9614 = vsel %vm8196, %v7945, 0
    %v9617 = vsel %vm8196, %v7946, 0
    %v9620 = vsel %vm8196, %v7947, 0
    %v9623 = vsel %vm8196, %v7948, 0
    %v9626 = vsel %vm8196, %v7949, 0
    %v9629 = vsel %vm8196, %v7950, 0
    %v9632 = vsel %vm8196, %v7951, 0
    %v9635 = vsel %vm8196, %v7952, 0
    %v9638 = vsel %vm8196, %v7953, 0
    %v9641 = vsel %vm8196, %v7954, 0
    %v9644 = vsel %vm8196, %v7955, 0
    %v9647 = vsel %vm8196, %v7956, 0
    %v9650 = vsel %vm8196, %v7957, 0
    %v9653 = vsel %vm8196, %v7958, 0
    %v9656 = vsel %vm8196, %v7959, 0
    %v9659 = vsel %vm8196, %v7976, 0
    %v9662 = vsel %vm8196, %v7977, 0
    %v9665 = vsel %vm8196, %v7978, 0
    %v9668 = vsel %vm8196, %v7979, 0
    %v9671 = vsel %vm8196, %v7980, 0
    %v9674 = vsel %vm8196, %v7981, 0
    %v9677 = vsel %vm8196, %v7982, 0
    %v9680 = vsel %vm8196, %v7983, 0
    %v9683 = vsel %vm8196, %v7984, 0
    %v9686 = vsel %vm8196, %v7985, 0
    %v9689 = vsel %vm8196, %v7986, 0
    %v9692 = vsel %vm8196, %v7987, 0
    %v9695 = vsel %vm8196, %v7988, 0
    %v9698 = vsel %vm8196, %v7989, 0
    %v9701 = vsel %vm8196, %v7990, 0
    %v9704 = vsel %vm8196, %v7991, 0
    %v9707 = vsel %vm8196, %v8008, 0
    %v9710 = vsel %vm8196, %v8009, 0
    %v9713 = vsel %vm8196, %v8010, 0
    %v9716 = vsel %vm8196, %v8011, 0
    %v9719 = vsel %vm8196, %v8012, 0
    %v9722 = vsel %vm8196, %v8013, 0
    %v9725 = vsel %vm8196, %v8014, 0
    %v9728 = vsel %vm8196, %v8015, 0
    %v9731 = vsel %vm8196, %v8016, 0
    %v9734 = vsel %vm8196, %v8017, 0
    %v9737 = vsel %vm8196, %v8018, 0
    %v9740 = vsel %vm8196, %v8019, 0
    %v9743 = vsel %vm8196, %v8020, 0
    %v9746 = vsel %vm8196, %v8021, 0
    %v9749 = vsel %vm8196, %v8022, 0
    %v9752 = vsel %vm8196, %v8023, 0
    %v9755 = vsel %vm8196, %v8040, 0
    %v9758 = vsel %vm8196, %v8041, 0
    %v9761 = vsel %vm8196, %v8042, 0
    %v9764 = vsel %vm8196, %v8043, 0
    %v9767 = vsel %vm8196, %v8044, 0
    %v9770 = vsel %vm8196, %v8045, 0
    %v9773 = vsel %vm8196, %v8046, 0
    %v9776 = vsel %vm8196, %v8047, 0
    %v9779 = vsel %vm8196, %v8048, 0
    %v9782 = vsel %vm8196, %v8049, 0
    %v9785 = vsel %vm8196, %v8050, 0
    %v9788 = vsel %vm8196, %v8051, 0
    %v9791 = vsel %vm8196, %v8052, 0
    %v9794 = vsel %vm8196, %v8053, 0
    %v9797 = vsel %vm8196, %v8054, 0
    %v9800 = vsel %vm8196, %v8055, 0
    %v9803 = vsel %vm8196, %v8072, 0
    %v9806 = vsel %vm8196, %v8073, 0
    %v9809 = vsel %vm8196, %v8074, 0
    %v9812 = vsel %vm8196, %v8075, 0
    %v9815 = vsel %vm8196, %v8076, 0
    %v9818 = vsel %vm8196, %v8077, 0
    %v9821 = vsel %vm8196, %v8078, 0
    %v9824 = vsel %vm8196, %v8079, 0
    %v9827 = vsel %vm8196, %v8080, 0
    %v9830 = vsel %vm8196, %v8081, 0
    %v9833 = vsel %vm8196, %v8082, 0
    %v9836 = vsel %vm8196, %v8083, 0
    %v9839 = vsel %vm8196, %v8084, 0
    %v9842 = vsel %vm8196, %v8085, 0
    %v9845 = vsel %vm8196, %v8086, 0
    %v9848 = vsel %vm8196, %v8087, 0
    %v9851 = vsel %vm8196, %v8104, 0
    %v9854 = vsel %vm8196, %v8105, 0
    %v9857 = vsel %vm8196, %v8106, 0
    %v9860 = vsel %vm8196, %v8107, 0
    %v9863 = vsel %vm8196, %v8108, 0
    %v9866 = vsel %vm8196, %v8109, 0
    %v9869 = vsel %vm8196, %v8110, 0
    %v9872 = vsel %vm8196, %v8111, 0
    %v9875 = vsel %vm8196, %v8112, 0
    %v9878 = vsel %vm8196, %v8113, 0
    %v9881 = vsel %vm8196, %v8114, 0
    %v9884 = vsel %vm8196, %v8115, 0
    %v9887 = vsel %vm8196, %v8116, 0
    %v9890 = vsel %vm8196, %v8117, 0
    %v9893 = vsel %vm8196, %v8118, 0
    %v9896 = vsel %vm8196, %v8119, 0
    %v9899 = vsel %vm8196, %v8136, 0
    %v9902 = vsel %vm8196, %v8137, 0
    %v9905 = vsel %vm8196, %v8138, 0
    %v9908 = vsel %vm8196, %v8139, 0
    %v9911 = vsel %vm8196, %v8140, 0
    %v9914 = vsel %vm8196, %v8141, 0
    %v9917 = vsel %vm8196, %v8142, 0
    %v9920 = vsel %vm8196, %v8143, 0
    %v9923 = vsel %vm8196, %v8144, 0
    %v9926 = vsel %vm8196, %v8145, 0
    %v9929 = vsel %vm8196, %v8146, 0
    %v9932 = vsel %vm8196, %v8147, 0
    %v9935 = vsel %vm8196, %v8148, 0
    %v9938 = vsel %vm8196, %v8149, 0
    %v9941 = vsel %vm8196, %v8150, 0
    %v9944 = vsel %vm8196, %v8151, 0
    %v9947 = vsel %vm8773, %v8189, 0
    %9949 = vmatpush.msra.mxu0 0.0
    %9950 = vmatpush.msra.mxu0 0.0
    %9951 = vmatpush.msra.mxu0 0.0
    %9952 = vmatpush.msra.mxu0 0.0
    %9953 = vmatpush.msra.mxu0 0.0
    %9954 = vmatpush.msra.mxu0 0.0
    %9955 = vmatpush.msra.mxu0 0.0
    %9956 = vmatpush.msra.mxu0 0.0
    %9957 = vmatpush.msra.mxu0 0.0
    %9958 = vmatpush.msra.mxu0 0.0
    %9959 = vmatpush.msra.mxu0 %v9947
    %9960 = vmatpush.msra.mxu0 %v8188
    %9961 = vmatpush.msra.mxu0 %v8187
    %9962 = vmatpush.msra.mxu0 %v8186
    %9963 = vmatpush.msra.mxu0 %v8185
    %9964 = vmatpush.msra.mxu0 %v8184
    %9965 = vmatmul.f32.gmra.mxu0 %v9371
    %v9966 = vpop.f32.mrf.mxu0
    %v9967 = vadd.f32 %v8795, %v9966
    %9968 = vmatmul.f32.gmra.mxu0 %v9374
    %v9969 = vpop.f32.mrf.mxu0
    %v9970 = vadd.f32 %v8798, %v9969
    %9971 = vmatmul.f32.gmra.mxu0 %v9377
    %v9972 = vpop.f32.mrf.mxu0
    %v9973 = vadd.f32 %v8801, %v9972
    %9974 = vmatmul.f32.gmra.mxu0 %v9380
    %v9975 = vpop.f32.mrf.mxu0
    %v9976 = vadd.f32 %v8804, %v9975
    %9977 = vmatmul.f32.gmra.mxu0 %v9383
    %v9978 = vpop.f32.mrf.mxu0
    %v9979 = vadd.f32 %v8807, %v9978
    %9980 = vmatmul.f32.gmra.mxu0 %v9386
    %v9981 = vpop.f32.mrf.mxu0
    %v9982 = vadd.f32 %v8810, %v9981
    %9983 = vmatmul.f32.gmra.mxu0 %v9389
    %v9984 = vpop.f32.mrf.mxu0
    %v9985 = vadd.f32 %v8813, %v9984
    %9986 = vmatmul.f32.gmra.mxu0 %v9392
    %v9987 = vpop.f32.mrf.mxu0
    %v9988 = vadd.f32 %v8816, %v9987
    %9989 = vmatmul.f32.gmra.mxu0 %v9395
    %v9990 = vpop.f32.mrf.mxu0
    %v9991 = vadd.f32 %v8819, %v9990
    %9992 = vmatmul.f32.gmra.mxu0 %v9398
    %v9993 = vpop.f32.mrf.mxu0
    %v9994 = vadd.f32 %v8822, %v9993
    %9995 = vmatmul.f32.gmra.mxu0 %v9401
    %v9996 = vpop.f32.mrf.mxu0
    %v9997 = vadd.f32 %v8825, %v9996
    %9998 = vmatmul.f32.gmra.mxu0 %v9404
    %v9999 = vpop.f32.mrf.mxu0
    %v10000 = vadd.f32 %v8828, %v9999
    %10001 = vmatmul.f32.gmra.mxu0 %v9407
    %v10002 = vpop.f32.mrf.mxu0
    %v10003 = vadd.f32 %v8831, %v10002
    %10004 = vmatmul.f32.gmra.mxu0 %v9410
    %v10005 = vpop.f32.mrf.mxu0
    %v10006 = vadd.f32 %v8834, %v10005
    %10007 = vmatmul.f32.gmra.mxu0 %v9413
    %v10008 = vpop.f32.mrf.mxu0
    %v10009 = vadd.f32 %v8837, %v10008
    %10010 = vmatmul.f32.gmra.mxu0 %v9416
    %v10011 = vpop.f32.mrf.mxu0
    %v10012 = vadd.f32 %v8840, %v10011
    %10013 = vmatmul.f32.gmra.mxu0 %v9419
    %v10014 = vpop.f32.mrf.mxu0
    %v10015 = vadd.f32 %v8843, %v10014
    %10016 = vmatmul.f32.gmra.mxu0 %v9422
    %v10017 = vpop.f32.mrf.mxu0
    %v10018 = vadd.f32 %v8846, %v10017
    %10019 = vmatmul.f32.gmra.mxu0 %v9425
    %v10020 = vpop.f32.mrf.mxu0
    %v10021 = vadd.f32 %v8849, %v10020
    %10022 = vmatmul.f32.gmra.mxu0 %v9428
    %v10023 = vpop.f32.mrf.mxu0
    %v10024 = vadd.f32 %v8852, %v10023
    %10025 = vmatmul.f32.gmra.mxu0 %v9431
    %v10026 = vpop.f32.mrf.mxu0
    %v10027 = vadd.f32 %v8855, %v10026
    %10028 = vmatmul.f32.gmra.mxu0 %v9434
    %v10029 = vpop.f32.mrf.mxu0
    %v10030 = vadd.f32 %v8858, %v10029
    %10031 = vmatmul.f32.gmra.mxu0 %v9437
    %v10032 = vpop.f32.mrf.mxu0
    %v10033 = vadd.f32 %v8861, %v10032
    %10034 = vmatmul.f32.gmra.mxu0 %v9440
    %v10035 = vpop.f32.mrf.mxu0
    %v10036 = vadd.f32 %v8864, %v10035
    %10037 = vmatmul.f32.gmra.mxu0 %v9443
    %v10038 = vpop.f32.mrf.mxu0
    %v10039 = vadd.f32 %v8867, %v10038
    %10040 = vmatmul.f32.gmra.mxu0 %v9446
    %v10041 = vpop.f32.mrf.mxu0
    %v10042 = vadd.f32 %v8870, %v10041
    %10043 = vmatmul.f32.gmra.mxu0 %v9449
    %v10044 = vpop.f32.mrf.mxu0
    %v10045 = vadd.f32 %v8873, %v10044
    %10046 = vmatmul.f32.gmra.mxu0 %v9452
    %v10047 = vpop.f32.mrf.mxu0
    %v10048 = vadd.f32 %v8876, %v10047
    %10049 = vmatmul.f32.gmra.mxu0 %v9455
    %v10050 = vpop.f32.mrf.mxu0
    %v10051 = vadd.f32 %v8879, %v10050
    %10052 = vmatmul.f32.gmra.mxu0 %v9458
    %v10053 = vpop.f32.mrf.mxu0
    %v10054 = vadd.f32 %v8882, %v10053
    %10055 = vmatmul.f32.gmra.mxu0 %v9461
    %v10056 = vpop.f32.mrf.mxu0
    %v10057 = vadd.f32 %v8885, %v10056
    %10058 = vmatmul.f32.gmra.mxu0 %v9464
    %v10059 = vpop.f32.mrf.mxu0
    %v10060 = vadd.f32 %v8888, %v10059
    %10061 = vmatmul.f32.gmra.mxu0 %v9467
    %v10062 = vpop.f32.mrf.mxu0
    %v10063 = vadd.f32 %v8891, %v10062
    %10064 = vmatmul.f32.gmra.mxu0 %v9470
    %v10065 = vpop.f32.mrf.mxu0
    %v10066 = vadd.f32 %v8894, %v10065
    %10067 = vmatmul.f32.gmra.mxu0 %v9473
    %v10068 = vpop.f32.mrf.mxu0
    %v10069 = vadd.f32 %v8897, %v10068
    %10070 = vmatmul.f32.gmra.mxu0 %v9476
    %v10071 = vpop.f32.mrf.mxu0
    %v10072 = vadd.f32 %v8900, %v10071
    %10073 = vmatmul.f32.gmra.mxu0 %v9479
    %v10074 = vpop.f32.mrf.mxu0
    %v10075 = vadd.f32 %v8903, %v10074
    %10076 = vmatmul.f32.gmra.mxu0 %v9482
    %v10077 = vpop.f32.mrf.mxu0
    %v10078 = vadd.f32 %v8906, %v10077
    %10079 = vmatmul.f32.gmra.mxu0 %v9485
    %v10080 = vpop.f32.mrf.mxu0
    %v10081 = vadd.f32 %v8909, %v10080
    %10082 = vmatmul.f32.gmra.mxu0 %v9488
    %v10083 = vpop.f32.mrf.mxu0
    %v10084 = vadd.f32 %v8912, %v10083
    %10085 = vmatmul.f32.gmra.mxu0 %v9491
    %v10086 = vpop.f32.mrf.mxu0
    %v10087 = vadd.f32 %v8915, %v10086
    %10088 = vmatmul.f32.gmra.mxu0 %v9494
    %v10089 = vpop.f32.mrf.mxu0
    %v10090 = vadd.f32 %v8918, %v10089
    %10091 = vmatmul.f32.gmra.mxu0 %v9497
    %v10092 = vpop.f32.mrf.mxu0
    %v10093 = vadd.f32 %v8921, %v10092
    %10094 = vmatmul.f32.gmra.mxu0 %v9500
    %v10095 = vpop.f32.mrf.mxu0
    %v10096 = vadd.f32 %v8924, %v10095
    %10097 = vmatmul.f32.gmra.mxu0 %v9503
    %v10098 = vpop.f32.mrf.mxu0
    %v10099 = vadd.f32 %v8927, %v10098
    %10100 = vmatmul.f32.gmra.mxu0 %v9506
    %v10101 = vpop.f32.mrf.mxu0
    %v10102 = vadd.f32 %v8930, %v10101
    %10103 = vmatmul.f32.gmra.mxu0 %v9509
    %v10104 = vpop.f32.mrf.mxu0
    %v10105 = vadd.f32 %v8933, %v10104
    %10106 = vmatmul.f32.gmra.mxu0 %v9512
    %v10107 = vpop.f32.mrf.mxu0
    %v10108 = vadd.f32 %v8936, %v10107
    %10109 = vmatmul.f32.gmra.mxu0 %v9515
    %v10110 = vpop.f32.mrf.mxu0
    %v10111 = vadd.f32 %v8939, %v10110
    %10112 = vmatmul.f32.gmra.mxu0 %v9518
    %v10113 = vpop.f32.mrf.mxu0
    %v10114 = vadd.f32 %v8942, %v10113
    %10115 = vmatmul.f32.gmra.mxu0 %v9521
    %v10116 = vpop.f32.mrf.mxu0
    %v10117 = vadd.f32 %v8945, %v10116
    %10118 = vmatmul.f32.gmra.mxu0 %v9524
    %v10119 = vpop.f32.mrf.mxu0
    %v10120 = vadd.f32 %v8948, %v10119
    %10121 = vmatmul.f32.gmra.mxu0 %v9527
    %v10122 = vpop.f32.mrf.mxu0
    %v10123 = vadd.f32 %v8951, %v10122
    %10124 = vmatmul.f32.gmra.mxu0 %v9530
    %v10125 = vpop.f32.mrf.mxu0
    %v10126 = vadd.f32 %v8954, %v10125
    %10127 = vmatmul.f32.gmra.mxu0 %v9533
    %v10128 = vpop.f32.mrf.mxu0
    %v10129 = vadd.f32 %v8957, %v10128
    %10130 = vmatmul.f32.gmra.mxu0 %v9536
    %v10131 = vpop.f32.mrf.mxu0
    %v10132 = vadd.f32 %v8960, %v10131
    %10133 = vmatmul.f32.gmra.mxu0 %v9539
    %v10134 = vpop.f32.mrf.mxu0
    %v10135 = vadd.f32 %v8963, %v10134
    %10136 = vmatmul.f32.gmra.mxu0 %v9542
    %v10137 = vpop.f32.mrf.mxu0
    %v10138 = vadd.f32 %v8966, %v10137
    %10139 = vmatmul.f32.gmra.mxu0 %v9545
    %v10140 = vpop.f32.mrf.mxu0
    %v10141 = vadd.f32 %v8969, %v10140
    %10142 = vmatmul.f32.gmra.mxu0 %v9548
    %v10143 = vpop.f32.mrf.mxu0
    %v10144 = vadd.f32 %v8972, %v10143
    %10145 = vmatmul.f32.gmra.mxu0 %v9551
    %v10146 = vpop.f32.mrf.mxu0
    %v10147 = vadd.f32 %v8975, %v10146
    %10148 = vmatmul.f32.gmra.mxu0 %v9554
    %v10149 = vpop.f32.mrf.mxu0
    %v10150 = vadd.f32 %v8978, %v10149
    %10151 = vmatmul.f32.gmra.mxu0 %v9557
    %v10152 = vpop.f32.mrf.mxu0
    %v10153 = vadd.f32 %v8981, %v10152
    %10154 = vmatmul.f32.gmra.mxu0 %v9560
    %v10155 = vpop.f32.mrf.mxu0
    %v10156 = vadd.f32 %v8984, %v10155
    %10157 = vmatmul.f32.gmra.mxu0 %v9563
    %v10158 = vpop.f32.mrf.mxu0
    %v10159 = vadd.f32 %v8987, %v10158
    %10160 = vmatmul.f32.gmra.mxu0 %v9566
    %v10161 = vpop.f32.mrf.mxu0
    %v10162 = vadd.f32 %v8990, %v10161
    %10163 = vmatmul.f32.gmra.mxu0 %v9569
    %v10164 = vpop.f32.mrf.mxu0
    %v10165 = vadd.f32 %v8993, %v10164
    %10166 = vmatmul.f32.gmra.mxu0 %v9572
    %v10167 = vpop.f32.mrf.mxu0
    %v10168 = vadd.f32 %v8996, %v10167
    %10169 = vmatmul.f32.gmra.mxu0 %v9575
    %v10170 = vpop.f32.mrf.mxu0
    %v10171 = vadd.f32 %v8999, %v10170
    %10172 = vmatmul.f32.gmra.mxu0 %v9578
    %v10173 = vpop.f32.mrf.mxu0
    %v10174 = vadd.f32 %v9002, %v10173
    %10175 = vmatmul.f32.gmra.mxu0 %v9581
    %v10176 = vpop.f32.mrf.mxu0
    %v10177 = vadd.f32 %v9005, %v10176
    %10178 = vmatmul.f32.gmra.mxu0 %v9584
    %v10179 = vpop.f32.mrf.mxu0
    %v10180 = vadd.f32 %v9008, %v10179
    %10181 = vmatmul.f32.gmra.mxu0 %v9587
    %v10182 = vpop.f32.mrf.mxu0
    %v10183 = vadd.f32 %v9011, %v10182
    %10184 = vmatmul.f32.gmra.mxu0 %v9590
    %v10185 = vpop.f32.mrf.mxu0
    %v10186 = vadd.f32 %v9014, %v10185
    %10187 = vmatmul.f32.gmra.mxu0 %v9593
    %v10188 = vpop.f32.mrf.mxu0
    %v10189 = vadd.f32 %v9017, %v10188
    %10190 = vmatmul.f32.gmra.mxu0 %v9596
    %v10191 = vpop.f32.mrf.mxu0
    %v10192 = vadd.f32 %v9020, %v10191
    %10193 = vmatmul.f32.gmra.mxu0 %v9599
    %v10194 = vpop.f32.mrf.mxu0
    %v10195 = vadd.f32 %v9023, %v10194
    %10196 = vmatmul.f32.gmra.mxu0 %v9602
    %v10197 = vpop.f32.mrf.mxu0
    %v10198 = vadd.f32 %v9026, %v10197
    %10199 = vmatmul.f32.gmra.mxu0 %v9605
    %v10200 = vpop.f32.mrf.mxu0
    %v10201 = vadd.f32 %v9029, %v10200
    %10202 = vmatmul.f32.gmra.mxu0 %v9608
    %v10203 = vpop.f32.mrf.mxu0
    %v10204 = vadd.f32 %v9032, %v10203
    %10205 = vmatmul.f32.gmra.mxu0 %v9611
    %v10206 = vpop.f32.mrf.mxu0
    %v10207 = vadd.f32 %v9035, %v10206
    %10208 = vmatmul.f32.gmra.mxu0 %v9614
    %v10209 = vpop.f32.mrf.mxu0
    %v10210 = vadd.f32 %v9038, %v10209
    %10211 = vmatmul.f32.gmra.mxu0 %v9617
    %v10212 = vpop.f32.mrf.mxu0
    %v10213 = vadd.f32 %v9041, %v10212
    %10214 = vmatmul.f32.gmra.mxu0 %v9620
    %v10215 = vpop.f32.mrf.mxu0
    %v10216 = vadd.f32 %v9044, %v10215
    %10217 = vmatmul.f32.gmra.mxu0 %v9623
    %v10218 = vpop.f32.mrf.mxu0
    %v10219 = vadd.f32 %v9047, %v10218
    %10220 = vmatmul.f32.gmra.mxu0 %v9626
    %v10221 = vpop.f32.mrf.mxu0
    %v10222 = vadd.f32 %v9050, %v10221
    %10223 = vmatmul.f32.gmra.mxu0 %v9629
    %v10224 = vpop.f32.mrf.mxu0
    %v10225 = vadd.f32 %v9053, %v10224
    %10226 = vmatmul.f32.gmra.mxu0 %v9632
    %v10227 = vpop.f32.mrf.mxu0
    %v10228 = vadd.f32 %v9056, %v10227
    %10229 = vmatmul.f32.gmra.mxu0 %v9635
    %v10230 = vpop.f32.mrf.mxu0
    %v10231 = vadd.f32 %v9059, %v10230
    %10232 = vmatmul.f32.gmra.mxu0 %v9638
    %v10233 = vpop.f32.mrf.mxu0
    %v10234 = vadd.f32 %v9062, %v10233
    %10235 = vmatmul.f32.gmra.mxu0 %v9641
    %v10236 = vpop.f32.mrf.mxu0
    %v10237 = vadd.f32 %v9065, %v10236
    %10238 = vmatmul.f32.gmra.mxu0 %v9644
    %v10239 = vpop.f32.mrf.mxu0
    %v10240 = vadd.f32 %v9068, %v10239
    %10241 = vmatmul.f32.gmra.mxu0 %v9647
    %v10242 = vpop.f32.mrf.mxu0
    %v10243 = vadd.f32 %v9071, %v10242
    %10244 = vmatmul.f32.gmra.mxu0 %v9650
    %v10245 = vpop.f32.mrf.mxu0
    %v10246 = vadd.f32 %v9074, %v10245
    %10247 = vmatmul.f32.gmra.mxu0 %v9653
    %v10248 = vpop.f32.mrf.mxu0
    %v10249 = vadd.f32 %v9077, %v10248
    %10250 = vmatmul.f32.gmra.mxu0 %v9656
    %v10251 = vpop.f32.mrf.mxu0
    %v10252 = vadd.f32 %v9080, %v10251
    %10253 = vmatmul.f32.gmra.mxu0 %v9659
    %v10254 = vpop.f32.mrf.mxu0
    %v10255 = vadd.f32 %v9083, %v10254
    %10256 = vmatmul.f32.gmra.mxu0 %v9662
    %v10257 = vpop.f32.mrf.mxu0
    %v10258 = vadd.f32 %v9086, %v10257
    %10259 = vmatmul.f32.gmra.mxu0 %v9665
    %v10260 = vpop.f32.mrf.mxu0
    %v10261 = vadd.f32 %v9089, %v10260
    %10262 = vmatmul.f32.gmra.mxu0 %v9668
    %v10263 = vpop.f32.mrf.mxu0
    %v10264 = vadd.f32 %v9092, %v10263
    %10265 = vmatmul.f32.gmra.mxu0 %v9671
    %v10266 = vpop.f32.mrf.mxu0
    %v10267 = vadd.f32 %v9095, %v10266
    %10268 = vmatmul.f32.gmra.mxu0 %v9674
    %v10269 = vpop.f32.mrf.mxu0
    %v10270 = vadd.f32 %v9098, %v10269
    %10271 = vmatmul.f32.gmra.mxu0 %v9677
    %v10272 = vpop.f32.mrf.mxu0
    %v10273 = vadd.f32 %v9101, %v10272
    %10274 = vmatmul.f32.gmra.mxu0 %v9680
    %v10275 = vpop.f32.mrf.mxu0
    %v10276 = vadd.f32 %v9104, %v10275
    %10277 = vmatmul.f32.gmra.mxu0 %v9683
    %v10278 = vpop.f32.mrf.mxu0
    %v10279 = vadd.f32 %v9107, %v10278
    %10280 = vmatmul.f32.gmra.mxu0 %v9686
    %v10281 = vpop.f32.mrf.mxu0
    %v10282 = vadd.f32 %v9110, %v10281
    %10283 = vmatmul.f32.gmra.mxu0 %v9689
    %v10284 = vpop.f32.mrf.mxu0
    %v10285 = vadd.f32 %v9113, %v10284
    %10286 = vmatmul.f32.gmra.mxu0 %v9692
    %v10287 = vpop.f32.mrf.mxu0
    %v10288 = vadd.f32 %v9116, %v10287
    %10289 = vmatmul.f32.gmra.mxu0 %v9695
    %v10290 = vpop.f32.mrf.mxu0
    %v10291 = vadd.f32 %v9119, %v10290
    %10292 = vmatmul.f32.gmra.mxu0 %v9698
    %v10293 = vpop.f32.mrf.mxu0
    %v10294 = vadd.f32 %v9122, %v10293
    %10295 = vmatmul.f32.gmra.mxu0 %v9701
    %v10296 = vpop.f32.mrf.mxu0
    %v10297 = vadd.f32 %v9125, %v10296
    %10298 = vmatmul.f32.gmra.mxu0 %v9704
    %v10299 = vpop.f32.mrf.mxu0
    %v10300 = vadd.f32 %v9128, %v10299
    %10301 = vmatmul.f32.gmra.mxu0 %v9707
    %v10302 = vpop.f32.mrf.mxu0
    %v10303 = vadd.f32 %v9131, %v10302
    %10304 = vmatmul.f32.gmra.mxu0 %v9710
    %v10305 = vpop.f32.mrf.mxu0
    %v10306 = vadd.f32 %v9134, %v10305
    %10307 = vmatmul.f32.gmra.mxu0 %v9713
    %v10308 = vpop.f32.mrf.mxu0
    %v10309 = vadd.f32 %v9137, %v10308
    %10310 = vmatmul.f32.gmra.mxu0 %v9716
    %v10311 = vpop.f32.mrf.mxu0
    %v10312 = vadd.f32 %v9140, %v10311
    %10313 = vmatmul.f32.gmra.mxu0 %v9719
    %v10314 = vpop.f32.mrf.mxu0
    %v10315 = vadd.f32 %v9143, %v10314
    %10316 = vmatmul.f32.gmra.mxu0 %v9722
    %v10317 = vpop.f32.mrf.mxu0
    %v10318 = vadd.f32 %v9146, %v10317
    %10319 = vmatmul.f32.gmra.mxu0 %v9725
    %v10320 = vpop.f32.mrf.mxu0
    %v10321 = vadd.f32 %v9149, %v10320
    %10322 = vmatmul.f32.gmra.mxu0 %v9728
    %v10323 = vpop.f32.mrf.mxu0
    %v10324 = vadd.f32 %v9152, %v10323
    %10325 = vmatmul.f32.gmra.mxu0 %v9731
    %v10326 = vpop.f32.mrf.mxu0
    %v10327 = vadd.f32 %v9155, %v10326
    %10328 = vmatmul.f32.gmra.mxu0 %v9734
    %v10329 = vpop.f32.mrf.mxu0
    %v10330 = vadd.f32 %v9158, %v10329
    %10331 = vmatmul.f32.gmra.mxu0 %v9737
    %v10332 = vpop.f32.mrf.mxu0
    %v10333 = vadd.f32 %v9161, %v10332
    %10334 = vmatmul.f32.gmra.mxu0 %v9740
    %v10335 = vpop.f32.mrf.mxu0
    %v10336 = vadd.f32 %v9164, %v10335
    %10337 = vmatmul.f32.gmra.mxu0 %v9743
    %v10338 = vpop.f32.mrf.mxu0
    %v10339 = vadd.f32 %v9167, %v10338
    %10340 = vmatmul.f32.gmra.mxu0 %v9746
    %v10341 = vpop.f32.mrf.mxu0
    %v10342 = vadd.f32 %v9170, %v10341
    %10343 = vmatmul.f32.gmra.mxu0 %v9749
    %v10344 = vpop.f32.mrf.mxu0
    %v10345 = vadd.f32 %v9173, %v10344
    %10346 = vmatmul.f32.gmra.mxu0 %v9752
    %v10347 = vpop.f32.mrf.mxu0
    %v10348 = vadd.f32 %v9176, %v10347
    %10349 = vmatmul.f32.gmra.mxu0 %v9755
    %v10350 = vpop.f32.mrf.mxu0
    %v10351 = vadd.f32 %v9179, %v10350
    %10352 = vmatmul.f32.gmra.mxu0 %v9758
    %v10353 = vpop.f32.mrf.mxu0
    %v10354 = vadd.f32 %v9182, %v10353
    %10355 = vmatmul.f32.gmra.mxu0 %v9761
    %v10356 = vpop.f32.mrf.mxu0
    %v10357 = vadd.f32 %v9185, %v10356
    %10358 = vmatmul.f32.gmra.mxu0 %v9764
    %v10359 = vpop.f32.mrf.mxu0
    %v10360 = vadd.f32 %v9188, %v10359
    %10361 = vmatmul.f32.gmra.mxu0 %v9767
    %v10362 = vpop.f32.mrf.mxu0
    %v10363 = vadd.f32 %v9191, %v10362
    %10364 = vmatmul.f32.gmra.mxu0 %v9770
    %v10365 = vpop.f32.mrf.mxu0
    %v10366 = vadd.f32 %v9194, %v10365
    %10367 = vmatmul.f32.gmra.mxu0 %v9773
    %v10368 = vpop.f32.mrf.mxu0
    %v10369 = vadd.f32 %v9197, %v10368
    %10370 = vmatmul.f32.gmra.mxu0 %v9776
    %v10371 = vpop.f32.mrf.mxu0
    %v10372 = vadd.f32 %v9200, %v10371
    %10373 = vmatmul.f32.gmra.mxu0 %v9779
    %v10374 = vpop.f32.mrf.mxu0
    %v10375 = vadd.f32 %v9203, %v10374
    %10376 = vmatmul.f32.gmra.mxu0 %v9782
    %v10377 = vpop.f32.mrf.mxu0
    %v10378 = vadd.f32 %v9206, %v10377
    %10379 = vmatmul.f32.gmra.mxu0 %v9785
    %v10380 = vpop.f32.mrf.mxu0
    %v10381 = vadd.f32 %v9209, %v10380
    %10382 = vmatmul.f32.gmra.mxu0 %v9788
    %v10383 = vpop.f32.mrf.mxu0
    %v10384 = vadd.f32 %v9212, %v10383
    %10385 = vmatmul.f32.gmra.mxu0 %v9791
    %v10386 = vpop.f32.mrf.mxu0
    %v10387 = vadd.f32 %v9215, %v10386
    %10388 = vmatmul.f32.gmra.mxu0 %v9794
    %v10389 = vpop.f32.mrf.mxu0
    %v10390 = vadd.f32 %v9218, %v10389
    %10391 = vmatmul.f32.gmra.mxu0 %v9797
    %v10392 = vpop.f32.mrf.mxu0
    %v10393 = vadd.f32 %v9221, %v10392
    %10394 = vmatmul.f32.gmra.mxu0 %v9800
    %v10395 = vpop.f32.mrf.mxu0
    %v10396 = vadd.f32 %v9224, %v10395
    %10397 = vmatmul.f32.gmra.mxu0 %v9803
    %v10398 = vpop.f32.mrf.mxu0
    %v10399 = vadd.f32 %v9227, %v10398
    %10400 = vmatmul.f32.gmra.mxu0 %v9806
    %v10401 = vpop.f32.mrf.mxu0
    %v10402 = vadd.f32 %v9230, %v10401
    %10403 = vmatmul.f32.gmra.mxu0 %v9809
    %v10404 = vpop.f32.mrf.mxu0
    %v10405 = vadd.f32 %v9233, %v10404
    %10406 = vmatmul.f32.gmra.mxu0 %v9812
    %v10407 = vpop.f32.mrf.mxu0
    %v10408 = vadd.f32 %v9236, %v10407
    %10409 = vmatmul.f32.gmra.mxu0 %v9815
    %v10410 = vpop.f32.mrf.mxu0
    %v10411 = vadd.f32 %v9239, %v10410
    %10412 = vmatmul.f32.gmra.mxu0 %v9818
    %v10413 = vpop.f32.mrf.mxu0
    %v10414 = vadd.f32 %v9242, %v10413
    %10415 = vmatmul.f32.gmra.mxu0 %v9821
    %v10416 = vpop.f32.mrf.mxu0
    %v10417 = vadd.f32 %v9245, %v10416
    %10418 = vmatmul.f32.gmra.mxu0 %v9824
    %v10419 = vpop.f32.mrf.mxu0
    %v10420 = vadd.f32 %v9248, %v10419
    %10421 = vmatmul.f32.gmra.mxu0 %v9827
    %v10422 = vpop.f32.mrf.mxu0
    %v10423 = vadd.f32 %v9251, %v10422
    %10424 = vmatmul.f32.gmra.mxu0 %v9830
    %v10425 = vpop.f32.mrf.mxu0
    %v10426 = vadd.f32 %v9254, %v10425
    %10427 = vmatmul.f32.gmra.mxu0 %v9833
    %v10428 = vpop.f32.mrf.mxu0
    %v10429 = vadd.f32 %v9257, %v10428
    %10430 = vmatmul.f32.gmra.mxu0 %v9836
    %v10431 = vpop.f32.mrf.mxu0
    %v10432 = vadd.f32 %v9260, %v10431
    %10433 = vmatmul.f32.gmra.mxu0 %v9839
    %v10434 = vpop.f32.mrf.mxu0
    %v10435 = vadd.f32 %v9263, %v10434
    %10436 = vmatmul.f32.gmra.mxu0 %v9842
    %v10437 = vpop.f32.mrf.mxu0
    %v10438 = vadd.f32 %v9266, %v10437
    %10439 = vmatmul.f32.gmra.mxu0 %v9845
    %v10440 = vpop.f32.mrf.mxu0
    %v10441 = vadd.f32 %v9269, %v10440
    %10442 = vmatmul.f32.gmra.mxu0 %v9848
    %v10443 = vpop.f32.mrf.mxu0
    %v10444 = vadd.f32 %v9272, %v10443
    %10445 = vmatmul.f32.gmra.mxu0 %v9851
    %v10446 = vpop.f32.mrf.mxu0
    %v10447 = vadd.f32 %v9275, %v10446
    %10448 = vmatmul.f32.gmra.mxu0 %v9854
    %v10449 = vpop.f32.mrf.mxu0
    %v10450 = vadd.f32 %v9278, %v10449
    %10451 = vmatmul.f32.gmra.mxu0 %v9857
    %v10452 = vpop.f32.mrf.mxu0
    %v10453 = vadd.f32 %v9281, %v10452
    %10454 = vmatmul.f32.gmra.mxu0 %v9860
    %v10455 = vpop.f32.mrf.mxu0
    %v10456 = vadd.f32 %v9284, %v10455
    %10457 = vmatmul.f32.gmra.mxu0 %v9863
    %v10458 = vpop.f32.mrf.mxu0
    %v10459 = vadd.f32 %v9287, %v10458
    %10460 = vmatmul.f32.gmra.mxu0 %v9866
    %v10461 = vpop.f32.mrf.mxu0
    %v10462 = vadd.f32 %v9290, %v10461
    %10463 = vmatmul.f32.gmra.mxu0 %v9869
    %v10464 = vpop.f32.mrf.mxu0
    %v10465 = vadd.f32 %v9293, %v10464
    %10466 = vmatmul.f32.gmra.mxu0 %v9872
    %v10467 = vpop.f32.mrf.mxu0
    %v10468 = vadd.f32 %v9296, %v10467
    %10469 = vmatmul.f32.gmra.mxu0 %v9875
    %v10470 = vpop.f32.mrf.mxu0
    %v10471 = vadd.f32 %v9299, %v10470
    %10472 = vmatmul.f32.gmra.mxu0 %v9878
    %v10473 = vpop.f32.mrf.mxu0
    %v10474 = vadd.f32 %v9302, %v10473
    %10475 = vmatmul.f32.gmra.mxu0 %v9881
    %v10476 = vpop.f32.mrf.mxu0
    %v10477 = vadd.f32 %v9305, %v10476
    %10478 = vmatmul.f32.gmra.mxu0 %v9884
    %v10479 = vpop.f32.mrf.mxu0
    %v10480 = vadd.f32 %v9308, %v10479
    %10481 = vmatmul.f32.gmra.mxu0 %v9887
    %v10482 = vpop.f32.mrf.mxu0
    %v10483 = vadd.f32 %v9311, %v10482
    %10484 = vmatmul.f32.gmra.mxu0 %v9890
    %v10485 = vpop.f32.mrf.mxu0
    %v10486 = vadd.f32 %v9314, %v10485
    %10487 = vmatmul.f32.gmra.mxu0 %v9893
    %v10488 = vpop.f32.mrf.mxu0
    %v10489 = vadd.f32 %v9317, %v10488
    %10490 = vmatmul.f32.gmra.mxu0 %v9896
    %v10491 = vpop.f32.mrf.mxu0
    %v10492 = vadd.f32 %v9320, %v10491
    %10493 = vmatmul.f32.gmra.mxu0 %v9899
    %v10494 = vpop.f32.mrf.mxu0
    %v10495 = vadd.f32 %v9323, %v10494
    %10496 = vmatmul.f32.gmra.mxu0 %v9902
    %v10497 = vpop.f32.mrf.mxu0
    %v10498 = vadd.f32 %v9326, %v10497
    %10499 = vmatmul.f32.gmra.mxu0 %v9905
    %v10500 = vpop.f32.mrf.mxu0
    %v10501 = vadd.f32 %v9329, %v10500
    %10502 = vmatmul.f32.gmra.mxu0 %v9908
    %v10503 = vpop.f32.mrf.mxu0
    %v10504 = vadd.f32 %v9332, %v10503
    %10505 = vmatmul.f32.gmra.mxu0 %v9911
    %v10506 = vpop.f32.mrf.mxu0
    %v10507 = vadd.f32 %v9335, %v10506
    %10508 = vmatmul.f32.gmra.mxu0 %v9914
    %v10509 = vpop.f32.mrf.mxu0
    %v10510 = vadd.f32 %v9338, %v10509
    %10511 = vmatmul.f32.gmra.mxu0 %v9917
    %v10512 = vpop.f32.mrf.mxu0
    %v10513 = vadd.f32 %v9341, %v10512
    %10514 = vmatmul.f32.gmra.mxu0 %v9920
    %v10515 = vpop.f32.mrf.mxu0
    %v10516 = vadd.f32 %v9344, %v10515
    %10517 = vmatmul.f32.gmra.mxu0 %v9923
    %v10518 = vpop.f32.mrf.mxu0
    %v10519 = vadd.f32 %v9347, %v10518
    %10520 = vmatmul.f32.gmra.mxu0 %v9926
    %v10521 = vpop.f32.mrf.mxu0
    %v10522 = vadd.f32 %v9350, %v10521
    %10523 = vmatmul.f32.gmra.mxu0 %v9929
    %v10524 = vpop.f32.mrf.mxu0
    %v10525 = vadd.f32 %v9353, %v10524
    %10526 = vmatmul.f32.gmra.mxu0 %v9932
    %v10527 = vpop.f32.mrf.mxu0
    %v10528 = vadd.f32 %v9356, %v10527
    %10529 = vmatmul.f32.gmra.mxu0 %v9935
    %v10530 = vpop.f32.mrf.mxu0
    %v10531 = vadd.f32 %v9359, %v10530
    %10532 = vmatmul.f32.gmra.mxu0 %v9938
    %v10533 = vpop.f32.mrf.mxu0
    %v10534 = vadd.f32 %v9362, %v10533
    %10535 = vmatmul.f32.gmra.mxu0 %v9941
    %v10536 = vpop.f32.mrf.mxu0
    %v10537 = vadd.f32 %v9365, %v10536
    %10538 = vmatmul.f32.gmra.mxu0 %v9944
    %v10539 = vpop.f32.mrf.mxu0
    %v10540 = vadd.f32 %v9368, %v10539
    %10541 = vdwg.mxu0
    %v10542 = vld [vmem:[%s3 + $0x60] sm:$0xff]
    %v10543 = vld [vmem:[%s3 + $0x68] sm:$0xff]
    %v10544 = vld [vmem:[%s3 + $0x70] sm:$0xff]
    %v10545 = vld [vmem:[%s3 + $0x78] sm:$0xff]
    %v10546 = vld [vmem:[%s3 + $0x80] sm:$0xff]
    %v10547 = vld [vmem:[%s3 + $0x88] sm:$0xf]
    %v10549 = vsel %vm8196, %v8168, 0
    %v10552 = vsel %vm8196, %v8169, 0
    %v10555 = vsel %vm8196, %v8170, 0
    %v10558 = vsel %vm8196, %v8171, 0
    %v10561 = vsel %vm8196, %v8172, 0
    %v10564 = vsel %vm8196, %v8173, 0
    %v10567 = vsel %vm8196, %v8174, 0
    %v10570 = vsel %vm8196, %v8175, 0
    %v10573 = vsel %vm8196, %v8176, 0
    %v10576 = vsel %vm8196, %v8177, 0
    %v10579 = vsel %vm8196, %v8178, 0
    %v10582 = vsel %vm8196, %v8179, 0
    %v10585 = vsel %vm8196, %v8180, 0
    %v10588 = vsel %vm8196, %v8181, 0
    %v10591 = vsel %vm8196, %v8182, 0
    %v10594 = vsel %vm8196, %v8183, 0
    %v10597 = vsel %vm8773, %v10547, 0
    %10599 = vmatpush.msra.mxu0 0.0
    %10600 = vmatpush.msra.mxu0 0.0
    %10601 = vmatpush.msra.mxu0 0.0
    %10602 = vmatpush.msra.mxu0 0.0
    %10603 = vmatpush.msra.mxu0 0.0
    %10604 = vmatpush.msra.mxu0 0.0
    %10605 = vmatpush.msra.mxu0 0.0
    %10606 = vmatpush.msra.mxu0 0.0
    %10607 = vmatpush.msra.mxu0 0.0
    %10608 = vmatpush.msra.mxu0 0.0
    %10609 = vmatpush.msra.mxu0 %v10597
    %10610 = vmatpush.msra.mxu0 %v10546
    %10611 = vmatpush.msra.mxu0 %v10545
    %10612 = vmatpush.msra.mxu0 %v10544
    %10613 = vmatpush.msra.mxu0 %v10543
    %10614 = vmatpush.msra.mxu0 %v10542
    %10615 = vmatmul.f32.gmra.mxu0 %v9419
    %v10616 = vpop.f32.mrf.mxu0
    %v10617 = vadd.f32 0.0, %v10616
    %10618 = vmatmul.f32.gmra.mxu0 %v9422
    %v10619 = vpop.f32.mrf.mxu0
    %v10620 = vadd.f32 0.0, %v10619
    %10621 = vmatmul.f32.gmra.mxu0 %v9425
    %v10622 = vpop.f32.mrf.mxu0
    %v10623 = vadd.f32 0.0, %v10622
    %10624 = vmatmul.f32.gmra.mxu0 %v9428
    %v10625 = vpop.f32.mrf.mxu0
    %v10626 = vadd.f32 0.0, %v10625
    %10627 = vmatmul.f32.gmra.mxu0 %v9431
    %v10628 = vpop.f32.mrf.mxu0
    %v10629 = vadd.f32 0.0, %v10628
    %10630 = vmatmul.f32.gmra.mxu0 %v9434
    %v10631 = vpop.f32.mrf.mxu0
    %v10632 = vadd.f32 0.0, %v10631
    %10633 = vmatmul.f32.gmra.mxu0 %v9437
    %v10634 = vpop.f32.mrf.mxu0
    %v10635 = vadd.f32 0.0, %v10634
    %10636 = vmatmul.f32.gmra.mxu0 %v9440
    %v10637 = vpop.f32.mrf.mxu0
    %v10638 = vadd.f32 0.0, %v10637
    %10639 = vmatmul.f32.gmra.mxu0 %v9443
    %v10640 = vpop.f32.mrf.mxu0
    %v10641 = vadd.f32 0.0, %v10640
    %10642 = vmatmul.f32.gmra.mxu0 %v9446
    %v10643 = vpop.f32.mrf.mxu0
    %v10644 = vadd.f32 0.0, %v10643
    %10645 = vmatmul.f32.gmra.mxu0 %v9449
    %v10646 = vpop.f32.mrf.mxu0
    %v10647 = vadd.f32 0.0, %v10646
    %10648 = vmatmul.f32.gmra.mxu0 %v9452
    %v10649 = vpop.f32.mrf.mxu0
    %v10650 = vadd.f32 0.0, %v10649
    %10651 = vmatmul.f32.gmra.mxu0 %v9455
    %v10652 = vpop.f32.mrf.mxu0
    %v10653 = vadd.f32 0.0, %v10652
    %10654 = vmatmul.f32.gmra.mxu0 %v9458
    %v10655 = vpop.f32.mrf.mxu0
    %v10656 = vadd.f32 0.0, %v10655
    %10657 = vmatmul.f32.gmra.mxu0 %v9461
    %v10658 = vpop.f32.mrf.mxu0
    %v10659 = vadd.f32 0.0, %v10658
    %10660 = vmatmul.f32.gmra.mxu0 %v9464
    %v10661 = vpop.f32.mrf.mxu0
    %v10662 = vadd.f32 0.0, %v10661
    %10663 = vmatmul.f32.gmra.mxu0 %v9467
    %v10664 = vpop.f32.mrf.mxu0
    %v10665 = vadd.f32 0.0, %v10664
    %10666 = vmatmul.f32.gmra.mxu0 %v9470
    %v10667 = vpop.f32.mrf.mxu0
    %v10668 = vadd.f32 0.0, %v10667
    %10669 = vmatmul.f32.gmra.mxu0 %v9473
    %v10670 = vpop.f32.mrf.mxu0
    %v10671 = vadd.f32 0.0, %v10670
    %10672 = vmatmul.f32.gmra.mxu0 %v9476
    %v10673 = vpop.f32.mrf.mxu0
    %v10674 = vadd.f32 0.0, %v10673
    %10675 = vmatmul.f32.gmra.mxu0 %v9479
    %v10676 = vpop.f32.mrf.mxu0
    %v10677 = vadd.f32 0.0, %v10676
    %10678 = vmatmul.f32.gmra.mxu0 %v9482
    %v10679 = vpop.f32.mrf.mxu0
    %v10680 = vadd.f32 0.0, %v10679
    %10681 = vmatmul.f32.gmra.mxu0 %v9485
    %v10682 = vpop.f32.mrf.mxu0
    %v10683 = vadd.f32 0.0, %v10682
    %10684 = vmatmul.f32.gmra.mxu0 %v9488
    %v10685 = vpop.f32.mrf.mxu0
    %v10686 = vadd.f32 0.0, %v10685
    %10687 = vmatmul.f32.gmra.mxu0 %v9491
    %v10688 = vpop.f32.mrf.mxu0
    %v10689 = vadd.f32 0.0, %v10688
    %10690 = vmatmul.f32.gmra.mxu0 %v9494
    %v10691 = vpop.f32.mrf.mxu0
    %v10692 = vadd.f32 0.0, %v10691
    %10693 = vmatmul.f32.gmra.mxu0 %v9497
    %v10694 = vpop.f32.mrf.mxu0
    %v10695 = vadd.f32 0.0, %v10694
    %10696 = vmatmul.f32.gmra.mxu0 %v9500
    %v10697 = vpop.f32.mrf.mxu0
    %v10698 = vadd.f32 0.0, %v10697
    %10699 = vmatmul.f32.gmra.mxu0 %v9503
    %v10700 = vpop.f32.mrf.mxu0
    %v10701 = vadd.f32 0.0, %v10700
    %10702 = vmatmul.f32.gmra.mxu0 %v9506
    %v10703 = vpop.f32.mrf.mxu0
    %v10704 = vadd.f32 0.0, %v10703
    %10705 = vmatmul.f32.gmra.mxu0 %v9509
    %v10706 = vpop.f32.mrf.mxu0
    %v10707 = vadd.f32 0.0, %v10706
    %10708 = vmatmul.f32.gmra.mxu0 %v9512
    %v10709 = vpop.f32.mrf.mxu0
    %v10710 = vadd.f32 0.0, %v10709
    %10711 = vmatmul.f32.gmra.mxu0 %v9515
    %v10712 = vpop.f32.mrf.mxu0
    %v10713 = vadd.f32 0.0, %v10712
    %10714 = vmatmul.f32.gmra.mxu0 %v9518
    %v10715 = vpop.f32.mrf.mxu0
    %v10716 = vadd.f32 0.0, %v10715
    %10717 = vmatmul.f32.gmra.mxu0 %v9521
    %v10718 = vpop.f32.mrf.mxu0
    %v10719 = vadd.f32 0.0, %v10718
    %10720 = vmatmul.f32.gmra.mxu0 %v9524
    %v10721 = vpop.f32.mrf.mxu0
    %v10722 = vadd.f32 0.0, %v10721
    %10723 = vmatmul.f32.gmra.mxu0 %v9527
    %v10724 = vpop.f32.mrf.mxu0
    %v10725 = vadd.f32 0.0, %v10724
    %10726 = vmatmul.f32.gmra.mxu0 %v9530
    %v10727 = vpop.f32.mrf.mxu0
    %v10728 = vadd.f32 0.0, %v10727
    %10729 = vmatmul.f32.gmra.mxu0 %v9533
    %v10730 = vpop.f32.mrf.mxu0
    %v10731 = vadd.f32 0.0, %v10730
    %10732 = vmatmul.f32.gmra.mxu0 %v9536
    %v10733 = vpop.f32.mrf.mxu0
    %v10734 = vadd.f32 0.0, %v10733
    %10735 = vmatmul.f32.gmra.mxu0 %v9539
    %v10736 = vpop.f32.mrf.mxu0
    %v10737 = vadd.f32 0.0, %v10736
    %10738 = vmatmul.f32.gmra.mxu0 %v9542
    %v10739 = vpop.f32.mrf.mxu0
    %v10740 = vadd.f32 0.0, %v10739
    %10741 = vmatmul.f32.gmra.mxu0 %v9545
    %v10742 = vpop.f32.mrf.mxu0
    %v10743 = vadd.f32 0.0, %v10742
    %10744 = vmatmul.f32.gmra.mxu0 %v9548
    %v10745 = vpop.f32.mrf.mxu0
    %v10746 = vadd.f32 0.0, %v10745
    %10747 = vmatmul.f32.gmra.mxu0 %v9551
    %v10748 = vpop.f32.mrf.mxu0
    %v10749 = vadd.f32 0.0, %v10748
    %10750 = vmatmul.f32.gmra.mxu0 %v9554
    %v10751 = vpop.f32.mrf.mxu0
    %v10752 = vadd.f32 0.0, %v10751
    %10753 = vmatmul.f32.gmra.mxu0 %v9557
    %v10754 = vpop.f32.mrf.mxu0
    %v10755 = vadd.f32 0.0, %v10754
    %10756 = vmatmul.f32.gmra.mxu0 %v9560
    %v10757 = vpop.f32.mrf.mxu0
    %v10758 = vadd.f32 0.0, %v10757
    %10759 = vmatmul.f32.gmra.mxu0 %v9563
    %v10760 = vpop.f32.mrf.mxu0
    %v10761 = vadd.f32 0.0, %v10760
    %10762 = vmatmul.f32.gmra.mxu0 %v9566
    %v10763 = vpop.f32.mrf.mxu0
    %v10764 = vadd.f32 0.0, %v10763
    %10765 = vmatmul.f32.gmra.mxu0 %v9569
    %v10766 = vpop.f32.mrf.mxu0
    %v10767 = vadd.f32 0.0, %v10766
    %10768 = vmatmul.f32.gmra.mxu0 %v9572
    %v10769 = vpop.f32.mrf.mxu0
    %v10770 = vadd.f32 0.0, %v10769
    %10771 = vmatmul.f32.gmra.mxu0 %v9575
    %v10772 = vpop.f32.mrf.mxu0
    %v10773 = vadd.f32 0.0, %v10772
    %10774 = vmatmul.f32.gmra.mxu0 %v9578
    %v10775 = vpop.f32.mrf.mxu0
    %v10776 = vadd.f32 0.0, %v10775
    %10777 = vmatmul.f32.gmra.mxu0 %v9581
    %v10778 = vpop.f32.mrf.mxu0
    %v10779 = vadd.f32 0.0, %v10778
    %10780 = vmatmul.f32.gmra.mxu0 %v9584
    %v10781 = vpop.f32.mrf.mxu0
    %v10782 = vadd.f32 0.0, %v10781
    %10783 = vmatmul.f32.gmra.mxu0 %v9587
    %v10784 = vpop.f32.mrf.mxu0
    %v10785 = vadd.f32 0.0, %v10784
    %10786 = vmatmul.f32.gmra.mxu0 %v9590
    %v10787 = vpop.f32.mrf.mxu0
    %v10788 = vadd.f32 0.0, %v10787
    %10789 = vmatmul.f32.gmra.mxu0 %v9593
    %v10790 = vpop.f32.mrf.mxu0
    %v10791 = vadd.f32 0.0, %v10790
    %10792 = vmatmul.f32.gmra.mxu0 %v9596
    %v10793 = vpop.f32.mrf.mxu0
    %v10794 = vadd.f32 0.0, %v10793
    %10795 = vmatmul.f32.gmra.mxu0 %v9599
    %v10796 = vpop.f32.mrf.mxu0
    %v10797 = vadd.f32 0.0, %v10796
    %10798 = vmatmul.f32.gmra.mxu0 %v9602
    %v10799 = vpop.f32.mrf.mxu0
    %v10800 = vadd.f32 0.0, %v10799
    %10801 = vmatmul.f32.gmra.mxu0 %v9605
    %v10802 = vpop.f32.mrf.mxu0
    %v10803 = vadd.f32 0.0, %v10802
    %10804 = vmatmul.f32.gmra.mxu0 %v9608
    %v10805 = vpop.f32.mrf.mxu0
    %v10806 = vadd.f32 0.0, %v10805
    %10807 = vmatmul.f32.gmra.mxu0 %v9611
    %v10808 = vpop.f32.mrf.mxu0
    %v10809 = vadd.f32 0.0, %v10808
    %10810 = vmatmul.f32.gmra.mxu0 %v9614
    %v10811 = vpop.f32.mrf.mxu0
    %v10812 = vadd.f32 0.0, %v10811
    %10813 = vmatmul.f32.gmra.mxu0 %v9617
    %v10814 = vpop.f32.mrf.mxu0
    %v10815 = vadd.f32 0.0, %v10814
    %10816 = vmatmul.f32.gmra.mxu0 %v9620
    %v10817 = vpop.f32.mrf.mxu0
    %v10818 = vadd.f32 0.0, %v10817
    %10819 = vmatmul.f32.gmra.mxu0 %v9623
    %v10820 = vpop.f32.mrf.mxu0
    %v10821 = vadd.f32 0.0, %v10820
    %10822 = vmatmul.f32.gmra.mxu0 %v9626
    %v10823 = vpop.f32.mrf.mxu0
    %v10824 = vadd.f32 0.0, %v10823
    %10825 = vmatmul.f32.gmra.mxu0 %v9629
    %v10826 = vpop.f32.mrf.mxu0
    %v10827 = vadd.f32 0.0, %v10826
    %10828 = vmatmul.f32.gmra.mxu0 %v9632
    %v10829 = vpop.f32.mrf.mxu0
    %v10830 = vadd.f32 0.0, %v10829
    %10831 = vmatmul.f32.gmra.mxu0 %v9635
    %v10832 = vpop.f32.mrf.mxu0
    %v10833 = vadd.f32 0.0, %v10832
    %10834 = vmatmul.f32.gmra.mxu0 %v9638
    %v10835 = vpop.f32.mrf.mxu0
    %v10836 = vadd.f32 0.0, %v10835
    %10837 = vmatmul.f32.gmra.mxu0 %v9641
    %v10838 = vpop.f32.mrf.mxu0
    %v10839 = vadd.f32 0.0, %v10838
    %10840 = vmatmul.f32.gmra.mxu0 %v9644
    %v10841 = vpop.f32.mrf.mxu0
    %v10842 = vadd.f32 0.0, %v10841
    %10843 = vmatmul.f32.gmra.mxu0 %v9647
    %v10844 = vpop.f32.mrf.mxu0
    %v10845 = vadd.f32 0.0, %v10844
    %10846 = vmatmul.f32.gmra.mxu0 %v9650
    %v10847 = vpop.f32.mrf.mxu0
    %v10848 = vadd.f32 0.0, %v10847
    %10849 = vmatmul.f32.gmra.mxu0 %v9653
    %v10850 = vpop.f32.mrf.mxu0
    %v10851 = vadd.f32 0.0, %v10850
    %10852 = vmatmul.f32.gmra.mxu0 %v9656
    %v10853 = vpop.f32.mrf.mxu0
    %v10854 = vadd.f32 0.0, %v10853
    %10855 = vmatmul.f32.gmra.mxu0 %v9659
    %v10856 = vpop.f32.mrf.mxu0
    %v10857 = vadd.f32 0.0, %v10856
    %10858 = vmatmul.f32.gmra.mxu0 %v9662
    %v10859 = vpop.f32.mrf.mxu0
    %v10860 = vadd.f32 0.0, %v10859
    %10861 = vmatmul.f32.gmra.mxu0 %v9665
    %v10862 = vpop.f32.mrf.mxu0
    %v10863 = vadd.f32 0.0, %v10862
    %10864 = vmatmul.f32.gmra.mxu0 %v9668
    %v10865 = vpop.f32.mrf.mxu0
    %v10866 = vadd.f32 0.0, %v10865
    %10867 = vmatmul.f32.gmra.mxu0 %v9671
    %v10868 = vpop.f32.mrf.mxu0
    %v10869 = vadd.f32 0.0, %v10868
    %10870 = vmatmul.f32.gmra.mxu0 %v9674
    %v10871 = vpop.f32.mrf.mxu0
    %v10872 = vadd.f32 0.0, %v10871
    %10873 = vmatmul.f32.gmra.mxu0 %v9677
    %v10874 = vpop.f32.mrf.mxu0
    %v10875 = vadd.f32 0.0, %v10874
    %10876 = vmatmul.f32.gmra.mxu0 %v9680
    %v10877 = vpop.f32.mrf.mxu0
    %v10878 = vadd.f32 0.0, %v10877
    %10879 = vmatmul.f32.gmra.mxu0 %v9683
    %v10880 = vpop.f32.mrf.mxu0
    %v10881 = vadd.f32 0.0, %v10880
    %10882 = vmatmul.f32.gmra.mxu0 %v9686
    %v10883 = vpop.f32.mrf.mxu0
    %v10884 = vadd.f32 0.0, %v10883
    %10885 = vmatmul.f32.gmra.mxu0 %v9689
    %v10886 = vpop.f32.mrf.mxu0
    %v10887 = vadd.f32 0.0, %v10886
    %10888 = vmatmul.f32.gmra.mxu0 %v9692
    %v10889 = vpop.f32.mrf.mxu0
    %v10890 = vadd.f32 0.0, %v10889
    %10891 = vmatmul.f32.gmra.mxu0 %v9695
    %v10892 = vpop.f32.mrf.mxu0
    %v10893 = vadd.f32 0.0, %v10892
    %10894 = vmatmul.f32.gmra.mxu0 %v9698
    %v10895 = vpop.f32.mrf.mxu0
    %v10896 = vadd.f32 0.0, %v10895
    %10897 = vmatmul.f32.gmra.mxu0 %v9701
    %v10898 = vpop.f32.mrf.mxu0
    %v10899 = vadd.f32 0.0, %v10898
    %10900 = vmatmul.f32.gmra.mxu0 %v9704
    %v10901 = vpop.f32.mrf.mxu0
    %v10902 = vadd.f32 0.0, %v10901
    %10903 = vmatmul.f32.gmra.mxu0 %v9707
    %v10904 = vpop.f32.mrf.mxu0
    %v10905 = vadd.f32 0.0, %v10904
    %10906 = vmatmul.f32.gmra.mxu0 %v9710
    %v10907 = vpop.f32.mrf.mxu0
    %v10908 = vadd.f32 0.0, %v10907
    %10909 = vmatmul.f32.gmra.mxu0 %v9713
    %v10910 = vpop.f32.mrf.mxu0
    %v10911 = vadd.f32 0.0, %v10910
    %10912 = vmatmul.f32.gmra.mxu0 %v9716
    %v10913 = vpop.f32.mrf.mxu0
    %v10914 = vadd.f32 0.0, %v10913
    %10915 = vmatmul.f32.gmra.mxu0 %v9719
    %v10916 = vpop.f32.mrf.mxu0
    %v10917 = vadd.f32 0.0, %v10916
    %10918 = vmatmul.f32.gmra.mxu0 %v9722
    %v10919 = vpop.f32.mrf.mxu0
    %v10920 = vadd.f32 0.0, %v10919
    %10921 = vmatmul.f32.gmra.mxu0 %v9725
    %v10922 = vpop.f32.mrf.mxu0
    %v10923 = vadd.f32 0.0, %v10922
    %10924 = vmatmul.f32.gmra.mxu0 %v9728
    %v10925 = vpop.f32.mrf.mxu0
    %v10926 = vadd.f32 0.0, %v10925
    %10927 = vmatmul.f32.gmra.mxu0 %v9731
    %v10928 = vpop.f32.mrf.mxu0
    %v10929 = vadd.f32 0.0, %v10928
    %10930 = vmatmul.f32.gmra.mxu0 %v9734
    %v10931 = vpop.f32.mrf.mxu0
    %v10932 = vadd.f32 0.0, %v10931
    %10933 = vmatmul.f32.gmra.mxu0 %v9737
    %v10934 = vpop.f32.mrf.mxu0
    %v10935 = vadd.f32 0.0, %v10934
    %10936 = vmatmul.f32.gmra.mxu0 %v9740
    %v10937 = vpop.f32.mrf.mxu0
    %v10938 = vadd.f32 0.0, %v10937
    %10939 = vmatmul.f32.gmra.mxu0 %v9743
    %v10940 = vpop.f32.mrf.mxu0
    %v10941 = vadd.f32 0.0, %v10940
    %10942 = vmatmul.f32.gmra.mxu0 %v9746
    %v10943 = vpop.f32.mrf.mxu0
    %v10944 = vadd.f32 0.0, %v10943
    %10945 = vmatmul.f32.gmra.mxu0 %v9749
    %v10946 = vpop.f32.mrf.mxu0
    %v10947 = vadd.f32 0.0, %v10946
    %10948 = vmatmul.f32.gmra.mxu0 %v9752
    %v10949 = vpop.f32.mrf.mxu0
    %v10950 = vadd.f32 0.0, %v10949
    %10951 = vmatmul.f32.gmra.mxu0 %v9755
    %v10952 = vpop.f32.mrf.mxu0
    %v10953 = vadd.f32 0.0, %v10952
    %10954 = vmatmul.f32.gmra.mxu0 %v9758
    %v10955 = vpop.f32.mrf.mxu0
    %v10956 = vadd.f32 0.0, %v10955
    %10957 = vmatmul.f32.gmra.mxu0 %v9761
    %v10958 = vpop.f32.mrf.mxu0
    %v10959 = vadd.f32 0.0, %v10958
    %10960 = vmatmul.f32.gmra.mxu0 %v9764
    %v10961 = vpop.f32.mrf.mxu0
    %v10962 = vadd.f32 0.0, %v10961
    %10963 = vmatmul.f32.gmra.mxu0 %v9767
    %v10964 = vpop.f32.mrf.mxu0
    %v10965 = vadd.f32 0.0, %v10964
    %10966 = vmatmul.f32.gmra.mxu0 %v9770
    %v10967 = vpop.f32.mrf.mxu0
    %v10968 = vadd.f32 0.0, %v10967
    %10969 = vmatmul.f32.gmra.mxu0 %v9773
    %v10970 = vpop.f32.mrf.mxu0
    %v10971 = vadd.f32 0.0, %v10970
    %10972 = vmatmul.f32.gmra.mxu0 %v9776
    %v10973 = vpop.f32.mrf.mxu0
    %v10974 = vadd.f32 0.0, %v10973
    %10975 = vmatmul.f32.gmra.mxu0 %v9779
    %v10976 = vpop.f32.mrf.mxu0
    %v10977 = vadd.f32 0.0, %v10976
    %10978 = vmatmul.f32.gmra.mxu0 %v9782
    %v10979 = vpop.f32.mrf.mxu0
    %v10980 = vadd.f32 0.0, %v10979
    %10981 = vmatmul.f32.gmra.mxu0 %v9785
    %v10982 = vpop.f32.mrf.mxu0
    %v10983 = vadd.f32 0.0, %v10982
    %10984 = vmatmul.f32.gmra.mxu0 %v9788
    %v10985 = vpop.f32.mrf.mxu0
    %v10986 = vadd.f32 0.0, %v10985
    %10987 = vmatmul.f32.gmra.mxu0 %v9791
    %v10988 = vpop.f32.mrf.mxu0
    %v10989 = vadd.f32 0.0, %v10988
    %10990 = vmatmul.f32.gmra.mxu0 %v9794
    %v10991 = vpop.f32.mrf.mxu0
    %v10992 = vadd.f32 0.0, %v10991
    %10993 = vmatmul.f32.gmra.mxu0 %v9797
    %v10994 = vpop.f32.mrf.mxu0
    %v10995 = vadd.f32 0.0, %v10994
    %10996 = vmatmul.f32.gmra.mxu0 %v9800
    %v10997 = vpop.f32.mrf.mxu0
    %v10998 = vadd.f32 0.0, %v10997
    %10999 = vmatmul.f32.gmra.mxu0 %v9803
    %v11000 = vpop.f32.mrf.mxu0
    %v11001 = vadd.f32 0.0, %v11000
    %11002 = vmatmul.f32.gmra.mxu0 %v9806
    %v11003 = vpop.f32.mrf.mxu0
    %v11004 = vadd.f32 0.0, %v11003
    %11005 = vmatmul.f32.gmra.mxu0 %v9809
    %v11006 = vpop.f32.mrf.mxu0
    %v11007 = vadd.f32 0.0, %v11006
    %11008 = vmatmul.f32.gmra.mxu0 %v9812
    %v11009 = vpop.f32.mrf.mxu0
    %v11010 = vadd.f32 0.0, %v11009
    %11011 = vmatmul.f32.gmra.mxu0 %v9815
    %v11012 = vpop.f32.mrf.mxu0
    %v11013 = vadd.f32 0.0, %v11012
    %11014 = vmatmul.f32.gmra.mxu0 %v9818
    %v11015 = vpop.f32.mrf.mxu0
    %v11016 = vadd.f32 0.0, %v11015
    %11017 = vmatmul.f32.gmra.mxu0 %v9821
    %v11018 = vpop.f32.mrf.mxu0
    %v11019 = vadd.f32 0.0, %v11018
    %11020 = vmatmul.f32.gmra.mxu0 %v9824
    %v11021 = vpop.f32.mrf.mxu0
    %v11022 = vadd.f32 0.0, %v11021
    %11023 = vmatmul.f32.gmra.mxu0 %v9827
    %v11024 = vpop.f32.mrf.mxu0
    %v11025 = vadd.f32 0.0, %v11024
    %11026 = vmatmul.f32.gmra.mxu0 %v9830
    %v11027 = vpop.f32.mrf.mxu0
    %v11028 = vadd.f32 0.0, %v11027
    %11029 = vmatmul.f32.gmra.mxu0 %v9833
    %v11030 = vpop.f32.mrf.mxu0
    %v11031 = vadd.f32 0.0, %v11030
    %11032 = vmatmul.f32.gmra.mxu0 %v9836
    %v11033 = vpop.f32.mrf.mxu0
    %v11034 = vadd.f32 0.0, %v11033
    %11035 = vmatmul.f32.gmra.mxu0 %v9839
    %v11036 = vpop.f32.mrf.mxu0
    %v11037 = vadd.f32 0.0, %v11036
    %11038 = vmatmul.f32.gmra.mxu0 %v9842
    %v11039 = vpop.f32.mrf.mxu0
    %v11040 = vadd.f32 0.0, %v11039
    %11041 = vmatmul.f32.gmra.mxu0 %v9845
    %v11042 = vpop.f32.mrf.mxu0
    %v11043 = vadd.f32 0.0, %v11042
    %11044 = vmatmul.f32.gmra.mxu0 %v9848
    %v11045 = vpop.f32.mrf.mxu0
    %v11046 = vadd.f32 0.0, %v11045
    %11047 = vmatmul.f32.gmra.mxu0 %v9851
    %v11048 = vpop.f32.mrf.mxu0
    %v11049 = vadd.f32 0.0, %v11048
    %11050 = vmatmul.f32.gmra.mxu0 %v9854
    %v11051 = vpop.f32.mrf.mxu0
    %v11052 = vadd.f32 0.0, %v11051
    %11053 = vmatmul.f32.gmra.mxu0 %v9857
    %v11054 = vpop.f32.mrf.mxu0
    %v11055 = vadd.f32 0.0, %v11054
    %11056 = vmatmul.f32.gmra.mxu0 %v9860
    %v11057 = vpop.f32.mrf.mxu0
    %v11058 = vadd.f32 0.0, %v11057
    %11059 = vmatmul.f32.gmra.mxu0 %v9863
    %v11060 = vpop.f32.mrf.mxu0
    %v11061 = vadd.f32 0.0, %v11060
    %11062 = vmatmul.f32.gmra.mxu0 %v9866
    %v11063 = vpop.f32.mrf.mxu0
    %v11064 = vadd.f32 0.0, %v11063
    %11065 = vmatmul.f32.gmra.mxu0 %v9869
    %v11066 = vpop.f32.mrf.mxu0
    %v11067 = vadd.f32 0.0, %v11066
    %11068 = vmatmul.f32.gmra.mxu0 %v9872
    %v11069 = vpop.f32.mrf.mxu0
    %v11070 = vadd.f32 0.0, %v11069
    %11071 = vmatmul.f32.gmra.mxu0 %v9875
    %v11072 = vpop.f32.mrf.mxu0
    %v11073 = vadd.f32 0.0, %v11072
    %11074 = vmatmul.f32.gmra.mxu0 %v9878
    %v11075 = vpop.f32.mrf.mxu0
    %v11076 = vadd.f32 0.0, %v11075
    %11077 = vmatmul.f32.gmra.mxu0 %v9881
    %v11078 = vpop.f32.mrf.mxu0
    %v11079 = vadd.f32 0.0, %v11078
    %11080 = vmatmul.f32.gmra.mxu0 %v9884
    %v11081 = vpop.f32.mrf.mxu0
    %v11082 = vadd.f32 0.0, %v11081
    %11083 = vmatmul.f32.gmra.mxu0 %v9887
    %v11084 = vpop.f32.mrf.mxu0
    %v11085 = vadd.f32 0.0, %v11084
    %11086 = vmatmul.f32.gmra.mxu0 %v9890
    %v11087 = vpop.f32.mrf.mxu0
    %v11088 = vadd.f32 0.0, %v11087
    %11089 = vmatmul.f32.gmra.mxu0 %v9893
    %v11090 = vpop.f32.mrf.mxu0
    %v11091 = vadd.f32 0.0, %v11090
    %11092 = vmatmul.f32.gmra.mxu0 %v9896
    %v11093 = vpop.f32.mrf.mxu0
    %v11094 = vadd.f32 0.0, %v11093
    %11095 = vmatmul.f32.gmra.mxu0 %v9899
    %v11096 = vpop.f32.mrf.mxu0
    %v11097 = vadd.f32 0.0, %v11096
    %11098 = vmatmul.f32.gmra.mxu0 %v9902
    %v11099 = vpop.f32.mrf.mxu0
    %v11100 = vadd.f32 0.0, %v11099
    %11101 = vmatmul.f32.gmra.mxu0 %v9905
    %v11102 = vpop.f32.mrf.mxu0
    %v11103 = vadd.f32 0.0, %v11102
    %11104 = vmatmul.f32.gmra.mxu0 %v9908
    %v11105 = vpop.f32.mrf.mxu0
    %v11106 = vadd.f32 0.0, %v11105
    %11107 = vmatmul.f32.gmra.mxu0 %v9911
    %v11108 = vpop.f32.mrf.mxu0
    %v11109 = vadd.f32 0.0, %v11108
    %11110 = vmatmul.f32.gmra.mxu0 %v9914
    %v11111 = vpop.f32.mrf.mxu0
    %v11112 = vadd.f32 0.0, %v11111
    %11113 = vmatmul.f32.gmra.mxu0 %v9917
    %v11114 = vpop.f32.mrf.mxu0
    %v11115 = vadd.f32 0.0, %v11114
    %11116 = vmatmul.f32.gmra.mxu0 %v9920
    %v11117 = vpop.f32.mrf.mxu0
    %v11118 = vadd.f32 0.0, %v11117
    %11119 = vmatmul.f32.gmra.mxu0 %v9923
    %v11120 = vpop.f32.mrf.mxu0
    %v11121 = vadd.f32 0.0, %v11120
    %11122 = vmatmul.f32.gmra.mxu0 %v9926
    %v11123 = vpop.f32.mrf.mxu0
    %v11124 = vadd.f32 0.0, %v11123
    %11125 = vmatmul.f32.gmra.mxu0 %v9929
    %v11126 = vpop.f32.mrf.mxu0
    %v11127 = vadd.f32 0.0, %v11126
    %11128 = vmatmul.f32.gmra.mxu0 %v9932
    %v11129 = vpop.f32.mrf.mxu0
    %v11130 = vadd.f32 0.0, %v11129
    %11131 = vmatmul.f32.gmra.mxu0 %v9935
    %v11132 = vpop.f32.mrf.mxu0
    %v11133 = vadd.f32 0.0, %v11132
    %11134 = vmatmul.f32.gmra.mxu0 %v9938
    %v11135 = vpop.f32.mrf.mxu0
    %v11136 = vadd.f32 0.0, %v11135
    %11137 = vmatmul.f32.gmra.mxu0 %v9941
    %v11138 = vpop.f32.mrf.mxu0
    %v11139 = vadd.f32 0.0, %v11138
    %11140 = vmatmul.f32.gmra.mxu0 %v9944
    %v11141 = vpop.f32.mrf.mxu0
    %v11142 = vadd.f32 0.0, %v11141
    %11143 = vmatmul.f32.gmra.mxu0 %v10549
    %v11144 = vpop.f32.mrf.mxu0
    %v11145 = vadd.f32 0.0, %v11144
    %11146 = vmatmul.f32.gmra.mxu0 %v10552
    %v11147 = vpop.f32.mrf.mxu0
    %v11148 = vadd.f32 0.0, %v11147
    %11149 = vmatmul.f32.gmra.mxu0 %v10555
    %v11150 = vpop.f32.mrf.mxu0
    %v11151 = vadd.f32 0.0, %v11150
    %11152 = vmatmul.f32.gmra.mxu0 %v10558
    %v11153 = vpop.f32.mrf.mxu0
    %v11154 = vadd.f32 0.0, %v11153
    %11155 = vmatmul.f32.gmra.mxu0 %v10561
    %v11156 = vpop.f32.mrf.mxu0
    %v11157 = vadd.f32 0.0, %v11156
    %11158 = vmatmul.f32.gmra.mxu0 %v10564
    %v11159 = vpop.f32.mrf.mxu0
    %v11160 = vadd.f32 0.0, %v11159
    %11161 = vmatmul.f32.gmra.mxu0 %v10567
    %v11162 = vpop.f32.mrf.mxu0
    %v11163 = vadd.f32 0.0, %v11162
    %11164 = vmatmul.f32.gmra.mxu0 %v10570
    %v11165 = vpop.f32.mrf.mxu0
    %v11166 = vadd.f32 0.0, %v11165
    %11167 = vmatmul.f32.gmra.mxu0 %v10573
    %v11168 = vpop.f32.mrf.mxu0
    %v11169 = vadd.f32 0.0, %v11168
    %11170 = vmatmul.f32.gmra.mxu0 %v10576
    %v11171 = vpop.f32.mrf.mxu0
    %v11172 = vadd.f32 0.0, %v11171
    %11173 = vmatmul.f32.gmra.mxu0 %v10579
    %v11174 = vpop.f32.mrf.mxu0
    %v11175 = vadd.f32 0.0, %v11174
    %11176 = vmatmul.f32.gmra.mxu0 %v10582
    %v11177 = vpop.f32.mrf.mxu0
    %v11178 = vadd.f32 0.0, %v11177
    %11179 = vmatmul.f32.gmra.mxu0 %v10585
    %v11180 = vpop.f32.mrf.mxu0
    %v11181 = vadd.f32 0.0, %v11180
    %11182 = vmatmul.f32.gmra.mxu0 %v10588
    %v11183 = vpop.f32.mrf.mxu0
    %v11184 = vadd.f32 0.0, %v11183
    %11185 = vmatmul.f32.gmra.mxu0 %v10591
    %v11186 = vpop.f32.mrf.mxu0
    %v11187 = vadd.f32 0.0, %v11186
    %11188 = vmatmul.f32.gmra.mxu0 %v10594
    %v11189 = vpop.f32.mrf.mxu0
    %v11190 = vadd.f32 0.0, %v11189
    %11191 = vdwg.mxu0
    %v11192 = vadd.f32 %v9967, %v10617
    %v11193 = vadd.f32 %v9970, %v10620
    %v11194 = vadd.f32 %v9973, %v10623
    %v11195 = vadd.f32 %v9976, %v10626
    %v11196 = vadd.f32 %v9979, %v10629
    %v11197 = vadd.f32 %v9982, %v10632
    %v11198 = vadd.f32 %v9985, %v10635
    %v11199 = vadd.f32 %v9988, %v10638
    %v11200 = vadd.f32 %v9991, %v10641
    %v11201 = vadd.f32 %v9994, %v10644
    %v11202 = vadd.f32 %v9997, %v10647
    %v11203 = vadd.f32 %v10000, %v10650
    %v11204 = vadd.f32 %v10003, %v10653
    %v11205 = vadd.f32 %v10006, %v10656
    %v11206 = vadd.f32 %v10009, %v10659
    %v11207 = vadd.f32 %v10012, %v10662
    %v11208 = vadd.f32 %v10015, %v10665
    %v11209 = vadd.f32 %v10018, %v10668
    %v11210 = vadd.f32 %v10021, %v10671
    %v11211 = vadd.f32 %v10024, %v10674
    %v11212 = vadd.f32 %v10027, %v10677
    %v11213 = vadd.f32 %v10030, %v10680
    %v11214 = vadd.f32 %v10033, %v10683
    %v11215 = vadd.f32 %v10036, %v10686
    %v11216 = vadd.f32 %v10039, %v10689
    %v11217 = vadd.f32 %v10042, %v10692
    %v11218 = vadd.f32 %v10045, %v10695
    %v11219 = vadd.f32 %v10048, %v10698
    %v11220 = vadd.f32 %v10051, %v10701
    %v11221 = vadd.f32 %v10054, %v10704
    %v11222 = vadd.f32 %v10057, %v10707
    %v11223 = vadd.f32 %v10060, %v10710
    %v11224 = vadd.f32 %v10063, %v10713
    %v11225 = vadd.f32 %v10066, %v10716
    %v11226 = vadd.f32 %v10069, %v10719
    %v11227 = vadd.f32 %v10072, %v10722
    %v11228 = vadd.f32 %v10075, %v10725
    %v11229 = vadd.f32 %v10078, %v10728
    %v11230 = vadd.f32 %v10081, %v10731
    %v11231 = vadd.f32 %v10084, %v10734
    %v11232 = vadd.f32 %v10087, %v10737
    %v11233 = vadd.f32 %v10090, %v10740
    %v11234 = vadd.f32 %v10093, %v10743
    %v11235 = vadd.f32 %v10096, %v10746
    %v11236 = vadd.f32 %v10099, %v10749
    %v11237 = vadd.f32 %v10102, %v10752
    %v11238 = vadd.f32 %v10105, %v10755
    %v11239 = vadd.f32 %v10108, %v10758
    %v11240 = vadd.f32 %v10111, %v10761
    %v11241 = vadd.f32 %v10114, %v10764
    %v11242 = vadd.f32 %v10117, %v10767
    %v11243 = vadd.f32 %v10120, %v10770
    %v11244 = vadd.f32 %v10123, %v10773
    %v11245 = vadd.f32 %v10126, %v10776
    %v11246 = vadd.f32 %v10129, %v10779
    %v11247 = vadd.f32 %v10132, %v10782
    %v11248 = vadd.f32 %v10135, %v10785
    %v11249 = vadd.f32 %v10138, %v10788
    %v11250 = vadd.f32 %v10141, %v10791
    %v11251 = vadd.f32 %v10144, %v10794
    %v11252 = vadd.f32 %v10147, %v10797
    %v11253 = vadd.f32 %v10150, %v10800
    %v11254 = vadd.f32 %v10153, %v10803
    %v11255 = vadd.f32 %v10156, %v10806
    %v11256 = vadd.f32 %v10159, %v10809
    %v11257 = vadd.f32 %v10162, %v10812
    %v11258 = vadd.f32 %v10165, %v10815
    %v11259 = vadd.f32 %v10168, %v10818
    %v11260 = vadd.f32 %v10171, %v10821
    %v11261 = vadd.f32 %v10174, %v10824
    %v11262 = vadd.f32 %v10177, %v10827
    %v11263 = vadd.f32 %v10180, %v10830
    %v11264 = vadd.f32 %v10183, %v10833
    %v11265 = vadd.f32 %v10186, %v10836
    %v11266 = vadd.f32 %v10189, %v10839
    %v11267 = vadd.f32 %v10192, %v10842
    %v11268 = vadd.f32 %v10195, %v10845
    %v11269 = vadd.f32 %v10198, %v10848
    %v11270 = vadd.f32 %v10201, %v10851
    %v11271 = vadd.f32 %v10204, %v10854
    %v11272 = vadd.f32 %v10207, %v10857
    %v11273 = vadd.f32 %v10210, %v10860
    %v11274 = vadd.f32 %v10213, %v10863
    %v11275 = vadd.f32 %v10216, %v10866
    %v11276 = vadd.f32 %v10219, %v10869
    %v11277 = vadd.f32 %v10222, %v10872
    %v11278 = vadd.f32 %v10225, %v10875
    %v11279 = vadd.f32 %v10228, %v10878
    %v11280 = vadd.f32 %v10231, %v10881
    %v11281 = vadd.f32 %v10234, %v10884
    %v11282 = vadd.f32 %v10237, %v10887
    %v11283 = vadd.f32 %v10240, %v10890
    %v11284 = vadd.f32 %v10243, %v10893
    %v11285 = vadd.f32 %v10246, %v10896
    %v11286 = vadd.f32 %v10249, %v10899
    %v11287 = vadd.f32 %v10252, %v10902
    %v11288 = vadd.f32 %v10255, %v10905
    %v11289 = vadd.f32 %v10258, %v10908
    %v11290 = vadd.f32 %v10261, %v10911
    %v11291 = vadd.f32 %v10264, %v10914
    %v11292 = vadd.f32 %v10267, %v10917
    %v11293 = vadd.f32 %v10270, %v10920
    %v11294 = vadd.f32 %v10273, %v10923
    %v11295 = vadd.f32 %v10276, %v10926
    %v11296 = vadd.f32 %v10279, %v10929
    %v11297 = vadd.f32 %v10282, %v10932
    %v11298 = vadd.f32 %v10285, %v10935
    %v11299 = vadd.f32 %v10288, %v10938
    %v11300 = vadd.f32 %v10291, %v10941
    %v11301 = vadd.f32 %v10294, %v10944
    %v11302 = vadd.f32 %v10297, %v10947
    %v11303 = vadd.f32 %v10300, %v10950
    %v11304 = vadd.f32 %v10303, %v10953
    %v11305 = vadd.f32 %v10306, %v10956
    %v11306 = vadd.f32 %v10309, %v10959
    %v11307 = vadd.f32 %v10312, %v10962
    %v11308 = vadd.f32 %v10315, %v10965
    %v11309 = vadd.f32 %v10318, %v10968
    %v11310 = vadd.f32 %v10321, %v10971
    %v11311 = vadd.f32 %v10324, %v10974
    %v11312 = vadd.f32 %v10327, %v10977
    %v11313 = vadd.f32 %v10330, %v10980
    %v11314 = vadd.f32 %v10333, %v10983
    %v11315 = vadd.f32 %v10336, %v10986
    %v11316 = vadd.f32 %v10339, %v10989
    %v11317 = vadd.f32 %v10342, %v10992
    %v11318 = vadd.f32 %v10345, %v10995
    %v11319 = vadd.f32 %v10348, %v10998
    %v11320 = vadd.f32 %v10351, %v11001
    %v11321 = vadd.f32 %v10354, %v11004
    %v11322 = vadd.f32 %v10357, %v11007
    %v11323 = vadd.f32 %v10360, %v11010
    %v11324 = vadd.f32 %v10363, %v11013
    %v11325 = vadd.f32 %v10366, %v11016
    %v11326 = vadd.f32 %v10369, %v11019
    %v11327 = vadd.f32 %v10372, %v11022
    %v11328 = vadd.f32 %v10375, %v11025
    %v11329 = vadd.f32 %v10378, %v11028
    %v11330 = vadd.f32 %v10381, %v11031
    %v11331 = vadd.f32 %v10384, %v11034
    %v11332 = vadd.f32 %v10387, %v11037
    %v11333 = vadd.f32 %v10390, %v11040
    %v11334 = vadd.f32 %v10393, %v11043
    %v11335 = vadd.f32 %v10396, %v11046
    %v11336 = vadd.f32 %v10399, %v11049
    %v11337 = vadd.f32 %v10402, %v11052
    %v11338 = vadd.f32 %v10405, %v11055
    %v11339 = vadd.f32 %v10408, %v11058
    %v11340 = vadd.f32 %v10411, %v11061
    %v11341 = vadd.f32 %v10414, %v11064
    %v11342 = vadd.f32 %v10417, %v11067
    %v11343 = vadd.f32 %v10420, %v11070
    %v11344 = vadd.f32 %v10423, %v11073
    %v11345 = vadd.f32 %v10426, %v11076
    %v11346 = vadd.f32 %v10429, %v11079
    %v11347 = vadd.f32 %v10432, %v11082
    %v11348 = vadd.f32 %v10435, %v11085
    %v11349 = vadd.f32 %v10438, %v11088
    %v11350 = vadd.f32 %v10441, %v11091
    %v11351 = vadd.f32 %v10444, %v11094
    %v11352 = vadd.f32 %v10447, %v11097
    %v11353 = vadd.f32 %v10450, %v11100
    %v11354 = vadd.f32 %v10453, %v11103
    %v11355 = vadd.f32 %v10456, %v11106
    %v11356 = vadd.f32 %v10459, %v11109
    %v11357 = vadd.f32 %v10462, %v11112
    %v11358 = vadd.f32 %v10465, %v11115
    %v11359 = vadd.f32 %v10468, %v11118
    %v11360 = vadd.f32 %v10471, %v11121
    %v11361 = vadd.f32 %v10474, %v11124
    %v11362 = vadd.f32 %v10477, %v11127
    %v11363 = vadd.f32 %v10480, %v11130
    %v11364 = vadd.f32 %v10483, %v11133
    %v11365 = vadd.f32 %v10486, %v11136
    %v11366 = vadd.f32 %v10489, %v11139
    %v11367 = vadd.f32 %v10492, %v11142
    %v11368 = vadd.f32 %v10495, %v11145
    %v11369 = vadd.f32 %v10498, %v11148
    %v11370 = vadd.f32 %v10501, %v11151
    %v11371 = vadd.f32 %v10504, %v11154
    %v11372 = vadd.f32 %v10507, %v11157
    %v11373 = vadd.f32 %v10510, %v11160
    %v11374 = vadd.f32 %v10513, %v11163
    %v11375 = vadd.f32 %v10516, %v11166
    %v11376 = vadd.f32 %v10519, %v11169
    %v11377 = vadd.f32 %v10522, %v11172
    %v11378 = vadd.f32 %v10525, %v11175
    %v11379 = vadd.f32 %v10528, %v11178
    %v11380 = vadd.f32 %v10531, %v11181
    %v11381 = vadd.f32 %v10534, %v11184
    %v11382 = vadd.f32 %v10537, %v11187
    %v11383 = vadd.f32 %v10540, %v11190
    %v11384 = vld [vmem:[%s4] sm:$0x1]
    %v11386 = vperm.slane %v11384, 0
    %v11388 = vadd.f32 %v11192, %v11386
    %v11389 = vadd.f32 %v11193, %v11386
    %v11390 = vadd.f32 %v11194, %v11386
    %v11391 = vadd.f32 %v11195, %v11386
    %v11392 = vadd.f32 %v11196, %v11386
    %v11393 = vadd.f32 %v11197, %v11386
    %v11394 = vadd.f32 %v11198, %v11386
    %v11395 = vadd.f32 %v11199, %v11386
    %v11396 = vadd.f32 %v11200, %v11386
    %v11397 = vadd.f32 %v11201, %v11386
    %v11398 = vadd.f32 %v11202, %v11386
    %v11399 = vadd.f32 %v11203, %v11386
    %v11400 = vadd.f32 %v11204, %v11386
    %v11401 = vadd.f32 %v11205, %v11386
    %v11402 = vadd.f32 %v11206, %v11386
    %v11403 = vadd.f32 %v11207, %v11386
    %v11404 = vadd.f32 %v11208, %v11386
    %v11405 = vadd.f32 %v11209, %v11386
    %v11406 = vadd.f32 %v11210, %v11386
    %v11407 = vadd.f32 %v11211, %v11386
    %v11408 = vadd.f32 %v11212, %v11386
    %v11409 = vadd.f32 %v11213, %v11386
    %v11410 = vadd.f32 %v11214, %v11386
    %v11411 = vadd.f32 %v11215, %v11386
    %v11412 = vadd.f32 %v11216, %v11386
    %v11413 = vadd.f32 %v11217, %v11386
    %v11414 = vadd.f32 %v11218, %v11386
    %v11415 = vadd.f32 %v11219, %v11386
    %v11416 = vadd.f32 %v11220, %v11386
    %v11417 = vadd.f32 %v11221, %v11386
    %v11418 = vadd.f32 %v11222, %v11386
    %v11419 = vadd.f32 %v11223, %v11386
    %v11420 = vadd.f32 %v11224, %v11386
    %v11421 = vadd.f32 %v11225, %v11386
    %v11422 = vadd.f32 %v11226, %v11386
    %v11423 = vadd.f32 %v11227, %v11386
    %v11424 = vadd.f32 %v11228, %v11386
    %v11425 = vadd.f32 %v11229, %v11386
    %v11426 = vadd.f32 %v11230, %v11386
    %v11427 = vadd.f32 %v11231, %v11386
    %v11428 = vadd.f32 %v11232, %v11386
    %v11429 = vadd.f32 %v11233, %v11386
    %v11430 = vadd.f32 %v11234, %v11386
    %v11431 = vadd.f32 %v11235, %v11386
    %v11432 = vadd.f32 %v11236, %v11386
    %v11433 = vadd.f32 %v11237, %v11386
    %v11434 = vadd.f32 %v11238, %v11386
    %v11435 = vadd.f32 %v11239, %v11386
    %v11436 = vadd.f32 %v11240, %v11386
    %v11437 = vadd.f32 %v11241, %v11386
    %v11438 = vadd.f32 %v11242, %v11386
    %v11439 = vadd.f32 %v11243, %v11386
    %v11440 = vadd.f32 %v11244, %v11386
    %v11441 = vadd.f32 %v11245, %v11386
    %v11442 = vadd.f32 %v11246, %v11386
    %v11443 = vadd.f32 %v11247, %v11386
    %v11444 = vadd.f32 %v11248, %v11386
    %v11445 = vadd.f32 %v11249, %v11386
    %v11446 = vadd.f32 %v11250, %v11386
    %v11447 = vadd.f32 %v11251, %v11386
    %v11448 = vadd.f32 %v11252, %v11386
    %v11449 = vadd.f32 %v11253, %v11386
    %v11450 = vadd.f32 %v11254, %v11386
    %v11451 = vadd.f32 %v11255, %v11386
    %v11452 = vadd.f32 %v11256, %v11386
    %v11453 = vadd.f32 %v11257, %v11386
    %v11454 = vadd.f32 %v11258, %v11386
    %v11455 = vadd.f32 %v11259, %v11386
    %v11456 = vadd.f32 %v11260, %v11386
    %v11457 = vadd.f32 %v11261, %v11386
    %v11458 = vadd.f32 %v11262, %v11386
    %v11459 = vadd.f32 %v11263, %v11386
    %v11460 = vadd.f32 %v11264, %v11386
    %v11461 = vadd.f32 %v11265, %v11386
    %v11462 = vadd.f32 %v11266, %v11386
    %v11463 = vadd.f32 %v11267, %v11386
    %v11464 = vadd.f32 %v11268, %v11386
    %v11465 = vadd.f32 %v11269, %v11386
    %v11466 = vadd.f32 %v11270, %v11386
    %v11467 = vadd.f32 %v11271, %v11386
    %v11468 = vadd.f32 %v11272, %v11386
    %v11469 = vadd.f32 %v11273, %v11386
    %v11470 = vadd.f32 %v11274, %v11386
    %v11471 = vadd.f32 %v11275, %v11386
    %v11472 = vadd.f32 %v11276, %v11386
    %v11473 = vadd.f32 %v11277, %v11386
    %v11474 = vadd.f32 %v11278, %v11386
    %v11475 = vadd.f32 %v11279, %v11386
    %v11476 = vadd.f32 %v11280, %v11386
    %v11477 = vadd.f32 %v11281, %v11386
    %v11478 = vadd.f32 %v11282, %v11386
    %v11479 = vadd.f32 %v11283, %v11386
    %v11480 = vadd.f32 %v11284, %v11386
    %v11481 = vadd.f32 %v11285, %v11386
    %v11482 = vadd.f32 %v11286, %v11386
    %v11483 = vadd.f32 %v11287, %v11386
    %v11484 = vadd.f32 %v11288, %v11386
    %v11485 = vadd.f32 %v11289, %v11386
    %v11486 = vadd.f32 %v11290, %v11386
    %v11487 = vadd.f32 %v11291, %v11386
    %v11488 = vadd.f32 %v11292, %v11386
    %v11489 = vadd.f32 %v11293, %v11386
    %v11490 = vadd.f32 %v11294, %v11386
    %v11491 = vadd.f32 %v11295, %v11386
    %v11492 = vadd.f32 %v11296, %v11386
    %v11493 = vadd.f32 %v11297, %v11386
    %v11494 = vadd.f32 %v11298, %v11386
    %v11495 = vadd.f32 %v11299, %v11386
    %v11496 = vadd.f32 %v11300, %v11386
    %v11497 = vadd.f32 %v11301, %v11386
    %v11498 = vadd.f32 %v11302, %v11386
    %v11499 = vadd.f32 %v11303, %v11386
    %v11500 = vadd.f32 %v11304, %v11386
    %v11501 = vadd.f32 %v11305, %v11386
    %v11502 = vadd.f32 %v11306, %v11386
    %v11503 = vadd.f32 %v11307, %v11386
    %v11504 = vadd.f32 %v11308, %v11386
    %v11505 = vadd.f32 %v11309, %v11386
    %v11506 = vadd.f32 %v11310, %v11386
    %v11507 = vadd.f32 %v11311, %v11386
    %v11508 = vadd.f32 %v11312, %v11386
    %v11509 = vadd.f32 %v11313, %v11386
    %v11510 = vadd.f32 %v11314, %v11386
    %v11511 = vadd.f32 %v11315, %v11386
    %v11512 = vadd.f32 %v11316, %v11386
    %v11513 = vadd.f32 %v11317, %v11386
    %v11514 = vadd.f32 %v11318, %v11386
    %v11515 = vadd.f32 %v11319, %v11386
    %v11516 = vadd.f32 %v11320, %v11386
    %v11517 = vadd.f32 %v11321, %v11386
    %v11518 = vadd.f32 %v11322, %v11386
    %v11519 = vadd.f32 %v11323, %v11386
    %v11520 = vadd.f32 %v11324, %v11386
    %v11521 = vadd.f32 %v11325, %v11386
    %v11522 = vadd.f32 %v11326, %v11386
    %v11523 = vadd.f32 %v11327, %v11386
    %v11524 = vadd.f32 %v11328, %v11386
    %v11525 = vadd.f32 %v11329, %v11386
    %v11526 = vadd.f32 %v11330, %v11386
    %v11527 = vadd.f32 %v11331, %v11386
    %v11528 = vadd.f32 %v11332, %v11386
    %v11529 = vadd.f32 %v11333, %v11386
    %v11530 = vadd.f32 %v11334, %v11386
    %v11531 = vadd.f32 %v11335, %v11386
    %v11532 = vadd.f32 %v11336, %v11386
    %v11533 = vadd.f32 %v11337, %v11386
    %v11534 = vadd.f32 %v11338, %v11386
    %v11535 = vadd.f32 %v11339, %v11386
    %v11536 = vadd.f32 %v11340, %v11386
    %v11537 = vadd.f32 %v11341, %v11386
    %v11538 = vadd.f32 %v11342, %v11386
    %v11539 = vadd.f32 %v11343, %v11386
    %v11540 = vadd.f32 %v11344, %v11386
    %v11541 = vadd.f32 %v11345, %v11386
    %v11542 = vadd.f32 %v11346, %v11386
    %v11543 = vadd.f32 %v11347, %v11386
    %v11544 = vadd.f32 %v11348, %v11386
    %v11545 = vadd.f32 %v11349, %v11386
    %v11546 = vadd.f32 %v11350, %v11386
    %v11547 = vadd.f32 %v11351, %v11386
    %v11548 = vadd.f32 %v11352, %v11386
    %v11549 = vadd.f32 %v11353, %v11386
    %v11550 = vadd.f32 %v11354, %v11386
    %v11551 = vadd.f32 %v11355, %v11386
    %v11552 = vadd.f32 %v11356, %v11386
    %v11553 = vadd.f32 %v11357, %v11386
    %v11554 = vadd.f32 %v11358, %v11386
    %v11555 = vadd.f32 %v11359, %v11386
    %v11556 = vadd.f32 %v11360, %v11386
    %v11557 = vadd.f32 %v11361, %v11386
    %v11558 = vadd.f32 %v11362, %v11386
    %v11559 = vadd.f32 %v11363, %v11386
    %v11560 = vadd.f32 %v11364, %v11386
    %v11561 = vadd.f32 %v11365, %v11386
    %v11562 = vadd.f32 %v11366, %v11386
    %v11563 = vadd.f32 %v11367, %v11386
    %v11564 = vadd.f32 %v11368, %v11386
    %v11565 = vadd.f32 %v11369, %v11386
    %v11566 = vadd.f32 %v11370, %v11386
    %v11567 = vadd.f32 %v11371, %v11386
    %v11568 = vadd.f32 %v11372, %v11386
    %v11569 = vadd.f32 %v11373, %v11386
    %v11570 = vadd.f32 %v11374, %v11386
    %v11571 = vadd.f32 %v11375, %v11386
    %v11572 = vadd.f32 %v11376, %v11386
    %v11573 = vadd.f32 %v11377, %v11386
    %v11574 = vadd.f32 %v11378, %v11386
    %v11575 = vadd.f32 %v11379, %v11386
    %v11576 = vadd.f32 %v11380, %v11386
    %v11577 = vadd.f32 %v11381, %v11386
    %v11578 = vadd.f32 %v11382, %v11386
    %v11579 = vadd.f32 %v11383, %v11386
    %v11580 = vmax.f32 %v11388, 0.0
    %v11581 = vmax.f32 %v11389, 0.0
    %v11582 = vmax.f32 %v11390, 0.0
    %v11583 = vmax.f32 %v11391, 0.0
    %v11584 = vmax.f32 %v11392, 0.0
    %v11585 = vmax.f32 %v11393, 0.0
    %v11586 = vmax.f32 %v11394, 0.0
    %v11587 = vmax.f32 %v11395, 0.0
    %v11588 = vmax.f32 %v11396, 0.0
    %v11589 = vmax.f32 %v11397, 0.0
    %v11590 = vmax.f32 %v11398, 0.0
    %v11591 = vmax.f32 %v11399, 0.0
    %v11592 = vmax.f32 %v11400, 0.0
    %v11593 = vmax.f32 %v11401, 0.0
    %v11594 = vmax.f32 %v11402, 0.0
    %v11595 = vmax.f32 %v11403, 0.0
    %v11596 = vmax.f32 %v11404, 0.0
    %v11597 = vmax.f32 %v11405, 0.0
    %v11598 = vmax.f32 %v11406, 0.0
    %v11599 = vmax.f32 %v11407, 0.0
    %v11600 = vmax.f32 %v11408, 0.0
    %v11601 = vmax.f32 %v11409, 0.0
    %v11602 = vmax.f32 %v11410, 0.0
    %v11603 = vmax.f32 %v11411, 0.0
    %v11604 = vmax.f32 %v11412, 0.0
    %v11605 = vmax.f32 %v11413, 0.0
    %v11606 = vmax.f32 %v11414, 0.0
    %v11607 = vmax.f32 %v11415, 0.0
    %v11608 = vmax.f32 %v11416, 0.0
    %v11609 = vmax.f32 %v11417, 0.0
    %v11610 = vmax.f32 %v11418, 0.0
    %v11611 = vmax.f32 %v11419, 0.0
    %v11612 = vmax.f32 %v11420, 0.0
    %v11613 = vmax.f32 %v11421, 0.0
    %v11614 = vmax.f32 %v11422, 0.0
    %v11615 = vmax.f32 %v11423, 0.0
    %v11616 = vmax.f32 %v11424, 0.0
    %v11617 = vmax.f32 %v11425, 0.0
    %v11618 = vmax.f32 %v11426, 0.0
    %v11619 = vmax.f32 %v11427, 0.0
    %v11620 = vmax.f32 %v11428, 0.0
    %v11621 = vmax.f32 %v11429, 0.0
    %v11622 = vmax.f32 %v11430, 0.0
    %v11623 = vmax.f32 %v11431, 0.0
    %v11624 = vmax.f32 %v11432, 0.0
    %v11625 = vmax.f32 %v11433, 0.0
    %v11626 = vmax.f32 %v11434, 0.0
    %v11627 = vmax.f32 %v11435, 0.0
    %v11628 = vmax.f32 %v11436, 0.0
    %v11629 = vmax.f32 %v11437, 0.0
    %v11630 = vmax.f32 %v11438, 0.0
    %v11631 = vmax.f32 %v11439, 0.0
    %v11632 = vmax.f32 %v11440, 0.0
    %v11633 = vmax.f32 %v11441, 0.0
    %v11634 = vmax.f32 %v11442, 0.0
    %v11635 = vmax.f32 %v11443, 0.0
    %v11636 = vmax.f32 %v11444, 0.0
    %v11637 = vmax.f32 %v11445, 0.0
    %v11638 = vmax.f32 %v11446, 0.0
    %v11639 = vmax.f32 %v11447, 0.0
    %v11640 = vmax.f32 %v11448, 0.0
    %v11641 = vmax.f32 %v11449, 0.0
    %v11642 = vmax.f32 %v11450, 0.0
    %v11643 = vmax.f32 %v11451, 0.0
    %v11644 = vmax.f32 %v11452, 0.0
    %v11645 = vmax.f32 %v11453, 0.0
    %v11646 = vmax.f32 %v11454, 0.0
    %v11647 = vmax.f32 %v11455, 0.0
    %v11648 = vmax.f32 %v11456, 0.0
    %v11649 = vmax.f32 %v11457, 0.0
    %v11650 = vmax.f32 %v11458, 0.0
    %v11651 = vmax.f32 %v11459, 0.0
    %v11652 = vmax.f32 %v11460, 0.0
    %v11653 = vmax.f32 %v11461, 0.0
    %v11654 = vmax.f32 %v11462, 0.0
    %v11655 = vmax.f32 %v11463, 0.0
    %v11656 = vmax.f32 %v11464, 0.0
    %v11657 = vmax.f32 %v11465, 0.0
    %v11658 = vmax.f32 %v11466, 0.0
    %v11659 = vmax.f32 %v11467, 0.0
    %v11660 = vmax.f32 %v11468, 0.0
    %v11661 = vmax.f32 %v11469, 0.0
    %v11662 = vmax.f32 %v11470, 0.0
    %v11663 = vmax.f32 %v11471, 0.0
    %v11664 = vmax.f32 %v11472, 0.0
    %v11665 = vmax.f32 %v11473, 0.0
    %v11666 = vmax.f32 %v11474, 0.0
    %v11667 = vmax.f32 %v11475, 0.0
    %v11668 = vmax.f32 %v11476, 0.0
    %v11669 = vmax.f32 %v11477, 0.0
    %v11670 = vmax.f32 %v11478, 0.0
    %v11671 = vmax.f32 %v11479, 0.0
    %v11672 = vmax.f32 %v11480, 0.0
    %v11673 = vmax.f32 %v11481, 0.0
    %v11674 = vmax.f32 %v11482, 0.0
    %v11675 = vmax.f32 %v11483, 0.0
    %v11676 = vmax.f32 %v11484, 0.0
    %v11677 = vmax.f32 %v11485, 0.0
    %v11678 = vmax.f32 %v11486, 0.0
    %v11679 = vmax.f32 %v11487, 0.0
    %v11680 = vmax.f32 %v11488, 0.0
    %v11681 = vmax.f32 %v11489, 0.0
    %v11682 = vmax.f32 %v11490, 0.0
    %v11683 = vmax.f32 %v11491, 0.0
    %v11684 = vmax.f32 %v11492, 0.0
    %v11685 = vmax.f32 %v11493, 0.0
    %v11686 = vmax.f32 %v11494, 0.0
    %v11687 = vmax.f32 %v11495, 0.0
    %v11688 = vmax.f32 %v11496, 0.0
    %v11689 = vmax.f32 %v11497, 0.0
    %v11690 = vmax.f32 %v11498, 0.0
    %v11691 = vmax.f32 %v11499, 0.0
    %v11692 = vmax.f32 %v11500, 0.0
    %v11693 = vmax.f32 %v11501, 0.0
    %v11694 = vmax.f32 %v11502, 0.0
    %v11695 = vmax.f32 %v11503, 0.0
    %v11696 = vmax.f32 %v11504, 0.0
    %v11697 = vmax.f32 %v11505, 0.0
    %v11698 = vmax.f32 %v11506, 0.0
    %v11699 = vmax.f32 %v11507, 0.0
    %v11700 = vmax.f32 %v11508, 0.0
    %v11701 = vmax.f32 %v11509, 0.0
    %v11702 = vmax.f32 %v11510, 0.0
    %v11703 = vmax.f32 %v11511, 0.0
    %v11704 = vmax.f32 %v11512, 0.0
    %v11705 = vmax.f32 %v11513, 0.0
    %v11706 = vmax.f32 %v11514, 0.0
    %v11707 = vmax.f32 %v11515, 0.0
    %v11708 = vmax.f32 %v11516, 0.0
    %v11709 = vmax.f32 %v11517, 0.0
    %v11710 = vmax.f32 %v11518, 0.0
    %v11711 = vmax.f32 %v11519, 0.0
    %v11712 = vmax.f32 %v11520, 0.0
    %v11713 = vmax.f32 %v11521, 0.0
    %v11714 = vmax.f32 %v11522, 0.0
    %v11715 = vmax.f32 %v11523, 0.0
    %v11716 = vmax.f32 %v11524, 0.0
    %v11717 = vmax.f32 %v11525, 0.0
    %v11718 = vmax.f32 %v11526, 0.0
    %v11719 = vmax.f32 %v11527, 0.0
    %v11720 = vmax.f32 %v11528, 0.0
    %v11721 = vmax.f32 %v11529, 0.0
    %v11722 = vmax.f32 %v11530, 0.0
    %v11723 = vmax.f32 %v11531, 0.0
    %v11724 = vmax.f32 %v11532, 0.0
    %v11725 = vmax.f32 %v11533, 0.0
    %v11726 = vmax.f32 %v11534, 0.0
    %v11727 = vmax.f32 %v11535, 0.0
    %v11728 = vmax.f32 %v11536, 0.0
    %v11729 = vmax.f32 %v11537, 0.0
    %v11730 = vmax.f32 %v11538, 0.0
    %v11731 = vmax.f32 %v11539, 0.0
    %v11732 = vmax.f32 %v11540, 0.0
    %v11733 = vmax.f32 %v11541, 0.0
    %v11734 = vmax.f32 %v11542, 0.0
    %v11735 = vmax.f32 %v11543, 0.0
    %v11736 = vmax.f32 %v11544, 0.0
    %v11737 = vmax.f32 %v11545, 0.0
    %v11738 = vmax.f32 %v11546, 0.0
    %v11739 = vmax.f32 %v11547, 0.0
    %v11740 = vmax.f32 %v11548, 0.0
    %v11741 = vmax.f32 %v11549, 0.0
    %v11742 = vmax.f32 %v11550, 0.0
    %v11743 = vmax.f32 %v11551, 0.0
    %v11744 = vmax.f32 %v11552, 0.0
    %v11745 = vmax.f32 %v11553, 0.0
    %v11746 = vmax.f32 %v11554, 0.0
    %v11747 = vmax.f32 %v11555, 0.0
    %v11748 = vmax.f32 %v11556, 0.0
    %v11749 = vmax.f32 %v11557, 0.0
    %v11750 = vmax.f32 %v11558, 0.0
    %v11751 = vmax.f32 %v11559, 0.0
    %v11752 = vmax.f32 %v11560, 0.0
    %v11753 = vmax.f32 %v11561, 0.0
    %v11754 = vmax.f32 %v11562, 0.0
    %v11755 = vmax.f32 %v11563, 0.0
    %v11756 = vmax.f32 %v11564, 0.0
    %v11757 = vmax.f32 %v11565, 0.0
    %v11758 = vmax.f32 %v11566, 0.0
    %v11759 = vmax.f32 %v11567, 0.0
    %v11760 = vmax.f32 %v11568, 0.0
    %v11761 = vmax.f32 %v11569, 0.0
    %v11762 = vmax.f32 %v11570, 0.0
    %v11763 = vmax.f32 %v11571, 0.0
    %v11764 = vmax.f32 %v11572, 0.0
    %v11765 = vmax.f32 %v11573, 0.0
    %v11766 = vmax.f32 %v11574, 0.0
    %v11767 = vmax.f32 %v11575, 0.0
    %v11768 = vmax.f32 %v11576, 0.0
    %v11769 = vmax.f32 %v11577, 0.0
    %v11770 = vmax.f32 %v11578, 0.0
    %v11771 = vmax.f32 %v11579, 0.0
    %v11772 = vld [vmem:[%s5] sm:$0xff]
    %v11773 = vld [vmem:[%s5 + $0x8] sm:$0xff]
    %v11774 = vld [vmem:[%s5 + $0x10] sm:$0xff]
    %v11775 = vld [vmem:[%s5 + $0x18] sm:$0xff]
    %v11776 = vld [vmem:[%s5 + $0x20] sm:$0xff]
    %v11777 = vld [vmem:[%s5 + $0x28] sm:$0xff]
    %v11778 = vld [vmem:[%s5 + $0x30] sm:$0xff]
    %v11779 = vld [vmem:[%s5 + $0x38] sm:$0xff]
    %v11780 = vld [vmem:[%s5 + $0x40] sm:$0xff]
    %v11781 = vld [vmem:[%s5 + $0x48] sm:$0xff]
    %vm11782 = vcmask 326656
    %v11784 = vsel %vm11782, %v11596, 0
    %v11787 = vsel %vm11782, %v11597, 0
    %v11790 = vsel %vm11782, %v11598, 0
    %v11793 = vsel %vm11782, %v11599, 0
    %v11796 = vsel %vm11782, %v11600, 0
    %v11799 = vsel %vm11782, %v11601, 0
    %v11802 = vsel %vm11782, %v11602, 0
    %v11805 = vsel %vm11782, %v11603, 0
    %v11808 = vsel %vm11782, %v11604, 0
    %v11811 = vsel %vm11782, %v11605, 0
    %v11814 = vsel %vm11782, %v11606, 0
    %v11817 = vsel %vm11782, %v11607, 0
    %v11820 = vsel %vm11782, %v11608, 0
    %v11823 = vsel %vm11782, %v11609, 0
    %v11826 = vsel %vm11782, %v11610, 0
    %v11829 = vsel %vm11782, %v11611, 0
    %v11832 = vsel %vm11782, %v11628, 0
    %v11835 = vsel %vm11782, %v11629, 0
    %v11838 = vsel %vm11782, %v11630, 0
    %v11841 = vsel %vm11782, %v11631, 0
    %v11844 = vsel %vm11782, %v11632, 0
    %v11847 = vsel %vm11782, %v11633, 0
    %v11850 = vsel %vm11782, %v11634, 0
    %v11853 = vsel %vm11782, %v11635, 0
    %v11856 = vsel %vm11782, %v11636, 0
    %v11859 = vsel %vm11782, %v11637, 0
    %v11862 = vsel %vm11782, %v11638, 0
    %v11865 = vsel %vm11782, %v11639, 0
    %v11868 = vsel %vm11782, %v11640, 0
    %v11871 = vsel %vm11782, %v11641, 0
    %v11874 = vsel %vm11782, %v11642, 0
    %v11877 = vsel %vm11782, %v11643, 0
    %v11880 = vsel %vm11782, %v11660, 0
    %v11883 = vsel %vm11782, %v11661, 0
    %v11886 = vsel %vm11782, %v11662, 0
    %v11889 = vsel %vm11782, %v11663, 0
    %v11892 = vsel %vm11782, %v11664, 0
    %v11895 = vsel %vm11782, %v11665, 0
    %v11898 = vsel %vm11782, %v11666, 0
    %v11901 = vsel %vm11782, %v11667, 0
    %v11904 = vsel %vm11782, %v11668, 0
    %v11907 = vsel %vm11782, %v11669, 0
    %v11910 = vsel %vm11782, %v11670, 0
    %v11913 = vsel %vm11782, %v11671, 0
    %v11916 = vsel %vm11782, %v11672, 0
    %v11919 = vsel %vm11782, %v11673, 0
    %v11922 = vsel %vm11782, %v11674, 0
    %v11925 = vsel %vm11782, %v11675, 0
    %v11928 = vsel %vm11782, %v11692, 0
    %v11931 = vsel %vm11782, %v11693, 0
    %v11934 = vsel %vm11782, %v11694, 0
    %v11937 = vsel %vm11782, %v11695, 0
    %v11940 = vsel %vm11782, %v11696, 0
    %v11943 = vsel %vm11782, %v11697, 0
    %v11946 = vsel %vm11782, %v11698, 0
    %v11949 = vsel %vm11782, %v11699, 0
    %v11952 = vsel %vm11782, %v11700, 0
    %v11955 = vsel %vm11782, %v11701, 0
    %v11958 = vsel %vm11782, %v11702, 0
    %v11961 = vsel %vm11782, %v11703, 0
    %v11964 = vsel %vm11782, %v11704, 0
    %v11967 = vsel %vm11782, %v11705, 0
    %v11970 = vsel %vm11782, %v11706, 0
    %v11973 = vsel %vm11782, %v11707, 0
    %v11976 = vsel %vm11782, %v11724, 0
    %v11979 = vsel %vm11782, %v11725, 0
    %v11982 = vsel %vm11782, %v11726, 0
    %v11985 = vsel %vm11782, %v11727, 0
    %v11988 = vsel %vm11782, %v11728, 0
    %v11991 = vsel %vm11782, %v11729, 0
    %v11994 = vsel %vm11782, %v11730, 0
    %v11997 = vsel %vm11782, %v11731, 0
    %v12000 = vsel %vm11782, %v11732, 0
    %v12003 = vsel %vm11782, %v11733, 0
    %v12006 = vsel %vm11782, %v11734, 0
    %v12009 = vsel %vm11782, %v11735, 0
    %v12012 = vsel %vm11782, %v11736, 0
    %v12015 = vsel %vm11782, %v11737, 0
    %v12018 = vsel %vm11782, %v11738, 0
    %v12021 = vsel %vm11782, %v11739, 0
    %12023 = vmatpush.msra.mxu0 0.0
    %12024 = vmatpush.msra.mxu0 0.0
    %12025 = vmatpush.msra.mxu0 0.0
    %12026 = vmatpush.msra.mxu0 0.0
    %12027 = vmatpush.msra.mxu0 0.0
    %12028 = vmatpush.msra.mxu0 0.0
    %12029 = vmatpush.msra.mxu0 0.0
    %12030 = vmatpush.msra.mxu0 0.0
    %12031 = vmatpush.msra.mxu0 0.0
    %12032 = vmatpush.msra.mxu0 0.0
    %12033 = vmatpush.msra.mxu0 0.0
    %12034 = vmatpush.msra.mxu0 %v11781
    %12035 = vmatpush.msra.mxu0 %v11780
    %12036 = vmatpush.msra.mxu0 %v11779
    %12037 = vmatpush.msra.mxu0 %v11778
    %12038 = vmatpush.msra.mxu0 %v11777
    %12039 = vmatmul.f32.gmra.mxu0 %v11784
    %v12040 = vpop.f32.mrf.mxu0
    %v12041 = vadd.f32 0.0, %v12040
    %12042 = vmatmul.f32.gmra.mxu0 %v11787
    %v12043 = vpop.f32.mrf.mxu0
    %v12044 = vadd.f32 0.0, %v12043
    %12045 = vmatmul.f32.gmra.mxu0 %v11790
    %v12046 = vpop.f32.mrf.mxu0
    %v12047 = vadd.f32 0.0, %v12046
    %12048 = vmatmul.f32.gmra.mxu0 %v11793
    %v12049 = vpop.f32.mrf.mxu0
    %v12050 = vadd.f32 0.0, %v12049
    %12051 = vmatmul.f32.gmra.mxu0 %v11796
    %v12052 = vpop.f32.mrf.mxu0
    %v12053 = vadd.f32 0.0, %v12052
    %12054 = vmatmul.f32.gmra.mxu0 %v11799
    %v12055 = vpop.f32.mrf.mxu0
    %v12056 = vadd.f32 0.0, %v12055
    %12057 = vmatmul.f32.gmra.mxu0 %v11802
    %v12058 = vpop.f32.mrf.mxu0
    %v12059 = vadd.f32 0.0, %v12058
    %12060 = vmatmul.f32.gmra.mxu0 %v11805
    %v12061 = vpop.f32.mrf.mxu0
    %v12062 = vadd.f32 0.0, %v12061
    %12063 = vmatmul.f32.gmra.mxu0 %v11808
    %v12064 = vpop.f32.mrf.mxu0
    %v12065 = vadd.f32 0.0, %v12064
    %12066 = vmatmul.f32.gmra.mxu0 %v11811
    %v12067 = vpop.f32.mrf.mxu0
    %v12068 = vadd.f32 0.0, %v12067
    %12069 = vmatmul.f32.gmra.mxu0 %v11814
    %v12070 = vpop.f32.mrf.mxu0
    %v12071 = vadd.f32 0.0, %v12070
    %12072 = vmatmul.f32.gmra.mxu0 %v11817
    %v12073 = vpop.f32.mrf.mxu0
    %v12074 = vadd.f32 0.0, %v12073
    %12075 = vmatmul.f32.gmra.mxu0 %v11820
    %v12076 = vpop.f32.mrf.mxu0
    %v12077 = vadd.f32 0.0, %v12076
    %12078 = vmatmul.f32.gmra.mxu0 %v11823
    %v12079 = vpop.f32.mrf.mxu0
    %v12080 = vadd.f32 0.0, %v12079
    %12081 = vmatmul.f32.gmra.mxu0 %v11826
    %v12082 = vpop.f32.mrf.mxu0
    %v12083 = vadd.f32 0.0, %v12082
    %12084 = vmatmul.f32.gmra.mxu0 %v11829
    %v12085 = vpop.f32.mrf.mxu0
    %v12086 = vadd.f32 0.0, %v12085
    %12087 = vmatmul.f32.gmra.mxu0 %v11832
    %v12088 = vpop.f32.mrf.mxu0
    %v12089 = vadd.f32 0.0, %v12088
    %12090 = vmatmul.f32.gmra.mxu0 %v11835
    %v12091 = vpop.f32.mrf.mxu0
    %v12092 = vadd.f32 0.0, %v12091
    %12093 = vmatmul.f32.gmra.mxu0 %v11838
    %v12094 = vpop.f32.mrf.mxu0
    %v12095 = vadd.f32 0.0, %v12094
    %12096 = vmatmul.f32.gmra.mxu0 %v11841
    %v12097 = vpop.f32.mrf.mxu0
    %v12098 = vadd.f32 0.0, %v12097
    %12099 = vmatmul.f32.gmra.mxu0 %v11844
    %v12100 = vpop.f32.mrf.mxu0
    %v12101 = vadd.f32 0.0, %v12100
    %12102 = vmatmul.f32.gmra.mxu0 %v11847
    %v12103 = vpop.f32.mrf.mxu0
    %v12104 = vadd.f32 0.0, %v12103
    %12105 = vmatmul.f32.gmra.mxu0 %v11850
    %v12106 = vpop.f32.mrf.mxu0
    %v12107 = vadd.f32 0.0, %v12106
    %12108 = vmatmul.f32.gmra.mxu0 %v11853
    %v12109 = vpop.f32.mrf.mxu0
    %v12110 = vadd.f32 0.0, %v12109
    %12111 = vmatmul.f32.gmra.mxu0 %v11856
    %v12112 = vpop.f32.mrf.mxu0
    %v12113 = vadd.f32 0.0, %v12112
    %12114 = vmatmul.f32.gmra.mxu0 %v11859
    %v12115 = vpop.f32.mrf.mxu0
    %v12116 = vadd.f32 0.0, %v12115
    %12117 = vmatmul.f32.gmra.mxu0 %v11862
    %v12118 = vpop.f32.mrf.mxu0
    %v12119 = vadd.f32 0.0, %v12118
    %12120 = vmatmul.f32.gmra.mxu0 %v11865
    %v12121 = vpop.f32.mrf.mxu0
    %v12122 = vadd.f32 0.0, %v12121
    %12123 = vmatmul.f32.gmra.mxu0 %v11868
    %v12124 = vpop.f32.mrf.mxu0
    %v12125 = vadd.f32 0.0, %v12124
    %12126 = vmatmul.f32.gmra.mxu0 %v11871
    %v12127 = vpop.f32.mrf.mxu0
    %v12128 = vadd.f32 0.0, %v12127
    %12129 = vmatmul.f32.gmra.mxu0 %v11874
    %v12130 = vpop.f32.mrf.mxu0
    %v12131 = vadd.f32 0.0, %v12130
    %12132 = vmatmul.f32.gmra.mxu0 %v11877
    %v12133 = vpop.f32.mrf.mxu0
    %v12134 = vadd.f32 0.0, %v12133
    %12135 = vmatmul.f32.gmra.mxu0 %v11880
    %v12136 = vpop.f32.mrf.mxu0
    %v12137 = vadd.f32 0.0, %v12136
    %12138 = vmatmul.f32.gmra.mxu0 %v11883
    %v12139 = vpop.f32.mrf.mxu0
    %v12140 = vadd.f32 0.0, %v12139
    %12141 = vmatmul.f32.gmra.mxu0 %v11886
    %v12142 = vpop.f32.mrf.mxu0
    %v12143 = vadd.f32 0.0, %v12142
    %12144 = vmatmul.f32.gmra.mxu0 %v11889
    %v12145 = vpop.f32.mrf.mxu0
    %v12146 = vadd.f32 0.0, %v12145
    %12147 = vmatmul.f32.gmra.mxu0 %v11892
    %v12148 = vpop.f32.mrf.mxu0
    %v12149 = vadd.f32 0.0, %v12148
    %12150 = vmatmul.f32.gmra.mxu0 %v11895
    %v12151 = vpop.f32.mrf.mxu0
    %v12152 = vadd.f32 0.0, %v12151
    %12153 = vmatmul.f32.gmra.mxu0 %v11898
    %v12154 = vpop.f32.mrf.mxu0
    %v12155 = vadd.f32 0.0, %v12154
    %12156 = vmatmul.f32.gmra.mxu0 %v11901
    %v12157 = vpop.f32.mrf.mxu0
    %v12158 = vadd.f32 0.0, %v12157
    %12159 = vmatmul.f32.gmra.mxu0 %v11904
    %v12160 = vpop.f32.mrf.mxu0
    %v12161 = vadd.f32 0.0, %v12160
    %12162 = vmatmul.f32.gmra.mxu0 %v11907
    %v12163 = vpop.f32.mrf.mxu0
    %v12164 = vadd.f32 0.0, %v12163
    %12165 = vmatmul.f32.gmra.mxu0 %v11910
    %v12166 = vpop.f32.mrf.mxu0
    %v12167 = vadd.f32 0.0, %v12166
    %12168 = vmatmul.f32.gmra.mxu0 %v11913
    %v12169 = vpop.f32.mrf.mxu0
    %v12170 = vadd.f32 0.0, %v12169
    %12171 = vmatmul.f32.gmra.mxu0 %v11916
    %v12172 = vpop.f32.mrf.mxu0
    %v12173 = vadd.f32 0.0, %v12172
    %12174 = vmatmul.f32.gmra.mxu0 %v11919
    %v12175 = vpop.f32.mrf.mxu0
    %v12176 = vadd.f32 0.0, %v12175
    %12177 = vmatmul.f32.gmra.mxu0 %v11922
    %v12178 = vpop.f32.mrf.mxu0
    %v12179 = vadd.f32 0.0, %v12178
    %12180 = vmatmul.f32.gmra.mxu0 %v11925
    %v12181 = vpop.f32.mrf.mxu0
    %v12182 = vadd.f32 0.0, %v12181
    %12183 = vmatmul.f32.gmra.mxu0 %v11928
    %v12184 = vpop.f32.mrf.mxu0
    %v12185 = vadd.f32 0.0, %v12184
    %12186 = vmatmul.f32.gmra.mxu0 %v11931
    %v12187 = vpop.f32.mrf.mxu0
    %v12188 = vadd.f32 0.0, %v12187
    %12189 = vmatmul.f32.gmra.mxu0 %v11934
    %v12190 = vpop.f32.mrf.mxu0
    %v12191 = vadd.f32 0.0, %v12190
    %12192 = vmatmul.f32.gmra.mxu0 %v11937
    %v12193 = vpop.f32.mrf.mxu0
    %v12194 = vadd.f32 0.0, %v12193
    %12195 = vmatmul.f32.gmra.mxu0 %v11940
    %v12196 = vpop.f32.mrf.mxu0
    %v12197 = vadd.f32 0.0, %v12196
    %12198 = vmatmul.f32.gmra.mxu0 %v11943
    %v12199 = vpop.f32.mrf.mxu0
    %v12200 = vadd.f32 0.0, %v12199
    %12201 = vmatmul.f32.gmra.mxu0 %v11946
    %v12202 = vpop.f32.mrf.mxu0
    %v12203 = vadd.f32 0.0, %v12202
    %12204 = vmatmul.f32.gmra.mxu0 %v11949
    %v12205 = vpop.f32.mrf.mxu0
    %v12206 = vadd.f32 0.0, %v12205
    %12207 = vmatmul.f32.gmra.mxu0 %v11952
    %v12208 = vpop.f32.mrf.mxu0
    %v12209 = vadd.f32 0.0, %v12208
    %12210 = vmatmul.f32.gmra.mxu0 %v11955
    %v12211 = vpop.f32.mrf.mxu0
    %v12212 = vadd.f32 0.0, %v12211
    %12213 = vmatmul.f32.gmra.mxu0 %v11958
    %v12214 = vpop.f32.mrf.mxu0
    %v12215 = vadd.f32 0.0, %v12214
    %12216 = vmatmul.f32.gmra.mxu0 %v11961
    %v12217 = vpop.f32.mrf.mxu0
    %v12218 = vadd.f32 0.0, %v12217
    %12219 = vmatmul.f32.gmra.mxu0 %v11964
    %v12220 = vpop.f32.mrf.mxu0
    %v12221 = vadd.f32 0.0, %v12220
    %12222 = vmatmul.f32.gmra.mxu0 %v11967
    %v12223 = vpop.f32.mrf.mxu0
    %v12224 = vadd.f32 0.0, %v12223
    %12225 = vmatmul.f32.gmra.mxu0 %v11970
    %v12226 = vpop.f32.mrf.mxu0
    %v12227 = vadd.f32 0.0, %v12226
    %12228 = vmatmul.f32.gmra.mxu0 %v11973
    %v12229 = vpop.f32.mrf.mxu0
    %v12230 = vadd.f32 0.0, %v12229
    %12231 = vmatmul.f32.gmra.mxu0 %v11976
    %v12232 = vpop.f32.mrf.mxu0
    %v12233 = vadd.f32 0.0, %v12232
    %12234 = vmatmul.f32.gmra.mxu0 %v11979
    %v12235 = vpop.f32.mrf.mxu0
    %v12236 = vadd.f32 0.0, %v12235
    %12237 = vmatmul.f32.gmra.mxu0 %v11982
    %v12238 = vpop.f32.mrf.mxu0
    %v12239 = vadd.f32 0.0, %v12238
    %12240 = vmatmul.f32.gmra.mxu0 %v11985
    %v12241 = vpop.f32.mrf.mxu0
    %v12242 = vadd.f32 0.0, %v12241
    %12243 = vmatmul.f32.gmra.mxu0 %v11988
    %v12244 = vpop.f32.mrf.mxu0
    %v12245 = vadd.f32 0.0, %v12244
    %12246 = vmatmul.f32.gmra.mxu0 %v11991
    %v12247 = vpop.f32.mrf.mxu0
    %v12248 = vadd.f32 0.0, %v12247
    %12249 = vmatmul.f32.gmra.mxu0 %v11994
    %v12250 = vpop.f32.mrf.mxu0
    %v12251 = vadd.f32 0.0, %v12250
    %12252 = vmatmul.f32.gmra.mxu0 %v11997
    %v12253 = vpop.f32.mrf.mxu0
    %v12254 = vadd.f32 0.0, %v12253
    %12255 = vmatmul.f32.gmra.mxu0 %v12000
    %v12256 = vpop.f32.mrf.mxu0
    %v12257 = vadd.f32 0.0, %v12256
    %12258 = vmatmul.f32.gmra.mxu0 %v12003
    %v12259 = vpop.f32.mrf.mxu0
    %v12260 = vadd.f32 0.0, %v12259
    %12261 = vmatmul.f32.gmra.mxu0 %v12006
    %v12262 = vpop.f32.mrf.mxu0
    %v12263 = vadd.f32 0.0, %v12262
    %12264 = vmatmul.f32.gmra.mxu0 %v12009
    %v12265 = vpop.f32.mrf.mxu0
    %v12266 = vadd.f32 0.0, %v12265
    %12267 = vmatmul.f32.gmra.mxu0 %v12012
    %v12268 = vpop.f32.mrf.mxu0
    %v12269 = vadd.f32 0.0, %v12268
    %12270 = vmatmul.f32.gmra.mxu0 %v12015
    %v12271 = vpop.f32.mrf.mxu0
    %v12272 = vadd.f32 0.0, %v12271
    %12273 = vmatmul.f32.gmra.mxu0 %v12018
    %v12274 = vpop.f32.mrf.mxu0
    %v12275 = vadd.f32 0.0, %v12274
    %12276 = vmatmul.f32.gmra.mxu0 %v12021
    %v12277 = vpop.f32.mrf.mxu0
    %v12278 = vadd.f32 0.0, %v12277
    %12279 = vdwg.mxu0
    %v12281 = vsel %vm11782, %v11580, 0
    %v12284 = vsel %vm11782, %v11581, 0
    %v12287 = vsel %vm11782, %v11582, 0
    %v12290 = vsel %vm11782, %v11583, 0
    %v12293 = vsel %vm11782, %v11584, 0
    %v12296 = vsel %vm11782, %v11585, 0
    %v12299 = vsel %vm11782, %v11586, 0
    %v12302 = vsel %vm11782, %v11587, 0
    %v12305 = vsel %vm11782, %v11588, 0
    %v12308 = vsel %vm11782, %v11589, 0
    %v12311 = vsel %vm11782, %v11590, 0
    %v12314 = vsel %vm11782, %v11591, 0
    %v12317 = vsel %vm11782, %v11592, 0
    %v12320 = vsel %vm11782, %v11593, 0
    %v12323 = vsel %vm11782, %v11594, 0
    %v12326 = vsel %vm11782, %v11595, 0
    %v12329 = vsel %vm11782, %v11612, 0
    %v12332 = vsel %vm11782, %v11613, 0
    %v12335 = vsel %vm11782, %v11614, 0
    %v12338 = vsel %vm11782, %v11615, 0
    %v12341 = vsel %vm11782, %v11616, 0
    %v12344 = vsel %vm11782, %v11617, 0
    %v12347 = vsel %vm11782, %v11618, 0
    %v12350 = vsel %vm11782, %v11619, 0
    %v12353 = vsel %vm11782, %v11620, 0
    %v12356 = vsel %vm11782, %v11621, 0
    %v12359 = vsel %vm11782, %v11622, 0
    %v12362 = vsel %vm11782, %v11623, 0
    %v12365 = vsel %vm11782, %v11624, 0
    %v12368 = vsel %vm11782, %v11625, 0
    %v12371 = vsel %vm11782, %v11626, 0
    %v12374 = vsel %vm11782, %v11627, 0
    %v12377 = vsel %vm11782, %v11644, 0
    %v12380 = vsel %vm11782, %v11645, 0
    %v12383 = vsel %vm11782, %v11646, 0
    %v12386 = vsel %vm11782, %v11647, 0
    %v12389 = vsel %vm11782, %v11648, 0
    %v12392 = vsel %vm11782, %v11649, 0
    %v12395 = vsel %vm11782, %v11650, 0
    %v12398 = vsel %vm11782, %v11651, 0
    %v12401 = vsel %vm11782, %v11652, 0
    %v12404 = vsel %vm11782, %v11653, 0
    %v12407 = vsel %vm11782, %v11654, 0
    %v12410 = vsel %vm11782, %v11655, 0
    %v12413 = vsel %vm11782, %v11656, 0
    %v12416 = vsel %vm11782, %v11657, 0
    %v12419 = vsel %vm11782, %v11658, 0
    %v12422 = vsel %vm11782, %v11659, 0
    %v12425 = vsel %vm11782, %v11676, 0
    %v12428 = vsel %vm11782, %v11677, 0
    %v12431 = vsel %vm11782, %v11678, 0
    %v12434 = vsel %vm11782, %v11679, 0
    %v12437 = vsel %vm11782, %v11680, 0
    %v12440 = vsel %vm11782, %v11681, 0
    %v12443 = vsel %vm11782, %v11682, 0
    %v12446 = vsel %vm11782, %v11683, 0
    %v12449 = vsel %vm11782, %v11684, 0
    %v12452 = vsel %vm11782, %v11685, 0
    %v12455 = vsel %vm11782, %v11686, 0
    %v12458 = vsel %vm11782, %v11687, 0
    %v12461 = vsel %vm11782, %v11688, 0
    %v12464 = vsel %vm11782, %v11689, 0
    %v12467 = vsel %vm11782, %v11690, 0
    %v12470 = vsel %vm11782, %v11691, 0
    %v12473 = vsel %vm11782, %v11708, 0
    %v12476 = vsel %vm11782, %v11709, 0
    %v12479 = vsel %vm11782, %v11710, 0
    %v12482 = vsel %vm11782, %v11711, 0
    %v12485 = vsel %vm11782, %v11712, 0
    %v12488 = vsel %vm11782, %v11713, 0
    %v12491 = vsel %vm11782, %v11714, 0
    %v12494 = vsel %vm11782, %v11715, 0
    %v12497 = vsel %vm11782, %v11716, 0
    %v12500 = vsel %vm11782, %v11717, 0
    %v12503 = vsel %vm11782, %v11718, 0
    %v12506 = vsel %vm11782, %v11719, 0
    %v12509 = vsel %vm11782, %v11720, 0
    %v12512 = vsel %vm11782, %v11721, 0
    %v12515 = vsel %vm11782, %v11722, 0
    %v12518 = vsel %vm11782, %v11723, 0
    %12520 = vmatpush.msra.mxu0 0.0
    %12521 = vmatpush.msra.mxu0 0.0
    %12522 = vmatpush.msra.mxu0 0.0
    %12523 = vmatpush.msra.mxu0 0.0
    %12524 = vmatpush.msra.mxu0 0.0
    %12525 = vmatpush.msra.mxu0 0.0
    %12526 = vmatpush.msra.mxu0 0.0
    %12527 = vmatpush.msra.mxu0 0.0
    %12528 = vmatpush.msra.mxu0 0.0
    %12529 = vmatpush.msra.mxu0 0.0
    %12530 = vmatpush.msra.mxu0 0.0
    %12531 = vmatpush.msra.mxu0 %v11776
    %12532 = vmatpush.msra.mxu0 %v11775
    %12533 = vmatpush.msra.mxu0 %v11774
    %12534 = vmatpush.msra.mxu0 %v11773
    %12535 = vmatpush.msra.mxu0 %v11772
    %12536 = vmatmul.f32.gmra.mxu0 %v12281
    %v12537 = vpop.f32.mrf.mxu0
    %v12538 = vadd.f32 %v12041, %v12537
    %12539 = vmatmul.f32.gmra.mxu0 %v12284
    %v12540 = vpop.f32.mrf.mxu0
    %v12541 = vadd.f32 %v12044, %v12540
    %12542 = vmatmul.f32.gmra.mxu0 %v12287
    %v12543 = vpop.f32.mrf.mxu0
    %v12544 = vadd.f32 %v12047, %v12543
    %12545 = vmatmul.f32.gmra.mxu0 %v12290
    %v12546 = vpop.f32.mrf.mxu0
    %v12547 = vadd.f32 %v12050, %v12546
    %12548 = vmatmul.f32.gmra.mxu0 %v12293
    %v12549 = vpop.f32.mrf.mxu0
    %v12550 = vadd.f32 %v12053, %v12549
    %12551 = vmatmul.f32.gmra.mxu0 %v12296
    %v12552 = vpop.f32.mrf.mxu0
    %v12553 = vadd.f32 %v12056, %v12552
    %12554 = vmatmul.f32.gmra.mxu0 %v12299
    %v12555 = vpop.f32.mrf.mxu0
    %v12556 = vadd.f32 %v12059, %v12555
    %12557 = vmatmul.f32.gmra.mxu0 %v12302
    %v12558 = vpop.f32.mrf.mxu0
    %v12559 = vadd.f32 %v12062, %v12558
    %12560 = vmatmul.f32.gmra.mxu0 %v12305
    %v12561 = vpop.f32.mrf.mxu0
    %v12562 = vadd.f32 %v12065, %v12561
    %12563 = vmatmul.f32.gmra.mxu0 %v12308
    %v12564 = vpop.f32.mrf.mxu0
    %v12565 = vadd.f32 %v12068, %v12564
    %12566 = vmatmul.f32.gmra.mxu0 %v12311
    %v12567 = vpop.f32.mrf.mxu0
    %v12568 = vadd.f32 %v12071, %v12567
    %12569 = vmatmul.f32.gmra.mxu0 %v12314
    %v12570 = vpop.f32.mrf.mxu0
    %v12571 = vadd.f32 %v12074, %v12570
    %12572 = vmatmul.f32.gmra.mxu0 %v12317
    %v12573 = vpop.f32.mrf.mxu0
    %v12574 = vadd.f32 %v12077, %v12573
    %12575 = vmatmul.f32.gmra.mxu0 %v12320
    %v12576 = vpop.f32.mrf.mxu0
    %v12577 = vadd.f32 %v12080, %v12576
    %12578 = vmatmul.f32.gmra.mxu0 %v12323
    %v12579 = vpop.f32.mrf.mxu0
    %v12580 = vadd.f32 %v12083, %v12579
    %12581 = vmatmul.f32.gmra.mxu0 %v12326
    %v12582 = vpop.f32.mrf.mxu0
    %v12583 = vadd.f32 %v12086, %v12582
    %12584 = vmatmul.f32.gmra.mxu0 %v12329
    %v12585 = vpop.f32.mrf.mxu0
    %v12586 = vadd.f32 %v12089, %v12585
    %12587 = vmatmul.f32.gmra.mxu0 %v12332
    %v12588 = vpop.f32.mrf.mxu0
    %v12589 = vadd.f32 %v12092, %v12588
    %12590 = vmatmul.f32.gmra.mxu0 %v12335
    %v12591 = vpop.f32.mrf.mxu0
    %v12592 = vadd.f32 %v12095, %v12591
    %12593 = vmatmul.f32.gmra.mxu0 %v12338
    %v12594 = vpop.f32.mrf.mxu0
    %v12595 = vadd.f32 %v12098, %v12594
    %12596 = vmatmul.f32.gmra.mxu0 %v12341
    %v12597 = vpop.f32.mrf.mxu0
    %v12598 = vadd.f32 %v12101, %v12597
    %12599 = vmatmul.f32.gmra.mxu0 %v12344
    %v12600 = vpop.f32.mrf.mxu0
    %v12601 = vadd.f32 %v12104, %v12600
    %12602 = vmatmul.f32.gmra.mxu0 %v12347
    %v12603 = vpop.f32.mrf.mxu0
    %v12604 = vadd.f32 %v12107, %v12603
    %12605 = vmatmul.f32.gmra.mxu0 %v12350
    %v12606 = vpop.f32.mrf.mxu0
    %v12607 = vadd.f32 %v12110, %v12606
    %12608 = vmatmul.f32.gmra.mxu0 %v12353
    %v12609 = vpop.f32.mrf.mxu0
    %v12610 = vadd.f32 %v12113, %v12609
    %12611 = vmatmul.f32.gmra.mxu0 %v12356
    %v12612 = vpop.f32.mrf.mxu0
    %v12613 = vadd.f32 %v12116, %v12612
    %12614 = vmatmul.f32.gmra.mxu0 %v12359
    %v12615 = vpop.f32.mrf.mxu0
    %v12616 = vadd.f32 %v12119, %v12615
    %12617 = vmatmul.f32.gmra.mxu0 %v12362
    %v12618 = vpop.f32.mrf.mxu0
    %v12619 = vadd.f32 %v12122, %v12618
    %12620 = vmatmul.f32.gmra.mxu0 %v12365
    %v12621 = vpop.f32.mrf.mxu0
    %v12622 = vadd.f32 %v12125, %v12621
    %12623 = vmatmul.f32.gmra.mxu0 %v12368
    %v12624 = vpop.f32.mrf.mxu0
    %v12625 = vadd.f32 %v12128, %v12624
    %12626 = vmatmul.f32.gmra.mxu0 %v12371
    %v12627 = vpop.f32.mrf.mxu0
    %v12628 = vadd.f32 %v12131, %v12627
    %12629 = vmatmul.f32.gmra.mxu0 %v12374
    %v12630 = vpop.f32.mrf.mxu0
    %v12631 = vadd.f32 %v12134, %v12630
    %12632 = vmatmul.f32.gmra.mxu0 %v12377
    %v12633 = vpop.f32.mrf.mxu0
    %v12634 = vadd.f32 %v12137, %v12633
    %12635 = vmatmul.f32.gmra.mxu0 %v12380
    %v12636 = vpop.f32.mrf.mxu0
    %v12637 = vadd.f32 %v12140, %v12636
    %12638 = vmatmul.f32.gmra.mxu0 %v12383
    %v12639 = vpop.f32.mrf.mxu0
    %v12640 = vadd.f32 %v12143, %v12639
    %12641 = vmatmul.f32.gmra.mxu0 %v12386
    %v12642 = vpop.f32.mrf.mxu0
    %v12643 = vadd.f32 %v12146, %v12642
    %12644 = vmatmul.f32.gmra.mxu0 %v12389
    %v12645 = vpop.f32.mrf.mxu0
    %v12646 = vadd.f32 %v12149, %v12645
    %12647 = vmatmul.f32.gmra.mxu0 %v12392
    %v12648 = vpop.f32.mrf.mxu0
    %v12649 = vadd.f32 %v12152, %v12648
    %12650 = vmatmul.f32.gmra.mxu0 %v12395
    %v12651 = vpop.f32.mrf.mxu0
    %v12652 = vadd.f32 %v12155, %v12651
    %12653 = vmatmul.f32.gmra.mxu0 %v12398
    %v12654 = vpop.f32.mrf.mxu0
    %v12655 = vadd.f32 %v12158, %v12654
    %12656 = vmatmul.f32.gmra.mxu0 %v12401
    %v12657 = vpop.f32.mrf.mxu0
    %v12658 = vadd.f32 %v12161, %v12657
    %12659 = vmatmul.f32.gmra.mxu0 %v12404
    %v12660 = vpop.f32.mrf.mxu0
    %v12661 = vadd.f32 %v12164, %v12660
    %12662 = vmatmul.f32.gmra.mxu0 %v12407
    %v12663 = vpop.f32.mrf.mxu0
    %v12664 = vadd.f32 %v12167, %v12663
    %12665 = vmatmul.f32.gmra.mxu0 %v12410
    %v12666 = vpop.f32.mrf.mxu0
    %v12667 = vadd.f32 %v12170, %v12666
    %12668 = vmatmul.f32.gmra.mxu0 %v12413
    %v12669 = vpop.f32.mrf.mxu0
    %v12670 = vadd.f32 %v12173, %v12669
    %12671 = vmatmul.f32.gmra.mxu0 %v12416
    %v12672 = vpop.f32.mrf.mxu0
    %v12673 = vadd.f32 %v12176, %v12672
    %12674 = vmatmul.f32.gmra.mxu0 %v12419
    %v12675 = vpop.f32.mrf.mxu0
    %v12676 = vadd.f32 %v12179, %v12675
    %12677 = vmatmul.f32.gmra.mxu0 %v12422
    %v12678 = vpop.f32.mrf.mxu0
    %v12679 = vadd.f32 %v12182, %v12678
    %12680 = vmatmul.f32.gmra.mxu0 %v12425
    %v12681 = vpop.f32.mrf.mxu0
    %v12682 = vadd.f32 %v12185, %v12681
    %12683 = vmatmul.f32.gmra.mxu0 %v12428
    %v12684 = vpop.f32.mrf.mxu0
    %v12685 = vadd.f32 %v12188, %v12684
    %12686 = vmatmul.f32.gmra.mxu0 %v12431
    %v12687 = vpop.f32.mrf.mxu0
    %v12688 = vadd.f32 %v12191, %v12687
    %12689 = vmatmul.f32.gmra.mxu0 %v12434
    %v12690 = vpop.f32.mrf.mxu0
    %v12691 = vadd.f32 %v12194, %v12690
    %12692 = vmatmul.f32.gmra.mxu0 %v12437
    %v12693 = vpop.f32.mrf.mxu0
    %v12694 = vadd.f32 %v12197, %v12693
    %12695 = vmatmul.f32.gmra.mxu0 %v12440
    %v12696 = vpop.f32.mrf.mxu0
    %v12697 = vadd.f32 %v12200, %v12696
    %12698 = vmatmul.f32.gmra.mxu0 %v12443
    %v12699 = vpop.f32.mrf.mxu0
    %v12700 = vadd.f32 %v12203, %v12699
    %12701 = vmatmul.f32.gmra.mxu0 %v12446
    %v12702 = vpop.f32.mrf.mxu0
    %v12703 = vadd.f32 %v12206, %v12702
    %12704 = vmatmul.f32.gmra.mxu0 %v12449
    %v12705 = vpop.f32.mrf.mxu0
    %v12706 = vadd.f32 %v12209, %v12705
    %12707 = vmatmul.f32.gmra.mxu0 %v12452
    %v12708 = vpop.f32.mrf.mxu0
    %v12709 = vadd.f32 %v12212, %v12708
    %12710 = vmatmul.f32.gmra.mxu0 %v12455
    %v12711 = vpop.f32.mrf.mxu0
    %v12712 = vadd.f32 %v12215, %v12711
    %12713 = vmatmul.f32.gmra.mxu0 %v12458
    %v12714 = vpop.f32.mrf.mxu0
    %v12715 = vadd.f32 %v12218, %v12714
    %12716 = vmatmul.f32.gmra.mxu0 %v12461
    %v12717 = vpop.f32.mrf.mxu0
    %v12718 = vadd.f32 %v12221, %v12717
    %12719 = vmatmul.f32.gmra.mxu0 %v12464
    %v12720 = vpop.f32.mrf.mxu0
    %v12721 = vadd.f32 %v12224, %v12720
    %12722 = vmatmul.f32.gmra.mxu0 %v12467
    %v12723 = vpop.f32.mrf.mxu0
    %v12724 = vadd.f32 %v12227, %v12723
    %12725 = vmatmul.f32.gmra.mxu0 %v12470
    %v12726 = vpop.f32.mrf.mxu0
    %v12727 = vadd.f32 %v12230, %v12726
    %12728 = vmatmul.f32.gmra.mxu0 %v12473
    %v12729 = vpop.f32.mrf.mxu0
    %v12730 = vadd.f32 %v12233, %v12729
    %12731 = vmatmul.f32.gmra.mxu0 %v12476
    %v12732 = vpop.f32.mrf.mxu0
    %v12733 = vadd.f32 %v12236, %v12732
    %12734 = vmatmul.f32.gmra.mxu0 %v12479
    %v12735 = vpop.f32.mrf.mxu0
    %v12736 = vadd.f32 %v12239, %v12735
    %12737 = vmatmul.f32.gmra.mxu0 %v12482
    %v12738 = vpop.f32.mrf.mxu0
    %v12739 = vadd.f32 %v12242, %v12738
    %12740 = vmatmul.f32.gmra.mxu0 %v12485
    %v12741 = vpop.f32.mrf.mxu0
    %v12742 = vadd.f32 %v12245, %v12741
    %12743 = vmatmul.f32.gmra.mxu0 %v12488
    %v12744 = vpop.f32.mrf.mxu0
    %v12745 = vadd.f32 %v12248, %v12744
    %12746 = vmatmul.f32.gmra.mxu0 %v12491
    %v12747 = vpop.f32.mrf.mxu0
    %v12748 = vadd.f32 %v12251, %v12747
    %12749 = vmatmul.f32.gmra.mxu0 %v12494
    %v12750 = vpop.f32.mrf.mxu0
    %v12751 = vadd.f32 %v12254, %v12750
    %12752 = vmatmul.f32.gmra.mxu0 %v12497
    %v12753 = vpop.f32.mrf.mxu0
    %v12754 = vadd.f32 %v12257, %v12753
    %12755 = vmatmul.f32.gmra.mxu0 %v12500
    %v12756 = vpop.f32.mrf.mxu0
    %v12757 = vadd.f32 %v12260, %v12756
    %12758 = vmatmul.f32.gmra.mxu0 %v12503
    %v12759 = vpop.f32.mrf.mxu0
    %v12760 = vadd.f32 %v12263, %v12759
    %12761 = vmatmul.f32.gmra.mxu0 %v12506
    %v12762 = vpop.f32.mrf.mxu0
    %v12763 = vadd.f32 %v12266, %v12762
    %12764 = vmatmul.f32.gmra.mxu0 %v12509
    %v12765 = vpop.f32.mrf.mxu0
    %v12766 = vadd.f32 %v12269, %v12765
    %12767 = vmatmul.f32.gmra.mxu0 %v12512
    %v12768 = vpop.f32.mrf.mxu0
    %v12769 = vadd.f32 %v12272, %v12768
    %12770 = vmatmul.f32.gmra.mxu0 %v12515
    %v12771 = vpop.f32.mrf.mxu0
    %v12772 = vadd.f32 %v12275, %v12771
    %12773 = vmatmul.f32.gmra.mxu0 %v12518
    %v12774 = vpop.f32.mrf.mxu0
    %v12775 = vadd.f32 %v12278, %v12774
    %12776 = vdwg.mxu0
    %v12777 = vld [vmem:[%s5 + $0x50] sm:$0xff]
    %v12778 = vld [vmem:[%s5 + $0x58] sm:$0xff]
    %v12779 = vld [vmem:[%s5 + $0x60] sm:$0xff]
    %v12780 = vld [vmem:[%s5 + $0x68] sm:$0xff]
    %v12781 = vld [vmem:[%s5 + $0x70] sm:$0xff]
    %v12783 = vsel %vm11782, %v11740, 0
    %v12786 = vsel %vm11782, %v11741, 0
    %v12789 = vsel %vm11782, %v11742, 0
    %v12792 = vsel %vm11782, %v11743, 0
    %v12795 = vsel %vm11782, %v11744, 0
    %v12798 = vsel %vm11782, %v11745, 0
    %v12801 = vsel %vm11782, %v11746, 0
    %v12804 = vsel %vm11782, %v11747, 0
    %v12807 = vsel %vm11782, %v11748, 0
    %v12810 = vsel %vm11782, %v11749, 0
    %v12813 = vsel %vm11782, %v11750, 0
    %v12816 = vsel %vm11782, %v11751, 0
    %v12819 = vsel %vm11782, %v11752, 0
    %v12822 = vsel %vm11782, %v11753, 0
    %v12825 = vsel %vm11782, %v11754, 0
    %v12828 = vsel %vm11782, %v11755, 0
    %12830 = vmatpush.msra.mxu0 0.0
    %12831 = vmatpush.msra.mxu0 0.0
    %12832 = vmatpush.msra.mxu0 0.0
    %12833 = vmatpush.msra.mxu0 0.0
    %12834 = vmatpush.msra.mxu0 0.0
    %12835 = vmatpush.msra.mxu0 0.0
    %12836 = vmatpush.msra.mxu0 0.0
    %12837 = vmatpush.msra.mxu0 0.0
    %12838 = vmatpush.msra.mxu0 0.0
    %12839 = vmatpush.msra.mxu0 0.0
    %12840 = vmatpush.msra.mxu0 0.0
    %12841 = vmatpush.msra.mxu0 %v12781
    %12842 = vmatpush.msra.mxu0 %v12780
    %12843 = vmatpush.msra.mxu0 %v12779
    %12844 = vmatpush.msra.mxu0 %v12778
    %12845 = vmatpush.msra.mxu0 %v12777
    %12846 = vmatmul.f32.gmra.mxu0 %v12329
    %v12847 = vpop.f32.mrf.mxu0
    %v12848 = vadd.f32 0.0, %v12847
    %12849 = vmatmul.f32.gmra.mxu0 %v12332
    %v12850 = vpop.f32.mrf.mxu0
    %v12851 = vadd.f32 0.0, %v12850
    %12852 = vmatmul.f32.gmra.mxu0 %v12335
    %v12853 = vpop.f32.mrf.mxu0
    %v12854 = vadd.f32 0.0, %v12853
    %12855 = vmatmul.f32.gmra.mxu0 %v12338
    %v12856 = vpop.f32.mrf.mxu0
    %v12857 = vadd.f32 0.0, %v12856
    %12858 = vmatmul.f32.gmra.mxu0 %v12341
    %v12859 = vpop.f32.mrf.mxu0
    %v12860 = vadd.f32 0.0, %v12859
    %12861 = vmatmul.f32.gmra.mxu0 %v12344
    %v12862 = vpop.f32.mrf.mxu0
    %v12863 = vadd.f32 0.0, %v12862
    %12864 = vmatmul.f32.gmra.mxu0 %v12347
    %v12865 = vpop.f32.mrf.mxu0
    %v12866 = vadd.f32 0.0, %v12865
    %12867 = vmatmul.f32.gmra.mxu0 %v12350
    %v12868 = vpop.f32.mrf.mxu0
    %v12869 = vadd.f32 0.0, %v12868
    %12870 = vmatmul.f32.gmra.mxu0 %v12353
    %v12871 = vpop.f32.mrf.mxu0
    %v12872 = vadd.f32 0.0, %v12871
    %12873 = vmatmul.f32.gmra.mxu0 %v12356
    %v12874 = vpop.f32.mrf.mxu0
    %v12875 = vadd.f32 0.0, %v12874
    %12876 = vmatmul.f32.gmra.mxu0 %v12359
    %v12877 = vpop.f32.mrf.mxu0
    %v12878 = vadd.f32 0.0, %v12877
    %12879 = vmatmul.f32.gmra.mxu0 %v12362
    %v12880 = vpop.f32.mrf.mxu0
    %v12881 = vadd.f32 0.0, %v12880
    %12882 = vmatmul.f32.gmra.mxu0 %v12365
    %v12883 = vpop.f32.mrf.mxu0
    %v12884 = vadd.f32 0.0, %v12883
    %12885 = vmatmul.f32.gmra.mxu0 %v12368
    %v12886 = vpop.f32.mrf.mxu0
    %v12887 = vadd.f32 0.0, %v12886
    %12888 = vmatmul.f32.gmra.mxu0 %v12371
    %v12889 = vpop.f32.mrf.mxu0
    %v12890 = vadd.f32 0.0, %v12889
    %12891 = vmatmul.f32.gmra.mxu0 %v12374
    %v12892 = vpop.f32.mrf.mxu0
    %v12893 = vadd.f32 0.0, %v12892
    %12894 = vmatmul.f32.gmra.mxu0 %v12377
    %v12895 = vpop.f32.mrf.mxu0
    %v12896 = vadd.f32 0.0, %v12895
    %12897 = vmatmul.f32.gmra.mxu0 %v12380
    %v12898 = vpop.f32.mrf.mxu0
    %v12899 = vadd.f32 0.0, %v12898
    %12900 = vmatmul.f32.gmra.mxu0 %v12383
    %v12901 = vpop.f32.mrf.mxu0
    %v12902 = vadd.f32 0.0, %v12901
    %12903 = vmatmul.f32.gmra.mxu0 %v12386
    %v12904 = vpop.f32.mrf.mxu0
    %v12905 = vadd.f32 0.0, %v12904
    %12906 = vmatmul.f32.gmra.mxu0 %v12389
    %v12907 = vpop.f32.mrf.mxu0
    %v12908 = vadd.f32 0.0, %v12907
    %12909 = vmatmul.f32.gmra.mxu0 %v12392
    %v12910 = vpop.f32.mrf.mxu0
    %v12911 = vadd.f32 0.0, %v12910
    %12912 = vmatmul.f32.gmra.mxu0 %v12395
    %v12913 = vpop.f32.mrf.mxu0
    %v12914 = vadd.f32 0.0, %v12913
    %12915 = vmatmul.f32.gmra.mxu0 %v12398
    %v12916 = vpop.f32.mrf.mxu0
    %v12917 = vadd.f32 0.0, %v12916
    %12918 = vmatmul.f32.gmra.mxu0 %v12401
    %v12919 = vpop.f32.mrf.mxu0
    %v12920 = vadd.f32 0.0, %v12919
    %12921 = vmatmul.f32.gmra.mxu0 %v12404
    %v12922 = vpop.f32.mrf.mxu0
    %v12923 = vadd.f32 0.0, %v12922
    %12924 = vmatmul.f32.gmra.mxu0 %v12407
    %v12925 = vpop.f32.mrf.mxu0
    %v12926 = vadd.f32 0.0, %v12925
    %12927 = vmatmul.f32.gmra.mxu0 %v12410
    %v12928 = vpop.f32.mrf.mxu0
    %v12929 = vadd.f32 0.0, %v12928
    %12930 = vmatmul.f32.gmra.mxu0 %v12413
    %v12931 = vpop.f32.mrf.mxu0
    %v12932 = vadd.f32 0.0, %v12931
    %12933 = vmatmul.f32.gmra.mxu0 %v12416
    %v12934 = vpop.f32.mrf.mxu0
    %v12935 = vadd.f32 0.0, %v12934
    %12936 = vmatmul.f32.gmra.mxu0 %v12419
    %v12937 = vpop.f32.mrf.mxu0
    %v12938 = vadd.f32 0.0, %v12937
    %12939 = vmatmul.f32.gmra.mxu0 %v12422
    %v12940 = vpop.f32.mrf.mxu0
    %v12941 = vadd.f32 0.0, %v12940
    %12942 = vmatmul.f32.gmra.mxu0 %v12425
    %v12943 = vpop.f32.mrf.mxu0
    %v12944 = vadd.f32 0.0, %v12943
    %12945 = vmatmul.f32.gmra.mxu0 %v12428
    %v12946 = vpop.f32.mrf.mxu0
    %v12947 = vadd.f32 0.0, %v12946
    %12948 = vmatmul.f32.gmra.mxu0 %v12431
    %v12949 = vpop.f32.mrf.mxu0
    %v12950 = vadd.f32 0.0, %v12949
    %12951 = vmatmul.f32.gmra.mxu0 %v12434
    %v12952 = vpop.f32.mrf.mxu0
    %v12953 = vadd.f32 0.0, %v12952
    %12954 = vmatmul.f32.gmra.mxu0 %v12437
    %v12955 = vpop.f32.mrf.mxu0
    %v12956 = vadd.f32 0.0, %v12955
    %12957 = vmatmul.f32.gmra.mxu0 %v12440
    %v12958 = vpop.f32.mrf.mxu0
    %v12959 = vadd.f32 0.0, %v12958
    %12960 = vmatmul.f32.gmra.mxu0 %v12443
    %v12961 = vpop.f32.mrf.mxu0
    %v12962 = vadd.f32 0.0, %v12961
    %12963 = vmatmul.f32.gmra.mxu0 %v12446
    %v12964 = vpop.f32.mrf.mxu0
    %v12965 = vadd.f32 0.0, %v12964
    %12966 = vmatmul.f32.gmra.mxu0 %v12449
    %v12967 = vpop.f32.mrf.mxu0
    %v12968 = vadd.f32 0.0, %v12967
    %12969 = vmatmul.f32.gmra.mxu0 %v12452
    %v12970 = vpop.f32.mrf.mxu0
    %v12971 = vadd.f32 0.0, %v12970
    %12972 = vmatmul.f32.gmra.mxu0 %v12455
    %v12973 = vpop.f32.mrf.mxu0
    %v12974 = vadd.f32 0.0, %v12973
    %12975 = vmatmul.f32.gmra.mxu0 %v12458
    %v12976 = vpop.f32.mrf.mxu0
    %v12977 = vadd.f32 0.0, %v12976
    %12978 = vmatmul.f32.gmra.mxu0 %v12461
    %v12979 = vpop.f32.mrf.mxu0
    %v12980 = vadd.f32 0.0, %v12979
    %12981 = vmatmul.f32.gmra.mxu0 %v12464
    %v12982 = vpop.f32.mrf.mxu0
    %v12983 = vadd.f32 0.0, %v12982
    %12984 = vmatmul.f32.gmra.mxu0 %v12467
    %v12985 = vpop.f32.mrf.mxu0
    %v12986 = vadd.f32 0.0, %v12985
    %12987 = vmatmul.f32.gmra.mxu0 %v12470
    %v12988 = vpop.f32.mrf.mxu0
    %v12989 = vadd.f32 0.0, %v12988
    %12990 = vmatmul.f32.gmra.mxu0 %v12473
    %v12991 = vpop.f32.mrf.mxu0
    %v12992 = vadd.f32 0.0, %v12991
    %12993 = vmatmul.f32.gmra.mxu0 %v12476
    %v12994 = vpop.f32.mrf.mxu0
    %v12995 = vadd.f32 0.0, %v12994
    %12996 = vmatmul.f32.gmra.mxu0 %v12479
    %v12997 = vpop.f32.mrf.mxu0
    %v12998 = vadd.f32 0.0, %v12997
    %12999 = vmatmul.f32.gmra.mxu0 %v12482
    %v13000 = vpop.f32.mrf.mxu0
    %v13001 = vadd.f32 0.0, %v13000
    %13002 = vmatmul.f32.gmra.mxu0 %v12485
    %v13003 = vpop.f32.mrf.mxu0
    %v13004 = vadd.f32 0.0, %v13003
    %13005 = vmatmul.f32.gmra.mxu0 %v12488
    %v13006 = vpop.f32.mrf.mxu0
    %v13007 = vadd.f32 0.0, %v13006
    %13008 = vmatmul.f32.gmra.mxu0 %v12491
    %v13009 = vpop.f32.mrf.mxu0
    %v13010 = vadd.f32 0.0, %v13009
    %13011 = vmatmul.f32.gmra.mxu0 %v12494
    %v13012 = vpop.f32.mrf.mxu0
    %v13013 = vadd.f32 0.0, %v13012
    %13014 = vmatmul.f32.gmra.mxu0 %v12497
    %v13015 = vpop.f32.mrf.mxu0
    %v13016 = vadd.f32 0.0, %v13015
    %13017 = vmatmul.f32.gmra.mxu0 %v12500
    %v13018 = vpop.f32.mrf.mxu0
    %v13019 = vadd.f32 0.0, %v13018
    %13020 = vmatmul.f32.gmra.mxu0 %v12503
    %v13021 = vpop.f32.mrf.mxu0
    %v13022 = vadd.f32 0.0, %v13021
    %13023 = vmatmul.f32.gmra.mxu0 %v12506
    %v13024 = vpop.f32.mrf.mxu0
    %v13025 = vadd.f32 0.0, %v13024
    %13026 = vmatmul.f32.gmra.mxu0 %v12509
    %v13027 = vpop.f32.mrf.mxu0
    %v13028 = vadd.f32 0.0, %v13027
    %13029 = vmatmul.f32.gmra.mxu0 %v12512
    %v13030 = vpop.f32.mrf.mxu0
    %v13031 = vadd.f32 0.0, %v13030
    %13032 = vmatmul.f32.gmra.mxu0 %v12515
    %v13033 = vpop.f32.mrf.mxu0
    %v13034 = vadd.f32 0.0, %v13033
    %13035 = vmatmul.f32.gmra.mxu0 %v12518
    %v13036 = vpop.f32.mrf.mxu0
    %v13037 = vadd.f32 0.0, %v13036
    %13038 = vmatmul.f32.gmra.mxu0 %v12783
    %v13039 = vpop.f32.mrf.mxu0
    %v13040 = vadd.f32 0.0, %v13039
    %13041 = vmatmul.f32.gmra.mxu0 %v12786
    %v13042 = vpop.f32.mrf.mxu0
    %v13043 = vadd.f32 0.0, %v13042
    %13044 = vmatmul.f32.gmra.mxu0 %v12789
    %v13045 = vpop.f32.mrf.mxu0
    %v13046 = vadd.f32 0.0, %v13045
    %13047 = vmatmul.f32.gmra.mxu0 %v12792
    %v13048 = vpop.f32.mrf.mxu0
    %v13049 = vadd.f32 0.0, %v13048
    %13050 = vmatmul.f32.gmra.mxu0 %v12795
    %v13051 = vpop.f32.mrf.mxu0
    %v13052 = vadd.f32 0.0, %v13051
    %13053 = vmatmul.f32.gmra.mxu0 %v12798
    %v13054 = vpop.f32.mrf.mxu0
    %v13055 = vadd.f32 0.0, %v13054
    %13056 = vmatmul.f32.gmra.mxu0 %v12801
    %v13057 = vpop.f32.mrf.mxu0
    %v13058 = vadd.f32 0.0, %v13057
    %13059 = vmatmul.f32.gmra.mxu0 %v12804
    %v13060 = vpop.f32.mrf.mxu0
    %v13061 = vadd.f32 0.0, %v13060
    %13062 = vmatmul.f32.gmra.mxu0 %v12807
    %v13063 = vpop.f32.mrf.mxu0
    %v13064 = vadd.f32 0.0, %v13063
    %13065 = vmatmul.f32.gmra.mxu0 %v12810
    %v13066 = vpop.f32.mrf.mxu0
    %v13067 = vadd.f32 0.0, %v13066
    %13068 = vmatmul.f32.gmra.mxu0 %v12813
    %v13069 = vpop.f32.mrf.mxu0
    %v13070 = vadd.f32 0.0, %v13069
    %13071 = vmatmul.f32.gmra.mxu0 %v12816
    %v13072 = vpop.f32.mrf.mxu0
    %v13073 = vadd.f32 0.0, %v13072
    %13074 = vmatmul.f32.gmra.mxu0 %v12819
    %v13075 = vpop.f32.mrf.mxu0
    %v13076 = vadd.f32 0.0, %v13075
    %13077 = vmatmul.f32.gmra.mxu0 %v12822
    %v13078 = vpop.f32.mrf.mxu0
    %v13079 = vadd.f32 0.0, %v13078
    %13080 = vmatmul.f32.gmra.mxu0 %v12825
    %v13081 = vpop.f32.mrf.mxu0
    %v13082 = vadd.f32 0.0, %v13081
    %13083 = vmatmul.f32.gmra.mxu0 %v12828
    %v13084 = vpop.f32.mrf.mxu0
    %v13085 = vadd.f32 0.0, %v13084
    %13086 = vdwg.mxu0
    %v13087 = vadd.f32 %v12538, %v12848
    %v13088 = vadd.f32 %v12541, %v12851
    %v13089 = vadd.f32 %v12544, %v12854
    %v13090 = vadd.f32 %v12547, %v12857
    %v13091 = vadd.f32 %v12550, %v12860
    %v13092 = vadd.f32 %v12553, %v12863
    %v13093 = vadd.f32 %v12556, %v12866
    %v13094 = vadd.f32 %v12559, %v12869
    %v13095 = vadd.f32 %v12562, %v12872
    %v13096 = vadd.f32 %v12565, %v12875
    %v13097 = vadd.f32 %v12568, %v12878
    %v13098 = vadd.f32 %v12571, %v12881
    %v13099 = vadd.f32 %v12574, %v12884
    %v13100 = vadd.f32 %v12577, %v12887
    %v13101 = vadd.f32 %v12580, %v12890
    %v13102 = vadd.f32 %v12583, %v12893
    %v13103 = vadd.f32 %v12586, %v12896
    %v13104 = vadd.f32 %v12589, %v12899
    %v13105 = vadd.f32 %v12592, %v12902
    %v13106 = vadd.f32 %v12595, %v12905
    %v13107 = vadd.f32 %v12598, %v12908
    %v13108 = vadd.f32 %v12601, %v12911
    %v13109 = vadd.f32 %v12604, %v12914
    %v13110 = vadd.f32 %v12607, %v12917
    %v13111 = vadd.f32 %v12610, %v12920
    %v13112 = vadd.f32 %v12613, %v12923
    %v13113 = vadd.f32 %v12616, %v12926
    %v13114 = vadd.f32 %v12619, %v12929
    %v13115 = vadd.f32 %v12622, %v12932
    %v13116 = vadd.f32 %v12625, %v12935
    %v13117 = vadd.f32 %v12628, %v12938
    %v13118 = vadd.f32 %v12631, %v12941
    %v13119 = vadd.f32 %v12634, %v12944
    %v13120 = vadd.f32 %v12637, %v12947
    %v13121 = vadd.f32 %v12640, %v12950
    %v13122 = vadd.f32 %v12643, %v12953
    %v13123 = vadd.f32 %v12646, %v12956
    %v13124 = vadd.f32 %v12649, %v12959
    %v13125 = vadd.f32 %v12652, %v12962
    %v13126 = vadd.f32 %v12655, %v12965
    %v13127 = vadd.f32 %v12658, %v12968
    %v13128 = vadd.f32 %v12661, %v12971
    %v13129 = vadd.f32 %v12664, %v12974
    %v13130 = vadd.f32 %v12667, %v12977
    %v13131 = vadd.f32 %v12670, %v12980
    %v13132 = vadd.f32 %v12673, %v12983
    %v13133 = vadd.f32 %v12676, %v12986
    %v13134 = vadd.f32 %v12679, %v12989
    %v13135 = vadd.f32 %v12682, %v12992
    %v13136 = vadd.f32 %v12685, %v12995
    %v13137 = vadd.f32 %v12688, %v12998
    %v13138 = vadd.f32 %v12691, %v13001
    %v13139 = vadd.f32 %v12694, %v13004
    %v13140 = vadd.f32 %v12697, %v13007
    %v13141 = vadd.f32 %v12700, %v13010
    %v13142 = vadd.f32 %v12703, %v13013
    %v13143 = vadd.f32 %v12706, %v13016
    %v13144 = vadd.f32 %v12709, %v13019
    %v13145 = vadd.f32 %v12712, %v13022
    %v13146 = vadd.f32 %v12715, %v13025
    %v13147 = vadd.f32 %v12718, %v13028
    %v13148 = vadd.f32 %v12721, %v13031
    %v13149 = vadd.f32 %v12724, %v13034
    %v13150 = vadd.f32 %v12727, %v13037
    %v13151 = vadd.f32 %v12730, %v13040
    %v13152 = vadd.f32 %v12733, %v13043
    %v13153 = vadd.f32 %v12736, %v13046
    %v13154 = vadd.f32 %v12739, %v13049
    %v13155 = vadd.f32 %v12742, %v13052
    %v13156 = vadd.f32 %v12745, %v13055
    %v13157 = vadd.f32 %v12748, %v13058
    %v13158 = vadd.f32 %v12751, %v13061
    %v13159 = vadd.f32 %v12754, %v13064
    %v13160 = vadd.f32 %v12757, %v13067
    %v13161 = vadd.f32 %v12760, %v13070
    %v13162 = vadd.f32 %v12763, %v13073
    %v13163 = vadd.f32 %v12766, %v13076
    %v13164 = vadd.f32 %v12769, %v13079
    %v13165 = vadd.f32 %v12772, %v13082
    %v13166 = vadd.f32 %v12775, %v13085
    %v13167 = vld [vmem:[%s5 + $0x78] sm:$0xff]
    %v13168 = vld [vmem:[%s5 + $0x80] sm:$0xff]
    %v13169 = vld [vmem:[%s5 + $0x88] sm:$0xff]
    %v13170 = vld [vmem:[%s5 + $0x90] sm:$0xff]
    %v13171 = vld [vmem:[%s5 + $0x98] sm:$0xff]
    %v13173 = vsel %vm11782, %v11756, 0
    %v13176 = vsel %vm11782, %v11757, 0
    %v13179 = vsel %vm11782, %v11758, 0
    %v13182 = vsel %vm11782, %v11759, 0
    %v13185 = vsel %vm11782, %v11760, 0
    %v13188 = vsel %vm11782, %v11761, 0
    %v13191 = vsel %vm11782, %v11762, 0
    %v13194 = vsel %vm11782, %v11763, 0
    %v13197 = vsel %vm11782, %v11764, 0
    %v13200 = vsel %vm11782, %v11765, 0
    %v13203 = vsel %vm11782, %v11766, 0
    %v13206 = vsel %vm11782, %v11767, 0
    %v13209 = vsel %vm11782, %v11768, 0
    %v13212 = vsel %vm11782, %v11769, 0
    %v13215 = vsel %vm11782, %v11770, 0
    %v13218 = vsel %vm11782, %v11771, 0
    %13220 = vmatpush.msra.mxu0 0.0
    %13221 = vmatpush.msra.mxu0 0.0
    %13222 = vmatpush.msra.mxu0 0.0
    %13223 = vmatpush.msra.mxu0 0.0
    %13224 = vmatpush.msra.mxu0 0.0
    %13225 = vmatpush.msra.mxu0 0.0
    %13226 = vmatpush.msra.mxu0 0.0
    %13227 = vmatpush.msra.mxu0 0.0
    %13228 = vmatpush.msra.mxu0 0.0
    %13229 = vmatpush.msra.mxu0 0.0
    %13230 = vmatpush.msra.mxu0 0.0
    %13231 = vmatpush.msra.mxu0 %v13171
    %13232 = vmatpush.msra.mxu0 %v13170
    %13233 = vmatpush.msra.mxu0 %v13169
    %13234 = vmatpush.msra.mxu0 %v13168
    %13235 = vmatpush.msra.mxu0 %v13167
    %13236 = vmatmul.f32.gmra.mxu0 %v11832
    %v13237 = vpop.f32.mrf.mxu0
    %v13238 = vadd.f32 0.0, %v13237
    %13239 = vmatmul.f32.gmra.mxu0 %v11835
    %v13240 = vpop.f32.mrf.mxu0
    %v13241 = vadd.f32 0.0, %v13240
    %13242 = vmatmul.f32.gmra.mxu0 %v11838
    %v13243 = vpop.f32.mrf.mxu0
    %v13244 = vadd.f32 0.0, %v13243
    %13245 = vmatmul.f32.gmra.mxu0 %v11841
    %v13246 = vpop.f32.mrf.mxu0
    %v13247 = vadd.f32 0.0, %v13246
    %13248 = vmatmul.f32.gmra.mxu0 %v11844
    %v13249 = vpop.f32.mrf.mxu0
    %v13250 = vadd.f32 0.0, %v13249
    %13251 = vmatmul.f32.gmra.mxu0 %v11847
    %v13252 = vpop.f32.mrf.mxu0
    %v13253 = vadd.f32 0.0, %v13252
    %13254 = vmatmul.f32.gmra.mxu0 %v11850
    %v13255 = vpop.f32.mrf.mxu0
    %v13256 = vadd.f32 0.0, %v13255
    %13257 = vmatmul.f32.gmra.mxu0 %v11853
    %v13258 = vpop.f32.mrf.mxu0
    %v13259 = vadd.f32 0.0, %v13258
    %13260 = vmatmul.f32.gmra.mxu0 %v11856
    %v13261 = vpop.f32.mrf.mxu0
    %v13262 = vadd.f32 0.0, %v13261
    %13263 = vmatmul.f32.gmra.mxu0 %v11859
    %v13264 = vpop.f32.mrf.mxu0
    %v13265 = vadd.f32 0.0, %v13264
    %13266 = vmatmul.f32.gmra.mxu0 %v11862
    %v13267 = vpop.f32.mrf.mxu0
    %v13268 = vadd.f32 0.0, %v13267
    %13269 = vmatmul.f32.gmra.mxu0 %v11865
    %v13270 = vpop.f32.mrf.mxu0
    %v13271 = vadd.f32 0.0, %v13270
    %13272 = vmatmul.f32.gmra.mxu0 %v11868
    %v13273 = vpop.f32.mrf.mxu0
    %v13274 = vadd.f32 0.0, %v13273
    %13275 = vmatmul.f32.gmra.mxu0 %v11871
    %v13276 = vpop.f32.mrf.mxu0
    %v13277 = vadd.f32 0.0, %v13276
    %13278 = vmatmul.f32.gmra.mxu0 %v11874
    %v13279 = vpop.f32.mrf.mxu0
    %v13280 = vadd.f32 0.0, %v13279
    %13281 = vmatmul.f32.gmra.mxu0 %v11877
    %v13282 = vpop.f32.mrf.mxu0
    %v13283 = vadd.f32 0.0, %v13282
    %13284 = vmatmul.f32.gmra.mxu0 %v11880
    %v13285 = vpop.f32.mrf.mxu0
    %v13286 = vadd.f32 0.0, %v13285
    %13287 = vmatmul.f32.gmra.mxu0 %v11883
    %v13288 = vpop.f32.mrf.mxu0
    %v13289 = vadd.f32 0.0, %v13288
    %13290 = vmatmul.f32.gmra.mxu0 %v11886
    %v13291 = vpop.f32.mrf.mxu0
    %v13292 = vadd.f32 0.0, %v13291
    %13293 = vmatmul.f32.gmra.mxu0 %v11889
    %v13294 = vpop.f32.mrf.mxu0
    %v13295 = vadd.f32 0.0, %v13294
    %13296 = vmatmul.f32.gmra.mxu0 %v11892
    %v13297 = vpop.f32.mrf.mxu0
    %v13298 = vadd.f32 0.0, %v13297
    %13299 = vmatmul.f32.gmra.mxu0 %v11895
    %v13300 = vpop.f32.mrf.mxu0
    %v13301 = vadd.f32 0.0, %v13300
    %13302 = vmatmul.f32.gmra.mxu0 %v11898
    %v13303 = vpop.f32.mrf.mxu0
    %v13304 = vadd.f32 0.0, %v13303
    %13305 = vmatmul.f32.gmra.mxu0 %v11901
    %v13306 = vpop.f32.mrf.mxu0
    %v13307 = vadd.f32 0.0, %v13306
    %13308 = vmatmul.f32.gmra.mxu0 %v11904
    %v13309 = vpop.f32.mrf.mxu0
    %v13310 = vadd.f32 0.0, %v13309
    %13311 = vmatmul.f32.gmra.mxu0 %v11907
    %v13312 = vpop.f32.mrf.mxu0
    %v13313 = vadd.f32 0.0, %v13312
    %13314 = vmatmul.f32.gmra.mxu0 %v11910
    %v13315 = vpop.f32.mrf.mxu0
    %v13316 = vadd.f32 0.0, %v13315
    %13317 = vmatmul.f32.gmra.mxu0 %v11913
    %v13318 = vpop.f32.mrf.mxu0
    %v13319 = vadd.f32 0.0, %v13318
    %13320 = vmatmul.f32.gmra.mxu0 %v11916
    %v13321 = vpop.f32.mrf.mxu0
    %v13322 = vadd.f32 0.0, %v13321
    %13323 = vmatmul.f32.gmra.mxu0 %v11919
    %v13324 = vpop.f32.mrf.mxu0
    %v13325 = vadd.f32 0.0, %v13324
    %13326 = vmatmul.f32.gmra.mxu0 %v11922
    %v13327 = vpop.f32.mrf.mxu0
    %v13328 = vadd.f32 0.0, %v13327
    %13329 = vmatmul.f32.gmra.mxu0 %v11925
    %v13330 = vpop.f32.mrf.mxu0
    %v13331 = vadd.f32 0.0, %v13330
    %13332 = vmatmul.f32.gmra.mxu0 %v11928
    %v13333 = vpop.f32.mrf.mxu0
    %v13334 = vadd.f32 0.0, %v13333
    %13335 = vmatmul.f32.gmra.mxu0 %v11931
    %v13336 = vpop.f32.mrf.mxu0
    %v13337 = vadd.f32 0.0, %v13336
    %13338 = vmatmul.f32.gmra.mxu0 %v11934
    %v13339 = vpop.f32.mrf.mxu0
    %v13340 = vadd.f32 0.0, %v13339
    %13341 = vmatmul.f32.gmra.mxu0 %v11937
    %v13342 = vpop.f32.mrf.mxu0
    %v13343 = vadd.f32 0.0, %v13342
    %13344 = vmatmul.f32.gmra.mxu0 %v11940
    %v13345 = vpop.f32.mrf.mxu0
    %v13346 = vadd.f32 0.0, %v13345
    %13347 = vmatmul.f32.gmra.mxu0 %v11943
    %v13348 = vpop.f32.mrf.mxu0
    %v13349 = vadd.f32 0.0, %v13348
    %13350 = vmatmul.f32.gmra.mxu0 %v11946
    %v13351 = vpop.f32.mrf.mxu0
    %v13352 = vadd.f32 0.0, %v13351
    %13353 = vmatmul.f32.gmra.mxu0 %v11949
    %v13354 = vpop.f32.mrf.mxu0
    %v13355 = vadd.f32 0.0, %v13354
    %13356 = vmatmul.f32.gmra.mxu0 %v11952
    %v13357 = vpop.f32.mrf.mxu0
    %v13358 = vadd.f32 0.0, %v13357
    %13359 = vmatmul.f32.gmra.mxu0 %v11955
    %v13360 = vpop.f32.mrf.mxu0
    %v13361 = vadd.f32 0.0, %v13360
    %13362 = vmatmul.f32.gmra.mxu0 %v11958
    %v13363 = vpop.f32.mrf.mxu0
    %v13364 = vadd.f32 0.0, %v13363
    %13365 = vmatmul.f32.gmra.mxu0 %v11961
    %v13366 = vpop.f32.mrf.mxu0
    %v13367 = vadd.f32 0.0, %v13366
    %13368 = vmatmul.f32.gmra.mxu0 %v11964
    %v13369 = vpop.f32.mrf.mxu0
    %v13370 = vadd.f32 0.0, %v13369
    %13371 = vmatmul.f32.gmra.mxu0 %v11967
    %v13372 = vpop.f32.mrf.mxu0
    %v13373 = vadd.f32 0.0, %v13372
    %13374 = vmatmul.f32.gmra.mxu0 %v11970
    %v13375 = vpop.f32.mrf.mxu0
    %v13376 = vadd.f32 0.0, %v13375
    %13377 = vmatmul.f32.gmra.mxu0 %v11973
    %v13378 = vpop.f32.mrf.mxu0
    %v13379 = vadd.f32 0.0, %v13378
    %13380 = vmatmul.f32.gmra.mxu0 %v11976
    %v13381 = vpop.f32.mrf.mxu0
    %v13382 = vadd.f32 0.0, %v13381
    %13383 = vmatmul.f32.gmra.mxu0 %v11979
    %v13384 = vpop.f32.mrf.mxu0
    %v13385 = vadd.f32 0.0, %v13384
    %13386 = vmatmul.f32.gmra.mxu0 %v11982
    %v13387 = vpop.f32.mrf.mxu0
    %v13388 = vadd.f32 0.0, %v13387
    %13389 = vmatmul.f32.gmra.mxu0 %v11985
    %v13390 = vpop.f32.mrf.mxu0
    %v13391 = vadd.f32 0.0, %v13390
    %13392 = vmatmul.f32.gmra.mxu0 %v11988
    %v13393 = vpop.f32.mrf.mxu0
    %v13394 = vadd.f32 0.0, %v13393
    %13395 = vmatmul.f32.gmra.mxu0 %v11991
    %v13396 = vpop.f32.mrf.mxu0
    %v13397 = vadd.f32 0.0, %v13396
    %13398 = vmatmul.f32.gmra.mxu0 %v11994
    %v13399 = vpop.f32.mrf.mxu0
    %v13400 = vadd.f32 0.0, %v13399
    %13401 = vmatmul.f32.gmra.mxu0 %v11997
    %v13402 = vpop.f32.mrf.mxu0
    %v13403 = vadd.f32 0.0, %v13402
    %13404 = vmatmul.f32.gmra.mxu0 %v12000
    %v13405 = vpop.f32.mrf.mxu0
    %v13406 = vadd.f32 0.0, %v13405
    %13407 = vmatmul.f32.gmra.mxu0 %v12003
    %v13408 = vpop.f32.mrf.mxu0
    %v13409 = vadd.f32 0.0, %v13408
    %13410 = vmatmul.f32.gmra.mxu0 %v12006
    %v13411 = vpop.f32.mrf.mxu0
    %v13412 = vadd.f32 0.0, %v13411
    %13413 = vmatmul.f32.gmra.mxu0 %v12009
    %v13414 = vpop.f32.mrf.mxu0
    %v13415 = vadd.f32 0.0, %v13414
    %13416 = vmatmul.f32.gmra.mxu0 %v12012
    %v13417 = vpop.f32.mrf.mxu0
    %v13418 = vadd.f32 0.0, %v13417
    %13419 = vmatmul.f32.gmra.mxu0 %v12015
    %v13420 = vpop.f32.mrf.mxu0
    %v13421 = vadd.f32 0.0, %v13420
    %13422 = vmatmul.f32.gmra.mxu0 %v12018
    %v13423 = vpop.f32.mrf.mxu0
    %v13424 = vadd.f32 0.0, %v13423
    %13425 = vmatmul.f32.gmra.mxu0 %v12021
    %v13426 = vpop.f32.mrf.mxu0
    %v13427 = vadd.f32 0.0, %v13426
    %13428 = vmatmul.f32.gmra.mxu0 %v13173
    %v13429 = vpop.f32.mrf.mxu0
    %v13430 = vadd.f32 0.0, %v13429
    %13431 = vmatmul.f32.gmra.mxu0 %v13176
    %v13432 = vpop.f32.mrf.mxu0
    %v13433 = vadd.f32 0.0, %v13432
    %13434 = vmatmul.f32.gmra.mxu0 %v13179
    %v13435 = vpop.f32.mrf.mxu0
    %v13436 = vadd.f32 0.0, %v13435
    %13437 = vmatmul.f32.gmra.mxu0 %v13182
    %v13438 = vpop.f32.mrf.mxu0
    %v13439 = vadd.f32 0.0, %v13438
    %13440 = vmatmul.f32.gmra.mxu0 %v13185
    %v13441 = vpop.f32.mrf.mxu0
    %v13442 = vadd.f32 0.0, %v13441
    %13443 = vmatmul.f32.gmra.mxu0 %v13188
    %v13444 = vpop.f32.mrf.mxu0
    %v13445 = vadd.f32 0.0, %v13444
    %13446 = vmatmul.f32.gmra.mxu0 %v13191
    %v13447 = vpop.f32.mrf.mxu0
    %v13448 = vadd.f32 0.0, %v13447
    %13449 = vmatmul.f32.gmra.mxu0 %v13194
    %v13450 = vpop.f32.mrf.mxu0
    %v13451 = vadd.f32 0.0, %v13450
    %13452 = vmatmul.f32.gmra.mxu0 %v13197
    %v13453 = vpop.f32.mrf.mxu0
    %v13454 = vadd.f32 0.0, %v13453
    %13455 = vmatmul.f32.gmra.mxu0 %v13200
    %v13456 = vpop.f32.mrf.mxu0
    %v13457 = vadd.f32 0.0, %v13456
    %13458 = vmatmul.f32.gmra.mxu0 %v13203
    %v13459 = vpop.f32.mrf.mxu0
    %v13460 = vadd.f32 0.0, %v13459
    %13461 = vmatmul.f32.gmra.mxu0 %v13206
    %v13462 = vpop.f32.mrf.mxu0
    %v13463 = vadd.f32 0.0, %v13462
    %13464 = vmatmul.f32.gmra.mxu0 %v13209
    %v13465 = vpop.f32.mrf.mxu0
    %v13466 = vadd.f32 0.0, %v13465
    %13467 = vmatmul.f32.gmra.mxu0 %v13212
    %v13468 = vpop.f32.mrf.mxu0
    %v13469 = vadd.f32 0.0, %v13468
    %13470 = vmatmul.f32.gmra.mxu0 %v13215
    %v13471 = vpop.f32.mrf.mxu0
    %v13472 = vadd.f32 0.0, %v13471
    %13473 = vmatmul.f32.gmra.mxu0 %v13218
    %v13474 = vpop.f32.mrf.mxu0
    %v13475 = vadd.f32 0.0, %v13474
    %13476 = vdwg.mxu0
    %v13477 = vadd.f32 %v13087, %v13238
    %v13478 = vadd.f32 %v13088, %v13241
    %v13479 = vadd.f32 %v13089, %v13244
    %v13480 = vadd.f32 %v13090, %v13247
    %v13481 = vadd.f32 %v13091, %v13250
    %v13482 = vadd.f32 %v13092, %v13253
    %v13483 = vadd.f32 %v13093, %v13256
    %v13484 = vadd.f32 %v13094, %v13259
    %v13485 = vadd.f32 %v13095, %v13262
    %v13486 = vadd.f32 %v13096, %v13265
    %v13487 = vadd.f32 %v13097, %v13268
    %v13488 = vadd.f32 %v13098, %v13271
    %v13489 = vadd.f32 %v13099, %v13274
    %v13490 = vadd.f32 %v13100, %v13277
    %v13491 = vadd.f32 %v13101, %v13280
    %v13492 = vadd.f32 %v13102, %v13283
    %v13493 = vadd.f32 %v13103, %v13286
    %v13494 = vadd.f32 %v13104, %v13289
    %v13495 = vadd.f32 %v13105, %v13292
    %v13496 = vadd.f32 %v13106, %v13295
    %v13497 = vadd.f32 %v13107, %v13298
    %v13498 = vadd.f32 %v13108, %v13301
    %v13499 = vadd.f32 %v13109, %v13304
    %v13500 = vadd.f32 %v13110, %v13307
    %v13501 = vadd.f32 %v13111, %v13310
    %v13502 = vadd.f32 %v13112, %v13313
    %v13503 = vadd.f32 %v13113, %v13316
    %v13504 = vadd.f32 %v13114, %v13319
    %v13505 = vadd.f32 %v13115, %v13322
    %v13506 = vadd.f32 %v13116, %v13325
    %v13507 = vadd.f32 %v13117, %v13328
    %v13508 = vadd.f32 %v13118, %v13331
    %v13509 = vadd.f32 %v13119, %v13334
    %v13510 = vadd.f32 %v13120, %v13337
    %v13511 = vadd.f32 %v13121, %v13340
    %v13512 = vadd.f32 %v13122, %v13343
    %v13513 = vadd.f32 %v13123, %v13346
    %v13514 = vadd.f32 %v13124, %v13349
    %v13515 = vadd.f32 %v13125, %v13352
    %v13516 = vadd.f32 %v13126, %v13355
    %v13517 = vadd.f32 %v13127, %v13358
    %v13518 = vadd.f32 %v13128, %v13361
    %v13519 = vadd.f32 %v13129, %v13364
    %v13520 = vadd.f32 %v13130, %v13367
    %v13521 = vadd.f32 %v13131, %v13370
    %v13522 = vadd.f32 %v13132, %v13373
    %v13523 = vadd.f32 %v13133, %v13376
    %v13524 = vadd.f32 %v13134, %v13379
    %v13525 = vadd.f32 %v13135, %v13382
    %v13526 = vadd.f32 %v13136, %v13385
    %v13527 = vadd.f32 %v13137, %v13388
    %v13528 = vadd.f32 %v13138, %v13391
    %v13529 = vadd.f32 %v13139, %v13394
    %v13530 = vadd.f32 %v13140, %v13397
    %v13531 = vadd.f32 %v13141, %v13400
    %v13532 = vadd.f32 %v13142, %v13403
    %v13533 = vadd.f32 %v13143, %v13406
    %v13534 = vadd.f32 %v13144, %v13409
    %v13535 = vadd.f32 %v13145, %v13412
    %v13536 = vadd.f32 %v13146, %v13415
    %v13537 = vadd.f32 %v13147, %v13418
    %v13538 = vadd.f32 %v13148, %v13421
    %v13539 = vadd.f32 %v13149, %v13424
    %v13540 = vadd.f32 %v13150, %v13427
    %v13541 = vadd.f32 %v13151, %v13430
    %v13542 = vadd.f32 %v13152, %v13433
    %v13543 = vadd.f32 %v13153, %v13436
    %v13544 = vadd.f32 %v13154, %v13439
    %v13545 = vadd.f32 %v13155, %v13442
    %v13546 = vadd.f32 %v13156, %v13445
    %v13547 = vadd.f32 %v13157, %v13448
    %v13548 = vadd.f32 %v13158, %v13451
    %v13549 = vadd.f32 %v13159, %v13454
    %v13550 = vadd.f32 %v13160, %v13457
    %v13551 = vadd.f32 %v13161, %v13460
    %v13552 = vadd.f32 %v13162, %v13463
    %v13553 = vadd.f32 %v13163, %v13466
    %v13554 = vadd.f32 %v13164, %v13469
    %v13555 = vadd.f32 %v13165, %v13472
    %v13556 = vadd.f32 %v13166, %v13475
    %v13557 = vld [vmem:[%s6] sm:$0x1]
    %v13559 = vperm.slane %v13557, 0
    %v13561 = vadd.f32 %v13477, %v13559
    %v13562 = vadd.f32 %v13478, %v13559
    %v13563 = vadd.f32 %v13479, %v13559
    %v13564 = vadd.f32 %v13480, %v13559
    %v13565 = vadd.f32 %v13481, %v13559
    %v13566 = vadd.f32 %v13482, %v13559
    %v13567 = vadd.f32 %v13483, %v13559
    %v13568 = vadd.f32 %v13484, %v13559
    %v13569 = vadd.f32 %v13485, %v13559
    %v13570 = vadd.f32 %v13486, %v13559
    %v13571 = vadd.f32 %v13487, %v13559
    %v13572 = vadd.f32 %v13488, %v13559
    %v13573 = vadd.f32 %v13489, %v13559
    %v13574 = vadd.f32 %v13490, %v13559
    %v13575 = vadd.f32 %v13491, %v13559
    %v13576 = vadd.f32 %v13492, %v13559
    %v13577 = vadd.f32 %v13493, %v13559
    %v13578 = vadd.f32 %v13494, %v13559
    %v13579 = vadd.f32 %v13495, %v13559
    %v13580 = vadd.f32 %v13496, %v13559
    %v13581 = vadd.f32 %v13497, %v13559
    %v13582 = vadd.f32 %v13498, %v13559
    %v13583 = vadd.f32 %v13499, %v13559
    %v13584 = vadd.f32 %v13500, %v13559
    %v13585 = vadd.f32 %v13501, %v13559
    %v13586 = vadd.f32 %v13502, %v13559
    %v13587 = vadd.f32 %v13503, %v13559
    %v13588 = vadd.f32 %v13504, %v13559
    %v13589 = vadd.f32 %v13505, %v13559
    %v13590 = vadd.f32 %v13506, %v13559
    %v13591 = vadd.f32 %v13507, %v13559
    %v13592 = vadd.f32 %v13508, %v13559
    %v13593 = vadd.f32 %v13509, %v13559
    %v13594 = vadd.f32 %v13510, %v13559
    %v13595 = vadd.f32 %v13511, %v13559
    %v13596 = vadd.f32 %v13512, %v13559
    %v13597 = vadd.f32 %v13513, %v13559
    %v13598 = vadd.f32 %v13514, %v13559
    %v13599 = vadd.f32 %v13515, %v13559
    %v13600 = vadd.f32 %v13516, %v13559
    %v13601 = vadd.f32 %v13517, %v13559
    %v13602 = vadd.f32 %v13518, %v13559
    %v13603 = vadd.f32 %v13519, %v13559
    %v13604 = vadd.f32 %v13520, %v13559
    %v13605 = vadd.f32 %v13521, %v13559
    %v13606 = vadd.f32 %v13522, %v13559
    %v13607 = vadd.f32 %v13523, %v13559
    %v13608 = vadd.f32 %v13524, %v13559
    %v13609 = vadd.f32 %v13525, %v13559
    %v13610 = vadd.f32 %v13526, %v13559
    %v13611 = vadd.f32 %v13527, %v13559
    %v13612 = vadd.f32 %v13528, %v13559
    %v13613 = vadd.f32 %v13529, %v13559
    %v13614 = vadd.f32 %v13530, %v13559
    %v13615 = vadd.f32 %v13531, %v13559
    %v13616 = vadd.f32 %v13532, %v13559
    %v13617 = vadd.f32 %v13533, %v13559
    %v13618 = vadd.f32 %v13534, %v13559
    %v13619 = vadd.f32 %v13535, %v13559
    %v13620 = vadd.f32 %v13536, %v13559
    %v13621 = vadd.f32 %v13537, %v13559
    %v13622 = vadd.f32 %v13538, %v13559
    %v13623 = vadd.f32 %v13539, %v13559
    %v13624 = vadd.f32 %v13540, %v13559
    %v13625 = vadd.f32 %v13541, %v13559
    %v13626 = vadd.f32 %v13542, %v13559
    %v13627 = vadd.f32 %v13543, %v13559
    %v13628 = vadd.f32 %v13544, %v13559
    %v13629 = vadd.f32 %v13545, %v13559
    %v13630 = vadd.f32 %v13546, %v13559
    %v13631 = vadd.f32 %v13547, %v13559
    %v13632 = vadd.f32 %v13548, %v13559
    %v13633 = vadd.f32 %v13549, %v13559
    %v13634 = vadd.f32 %v13550, %v13559
    %v13635 = vadd.f32 %v13551, %v13559
    %v13636 = vadd.f32 %v13552, %v13559
    %v13637 = vadd.f32 %v13553, %v13559
    %v13638 = vadd.f32 %v13554, %v13559
    %v13639 = vadd.f32 %v13555, %v13559
    %v13640 = vadd.f32 %v13556, %v13559
    %v13641 = vmax.f32 %v13561, 0.0
    %v13642 = vmax.f32 %v13562, 0.0
    %v13643 = vmax.f32 %v13563, 0.0
    %v13644 = vmax.f32 %v13564, 0.0
    %v13645 = vmax.f32 %v13565, 0.0
    %v13646 = vmax.f32 %v13566, 0.0
    %v13647 = vmax.f32 %v13567, 0.0
    %v13648 = vmax.f32 %v13568, 0.0
    %v13649 = vmax.f32 %v13569, 0.0
    %v13650 = vmax.f32 %v13570, 0.0
    %v13651 = vmax.f32 %v13571, 0.0
    %v13652 = vmax.f32 %v13572, 0.0
    %v13653 = vmax.f32 %v13573, 0.0
    %v13654 = vmax.f32 %v13574, 0.0
    %v13655 = vmax.f32 %v13575, 0.0
    %v13656 = vmax.f32 %v13576, 0.0
    %v13657 = vmax.f32 %v13577, 0.0
    %v13658 = vmax.f32 %v13578, 0.0
    %v13659 = vmax.f32 %v13579, 0.0
    %v13660 = vmax.f32 %v13580, 0.0
    %v13661 = vmax.f32 %v13581, 0.0
    %v13662 = vmax.f32 %v13582, 0.0
    %v13663 = vmax.f32 %v13583, 0.0
    %v13664 = vmax.f32 %v13584, 0.0
    %v13665 = vmax.f32 %v13585, 0.0
    %v13666 = vmax.f32 %v13586, 0.0
    %v13667 = vmax.f32 %v13587, 0.0
    %v13668 = vmax.f32 %v13588, 0.0
    %v13669 = vmax.f32 %v13589, 0.0
    %v13670 = vmax.f32 %v13590, 0.0
    %v13671 = vmax.f32 %v13591, 0.0
    %v13672 = vmax.f32 %v13592, 0.0
    %v13673 = vmax.f32 %v13593, 0.0
    %v13674 = vmax.f32 %v13594, 0.0
    %v13675 = vmax.f32 %v13595, 0.0
    %v13676 = vmax.f32 %v13596, 0.0
    %v13677 = vmax.f32 %v13597, 0.0
    %v13678 = vmax.f32 %v13598, 0.0
    %v13679 = vmax.f32 %v13599, 0.0
    %v13680 = vmax.f32 %v13600, 0.0
    %v13681 = vmax.f32 %v13601, 0.0
    %v13682 = vmax.f32 %v13602, 0.0
    %v13683 = vmax.f32 %v13603, 0.0
    %v13684 = vmax.f32 %v13604, 0.0
    %v13685 = vmax.f32 %v13605, 0.0
    %v13686 = vmax.f32 %v13606, 0.0
    %v13687 = vmax.f32 %v13607, 0.0
    %v13688 = vmax.f32 %v13608, 0.0
    %v13689 = vmax.f32 %v13609, 0.0
    %v13690 = vmax.f32 %v13610, 0.0
    %v13691 = vmax.f32 %v13611, 0.0
    %v13692 = vmax.f32 %v13612, 0.0
    %v13693 = vmax.f32 %v13613, 0.0
    %v13694 = vmax.f32 %v13614, 0.0
    %v13695 = vmax.f32 %v13615, 0.0
    %v13696 = vmax.f32 %v13616, 0.0
    %v13697 = vmax.f32 %v13617, 0.0
    %v13698 = vmax.f32 %v13618, 0.0
    %v13699 = vmax.f32 %v13619, 0.0
    %v13700 = vmax.f32 %v13620, 0.0
    %v13701 = vmax.f32 %v13621, 0.0
    %v13702 = vmax.f32 %v13622, 0.0
    %v13703 = vmax.f32 %v13623, 0.0
    %v13704 = vmax.f32 %v13624, 0.0
    %v13705 = vmax.f32 %v13625, 0.0
    %v13706 = vmax.f32 %v13626, 0.0
    %v13707 = vmax.f32 %v13627, 0.0
    %v13708 = vmax.f32 %v13628, 0.0
    %v13709 = vmax.f32 %v13629, 0.0
    %v13710 = vmax.f32 %v13630, 0.0
    %v13711 = vmax.f32 %v13631, 0.0
    %v13712 = vmax.f32 %v13632, 0.0
    %v13713 = vmax.f32 %v13633, 0.0
    %v13714 = vmax.f32 %v13634, 0.0
    %v13715 = vmax.f32 %v13635, 0.0
    %v13716 = vmax.f32 %v13636, 0.0
    %v13717 = vmax.f32 %v13637, 0.0
    %v13718 = vmax.f32 %v13638, 0.0
    %v13719 = vmax.f32 %v13639, 0.0
    %v13720 = vmax.f32 %v13640, 0.0
    %v13721 = vld [vmem:[%s7] sm:$0xff]
    %v13722 = vld [vmem:[%s7 + $0x8] sm:$0xff]
    %v13723 = vld [vmem:[%s7 + $0x10] sm:$0xf]
    %v13724 = vld [vmem:[%s7 + $0x18] sm:$0xff]
    %v13725 = vld [vmem:[%s7 + $0x20] sm:$0xff]
    %v13726 = vld [vmem:[%s7 + $0x28] sm:$0xf]
    %vm13727 = vcmask 162816
    %v13729 = vsel %vm13727, %v13657, 0
    %v13732 = vsel %vm13727, %v13658, 0
    %v13735 = vsel %vm13727, %v13659, 0
    %v13738 = vsel %vm13727, %v13660, 0
    %v13741 = vsel %vm13727, %v13661, 0
    %v13744 = vsel %vm13727, %v13662, 0
    %v13747 = vsel %vm13727, %v13663, 0
    %v13750 = vsel %vm13727, %v13664, 0
    %v13753 = vsel %vm13727, %v13665, 0
    %v13756 = vsel %vm13727, %v13666, 0
    %v13759 = vsel %vm13727, %v13667, 0
    %v13762 = vsel %vm13727, %v13668, 0
    %v13765 = vsel %vm13727, %v13669, 0
    %v13768 = vsel %vm13727, %v13670, 0
    %v13771 = vsel %vm13727, %v13671, 0
    %v13774 = vsel %vm13727, %v13672, 0
    %v13777 = vsel %vm13727, %v13689, 0
    %v13780 = vsel %vm13727, %v13690, 0
    %v13783 = vsel %vm13727, %v13691, 0
    %v13786 = vsel %vm13727, %v13692, 0
    %v13789 = vsel %vm13727, %v13693, 0
    %v13792 = vsel %vm13727, %v13694, 0
    %v13795 = vsel %vm13727, %v13695, 0
    %v13798 = vsel %vm13727, %v13696, 0
    %v13801 = vsel %vm13727, %v13697, 0
    %v13804 = vsel %vm13727, %v13698, 0
    %v13807 = vsel %vm13727, %v13699, 0
    %v13810 = vsel %vm13727, %v13700, 0
    %v13813 = vsel %vm13727, %v13701, 0
    %v13816 = vsel %vm13727, %v13702, 0
    %v13819 = vsel %vm13727, %v13703, 0
    %v13822 = vsel %vm13727, %v13704, 0
    %v13825 = vsel %vm8773, %v13726, 0
    %13827 = vmatpush.msra.mxu0 0.0
    %13828 = vmatpush.msra.mxu0 0.0
    %13829 = vmatpush.msra.mxu0 0.0
    %13830 = vmatpush.msra.mxu0 0.0
    %13831 = vmatpush.msra.mxu0 0.0
    %13832 = vmatpush.msra.mxu0 0.0
    %13833 = vmatpush.msra.mxu0 0.0
    %13834 = vmatpush.msra.mxu0 0.0
    %13835 = vmatpush.msra.mxu0 0.0
    %13836 = vmatpush.msra.mxu0 0.0
    %13837 = vmatpush.msra.mxu0 0.0
    %13838 = vmatpush.msra.mxu0 0.0
    %13839 = vmatpush.msra.mxu0 0.0
    %13840 = vmatpush.msra.mxu0 %v13825
    %13841 = vmatpush.msra.mxu0 %v13725
    %13842 = vmatpush.msra.mxu0 %v13724
    %13843 = vmatmul.f32.gmra.mxu0 %v13729
    %v13844 = vpop.f32.mrf.mxu0
    %v13845 = vadd.f32 0.0, %v13844
    %13846 = vmatmul.f32.gmra.mxu0 %v13732
    %v13847 = vpop.f32.mrf.mxu0
    %v13848 = vadd.f32 0.0, %v13847
    %13849 = vmatmul.f32.gmra.mxu0 %v13735
    %v13850 = vpop.f32.mrf.mxu0
    %v13851 = vadd.f32 0.0, %v13850
    %13852 = vmatmul.f32.gmra.mxu0 %v13738
    %v13853 = vpop.f32.mrf.mxu0
    %v13854 = vadd.f32 0.0, %v13853
    %13855 = vmatmul.f32.gmra.mxu0 %v13741
    %v13856 = vpop.f32.mrf.mxu0
    %v13857 = vadd.f32 0.0, %v13856
    %13858 = vmatmul.f32.gmra.mxu0 %v13744
    %v13859 = vpop.f32.mrf.mxu0
    %v13860 = vadd.f32 0.0, %v13859
    %13861 = vmatmul.f32.gmra.mxu0 %v13747
    %v13862 = vpop.f32.mrf.mxu0
    %v13863 = vadd.f32 0.0, %v13862
    %13864 = vmatmul.f32.gmra.mxu0 %v13750
    %v13865 = vpop.f32.mrf.mxu0
    %v13866 = vadd.f32 0.0, %v13865
    %13867 = vmatmul.f32.gmra.mxu0 %v13753
    %v13868 = vpop.f32.mrf.mxu0
    %v13869 = vadd.f32 0.0, %v13868
    %13870 = vmatmul.f32.gmra.mxu0 %v13756
    %v13871 = vpop.f32.mrf.mxu0
    %v13872 = vadd.f32 0.0, %v13871
    %13873 = vmatmul.f32.gmra.mxu0 %v13759
    %v13874 = vpop.f32.mrf.mxu0
    %v13875 = vadd.f32 0.0, %v13874
    %13876 = vmatmul.f32.gmra.mxu0 %v13762
    %v13877 = vpop.f32.mrf.mxu0
    %v13878 = vadd.f32 0.0, %v13877
    %13879 = vmatmul.f32.gmra.mxu0 %v13765
    %v13880 = vpop.f32.mrf.mxu0
    %v13881 = vadd.f32 0.0, %v13880
    %13882 = vmatmul.f32.gmra.mxu0 %v13768
    %v13883 = vpop.f32.mrf.mxu0
    %v13884 = vadd.f32 0.0, %v13883
    %13885 = vmatmul.f32.gmra.mxu0 %v13771
    %v13886 = vpop.f32.mrf.mxu0
    %v13887 = vadd.f32 0.0, %v13886
    %13888 = vmatmul.f32.gmra.mxu0 %v13774
    %v13889 = vpop.f32.mrf.mxu0
    %v13890 = vadd.f32 0.0, %v13889
    %13891 = vmatmul.f32.gmra.mxu0 %v13777
    %v13892 = vpop.f32.mrf.mxu0
    %v13893 = vadd.f32 0.0, %v13892
    %13894 = vmatmul.f32.gmra.mxu0 %v13780
    %v13895 = vpop.f32.mrf.mxu0
    %v13896 = vadd.f32 0.0, %v13895
    %13897 = vmatmul.f32.gmra.mxu0 %v13783
    %v13898 = vpop.f32.mrf.mxu0
    %v13899 = vadd.f32 0.0, %v13898
    %13900 = vmatmul.f32.gmra.mxu0 %v13786
    %v13901 = vpop.f32.mrf.mxu0
    %v13902 = vadd.f32 0.0, %v13901
    %13903 = vmatmul.f32.gmra.mxu0 %v13789
    %v13904 = vpop.f32.mrf.mxu0
    %v13905 = vadd.f32 0.0, %v13904
    %13906 = vmatmul.f32.gmra.mxu0 %v13792
    %v13907 = vpop.f32.mrf.mxu0
    %v13908 = vadd.f32 0.0, %v13907
    %13909 = vmatmul.f32.gmra.mxu0 %v13795
    %v13910 = vpop.f32.mrf.mxu0
    %v13911 = vadd.f32 0.0, %v13910
    %13912 = vmatmul.f32.gmra.mxu0 %v13798
    %v13913 = vpop.f32.mrf.mxu0
    %v13914 = vadd.f32 0.0, %v13913
    %13915 = vmatmul.f32.gmra.mxu0 %v13801
    %v13916 = vpop.f32.mrf.mxu0
    %v13917 = vadd.f32 0.0, %v13916
    %13918 = vmatmul.f32.gmra.mxu0 %v13804
    %v13919 = vpop.f32.mrf.mxu0
    %v13920 = vadd.f32 0.0, %v13919
    %13921 = vmatmul.f32.gmra.mxu0 %v13807
    %v13922 = vpop.f32.mrf.mxu0
    %v13923 = vadd.f32 0.0, %v13922
    %13924 = vmatmul.f32.gmra.mxu0 %v13810
    %v13925 = vpop.f32.mrf.mxu0
    %v13926 = vadd.f32 0.0, %v13925
    %13927 = vmatmul.f32.gmra.mxu0 %v13813
    %v13928 = vpop.f32.mrf.mxu0
    %v13929 = vadd.f32 0.0, %v13928
    %13930 = vmatmul.f32.gmra.mxu0 %v13816
    %v13931 = vpop.f32.mrf.mxu0
    %v13932 = vadd.f32 0.0, %v13931
    %13933 = vmatmul.f32.gmra.mxu0 %v13819
    %v13934 = vpop.f32.mrf.mxu0
    %v13935 = vadd.f32 0.0, %v13934
    %13936 = vmatmul.f32.gmra.mxu0 %v13822
    %v13937 = vpop.f32.mrf.mxu0
    %v13938 = vadd.f32 0.0, %v13937
    %13939 = vdwg.mxu0
    %v13941 = vsel %vm13727, %v13641, 0
    %v13944 = vsel %vm13727, %v13642, 0
    %v13947 = vsel %vm13727, %v13643, 0
    %v13950 = vsel %vm13727, %v13644, 0
    %v13953 = vsel %vm13727, %v13645, 0
    %v13956 = vsel %vm13727, %v13646, 0
    %v13959 = vsel %vm13727, %v13647, 0
    %v13962 = vsel %vm13727, %v13648, 0
    %v13965 = vsel %vm13727, %v13649, 0
    %v13968 = vsel %vm13727, %v13650, 0
    %v13971 = vsel %vm13727, %v13651, 0
    %v13974 = vsel %vm13727, %v13652, 0
    %v13977 = vsel %vm13727, %v13653, 0
    %v13980 = vsel %vm13727, %v13654, 0
    %v13983 = vsel %vm13727, %v13655, 0
    %v13986 = vsel %vm13727, %v13656, 0
    %v13989 = vsel %vm13727, %v13673, 0
    %v13992 = vsel %vm13727, %v13674, 0
    %v13995 = vsel %vm13727, %v13675, 0
    %v13998 = vsel %vm13727, %v13676, 0
    %v14001 = vsel %vm13727, %v13677, 0
    %v14004 = vsel %vm13727, %v13678, 0
    %v14007 = vsel %vm13727, %v13679, 0
    %v14010 = vsel %vm13727, %v13680, 0
    %v14013 = vsel %vm13727, %v13681, 0
    %v14016 = vsel %vm13727, %v13682, 0
    %v14019 = vsel %vm13727, %v13683, 0
    %v14022 = vsel %vm13727, %v13684, 0
    %v14025 = vsel %vm13727, %v13685, 0
    %v14028 = vsel %vm13727, %v13686, 0
    %v14031 = vsel %vm13727, %v13687, 0
    %v14034 = vsel %vm13727, %v13688, 0
    %v14037 = vsel %vm8773, %v13723, 0
    %14039 = vmatpush.msra.mxu0 0.0
    %14040 = vmatpush.msra.mxu0 0.0
    %14041 = vmatpush.msra.mxu0 0.0
    %14042 = vmatpush.msra.mxu0 0.0
    %14043 = vmatpush.msra.mxu0 0.0
    %14044 = vmatpush.msra.mxu0 0.0
    %14045 = vmatpush.msra.mxu0 0.0
    %14046 = vmatpush.msra.mxu0 0.0
    %14047 = vmatpush.msra.mxu0 0.0
    %14048 = vmatpush.msra.mxu0 0.0
    %14049 = vmatpush.msra.mxu0 0.0
    %14050 = vmatpush.msra.mxu0 0.0
    %14051 = vmatpush.msra.mxu0 0.0
    %14052 = vmatpush.msra.mxu0 %v14037
    %14053 = vmatpush.msra.mxu0 %v13722
    %14054 = vmatpush.msra.mxu0 %v13721
    %14055 = vmatmul.f32.gmra.mxu0 %v13941
    %v14056 = vpop.f32.mrf.mxu0
    %v14057 = vadd.f32 %v13845, %v14056
    %14058 = vmatmul.f32.gmra.mxu0 %v13944
    %v14059 = vpop.f32.mrf.mxu0
    %v14060 = vadd.f32 %v13848, %v14059
    %14061 = vmatmul.f32.gmra.mxu0 %v13947
    %v14062 = vpop.f32.mrf.mxu0
    %v14063 = vadd.f32 %v13851, %v14062
    %14064 = vmatmul.f32.gmra.mxu0 %v13950
    %v14065 = vpop.f32.mrf.mxu0
    %v14066 = vadd.f32 %v13854, %v14065
    %14067 = vmatmul.f32.gmra.mxu0 %v13953
    %v14068 = vpop.f32.mrf.mxu0
    %v14069 = vadd.f32 %v13857, %v14068
    %14070 = vmatmul.f32.gmra.mxu0 %v13956
    %v14071 = vpop.f32.mrf.mxu0
    %v14072 = vadd.f32 %v13860, %v14071
    %14073 = vmatmul.f32.gmra.mxu0 %v13959
    %v14074 = vpop.f32.mrf.mxu0
    %v14075 = vadd.f32 %v13863, %v14074
    %14076 = vmatmul.f32.gmra.mxu0 %v13962
    %v14077 = vpop.f32.mrf.mxu0
    %v14078 = vadd.f32 %v13866, %v14077
    %14079 = vmatmul.f32.gmra.mxu0 %v13965
    %v14080 = vpop.f32.mrf.mxu0
    %v14081 = vadd.f32 %v13869, %v14080
    %14082 = vmatmul.f32.gmra.mxu0 %v13968
    %v14083 = vpop.f32.mrf.mxu0
    %v14084 = vadd.f32 %v13872, %v14083
    %14085 = vmatmul.f32.gmra.mxu0 %v13971
    %v14086 = vpop.f32.mrf.mxu0
    %v14087 = vadd.f32 %v13875, %v14086
    %14088 = vmatmul.f32.gmra.mxu0 %v13974
    %v14089 = vpop.f32.mrf.mxu0
    %v14090 = vadd.f32 %v13878, %v14089
    %14091 = vmatmul.f32.gmra.mxu0 %v13977
    %v14092 = vpop.f32.mrf.mxu0
    %v14093 = vadd.f32 %v13881, %v14092
    %14094 = vmatmul.f32.gmra.mxu0 %v13980
    %v14095 = vpop.f32.mrf.mxu0
    %v14096 = vadd.f32 %v13884, %v14095
    %14097 = vmatmul.f32.gmra.mxu0 %v13983
    %v14098 = vpop.f32.mrf.mxu0
    %v14099 = vadd.f32 %v13887, %v14098
    %14100 = vmatmul.f32.gmra.mxu0 %v13986
    %v14101 = vpop.f32.mrf.mxu0
    %v14102 = vadd.f32 %v13890, %v14101
    %14103 = vmatmul.f32.gmra.mxu0 %v13989
    %v14104 = vpop.f32.mrf.mxu0
    %v14105 = vadd.f32 %v13893, %v14104
    %14106 = vmatmul.f32.gmra.mxu0 %v13992
    %v14107 = vpop.f32.mrf.mxu0
    %v14108 = vadd.f32 %v13896, %v14107
    %14109 = vmatmul.f32.gmra.mxu0 %v13995
    %v14110 = vpop.f32.mrf.mxu0
    %v14111 = vadd.f32 %v13899, %v14110
    %14112 = vmatmul.f32.gmra.mxu0 %v13998
    %v14113 = vpop.f32.mrf.mxu0
    %v14114 = vadd.f32 %v13902, %v14113
    %14115 = vmatmul.f32.gmra.mxu0 %v14001
    %v14116 = vpop.f32.mrf.mxu0
    %v14117 = vadd.f32 %v13905, %v14116
    %14118 = vmatmul.f32.gmra.mxu0 %v14004
    %v14119 = vpop.f32.mrf.mxu0
    %v14120 = vadd.f32 %v13908, %v14119
    %14121 = vmatmul.f32.gmra.mxu0 %v14007
    %v14122 = vpop.f32.mrf.mxu0
    %v14123 = vadd.f32 %v13911, %v14122
    %14124 = vmatmul.f32.gmra.mxu0 %v14010
    %v14125 = vpop.f32.mrf.mxu0
    %v14126 = vadd.f32 %v13914, %v14125
    %14127 = vmatmul.f32.gmra.mxu0 %v14013
    %v14128 = vpop.f32.mrf.mxu0
    %v14129 = vadd.f32 %v13917, %v14128
    %14130 = vmatmul.f32.gmra.mxu0 %v14016
    %v14131 = vpop.f32.mrf.mxu0
    %v14132 = vadd.f32 %v13920, %v14131
    %14133 = vmatmul.f32.gmra.mxu0 %v14019
    %v14134 = vpop.f32.mrf.mxu0
    %v14135 = vadd.f32 %v13923, %v14134
    %14136 = vmatmul.f32.gmra.mxu0 %v14022
    %v14137 = vpop.f32.mrf.mxu0
    %v14138 = vadd.f32 %v13926, %v14137
    %14139 = vmatmul.f32.gmra.mxu0 %v14025
    %v14140 = vpop.f32.mrf.mxu0
    %v14141 = vadd.f32 %v13929, %v14140
    %14142 = vmatmul.f32.gmra.mxu0 %v14028
    %v14143 = vpop.f32.mrf.mxu0
    %v14144 = vadd.f32 %v13932, %v14143
    %14145 = vmatmul.f32.gmra.mxu0 %v14031
    %v14146 = vpop.f32.mrf.mxu0
    %v14147 = vadd.f32 %v13935, %v14146
    %14148 = vmatmul.f32.gmra.mxu0 %v14034
    %v14149 = vpop.f32.mrf.mxu0
    %v14150 = vadd.f32 %v13938, %v14149
    %14151 = vdwg.mxu0
    %v14152 = vld [vmem:[%s7 + $0x30] sm:$0xff]
    %v14153 = vld [vmem:[%s7 + $0x38] sm:$0xff]
    %v14154 = vld [vmem:[%s7 + $0x40] sm:$0xf]
    %v14156 = vsel %vm13727, %v13705, 0
    %v14159 = vsel %vm13727, %v13706, 0
    %v14162 = vsel %vm13727, %v13707, 0
    %v14165 = vsel %vm13727, %v13708, 0
    %v14168 = vsel %vm13727, %v13709, 0
    %v14171 = vsel %vm13727, %v13710, 0
    %v14174 = vsel %vm13727, %v13711, 0
    %v14177 = vsel %vm13727, %v13712, 0
    %v14180 = vsel %vm13727, %v13713, 0
    %v14183 = vsel %vm13727, %v13714, 0
    %v14186 = vsel %vm13727, %v13715, 0
    %v14189 = vsel %vm13727, %v13716, 0
    %v14192 = vsel %vm13727, %v13717, 0
    %v14195 = vsel %vm13727, %v13718, 0
    %v14198 = vsel %vm13727, %v13719, 0
    %v14201 = vsel %vm13727, %v13720, 0
    %v14204 = vsel %vm8773, %v14154, 0
    %14206 = vmatpush.msra.mxu0 0.0
    %14207 = vmatpush.msra.mxu0 0.0
    %14208 = vmatpush.msra.mxu0 0.0
    %14209 = vmatpush.msra.mxu0 0.0
    %14210 = vmatpush.msra.mxu0 0.0
    %14211 = vmatpush.msra.mxu0 0.0
    %14212 = vmatpush.msra.mxu0 0.0
    %14213 = vmatpush.msra.mxu0 0.0
    %14214 = vmatpush.msra.mxu0 0.0
    %14215 = vmatpush.msra.mxu0 0.0
    %14216 = vmatpush.msra.mxu0 0.0
    %14217 = vmatpush.msra.mxu0 0.0
    %14218 = vmatpush.msra.mxu0 0.0
    %14219 = vmatpush.msra.mxu0 %v14204
    %14220 = vmatpush.msra.mxu0 %v14153
    %14221 = vmatpush.msra.mxu0 %v14152
    %14222 = vmatmul.f32.gmra.mxu0 %v13989
    %v14223 = vpop.f32.mrf.mxu0
    %v14224 = vadd.f32 0.0, %v14223
    %14225 = vmatmul.f32.gmra.mxu0 %v13992
    %v14226 = vpop.f32.mrf.mxu0
    %v14227 = vadd.f32 0.0, %v14226
    %14228 = vmatmul.f32.gmra.mxu0 %v13995
    %v14229 = vpop.f32.mrf.mxu0
    %v14230 = vadd.f32 0.0, %v14229
    %14231 = vmatmul.f32.gmra.mxu0 %v13998
    %v14232 = vpop.f32.mrf.mxu0
    %v14233 = vadd.f32 0.0, %v14232
    %14234 = vmatmul.f32.gmra.mxu0 %v14001
    %v14235 = vpop.f32.mrf.mxu0
    %v14236 = vadd.f32 0.0, %v14235
    %14237 = vmatmul.f32.gmra.mxu0 %v14004
    %v14238 = vpop.f32.mrf.mxu0
    %v14239 = vadd.f32 0.0, %v14238
    %14240 = vmatmul.f32.gmra.mxu0 %v14007
    %v14241 = vpop.f32.mrf.mxu0
    %v14242 = vadd.f32 0.0, %v14241
    %14243 = vmatmul.f32.gmra.mxu0 %v14010
    %v14244 = vpop.f32.mrf.mxu0
    %v14245 = vadd.f32 0.0, %v14244
    %14246 = vmatmul.f32.gmra.mxu0 %v14013
    %v14247 = vpop.f32.mrf.mxu0
    %v14248 = vadd.f32 0.0, %v14247
    %14249 = vmatmul.f32.gmra.mxu0 %v14016
    %v14250 = vpop.f32.mrf.mxu0
    %v14251 = vadd.f32 0.0, %v14250
    %14252 = vmatmul.f32.gmra.mxu0 %v14019
    %v14253 = vpop.f32.mrf.mxu0
    %v14254 = vadd.f32 0.0, %v14253
    %14255 = vmatmul.f32.gmra.mxu0 %v14022
    %v14256 = vpop.f32.mrf.mxu0
    %v14257 = vadd.f32 0.0, %v14256
    %14258 = vmatmul.f32.gmra.mxu0 %v14025
    %v14259 = vpop.f32.mrf.mxu0
    %v14260 = vadd.f32 0.0, %v14259
    %14261 = vmatmul.f32.gmra.mxu0 %v14028
    %v14262 = vpop.f32.mrf.mxu0
    %v14263 = vadd.f32 0.0, %v14262
    %14264 = vmatmul.f32.gmra.mxu0 %v14031
    %v14265 = vpop.f32.mrf.mxu0
    %v14266 = vadd.f32 0.0, %v14265
    %14267 = vmatmul.f32.gmra.mxu0 %v14034
    %v14268 = vpop.f32.mrf.mxu0
    %v14269 = vadd.f32 0.0, %v14268
    %14270 = vmatmul.f32.gmra.mxu0 %v14156
    %v14271 = vpop.f32.mrf.mxu0
    %v14272 = vadd.f32 0.0, %v14271
    %14273 = vmatmul.f32.gmra.mxu0 %v14159
    %v14274 = vpop.f32.mrf.mxu0
    %v14275 = vadd.f32 0.0, %v14274
    %14276 = vmatmul.f32.gmra.mxu0 %v14162
    %v14277 = vpop.f32.mrf.mxu0
    %v14278 = vadd.f32 0.0, %v14277
    %14279 = vmatmul.f32.gmra.mxu0 %v14165
    %v14280 = vpop.f32.mrf.mxu0
    %v14281 = vadd.f32 0.0, %v14280
    %14282 = vmatmul.f32.gmra.mxu0 %v14168
    %v14283 = vpop.f32.mrf.mxu0
    %v14284 = vadd.f32 0.0, %v14283
    %14285 = vmatmul.f32.gmra.mxu0 %v14171
    %v14286 = vpop.f32.mrf.mxu0
    %v14287 = vadd.f32 0.0, %v14286
    %14288 = vmatmul.f32.gmra.mxu0 %v14174
    %v14289 = vpop.f32.mrf.mxu0
    %v14290 = vadd.f32 0.0, %v14289
    %14291 = vmatmul.f32.gmra.mxu0 %v14177
    %v14292 = vpop.f32.mrf.mxu0
    %v14293 = vadd.f32 0.0, %v14292
    %14294 = vmatmul.f32.gmra.mxu0 %v14180
    %v14295 = vpop.f32.mrf.mxu0
    %v14296 = vadd.f32 0.0, %v14295
    %14297 = vmatmul.f32.gmra.mxu0 %v14183
    %v14298 = vpop.f32.mrf.mxu0
    %v14299 = vadd.f32 0.0, %v14298
    %14300 = vmatmul.f32.gmra.mxu0 %v14186
    %v14301 = vpop.f32.mrf.mxu0
    %v14302 = vadd.f32 0.0, %v14301
    %14303 = vmatmul.f32.gmra.mxu0 %v14189
    %v14304 = vpop.f32.mrf.mxu0
    %v14305 = vadd.f32 0.0, %v14304
    %14306 = vmatmul.f32.gmra.mxu0 %v14192
    %v14307 = vpop.f32.mrf.mxu0
    %v14308 = vadd.f32 0.0, %v14307
    %14309 = vmatmul.f32.gmra.mxu0 %v14195
    %v14310 = vpop.f32.mrf.mxu0
    %v14311 = vadd.f32 0.0, %v14310
    %14312 = vmatmul.f32.gmra.mxu0 %v14198
    %v14313 = vpop.f32.mrf.mxu0
    %v14314 = vadd.f32 0.0, %v14313
    %14315 = vmatmul.f32.gmra.mxu0 %v14201
    %v14316 = vpop.f32.mrf.mxu0
    %v14317 = vadd.f32 0.0, %v14316
    %14318 = vdwg.mxu0
    %v14319 = vadd.f32 %v14057, %v14224
    %v14320 = vadd.f32 %v14060, %v14227
    %v14321 = vadd.f32 %v14063, %v14230
    %v14322 = vadd.f32 %v14066, %v14233
    %v14323 = vadd.f32 %v14069, %v14236
    %v14324 = vadd.f32 %v14072, %v14239
    %v14325 = vadd.f32 %v14075, %v14242
    %v14326 = vadd.f32 %v14078, %v14245
    %v14327 = vadd.f32 %v14081, %v14248
    %v14328 = vadd.f32 %v14084, %v14251
    %v14329 = vadd.f32 %v14087, %v14254
    %v14330 = vadd.f32 %v14090, %v14257
    %v14331 = vadd.f32 %v14093, %v14260
    %v14332 = vadd.f32 %v14096, %v14263
    %v14333 = vadd.f32 %v14099, %v14266
    %v14334 = vadd.f32 %v14102, %v14269
    %v14335 = vadd.f32 %v14105, %v14272
    %v14336 = vadd.f32 %v14108, %v14275
    %v14337 = vadd.f32 %v14111, %v14278
    %v14338 = vadd.f32 %v14114, %v14281
    %v14339 = vadd.f32 %v14117, %v14284
    %v14340 = vadd.f32 %v14120, %v14287
    %v14341 = vadd.f32 %v14123, %v14290
    %v14342 = vadd.f32 %v14126, %v14293
    %v14343 = vadd.f32 %v14129, %v14296
    %v14344 = vadd.f32 %v14132, %v14299
    %v14345 = vadd.f32 %v14135, %v14302
    %v14346 = vadd.f32 %v14138, %v14305
    %v14347 = vadd.f32 %v14141, %v14308
    %v14348 = vadd.f32 %v14144, %v14311
    %v14349 = vadd.f32 %v14147, %v14314
    %v14350 = vadd.f32 %v14150, %v14317
    %v14351 = vld [vmem:[%s8] sm:$0x1]
    %v14353 = vperm.slane %v14351, 0
    %v14355 = vadd.f32 %v14319, %v14353
    %v14356 = vadd.f32 %v14320, %v14353
    %v14357 = vadd.f32 %v14321, %v14353
    %v14358 = vadd.f32 %v14322, %v14353
    %v14359 = vadd.f32 %v14323, %v14353
    %v14360 = vadd.f32 %v14324, %v14353
    %v14361 = vadd.f32 %v14325, %v14353
    %v14362 = vadd.f32 %v14326, %v14353
    %v14363 = vadd.f32 %v14327, %v14353
    %v14364 = vadd.f32 %v14328, %v14353
    %v14365 = vadd.f32 %v14329, %v14353
    %v14366 = vadd.f32 %v14330, %v14353
    %v14367 = vadd.f32 %v14331, %v14353
    %v14368 = vadd.f32 %v14332, %v14353
    %v14369 = vadd.f32 %v14333, %v14353
    %v14370 = vadd.f32 %v14334, %v14353
    %v14371 = vadd.f32 %v14335, %v14353
    %v14372 = vadd.f32 %v14336, %v14353
    %v14373 = vadd.f32 %v14337, %v14353
    %v14374 = vadd.f32 %v14338, %v14353
    %v14375 = vadd.f32 %v14339, %v14353
    %v14376 = vadd.f32 %v14340, %v14353
    %v14377 = vadd.f32 %v14341, %v14353
    %v14378 = vadd.f32 %v14342, %v14353
    %v14379 = vadd.f32 %v14343, %v14353
    %v14380 = vadd.f32 %v14344, %v14353
    %v14381 = vadd.f32 %v14345, %v14353
    %v14382 = vadd.f32 %v14346, %v14353
    %v14383 = vadd.f32 %v14347, %v14353
    %v14384 = vadd.f32 %v14348, %v14353
    %v14385 = vadd.f32 %v14349, %v14353
    %v14386 = vadd.f32 %v14350, %v14353
    %v14387 = vmax.f32 %v14355, 0.0
    %v14388 = vmax.f32 %v14356, 0.0
    %v14389 = vmax.f32 %v14357, 0.0
    %v14390 = vmax.f32 %v14358, 0.0
    %v14391 = vmax.f32 %v14359, 0.0
    %v14392 = vmax.f32 %v14360, 0.0
    %v14393 = vmax.f32 %v14361, 0.0
    %v14394 = vmax.f32 %v14362, 0.0
    %v14395 = vmax.f32 %v14363, 0.0
    %v14396 = vmax.f32 %v14364, 0.0
    %v14397 = vmax.f32 %v14365, 0.0
    %v14398 = vmax.f32 %v14366, 0.0
    %v14399 = vmax.f32 %v14367, 0.0
    %v14400 = vmax.f32 %v14368, 0.0
    %v14401 = vmax.f32 %v14369, 0.0
    %v14402 = vmax.f32 %v14370, 0.0
    %v14403 = vmax.f32 %v14371, 0.0
    %v14404 = vmax.f32 %v14372, 0.0
    %v14405 = vmax.f32 %v14373, 0.0
    %v14406 = vmax.f32 %v14374, 0.0
    %v14407 = vmax.f32 %v14375, 0.0
    %v14408 = vmax.f32 %v14376, 0.0
    %v14409 = vmax.f32 %v14377, 0.0
    %v14410 = vmax.f32 %v14378, 0.0
    %v14411 = vmax.f32 %v14379, 0.0
    %v14412 = vmax.f32 %v14380, 0.0
    %v14413 = vmax.f32 %v14381, 0.0
    %v14414 = vmax.f32 %v14382, 0.0
    %v14415 = vmax.f32 %v14383, 0.0
    %v14416 = vmax.f32 %v14384, 0.0
    %v14417 = vmax.f32 %v14385, 0.0
    %v14418 = vmax.f32 %v14386, 0.0
    %v14419 = vld [vmem:[%s9] sm:$0xff]
    %v14420 = vld [vmem:[%s10] sm:$0xff]
    %vm14421 = vcmask 64512
    %v14423 = vsel %vm14421, %v14403, 0
    %v14426 = vsel %vm14421, %v14404, 0
    %v14429 = vsel %vm14421, %v14405, 0
    %v14432 = vsel %vm14421, %v14406, 0
    %v14435 = vsel %vm14421, %v14407, 0
    %v14438 = vsel %vm14421, %v14408, 0
    %v14441 = vsel %vm14421, %v14409, 0
    %v14444 = vsel %vm14421, %v14410, 0
    %v14447 = vsel %vm14421, %v14411, 0
    %v14450 = vsel %vm14421, %v14412, 0
    %v14453 = vsel %vm14421, %v14413, 0
    %v14456 = vsel %vm14421, %v14414, 0
    %v14459 = vsel %vm14421, %v14415, 0
    %v14462 = vsel %vm14421, %v14416, 0
    %v14465 = vsel %vm14421, %v14417, 0
    %v14468 = vsel %vm14421, %v14418, 0
    %14470 = vmatpush.msra.mxu0 0.0
    %14471 = vmatpush.msra.mxu0 0.0
    %14472 = vmatpush.msra.mxu0 0.0
    %14473 = vmatpush.msra.mxu0 0.0
    %14474 = vmatpush.msra.mxu0 0.0
    %14475 = vmatpush.msra.mxu0 0.0
    %14476 = vmatpush.msra.mxu0 0.0
    %14477 = vmatpush.msra.mxu0 0.0
    %14478 = vmatpush.msra.mxu0 0.0
    %14479 = vmatpush.msra.mxu0 0.0
    %14480 = vmatpush.msra.mxu0 0.0
    %14481 = vmatpush.msra.mxu0 0.0
    %14482 = vmatpush.msra.mxu0 0.0
    %14483 = vmatpush.msra.mxu0 0.0
    %14484 = vmatpush.msra.mxu0 0.0
    %14485 = vmatpush.msra.mxu0 %v14420
    %14486 = vmatmul.f32.gmra.mxu0 %v14423
    %v14487 = vpop.f32.mrf.mxu0
    %v14488 = vadd.f32 0.0, %v14487
    %14489 = vmatmul.f32.gmra.mxu0 %v14426
    %v14490 = vpop.f32.mrf.mxu0
    %v14491 = vadd.f32 0.0, %v14490
    %14492 = vmatmul.f32.gmra.mxu0 %v14429
    %v14493 = vpop.f32.mrf.mxu0
    %v14494 = vadd.f32 0.0, %v14493
    %14495 = vmatmul.f32.gmra.mxu0 %v14432
    %v14496 = vpop.f32.mrf.mxu0
    %v14497 = vadd.f32 0.0, %v14496
    %14498 = vmatmul.f32.gmra.mxu0 %v14435
    %v14499 = vpop.f32.mrf.mxu0
    %v14500 = vadd.f32 0.0, %v14499
    %14501 = vmatmul.f32.gmra.mxu0 %v14438
    %v14502 = vpop.f32.mrf.mxu0
    %v14503 = vadd.f32 0.0, %v14502
    %14504 = vmatmul.f32.gmra.mxu0 %v14441
    %v14505 = vpop.f32.mrf.mxu0
    %v14506 = vadd.f32 0.0, %v14505
    %14507 = vmatmul.f32.gmra.mxu0 %v14444
    %v14508 = vpop.f32.mrf.mxu0
    %v14509 = vadd.f32 0.0, %v14508
    %14510 = vmatmul.f32.gmra.mxu0 %v14447
    %v14511 = vpop.f32.mrf.mxu0
    %v14512 = vadd.f32 0.0, %v14511
    %14513 = vmatmul.f32.gmra.mxu0 %v14450
    %v14514 = vpop.f32.mrf.mxu0
    %v14515 = vadd.f32 0.0, %v14514
    %14516 = vmatmul.f32.gmra.mxu0 %v14453
    %v14517 = vpop.f32.mrf.mxu0
    %v14518 = vadd.f32 0.0, %v14517
    %14519 = vmatmul.f32.gmra.mxu0 %v14456
    %v14520 = vpop.f32.mrf.mxu0
    %v14521 = vadd.f32 0.0, %v14520
    %14522 = vmatmul.f32.gmra.mxu0 %v14459
    %v14523 = vpop.f32.mrf.mxu0
    %v14524 = vadd.f32 0.0, %v14523
    %14525 = vmatmul.f32.gmra.mxu0 %v14462
    %v14526 = vpop.f32.mrf.mxu0
    %v14527 = vadd.f32 0.0, %v14526
    %14528 = vmatmul.f32.gmra.mxu0 %v14465
    %v14529 = vpop.f32.mrf.mxu0
    %v14530 = vadd.f32 0.0, %v14529
    %14531 = vmatmul.f32.gmra.mxu0 %v14468
    %v14532 = vpop.f32.mrf.mxu0
    %v14533 = vadd.f32 0.0, %v14532
    %14534 = vdwg.mxu0
    %v14536 = vsel %vm14421, %v14387, 0
    %v14539 = vsel %vm14421, %v14388, 0
    %v14542 = vsel %vm14421, %v14389, 0
    %v14545 = vsel %vm14421, %v14390, 0
    %v14548 = vsel %vm14421, %v14391, 0
    %v14551 = vsel %vm14421, %v14392, 0
    %v14554 = vsel %vm14421, %v14393, 0
    %v14557 = vsel %vm14421, %v14394, 0
    %v14560 = vsel %vm14421, %v14395, 0
    %v14563 = vsel %vm14421, %v14396, 0
    %v14566 = vsel %vm14421, %v14397, 0
    %v14569 = vsel %vm14421, %v14398, 0
    %v14572 = vsel %vm14421, %v14399, 0
    %v14575 = vsel %vm14421, %v14400, 0
    %v14578 = vsel %vm14421, %v14401, 0
    %v14581 = vsel %vm14421, %v14402, 0
    %14583 = vmatpush.msra.mxu0 0.0
    %14584 = vmatpush.msra.mxu0 0.0
    %14585 = vmatpush.msra.mxu0 0.0
    %14586 = vmatpush.msra.mxu0 0.0
    %14587 = vmatpush.msra.mxu0 0.0
    %14588 = vmatpush.msra.mxu0 0.0
    %14589 = vmatpush.msra.mxu0 0.0
    %14590 = vmatpush.msra.mxu0 0.0
    %14591 = vmatpush.msra.mxu0 0.0
    %14592 = vmatpush.msra.mxu0 0.0
    %14593 = vmatpush.msra.mxu0 0.0
    %14594 = vmatpush.msra.mxu0 0.0
    %14595 = vmatpush.msra.mxu0 0.0
    %14596 = vmatpush.msra.mxu0 0.0
    %14597 = vmatpush.msra.mxu0 0.0
    %14598 = vmatpush.msra.mxu0 %v14419
    %14599 = vmatmul.f32.gmra.mxu0 %v14536
    %v14600 = vpop.f32.mrf.mxu0
    %v14601 = vadd.f32 %v14488, %v14600
    %14602 = vmatmul.f32.gmra.mxu0 %v14539
    %v14603 = vpop.f32.mrf.mxu0
    %v14604 = vadd.f32 %v14491, %v14603
    %14605 = vmatmul.f32.gmra.mxu0 %v14542
    %v14606 = vpop.f32.mrf.mxu0
    %v14607 = vadd.f32 %v14494, %v14606
    %14608 = vmatmul.f32.gmra.mxu0 %v14545
    %v14609 = vpop.f32.mrf.mxu0
    %v14610 = vadd.f32 %v14497, %v14609
    %14611 = vmatmul.f32.gmra.mxu0 %v14548
    %v14612 = vpop.f32.mrf.mxu0
    %v14613 = vadd.f32 %v14500, %v14612
    %14614 = vmatmul.f32.gmra.mxu0 %v14551
    %v14615 = vpop.f32.mrf.mxu0
    %v14616 = vadd.f32 %v14503, %v14615
    %14617 = vmatmul.f32.gmra.mxu0 %v14554
    %v14618 = vpop.f32.mrf.mxu0
    %v14619 = vadd.f32 %v14506, %v14618
    %14620 = vmatmul.f32.gmra.mxu0 %v14557
    %v14621 = vpop.f32.mrf.mxu0
    %v14622 = vadd.f32 %v14509, %v14621
    %14623 = vmatmul.f32.gmra.mxu0 %v14560
    %v14624 = vpop.f32.mrf.mxu0
    %v14625 = vadd.f32 %v14512, %v14624
    %14626 = vmatmul.f32.gmra.mxu0 %v14563
    %v14627 = vpop.f32.mrf.mxu0
    %v14628 = vadd.f32 %v14515, %v14627
    %14629 = vmatmul.f32.gmra.mxu0 %v14566
    %v14630 = vpop.f32.mrf.mxu0
    %v14631 = vadd.f32 %v14518, %v14630
    %14632 = vmatmul.f32.gmra.mxu0 %v14569
    %v14633 = vpop.f32.mrf.mxu0
    %v14634 = vadd.f32 %v14521, %v14633
    %14635 = vmatmul.f32.gmra.mxu0 %v14572
    %v14636 = vpop.f32.mrf.mxu0
    %v14637 = vadd.f32 %v14524, %v14636
    %14638 = vmatmul.f32.gmra.mxu0 %v14575
    %v14639 = vpop.f32.mrf.mxu0
    %v14640 = vadd.f32 %v14527, %v14639
    %14641 = vmatmul.f32.gmra.mxu0 %v14578
    %v14642 = vpop.f32.mrf.mxu0
    %v14643 = vadd.f32 %v14530, %v14642
    %14644 = vmatmul.f32.gmra.mxu0 %v14581
    %v14645 = vpop.f32.mrf.mxu0
    %v14646 = vadd.f32 %v14533, %v14645
    %14647 = vdwg.mxu0
    %v14648 = vld [vmem:[%s11] sm:$0x1]
    %v14650 = vperm.slane %v14648, 0
    %v14652 = vadd.f32 %v14601, %v14650
    %v14653 = vadd.f32 %v14604, %v14650
    %v14654 = vadd.f32 %v14607, %v14650
    %v14655 = vadd.f32 %v14610, %v14650
    %v14656 = vadd.f32 %v14613, %v14650
    %v14657 = vadd.f32 %v14616, %v14650
    %v14658 = vadd.f32 %v14619, %v14650
    %v14659 = vadd.f32 %v14622, %v14650
    %v14660 = vadd.f32 %v14625, %v14650
    %v14661 = vadd.f32 %v14628, %v14650
    %v14662 = vadd.f32 %v14631, %v14650
    %v14663 = vadd.f32 %v14634, %v14650
    %v14664 = vadd.f32 %v14637, %v14650
    %v14665 = vadd.f32 %v14640, %v14650
    %v14666 = vadd.f32 %v14643, %v14650
    %v14667 = vadd.f32 %v14646, %v14650
    %v14668 = vmax.f32 %v14652, 0.0
    %v14669 = vmax.f32 %v14653, 0.0
    %v14670 = vmax.f32 %v14654, 0.0
    %v14671 = vmax.f32 %v14655, 0.0
    %v14672 = vmax.f32 %v14656, 0.0
    %v14673 = vmax.f32 %v14657, 0.0
    %v14674 = vmax.f32 %v14658, 0.0
    %v14675 = vmax.f32 %v14659, 0.0
    %v14676 = vmax.f32 %v14660, 0.0
    %v14677 = vmax.f32 %v14661, 0.0
    %v14678 = vmax.f32 %v14662, 0.0
    %v14679 = vmax.f32 %v14663, 0.0
    %v14680 = vmax.f32 %v14664, 0.0
    %v14681 = vmax.f32 %v14665, 0.0
    %v14682 = vmax.f32 %v14666, 0.0
    %v14683 = vmax.f32 %v14667, 0.0
    %v14684 = vld [vmem:[%s12] sm:$0xff]
    %v14685 = vld [vmem:[%s13] sm:$0x1]
    %v14687 = vperm.slane %v14685, 0
    %v14690 = vsel %vm14421, %v14668, 0
    %v14693 = vsel %vm14421, %v14669, 0
    %v14696 = vsel %vm14421, %v14670, 0
    %v14699 = vsel %vm14421, %v14671, 0
    %v14702 = vsel %vm14421, %v14672, 0
    %v14705 = vsel %vm14421, %v14673, 0
    %v14708 = vsel %vm14421, %v14674, 0
    %v14711 = vsel %vm14421, %v14675, 0
    %v14714 = vsel %vm14421, %v14676, 0
    %v14717 = vsel %vm14421, %v14677, 0
    %v14720 = vsel %vm14421, %v14678, 0
    %v14723 = vsel %vm14421, %v14679, 0
    %v14726 = vsel %vm14421, %v14680, 0
    %v14729 = vsel %vm14421, %v14681, 0
    %v14732 = vsel %vm14421, %v14682, 0
    %v14735 = vsel %vm14421, %v14683, 0
    %14737 = vmatpush.msra.mxu0 0.0
    %14738 = vmatpush.msra.mxu0 0.0
    %14739 = vmatpush.msra.mxu0 0.0
    %14740 = vmatpush.msra.mxu0 0.0
    %14741 = vmatpush.msra.mxu0 0.0
    %14742 = vmatpush.msra.mxu0 0.0
    %14743 = vmatpush.msra.mxu0 0.0
    %14744 = vmatpush.msra.mxu0 0.0
    %14745 = vmatpush.msra.mxu0 0.0
    %14746 = vmatpush.msra.mxu0 0.0
    %14747 = vmatpush.msra.mxu0 0.0
    %14748 = vmatpush.msra.mxu0 0.0
    %14749 = vmatpush.msra.mxu0 0.0
    %14750 = vmatpush.msra.mxu0 0.0
    %14751 = vmatpush.msra.mxu0 0.0
    %14752 = vmatpush.msra.mxu0 %v14684
    %14753 = vmatmul.f32.gmra.mxu0 %v14690
    %v14754 = vpop.f32.mrf.mxu0
    %v14755 = vadd.f32 %v14687, %v14754
    %14756 = vmatmul.f32.gmra.mxu0 %v14693
    %v14757 = vpop.f32.mrf.mxu0
    %v14758 = vadd.f32 %v14687, %v14757
    %14759 = vmatmul.f32.gmra.mxu0 %v14696
    %v14760 = vpop.f32.mrf.mxu0
    %v14761 = vadd.f32 %v14687, %v14760
    %14762 = vmatmul.f32.gmra.mxu0 %v14699
    %v14763 = vpop.f32.mrf.mxu0
    %v14764 = vadd.f32 %v14687, %v14763
    %14765 = vmatmul.f32.gmra.mxu0 %v14702
    %v14766 = vpop.f32.mrf.mxu0
    %v14767 = vadd.f32 %v14687, %v14766
    %14768 = vmatmul.f32.gmra.mxu0 %v14705
    %v14769 = vpop.f32.mrf.mxu0
    %v14770 = vadd.f32 %v14687, %v14769
    %14771 = vmatmul.f32.gmra.mxu0 %v14708
    %v14772 = vpop.f32.mrf.mxu0
    %v14773 = vadd.f32 %v14687, %v14772
    %14774 = vmatmul.f32.gmra.mxu0 %v14711
    %v14775 = vpop.f32.mrf.mxu0
    %v14776 = vadd.f32 %v14687, %v14775
    %14777 = vmatmul.f32.gmra.mxu0 %v14714
    %v14778 = vpop.f32.mrf.mxu0
    %v14779 = vadd.f32 %v14687, %v14778
    %14780 = vmatmul.f32.gmra.mxu0 %v14717
    %v14781 = vpop.f32.mrf.mxu0
    %v14782 = vadd.f32 %v14687, %v14781
    %14783 = vmatmul.f32.gmra.mxu0 %v14720
    %v14784 = vpop.f32.mrf.mxu0
    %v14785 = vadd.f32 %v14687, %v14784
    %14786 = vmatmul.f32.gmra.mxu0 %v14723
    %v14787 = vpop.f32.mrf.mxu0
    %v14788 = vadd.f32 %v14687, %v14787
    %14789 = vmatmul.f32.gmra.mxu0 %v14726
    %v14790 = vpop.f32.mrf.mxu0
    %v14791 = vadd.f32 %v14687, %v14790
    %14792 = vmatmul.f32.gmra.mxu0 %v14729
    %v14793 = vpop.f32.mrf.mxu0
    %v14794 = vadd.f32 %v14687, %v14793
    %14795 = vmatmul.f32.gmra.mxu0 %v14732
    %v14796 = vpop.f32.mrf.mxu0
    %v14797 = vadd.f32 %v14687, %v14796
    %14798 = vmatmul.f32.gmra.mxu0 %v14735
    %v14799 = vpop.f32.mrf.mxu0
    %v14800 = vadd.f32 %v14687, %v14799
    %14801 = vdwg.mxu0
    %14802 = vmax.xlane.f32.xlu0 %v14755
    %v14803 = vpop.xlane.xlu0 %14802
    %14804 = vmax.xlane.f32.xlu0 %v14758
    %v14805 = vpop.xlane.xlu0 %14804
    %14806 = vmax.xlane.f32.xlu0 %v14761
    %v14807 = vpop.xlane.xlu0 %14806
    %14808 = vmax.xlane.f32.xlu0 %v14764
    %v14809 = vpop.xlane.xlu0 %14808
    %14810 = vmax.xlane.f32.xlu0 %v14767
    %v14811 = vpop.xlane.xlu0 %14810
    %14812 = vmax.xlane.f32.xlu0 %v14770
    %v14813 = vpop.xlane.xlu0 %14812
    %14814 = vmax.xlane.f32.xlu0 %v14773
    %v14815 = vpop.xlane.xlu0 %14814
    %14816 = vmax.xlane.f32.xlu0 %v14776
    %v14817 = vpop.xlane.xlu0 %14816
    %14818 = vmax.xlane.f32.xlu0 %v14779
    %v14819 = vpop.xlane.xlu0 %14818
    %14820 = vmax.xlane.f32.xlu0 %v14782
    %v14821 = vpop.xlane.xlu0 %14820
    %14822 = vmax.xlane.f32.xlu0 %v14785
    %v14823 = vpop.xlane.xlu0 %14822
    %14824 = vmax.xlane.f32.xlu0 %v14788
    %v14825 = vpop.xlane.xlu0 %14824
    %14826 = vmax.xlane.f32.xlu0 %v14791
    %v14827 = vpop.xlane.xlu0 %14826
    %14828 = vmax.xlane.f32.xlu0 %v14794
    %v14829 = vpop.xlane.xlu0 %14828
    %14830 = vmax.xlane.f32.xlu0 %v14797
    %v14831 = vpop.xlane.xlu0 %14830
    %14832 = vmax.xlane.f32.xlu0 %v14800
    %v14833 = vpop.xlane.xlu0 %14832
    %v14834 = vsub.f32 %v14755, %v14803
    %v14835 = vsub.f32 %v14758, %v14805
    %v14836 = vsub.f32 %v14761, %v14807
    %v14837 = vsub.f32 %v14764, %v14809
    %v14838 = vsub.f32 %v14767, %v14811
    %v14839 = vsub.f32 %v14770, %v14813
    %v14840 = vsub.f32 %v14773, %v14815
    %v14841 = vsub.f32 %v14776, %v14817
    %v14842 = vsub.f32 %v14779, %v14819
    %v14843 = vsub.f32 %v14782, %v14821
    %v14844 = vsub.f32 %v14785, %v14823
    %v14845 = vsub.f32 %v14788, %v14825
    %v14846 = vsub.f32 %v14791, %v14827
    %v14847 = vsub.f32 %v14794, %v14829
    %v14848 = vsub.f32 %v14797, %v14831
    %v14849 = vsub.f32 %v14800, %v14833
    %v14850 = vmul.f32 %v14834, 1.442695
    %v14851 = vpow.pop %v14850
    %v14852 = vmul.f32 %v14835, 1.442695
    %v14853 = vpow.pop %v14852
    %v14854 = vmul.f32 %v14836, 1.442695
    %v14855 = vpow.pop %v14854
    %v14856 = vmul.f32 %v14837, 1.442695
    %v14857 = vpow.pop %v14856
    %v14858 = vmul.f32 %v14838, 1.442695
    %v14859 = vpow.pop %v14858
    %v14860 = vmul.f32 %v14839, 1.442695
    %v14861 = vpow.pop %v14860
    %v14862 = vmul.f32 %v14840, 1.442695
    %v14863 = vpow.pop %v14862
    %v14864 = vmul.f32 %v14841, 1.442695
    %v14865 = vpow.pop %v14864
    %v14866 = vmul.f32 %v14842, 1.442695
    %v14867 = vpow.pop %v14866
    %v14868 = vmul.f32 %v14843, 1.442695
    %v14869 = vpow.pop %v14868
    %v14870 = vmul.f32 %v14844, 1.442695
    %v14871 = vpow.pop %v14870
    %v14872 = vmul.f32 %v14845, 1.442695
    %v14873 = vpow.pop %v14872
    %v14874 = vmul.f32 %v14846, 1.442695
    %v14875 = vpow.pop %v14874
    %v14876 = vmul.f32 %v14847, 1.442695
    %v14877 = vpow.pop %v14876
    %v14878 = vmul.f32 %v14848, 1.442695
    %v14879 = vpow.pop %v14878
    %v14880 = vmul.f32 %v14849, 1.442695
    %v14881 = vpow.pop %v14880
    %14882 = vadd.xlane.f32.xlu0 %v14851
    %v14883 = vpop.xlane.xlu0 %14882
    %14884 = vadd.xlane.f32.xlu0 %v14853
    %v14885 = vpop.xlane.xlu0 %14884
    %14886 = vadd.xlane.f32.xlu0 %v14855
    %v14887 = vpop.xlane.xlu0 %14886
    %14888 = vadd.xlane.f32.xlu0 %v14857
    %v14889 = vpop.xlane.xlu0 %14888
    %14890 = vadd.xlane.f32.xlu0 %v14859
    %v14891 = vpop.xlane.xlu0 %14890
    %14892 = vadd.xlane.f32.xlu0 %v14861
    %v14893 = vpop.xlane.xlu0 %14892
    %14894 = vadd.xlane.f32.xlu0 %v14863
    %v14895 = vpop.xlane.xlu0 %14894
    %14896 = vadd.xlane.f32.xlu0 %v14865
    %v14897 = vpop.xlane.xlu0 %14896
    %14898 = vadd.xlane.f32.xlu0 %v14867
    %v14899 = vpop.xlane.xlu0 %14898
    %14900 = vadd.xlane.f32.xlu0 %v14869
    %v14901 = vpop.xlane.xlu0 %14900
    %14902 = vadd.xlane.f32.xlu0 %v14871
    %v14903 = vpop.xlane.xlu0 %14902
    %14904 = vadd.xlane.f32.xlu0 %v14873
    %v14905 = vpop.xlane.xlu0 %14904
    %14906 = vadd.xlane.f32.xlu0 %v14875
    %v14907 = vpop.xlane.xlu0 %14906
    %14908 = vadd.xlane.f32.xlu0 %v14877
    %v14909 = vpop.xlane.xlu0 %14908
    %14910 = vadd.xlane.f32.xlu0 %v14879
    %v14911 = vpop.xlane.xlu0 %14910
    %14912 = vadd.xlane.f32.xlu0 %v14881
    %v14913 = vpop.xlane.xlu0 %14912
    %v14914 = vrcp.pop %v14883
    %v14915 = vrcp.pop %v14885
    %v14916 = vrcp.pop %v14887
    %v14917 = vrcp.pop %v14889
    %v14918 = vrcp.pop %v14891
    %v14919 = vrcp.pop %v14893
    %v14920 = vrcp.pop %v14895
    %v14921 = vrcp.pop %v14897
    %v14922 = vrcp.pop %v14899
    %v14923 = vrcp.pop %v14901
    %v14924 = vrcp.pop %v14903
    %v14925 = vrcp.pop %v14905
    %v14926 = vrcp.pop %v14907
    %v14927 = vrcp.pop %v14909
    %v14928 = vrcp.pop %v14911
    %v14929 = vrcp.pop %v14913
    %v14930 = vmul.f32 %v14851, %v14914
    %v14931 = vmul.f32 %v14853, %v14915
    %v14932 = vmul.f32 %v14855, %v14916
    %v14933 = vmul.f32 %v14857, %v14917
    %v14934 = vmul.f32 %v14859, %v14918
    %v14935 = vmul.f32 %v14861, %v14919
    %v14936 = vmul.f32 %v14863, %v14920
    %v14937 = vmul.f32 %v14865, %v14921
    %v14938 = vmul.f32 %v14867, %v14922
    %v14939 = vmul.f32 %v14869, %v14923
    %v14940 = vmul.f32 %v14871, %v14924
    %v14941 = vmul.f32 %v14873, %v14925
    %v14942 = vmul.f32 %v14875, %v14926
    %v14943 = vmul.f32 %v14877, %v14927
    %v14944 = vmul.f32 %v14879, %v14928
    %v14945 = vmul.f32 %v14881, %v14929
    %14946 = vst [vmem:[#allocation2] sm:$0xff] %v14930
    %14947 = vst [vmem:[#allocation2 + $0x8] sm:$0xff] %v14931
    %14948 = vst [vmem:[#allocation2 + $0x10] sm:$0xff] %v14932
    %14949 = vst [vmem:[#allocation2 + $0x18] sm:$0xff] %v14933
    %14950 = vst [vmem:[#allocation2 + $0x20] sm:$0xff] %v14934
    %14951 = vst [vmem:[#allocation2 + $0x28] sm:$0xff] %v14935
    %14952 = vst [vmem:[#allocation2 + $0x30] sm:$0xff] %v14936
    %14953 = vst [vmem:[#allocation2 + $0x38] sm:$0xff] %v14937
    %14954 = vst [vmem:[#allocation2 + $0x40] sm:$0xff] %v14938
    %14955 = vst [vmem:[#allocation2 + $0x48] sm:$0xff] %v14939
    %14956 = vst [vmem:[#allocation2 + $0x50] sm:$0xff] %v14940
    %14957 = vst [vmem:[#allocation2 + $0x58] sm:$0xff] %v14941
    %14958 = vst [vmem:[#allocation2 + $0x60] sm:$0xff] %v14942
    %14959 = vst [vmem:[#allocation2 + $0x68] sm:$0xff] %v14943
    %14960 = vst [vmem:[#allocation2 + $0x70] sm:$0xff] %v14944
    %14961 = vst [vmem:[#allocation2 + $0x78] sm:$0xff] %v14945
    // Predicated region
    $region58: #{tpu_custom_call.1} parent=1 // pred_check
      _
    $region59: #{tpu_custom_call.1} parent=1 // pred_check_branch
      %14963 = sbr.rel (0) target = $region61
    $region60: #{tpu_custom_call.1} parent=1 // pred_region
      %14965 = vsyncadd [#allocation3], 0
      %s14966 = sshll.u32 [#allocation2], 4
      %s14967 = int_to_ptr.vmem [resolvable:$true] %s14966
      %s14968 = sshll.u32 %s14, 4
      %s14969 = int_to_ptr.hbm [resolvable:$true] %s14968
      %14974 = dma.vmem_to_hbm [thread:$0]  %s14967, 2048, %s14969, [#allocation3], 128, 128, 8
    $region61: #{tpu_custom_call.1} parent=1 // pred_fallthru
      _
    // Predicated region
    $region62: #{tpu_custom_call.1} parent=1 // pred_check
      _
    $region63: #{tpu_custom_call.1} parent=1 // pred_check_branch
      %14976 = sbr.rel (0) target = $region65
    $region64: #{tpu_custom_call.1} parent=1 // pred_region
      %14978 = dma.done [#allocation3], 2048
    $region65: #{tpu_custom_call.1} parent=1 // pred_fallthru
      _
    %14979 = vsyncpa [#allocation3], 1

</llo_original>
